<compile_context>
chip_gen: v5e
topology: v5e:2x2
jax: 0.10.0
libtpu: 0.0.40
codegen_flags: <defaults>
</compile_context>

<pallas_src>
import jax
import jax.numpy as jnp
import numpy as np
from jax import lax
from jax.experimental import pallas as pl
from jax.experimental.pallas import tpu as pltpu

NUM_CLASSES = 10
CHANNELS = 3
RESIZE = 256                               # T.Resize([256])
CROP = 224                                 # T.CenterCrop(224)
K_TOTAL = CHANNELS * CROP * CROP           # 150528 flattened pixels
K_HALVES = 2                               # parallel K split (2 TCs on v7x)
K_STEPS = 2                                # reduction steps per half
TK = K_TOTAL // (K_HALVES * K_STEPS)       # 37632, multiple of 128


def _predictor_kernel(x_ref, wt_ref, out_ref):
    """Fused uint8->bf16 cast + (normalize folded into W) partial GEMV.

    out_ref holds the f32 partial logits for this K-half; its block index is
    constant across the reduction axis, so it stays VMEM-resident and we
    accumulate into it directly (no scratch).  Bias + softmax live in the
    wrapper.
    """
    k = pl.program_id(1)

    @pl.when(k == 0)
    def _():
        out_ref[...] = jnp.zeros_like(out_ref)

    # /255 + Normalize are folded into wt on the host; the uint8 pixels are
    # exactly representable in bf16, so both MXU operands are native bf16.
    xf = x_ref[...].astype(jnp.bfloat16)                               # (B, TK)

    # (B, TK) x (NCLS, TK) contracting on the lane-dense K axis -> (B, NCLS)
    out_ref[...] += lax.dot_general(
        xf, wt_ref[...],
        dimension_numbers=(((1,), (1,)), ((), ())),
        preferred_element_type=jnp.float32)


def fold_normalize_into_weights(w, b, mean, std):
    """Fold ConvertImageDtype(/255) + Normalize into the classifier params.

    logits = ((x/255 - mean)/std) @ W + b
           =  x @ (scale * W)  +  (bias @ W + b),
    with scale_k = 1/(255*std_c(k)), bias_k = -mean_c(k)/std_c(k) aligned with
    the channel-major (NCHW) flattening.  Fold math is f32; the returned
    weight is transposed (NUM_CLASSES, K) and cast to bf16 for streaming.
    """
    scale_flat = jnp.repeat(1.0 / (255.0 * std), CROP * CROP)          # (K,)
    bias_flat = jnp.repeat(-mean / std, CROP * CROP)                   # (K,)
    wt = (w.T * scale_flat[None, :]).astype(jnp.bfloat16)              # (NCLS, K)
    b_fold = b + jnp.dot(bias_flat, w,
                         precision=lax.Precision.HIGHEST)[None, :]     # (1, NCLS) f32
    return wt, b_fold


def predictor_forward(x_u8, wt, b_fold):
    """Equivalent of Predictor.forward on a uint8 NCHW image batch."""
    B, C, H, W = x_u8.shape

    # --- transforms glue (plain JAX) --------------------------------------
    # T.Resize([256]): shortest side to 256 (bilinear).  Identity for 256x256.
    scale = RESIZE / min(H, W)
    new_h, new_w = int(round(H * scale)), int(round(W * scale))
    if (new_h, new_w) != (H, W):
        # TODO(synk): torchvision T.Resize defaults to antialias=True; plain
        # bilinear resize + uint8 requantization diverges for non-256 inputs.
        xr = jax.image.resize(x_u8.astype(jnp.float32), (B, C, new_h, new_w),
                              method="bilinear")
        x_u8 = jnp.clip(jnp.round(xr), 0, 255).astype(jnp.uint8)
    # T.CenterCrop(224) — stays uint8; no pre-kernel f32 image copy in HBM.
    top = (new_h - CROP) // 2
    left = (new_w - CROP) // 2
    x_u8 = x_u8[:, :, top:top + CROP, left:left + CROP]
    x_flat = x_u8.reshape(B, K_TOTAL)                                  # uint8

    # --- fused Pallas kernel ------------------------------------------------
    partials = pl.pallas_call(
        _predictor_kernel,
        out_shape=jax.ShapeDtypeStruct((K_HALVES, B, NUM_CLASSES), jnp.float32),
        grid_spec=pltpu.PrefetchScalarGridSpec(
            num_scalar_prefetch=0,
            grid=(K_HALVES, K_STEPS),
            in_specs=[
                # uint8 pixels, lane-dense K block
                pl.BlockSpec((B, TK), lambda h, k: (0, h * K_STEPS + k)),
                # bf16 W^T, lane-dense K block
                pl.BlockSpec((NUM_CLASSES, TK), lambda h, k: (0, h * K_STEPS + k)),
            ],
            # per-half partial logits; leading dim squeezed in the kernel
            out_specs=pl.BlockSpec((None, B, NUM_CLASSES), lambda h, k: (h, 0, 0)),
        ),
        compiler_params=pltpu.CompilerParams(
            dimension_semantics=("parallel", "arbitrary")),
    )(x_flat, wt)

    # --- epilogue in the wrapper (negligible (B,10) work) -------------------
    logits = partials.sum(axis=0) + b_fold                             # (B, NCLS)
    return jax.nn.softmax(logits, axis=-1)


if __name__ == "__main__":
    key = jax.random.PRNGKey(0)
    k_img, k_w, k_b = jax.random.split(key, 3)

    B = 2
    # deterministic "uint8 image" input, 256x256 so Resize([256]) is identity
    x_u8 = jax.random.randint(
        k_img, (B, CHANNELS, RESIZE, RESIZE), 0, 256, dtype=jnp.int32
    ).astype(jnp.uint8)

    # synthetic model parameters (Linear(C*224*224 -> NUM_CLASSES))
    w = jax.random.normal(k_w, (K_TOTAL, NUM_CLASSES), jnp.float32) * 0.01
    b = (jax.random.normal(k_b, (NUM_CLASSES,), jnp.float32) * 0.01).reshape(
        1, NUM_CLASSES
    )

    # ImageNet normalization constants (deterministic)
    mean = jnp.array([0.485, 0.456, 0.406], jnp.float32)
    std = jnp.array([0.229, 0.224, 0.225], jnp.float32)

    # one-time (offline) weight prep: transpose + fold normalize + bf16 cast
    wt, b_fold = fold_normalize_into_weights(w, b, mean, std)

    probs = predictor_forward(x_u8, wt, b_fold)
    probs = jax.block_until_ready(probs)

    # pure-JAX reference for correctness (unfused transforms + linear + softmax)
    xf = x_u8.astype(jnp.float32) / 255.0
    xn = (xf - mean.reshape(1, 3, 1, 1)) / std.reshape(1, 3, 1, 1)
    off = (RESIZE - CROP) // 2
    xn = xn[:, :, off:off + CROP, off:off + CROP]
    logits_ref = xn.reshape(B, -1) @ w + b
    probs_ref = jax.nn.softmax(logits_ref, axis=-1)

    # bf16 weight stream -> tolerance appropriate for bf16-precision matmul
    np.testing.assert_allclose(
        np.asarray(probs), np.asarray(probs_ref), rtol=5e-2, atol=5e-3
    )
    assert np.allclose(np.asarray(probs).sum(-1), 1.0, atol=1e-5)
    print("KERNEL_OK")
</pallas_src>

<mosaic_0001>
module attributes {stable_mosaic.version = 11 : i64} {
  func.func @_predictor_kernel(%arg0: i32, %arg1: i32, %arg2: memref<2x37632xi8, #tpu.memory_space<vmem>>, %arg3: memref<10x37632xbf16, #tpu.memory_space<vmem>>, %arg4: memref<1x2x10xf32, #tpu.memory_space<vmem>>) attributes {dimension_semantics = [#tpu.dimension_semantics<parallel>, #tpu.dimension_semantics<arbitrary>], iteration_bounds = array<i64: 2, 2>, scalar_prefetch = 0 : i64, scratch_operands = 0 : i64, tpu.core_type = #tpu.core_type<tc>, window_params = [{transform_indices = @transform_0, window_bounds = array<i64: 2, 37632>}, {transform_indices = @transform_1, window_bounds = array<i64: 10, 37632>}, {transform_indices = @transform_2, window_bounds = array<i64: 1, 2, 10>}]} {
    %c0_i32 = arith.constant 0 : i32
    %0 = arith.cmpi eq, %arg1, %c0_i32 : i32
    %1 = arith.extui %0 : i1 to i32
    %c0_i32_0 = arith.constant 0 : i32
    %2 = arith.cmpi ne, %1, %c0_i32_0 : i32
    scf.if %2 {
      %cst_10 = arith.constant 0.000000e+00 : f32
      %13 = vector.broadcast %cst_10 : f32 to vector<2x10xf32>
      %c0_11 = arith.constant 0 : index
      %c0_12 = arith.constant 0 : index
      %c0_13 = arith.constant 0 : index
      %14 = vector.load %arg4[%c0_11, %c0_12, %c0_13] : memref<1x2x10xf32, #tpu.memory_space<vmem>>, vector<1x2x10xf32>
      %15 = vector.shape_cast %14 : vector<1x2x10xf32> to vector<2x10xf32>
      %16 = vector.shape_cast %13 : vector<2x10xf32> to vector<1x2x10xf32>
      tpu.vector_store %arg4[%c0_11, %c0_12, %c0_13], %16 {strides = array<i32>} : memref<1x2x10xf32, #tpu.memory_space<vmem>>, vector<1x2x10xf32>,
    } else {
    }
    %c0 = arith.constant 0 : index
    %c0_1 = arith.constant 0 : index
    %3 = vector.load %arg2[%c0, %c0_1] : memref<2x37632xi8, #tpu.memory_space<vmem>>, vector<2x37632xi8>
    %4 = arith.uitofp %3 : vector<2x37632xi8> to vector<2x37632xbf16>
    %c0_2 = arith.constant 0 : index
    %c0_3 = arith.constant 0 : index
    %c0_4 = arith.constant 0 : index
    %5 = vector.load %arg4[%c0_2, %c0_3, %c0_4] : memref<1x2x10xf32, #tpu.memory_space<vmem>>, vector<1x2x10xf32>
    %6 = vector.shape_cast %5 : vector<1x2x10xf32> to vector<2x10xf32>
    %c0_5 = arith.constant 0 : index
    %c0_6 = arith.constant 0 : index
    %7 = vector.load %arg3[%c0_5, %c0_6] : memref<10x37632xbf16, #tpu.memory_space<vmem>>, vector<10x37632xbf16>
    %cst = arith.constant dense<0.000000e+00> : vector<2x10xf32>
    %8 = tpu.matmul %4, %7, %cst {dimension_numbers = #tpu.dot_dimension_numbers<[1], [1], [0], [0], [0, 0, 1, 0], [], []>} : vector<2x37632xbf16>, vector<10x37632xbf16>, vector<2x10xf32> -> vector<2x10xf32>
    %9 = arith.addf %6, %8 : vector<2x10xf32>
    %c0_7 = arith.constant 0 : index
    %c0_8 = arith.constant 0 : index
    %c0_9 = arith.constant 0 : index
    %10 = vector.load %arg4[%c0_7, %c0_8, %c0_9] : memref<1x2x10xf32, #tpu.memory_space<vmem>>, vector<1x2x10xf32>
    %11 = vector.shape_cast %10 : vector<1x2x10xf32> to vector<2x10xf32>
    %12 = vector.shape_cast %9 : vector<2x10xf32> to vector<1x2x10xf32>
    tpu.vector_store %arg4[%c0_7, %c0_8, %c0_9], %12 {strides = array<i32>} : memref<1x2x10xf32, #tpu.memory_space<vmem>>, vector<1x2x10xf32>,
    return
  }
  func.func @transform_0(%arg0: i32, %arg1: i32) -> (i32, i32) {
    %c2_i32 = arith.constant 2 : i32
    %0 = arith.muli %arg0, %c2_i32 : i32
    %1 = arith.addi %0, %arg1 : i32
    %c0_i32 = arith.constant 0 : i32
    %c0_i32_0 = arith.constant 0 : i32
    return %c0_i32, %1 : i32, i32
  }
  func.func @transform_1(%arg0: i32, %arg1: i32) -> (i32, i32) {
    %c2_i32 = arith.constant 2 : i32
    %0 = arith.muli %arg0, %c2_i32 : i32
    %1 = arith.addi %0, %arg1 : i32
    %c0_i32 = arith.constant 0 : i32
    %c0_i32_0 = arith.constant 0 : i32
    return %c0_i32, %1 : i32, i32
  }
  func.func @transform_2(%arg0: i32, %arg1: i32) -> (i32, i32, i32) {
    %c0_i32 = arith.constant 0 : i32
    %c0_i32_0 = arith.constant 0 : i32
    %c0_i32_1 = arith.constant 0 : i32
    return %arg0, %c0_i32, %c0_i32_0 : i32, i32, i32
  }
}

</mosaic_0001>

<llo_original>
// kernel: tpu_custom_call.1
$region0: #{tpu_custom_call.1}
  #allocation0 [shape = 'u32[]', space=smem, size = 0x4, offset = 0x4, fixed_abs, tag = 'smem constant byte address 0x4 - core index']
  #allocation1 [shape = 'u32[72,128]{1,0:T(1,128)}', space=vmem, size = 0x9000, scoped, tag = 'internal scratch']
  %s0 = inlined_call_operand.hbm [shape: u8[2,150528], index: 0, kind: input, shape index: {}]
  %s1 = inlined_call_operand.hbm [shape: bf16[10,150528], index: 1, kind: input, shape index: {}]
  %s2 = inlined_call_operand.hbm [shape: f32[2,2,10], index: 2, kind: output, shape index: {}]
  %s3 = sld [smem:[#allocation0]]
  $region53: #{tpu_custom_call.1} parent=0
    _
  %s5 = ssub.s32 1, %s3
  %s6 = scalar_select 0, %s5, %s3
  $region1: #{tpu_custom_call.1} parent=0
    #allocation2 [shape = 'u8[301056]{0}', space=vmem, size = 0x49800, scoped, tag = 'input window, operand 0']
    #allocation3 [shape = 's32[2]{0}', space=sflag, size = 0x8, scoped, tag = 'scoped memory for tpu_custom_call.1']
    #allocation4 [shape = 's32[2]{0}', space=sflag, size = 0x8, scoped, tag = 'scoped memory for tpu_custom_call.1']
    #allocation5 [shape = 'u8[2408448]{0}', space=vmem, size = 0x24c000, scoped, tag = 'input window, operand 1']
    #allocation6 [shape = 's32[2]{0}', space=sflag, size = 0x8, scoped, tag = 'scoped memory for tpu_custom_call.1']
    #allocation7 [shape = 'u8[2048]{0}', space=vmem, size = 0x800, scoped, tag = 'output window, operand 0']
    %7 = vsyncpa [#allocation3], 0
    %s8 = scalar_lea.sflag [#allocation3], 1
    %9 = vsyncpa %s8, 0
    %10 = vsyncpa [#allocation6], 0
    %s11 = scalar_lea.sflag [#allocation6], 1
    %12 = vsyncpa %s11, 0
    %13 = vsyncpa [#allocation4], 0
    %s14 = scalar_lea.sflag [#allocation4], 1
    %15 = vsyncpa %s14, 0
    loop: start=0, step=1, limit=6
    $region2: #{tpu_custom_call.1} parent=1 // loop_pre_header
      _
    $region3: #{tpu_custom_call.1} parent=1 // loop_header
      %s17 = sphi 0, %s21
      %p18 = scmp.ge.s32.totalorder %s17, 6
      %s24 = sphi 0, %s36
      %s25 = sphi 0, %s32
      %s26 = sphi 0, %s24
      %s27 = sphi 0, %s25
      %s28 = sphi 0, %s26
      %s29 = sphi 0, %s27
      %s43 = sphi 0, %s45
      %s46 = sphi 0, %s43
      %s47 = sphi 0, %s46
      %s63 = sphi 0, %s47
      %s73 = sphi 0, %s75
      %s76 = sphi 0, %s73
      %s77 = sphi 0, %s76
      %s93 = sphi 0, %s77
      %s99 = sphi 0, %s101
      %s102 = sphi 0, %s99
      %s103 = sphi 0, %s102
      %s119 = sphi 0, %s103
    $region4: #{tpu_custom_call.1} parent=1 // loop_header_branch
      %20 = sbr.rel (%p18) target = $region8
    $region5: #{tpu_custom_call.1} parent=1 // loop_body
      %s22 = ssub.s32 %s17, 1
      %s23 = ssub.s32 %s17, 2
      %s30 = sadd.s32 1, %s25
      %p31 = scmp.ge.s32.totalorder %s30, 2
      %s32 = scalar_select %p31, 0, %s30
      %s33 = sadd.s32 1, %s24
      %s34 = scalar_select %p31, %s33, %s24
      %p35 = scmp.ge.s32.totalorder %s34, 2
      %s36 = scalar_select %p35, 0, %s34
      %s37 = smul.u32 %s24, 2
      %s38 = sadd.s32 %s37, %s25
      %s39 = smul.u32 %s36, 2
      %s40 = sadd.s32 %s39, %s32
      %s41 = ssub.s32 %s38, %s40
      %p42 = scmp.eq.s32.totalorder %s41, 0
      %s44 = sadd.s32 %s43, 1
      %s45 = scalar_select %p42, %s43, %s44
      %p48 = pneg %p42
      %p49 = scmp.eq.s32.totalorder %s17, 3
      %p50 = por %p48, %p49
      %p51 = scmp.ne.s32.totalorder %s43, %s46
      %p52 = scmp.eq.s32.totalorder %s17, 0
      %p53 = por %p51, %p52
      %p54 = scmp.ne.s32.totalorder %s43, %s46
      %p55 = scmp.eq.s32.totalorder %s22, 3
      %p56 = por %p54, %p55
      %p57 = scmp.ne.s32.totalorder %s46, %s47
      %p58 = scmp.eq.s32.totalorder %s22, 0
      %p59 = por %p57, %p58
      %p60 = scmp.ne.s32.totalorder %s46, %s47
      %p61 = scmp.eq.s32.totalorder %s23, 3
      %p62 = por %p60, %p61
      %p64 = scmp.ne.s32.totalorder %s47, %s63
      %p65 = scmp.eq.s32.totalorder %s23, 0
      %p66 = por %p64, %p65
      %s67 = smul.u32 %s24, 2
      %s68 = sadd.s32 %s67, %s25
      %s69 = smul.u32 %s36, 2
      %s70 = sadd.s32 %s69, %s32
      %s71 = ssub.s32 %s68, %s70
      %p72 = scmp.eq.s32.totalorder %s71, 0
      %s74 = sadd.s32 %s73, 1
      %s75 = scalar_select %p72, %s73, %s74
      %p78 = pneg %p72
      %p79 = scmp.eq.s32.totalorder %s17, 3
      %p80 = por %p78, %p79
      %p81 = scmp.ne.s32.totalorder %s73, %s76
      %p82 = scmp.eq.s32.totalorder %s17, 0
      %p83 = por %p81, %p82
      %p84 = scmp.ne.s32.totalorder %s73, %s76
      %p85 = scmp.eq.s32.totalorder %s22, 3
      %p86 = por %p84, %p85
      %p87 = scmp.ne.s32.totalorder %s76, %s77
      %p88 = scmp.eq.s32.totalorder %s22, 0
      %p89 = por %p87, %p88
      %p90 = scmp.ne.s32.totalorder %s76, %s77
      %p91 = scmp.eq.s32.totalorder %s23, 3
      %p92 = por %p90, %p91
      %p94 = scmp.ne.s32.totalorder %s77, %s93
      %p95 = scmp.eq.s32.totalorder %s23, 0
      %p96 = por %p94, %p95
      %s97 = ssub.s32 %s24, %s36
      %p98 = scmp.eq.s32.totalorder %s97, 0
      %s100 = sadd.s32 %s99, 1
      %s101 = scalar_select %p98, %s99, %s100
      %p104 = pneg %p98
      %p105 = scmp.eq.s32.totalorder %s17, 3
      %p106 = por %p104, %p105
      %p107 = scmp.ne.s32.totalorder %s99, %s102
      %p108 = scmp.eq.s32.totalorder %s17, 0
      %p109 = por %p107, %p108
      %p110 = scmp.ne.s32.totalorder %s99, %s102
      %p111 = scmp.eq.s32.totalorder %s22, 3
      %p112 = por %p110, %p111
      %p113 = scmp.ne.s32.totalorder %s102, %s103
      %p114 = scmp.eq.s32.totalorder %s22, 0
      %p115 = por %p113, %p114
      %p116 = scmp.ne.s32.totalorder %s102, %s103
      %p117 = scmp.eq.s32.totalorder %s23, 3
      %p118 = por %p116, %p117
      %p120 = scmp.ne.s32.totalorder %s103, %s119
      %p121 = scmp.eq.s32.totalorder %s23, 0
      %p122 = por %p120, %p121
      %p123 = scmp.le.s32.totalorder 1, %s17
      %p124 = scmp.lt.s32.totalorder %s17, 5
      %p125 = pnand %p123, %p124
      %p126 = pneg %p125
      // Predicated region
      $region9: #{tpu_custom_call.1} parent=5 // pred_check
        _
      $region10: #{tpu_custom_call.1} parent=5 // pred_check_branch
        %128 = sbr.rel (%p125) target = $region12
      $region11: #{tpu_custom_call.1} parent=5 // pred_region
        %s129 = ssub.s32 %s17, 1
      $region12: #{tpu_custom_call.1} parent=5 // pred_fallthru
        _
      %p130 = scmp.lt.s32.totalorder %s17, 4
      // Predicated region
      $region13: #{tpu_custom_call.1} parent=5 // pred_check
        %p131 = pneg %p130
      $region14: #{tpu_custom_call.1} parent=5 // pred_check_branch
        %133 = sbr.rel (%p131) target = $region16
      $region15: #{tpu_custom_call.1} parent=5 // pred_region
        // Predicated region
        $region17: #{tpu_custom_call.1} parent=15 // pred_check
          %p134 = pneg %p53
        $region18: #{tpu_custom_call.1} parent=15 // pred_check_branch
          %136 = sbr.rel (%p134) target = $region20
        $region19: #{tpu_custom_call.1} parent=15 // pred_region
          %s137 = sand.u32 %s43, 1
          %s138 = scalar_lea.sflag [#allocation3], %s137
          %s139 = sand.u32 %s43, 1
          %s140 = smul.addr %s139, 294
          %s141 = scalar_lea.vmem [#allocation2], %s140
          %s142 = smul.u32 %s24, 2
          %s143 = sadd.s32 %s142, %s25
          %s144 = smul.u32 294, %s143
          %146 = vsyncadd %s138, 0
          %s147 = scalar_lea.hbm %s0, %s144
          %s149 = sshll.u32 %s147, 4
          %s150 = int_to_ptr.hbm [resolvable:$true] %s149
          %s151 = sshll.u32 %s141, 4
          %s152 = int_to_ptr.vmem [resolvable:$true] %s151
          %154 = dma.hbm_to_vmem [thread:$0]  %s150, 4704, %s152, %s138
        $region20: #{tpu_custom_call.1} parent=15 // pred_fallthru
          _
        // Predicated region
        $region21: #{tpu_custom_call.1} parent=15 // pred_check
          %p155 = pneg %p83
        $region22: #{tpu_custom_call.1} parent=15 // pred_check_branch
          %157 = sbr.rel (%p155) target = $region24
        $region23: #{tpu_custom_call.1} parent=15 // pred_region
          %s158 = sand.u32 %s73, 1
          %s159 = scalar_lea.sflag [#allocation6], %s158
          %s160 = sand.u32 %s73, 1
          %s161 = smul.addr %s160, 2352
          %s162 = scalar_lea.vmem [#allocation5], %s161
          %s163 = smul.u32 %s24, 2
          %s164 = sadd.s32 %s163, %s25
          %s165 = smul.u32 294, %s164
          %167 = vsyncadd %s159, 0
          %s168 = smul.addr %s165, 4
          %s169 = scalar_lea.hbm %s1, %s168
          %s170 = sshll.u32 %s169, 4
          %s171 = int_to_ptr.hbm [resolvable:$true] %s170
          %s172 = sshll.u32 %s162, 4
          %s173 = int_to_ptr.vmem [resolvable:$true] %s172
          %178 = dma.hbm_to_vmem [thread:$0]  %s171, 37632, %s173, %s159, 75264, 18816, 1176
        $region24: #{tpu_custom_call.1} parent=15 // pred_fallthru
          _
      $region16: #{tpu_custom_call.1} parent=5 // pred_fallthru
        _
      %p179 = scmp.le.s32.totalorder 1, %s17
      %p180 = scmp.lt.s32.totalorder %s17, 5
      %p181 = pnand %p179, %p180
      %p182 = pneg %p181
      // Predicated region
      $region25: #{tpu_custom_call.1} parent=5 // pred_check
        _
      $region26: #{tpu_custom_call.1} parent=5 // pred_check_branch
        %184 = sbr.rel (%p181) target = $region28
      $region27: #{tpu_custom_call.1} parent=5 // pred_region
        %s185 = ssub.s32 %s17, 1
        %s186 = sand.u32 %s46, 1
        %s187 = scalar_lea.sflag [#allocation3], %s186
        %s188 = sand.u32 %s46, 1
        %s189 = smul.addr %s188, 294
        %s190 = scalar_lea.vmem [#allocation2], %s189
        // Predicated region
        $region29: #{tpu_custom_call.1} parent=27 // pred_check
          %p191 = pneg %p59
        $region30: #{tpu_custom_call.1} parent=27 // pred_check_branch
          %193 = sbr.rel (%p191) target = $region32
        $region31: #{tpu_custom_call.1} parent=27 // pred_region
          %195 = dma.done %s187, 4704
        $region32: #{tpu_custom_call.1} parent=27 // pred_fallthru
          _
        %s196 = sand.u32 %s76, 1
        %s197 = scalar_lea.sflag [#allocation6], %s196
        %s198 = sand.u32 %s76, 1
        %s199 = smul.addr %s198, 2352
        %s200 = scalar_lea.vmem [#allocation5], %s199
        // Predicated region
        $region33: #{tpu_custom_call.1} parent=27 // pred_check
          %p201 = pneg %p89
        $region34: #{tpu_custom_call.1} parent=27 // pred_check_branch
          %203 = sbr.rel (%p201) target = $region36
        $region35: #{tpu_custom_call.1} parent=27 // pred_region
          %205 = dma.done %s197, 37632
        $region36: #{tpu_custom_call.1} parent=27 // pred_fallthru
          _
        %s206 = sand.u32 %s46, 1
        %s207 = scalar_lea.sflag [#allocation3], %s206
        %s208 = sand.u32 %s46, 1
        %s209 = smul.addr %s208, 294
        %s210 = scalar_lea.vmem [#allocation2], %s209
        %p211 = pneg %p59
        %p212 = pneg %p56
        %s213 = sand.u32 %s76, 1
        %s214 = scalar_lea.sflag [#allocation6], %s213
        %s215 = sand.u32 %s76, 1
        %s216 = smul.addr %s215, 2352
        %s217 = scalar_lea.vmem [#allocation5], %s216
        %p218 = pneg %p89
        %p219 = pneg %p86
        %p220 = pneg %p115
        %p221 = pneg %p112
        %s222 = sand.u32 %s102, 1
        %s223 = scalar_lea.sflag [#allocation4], %s222
        %s224 = sand.u32 %s102, 1
        %s225 = smul.addr %s224, 2
        %s226 = scalar_lea.vmem [#allocation7], %s225
        %s227 = smul.u32 %s26, 2
        %s228 = sadd.s32 %s227, %s27
        %s229 = smul.u32 294, %s228
        %s230 = smul.u32 %s26, 2
        %s231 = sadd.s32 %s230, %s27
        %s232 = smul.u32 294, %s231
        %p234 = scmp.eq.s32.totalorder %s27, 0
        // Predicated region
        $region37: #{tpu_custom_call.1} parent=27 // pred_check
          %p235 = pneg %p234
        $region38: #{tpu_custom_call.1} parent=27 // pred_check_branch
          %237 = sbr.rel (%p235) target = $region40
        $region39: #{tpu_custom_call.1} parent=27 // pred_region
          %vm238 = vcmask 74752
          %239 = vst.msk [vmem:[%s226] sm:$0x3] %vm238, 0.0
        $region40: #{tpu_custom_call.1} parent=27 // pred_fallthru
          _
        %v240 = vld [vmem:[%s190] sm:$0xff]
        %v241 = vld [vmem:[%s190 + $0x8] sm:$0xff]
        %v242 = vld [vmem:[%s190 + $0x10] sm:$0xff]
        %v243 = vld [vmem:[%s190 + $0x18] sm:$0xff]
        %v244 = vld [vmem:[%s190 + $0x20] sm:$0xff]
        %v245 = vld [vmem:[%s190 + $0x28] sm:$0xff]
        %v246 = vld [vmem:[%s190 + $0x30] sm:$0xff]
        %v247 = vld [vmem:[%s190 + $0x38] sm:$0xff]
        %v248 = vld [vmem:[%s190 + $0x40] sm:$0xff]
        %v249 = vld [vmem:[%s190 + $0x48] sm:$0xff]
        %v250 = vld [vmem:[%s190 + $0x50] sm:$0xff]
        %v251 = vld [vmem:[%s190 + $0x58] sm:$0xff]
        %v252 = vld [vmem:[%s190 + $0x60] sm:$0xff]
        %v253 = vld [vmem:[%s190 + $0x68] sm:$0xff]
        %v254 = vld [vmem:[%s190 + $0x70] sm:$0xff]
        %v255 = vld [vmem:[%s190 + $0x78] sm:$0xff]
        %v256 = vld [vmem:[%s190 + $0x80] sm:$0xff]
        %v257 = vld [vmem:[%s190 + $0x88] sm:$0xff]
        %v258 = vld [vmem:[%s190 + $0x90] sm:$0xff]
        %v259 = vld [vmem:[%s190 + $0x98] sm:$0xff]
        %v260 = vld [vmem:[%s190 + $0xa0] sm:$0xff]
        %v261 = vld [vmem:[%s190 + $0xa8] sm:$0xff]
        %v262 = vld [vmem:[%s190 + $0xb0] sm:$0xff]
        %v263 = vld [vmem:[%s190 + $0xb8] sm:$0xff]
        %v264 = vld [vmem:[%s190 + $0xc0] sm:$0xff]
        %v265 = vld [vmem:[%s190 + $0xc8] sm:$0xff]
        %v266 = vld [vmem:[%s190 + $0xd0] sm:$0xff]
        %v267 = vld [vmem:[%s190 + $0xd8] sm:$0xff]
        %v268 = vld [vmem:[%s190 + $0xe0] sm:$0xff]
        %v269 = vld [vmem:[%s190 + $0xe8] sm:$0xff]
        %v270 = vld [vmem:[%s190 + $0xf0] sm:$0xff]
        %v271 = vld [vmem:[%s190 + $0xf8] sm:$0xff]
        %v272 = vld [vmem:[%s190 + $0x100] sm:$0xff]
        %v273 = vld [vmem:[%s190 + $0x108] sm:$0xff]
        %v274 = vld [vmem:[%s190 + $0x110] sm:$0xff]
        %v275 = vld [vmem:[%s190 + $0x118] sm:$0xff]
        %v276 = vld [vmem:[%s190 + $0x120] sm:$0x3f]
        %v277 = vunpack.c.0.s8 %v240
        %v278 = vunpack.c.1.s8 %v240
        %v279 = vunpack.c.2.s8 %v240
        %v280 = vunpack.c.3.s8 %v240
        %v281 = vunpack.c.0.s8 %v241
        %v282 = vunpack.c.1.s8 %v241
        %v283 = vunpack.c.2.s8 %v241
        %v284 = vunpack.c.3.s8 %v241
        %v285 = vunpack.c.0.s8 %v242
        %v286 = vunpack.c.1.s8 %v242
        %v287 = vunpack.c.2.s8 %v242
        %v288 = vunpack.c.3.s8 %v242
        %v289 = vunpack.c.0.s8 %v243
        %v290 = vunpack.c.1.s8 %v243
        %v291 = vunpack.c.2.s8 %v243
        %v292 = vunpack.c.3.s8 %v243
        %v293 = vunpack.c.0.s8 %v244
        %v294 = vunpack.c.1.s8 %v244
        %v295 = vunpack.c.2.s8 %v244
        %v296 = vunpack.c.3.s8 %v244
        %v297 = vunpack.c.0.s8 %v245
        %v298 = vunpack.c.1.s8 %v245
        %v299 = vunpack.c.2.s8 %v245
        %v300 = vunpack.c.3.s8 %v245
        %v301 = vunpack.c.0.s8 %v246
        %v302 = vunpack.c.1.s8 %v246
        %v303 = vunpack.c.2.s8 %v246
        %v304 = vunpack.c.3.s8 %v246
        %v305 = vunpack.c.0.s8 %v247
        %v306 = vunpack.c.1.s8 %v247
        %v307 = vunpack.c.2.s8 %v247
        %v308 = vunpack.c.3.s8 %v247
        %v309 = vunpack.c.0.s8 %v248
        %v310 = vunpack.c.1.s8 %v248
        %v311 = vunpack.c.2.s8 %v248
        %v312 = vunpack.c.3.s8 %v248
        %v313 = vunpack.c.0.s8 %v249
        %v314 = vunpack.c.1.s8 %v249
        %v315 = vunpack.c.2.s8 %v249
        %v316 = vunpack.c.3.s8 %v249
        %v317 = vunpack.c.0.s8 %v250
        %v318 = vunpack.c.1.s8 %v250
        %v319 = vunpack.c.2.s8 %v250
        %v320 = vunpack.c.3.s8 %v250
        %v321 = vunpack.c.0.s8 %v251
        %v322 = vunpack.c.1.s8 %v251
        %v323 = vunpack.c.2.s8 %v251
        %v324 = vunpack.c.3.s8 %v251
        %v325 = vunpack.c.0.s8 %v252
        %v326 = vunpack.c.1.s8 %v252
        %v327 = vunpack.c.2.s8 %v252
        %v328 = vunpack.c.3.s8 %v252
        %v329 = vunpack.c.0.s8 %v253
        %v330 = vunpack.c.1.s8 %v253
        %v331 = vunpack.c.2.s8 %v253
        %v332 = vunpack.c.3.s8 %v253
        %v333 = vunpack.c.0.s8 %v254
        %v334 = vunpack.c.1.s8 %v254
        %v335 = vunpack.c.2.s8 %v254
        %v336 = vunpack.c.3.s8 %v254
        %v337 = vunpack.c.0.s8 %v255
        %v338 = vunpack.c.1.s8 %v255
        %v339 = vunpack.c.2.s8 %v255
        %v340 = vunpack.c.3.s8 %v255
        %v341 = vunpack.c.0.s8 %v256
        %v342 = vunpack.c.1.s8 %v256
        %v343 = vunpack.c.2.s8 %v256
        %v344 = vunpack.c.3.s8 %v256
        %v345 = vunpack.c.0.s8 %v257
        %v346 = vunpack.c.1.s8 %v257
        %v347 = vunpack.c.2.s8 %v257
        %v348 = vunpack.c.3.s8 %v257
        %v349 = vunpack.c.0.s8 %v258
        %v350 = vunpack.c.1.s8 %v258
        %v351 = vunpack.c.2.s8 %v258
        %v352 = vunpack.c.3.s8 %v258
        %v353 = vunpack.c.0.s8 %v259
        %v354 = vunpack.c.1.s8 %v259
        %v355 = vunpack.c.2.s8 %v259
        %v356 = vunpack.c.3.s8 %v259
        %v357 = vunpack.c.0.s8 %v260
        %v358 = vunpack.c.1.s8 %v260
        %v359 = vunpack.c.2.s8 %v260
        %v360 = vunpack.c.3.s8 %v260
        %v361 = vunpack.c.0.s8 %v261
        %v362 = vunpack.c.1.s8 %v261
        %v363 = vunpack.c.2.s8 %v261
        %v364 = vunpack.c.3.s8 %v261
        %v365 = vunpack.c.0.s8 %v262
        %v366 = vunpack.c.1.s8 %v262
        %v367 = vunpack.c.2.s8 %v262
        %v368 = vunpack.c.3.s8 %v262
        %v369 = vunpack.c.0.s8 %v263
        %v370 = vunpack.c.1.s8 %v263
        %v371 = vunpack.c.2.s8 %v263
        %v372 = vunpack.c.3.s8 %v263
        %v373 = vunpack.c.0.s8 %v264
        %v374 = vunpack.c.1.s8 %v264
        %v375 = vunpack.c.2.s8 %v264
        %v376 = vunpack.c.3.s8 %v264
        %v377 = vunpack.c.0.s8 %v265
        %v378 = vunpack.c.1.s8 %v265
        %v379 = vunpack.c.2.s8 %v265
        %v380 = vunpack.c.3.s8 %v265
        %v381 = vunpack.c.0.s8 %v266
        %v382 = vunpack.c.1.s8 %v266
        %v383 = vunpack.c.2.s8 %v266
        %v384 = vunpack.c.3.s8 %v266
        %v385 = vunpack.c.0.s8 %v267
        %v386 = vunpack.c.1.s8 %v267
        %v387 = vunpack.c.2.s8 %v267
        %v388 = vunpack.c.3.s8 %v267
        %v389 = vunpack.c.0.s8 %v268
        %v390 = vunpack.c.1.s8 %v268
        %v391 = vunpack.c.2.s8 %v268
        %v392 = vunpack.c.3.s8 %v268
        %v393 = vunpack.c.0.s8 %v269
        %v394 = vunpack.c.1.s8 %v269
        %v395 = vunpack.c.2.s8 %v269
        %v396 = vunpack.c.3.s8 %v269
        %v397 = vunpack.c.0.s8 %v270
        %v398 = vunpack.c.1.s8 %v270
        %v399 = vunpack.c.2.s8 %v270
        %v400 = vunpack.c.3.s8 %v270
        %v401 = vunpack.c.0.s8 %v271
        %v402 = vunpack.c.1.s8 %v271
        %v403 = vunpack.c.2.s8 %v271
        %v404 = vunpack.c.3.s8 %v271
        %v405 = vunpack.c.0.s8 %v272
        %v406 = vunpack.c.1.s8 %v272
        %v407 = vunpack.c.2.s8 %v272
        %v408 = vunpack.c.3.s8 %v272
        %v409 = vunpack.c.0.s8 %v273
        %v410 = vunpack.c.1.s8 %v273
        %v411 = vunpack.c.2.s8 %v273
        %v412 = vunpack.c.3.s8 %v273
        %v413 = vunpack.c.0.s8 %v274
        %v414 = vunpack.c.1.s8 %v274
        %v415 = vunpack.c.2.s8 %v274
        %v416 = vunpack.c.3.s8 %v274
        %v417 = vunpack.c.0.s8 %v275
        %v418 = vunpack.c.1.s8 %v275
        %v419 = vunpack.c.2.s8 %v275
        %v420 = vunpack.c.3.s8 %v275
        %v421 = vunpack.c.0.s8 %v276
        %v422 = vunpack.c.1.s8 %v276
        %v423 = vunpack.c.2.s8 %v276
        %v424 = vand.u32 %v277, 255
        %v425 = vand.u32 %v278, 255
        %v426 = vand.u32 %v279, 255
        %v427 = vand.u32 %v280, 255
        %v428 = vand.u32 %v281, 255
        %v429 = vand.u32 %v282, 255
        %v430 = vand.u32 %v283, 255
        %v431 = vand.u32 %v284, 255
        %v432 = vand.u32 %v285, 255
        %v433 = vand.u32 %v286, 255
        %v434 = vand.u32 %v287, 255
        %v435 = vand.u32 %v288, 255
        %v436 = vand.u32 %v289, 255
        %v437 = vand.u32 %v290, 255
        %v438 = vand.u32 %v291, 255
        %v439 = vand.u32 %v292, 255
        %v440 = vand.u32 %v293, 255
        %v441 = vand.u32 %v294, 255
        %v442 = vand.u32 %v295, 255
        %v443 = vand.u32 %v296, 255
        %v444 = vand.u32 %v297, 255
        %v445 = vand.u32 %v298, 255
        %v446 = vand.u32 %v299, 255
        %v447 = vand.u32 %v300, 255
        %v448 = vand.u32 %v301, 255
        %v449 = vand.u32 %v302, 255
        %v450 = vand.u32 %v303, 255
        %v451 = vand.u32 %v304, 255
        %v452 = vand.u32 %v305, 255
        %v453 = vand.u32 %v306, 255
        %v454 = vand.u32 %v307, 255
        %v455 = vand.u32 %v308, 255
        %v456 = vand.u32 %v309, 255
        %v457 = vand.u32 %v310, 255
        %v458 = vand.u32 %v311, 255
        %v459 = vand.u32 %v312, 255
        %v460 = vand.u32 %v313, 255
        %v461 = vand.u32 %v314, 255
        %v462 = vand.u32 %v315, 255
        %v463 = vand.u32 %v316, 255
        %v464 = vand.u32 %v317, 255
        %v465 = vand.u32 %v318, 255
        %v466 = vand.u32 %v319, 255
        %v467 = vand.u32 %v320, 255
        %v468 = vand.u32 %v321, 255
        %v469 = vand.u32 %v322, 255
        %v470 = vand.u32 %v323, 255
        %v471 = vand.u32 %v324, 255
        %v472 = vand.u32 %v325, 255
        %v473 = vand.u32 %v326, 255
        %v474 = vand.u32 %v327, 255
        %v475 = vand.u32 %v328, 255
        %v476 = vand.u32 %v329, 255
        %v477 = vand.u32 %v330, 255
        %v478 = vand.u32 %v331, 255
        %v479 = vand.u32 %v332, 255
        %v480 = vand.u32 %v333, 255
        %v481 = vand.u32 %v334, 255
        %v482 = vand.u32 %v335, 255
        %v483 = vand.u32 %v336, 255
        %v484 = vand.u32 %v337, 255
        %v485 = vand.u32 %v338, 255
        %v486 = vand.u32 %v339, 255
        %v487 = vand.u32 %v340, 255
        %v488 = vand.u32 %v341, 255
        %v489 = vand.u32 %v342, 255
        %v490 = vand.u32 %v343, 255
        %v491 = vand.u32 %v344, 255
        %v492 = vand.u32 %v345, 255
        %v493 = vand.u32 %v346, 255
        %v494 = vand.u32 %v347, 255
        %v495 = vand.u32 %v348, 255
        %v496 = vand.u32 %v349, 255
        %v497 = vand.u32 %v350, 255
        %v498 = vand.u32 %v351, 255
        %v499 = vand.u32 %v352, 255
        %v500 = vand.u32 %v353, 255
        %v501 = vand.u32 %v354, 255
        %v502 = vand.u32 %v355, 255
        %v503 = vand.u32 %v356, 255
        %v504 = vand.u32 %v357, 255
        %v505 = vand.u32 %v358, 255
        %v506 = vand.u32 %v359, 255
        %v507 = vand.u32 %v360, 255
        %v508 = vand.u32 %v361, 255
        %v509 = vand.u32 %v362, 255
        %v510 = vand.u32 %v363, 255
        %v511 = vand.u32 %v364, 255
        %v512 = vand.u32 %v365, 255
        %v513 = vand.u32 %v366, 255
        %v514 = vand.u32 %v367, 255
        %v515 = vand.u32 %v368, 255
        %v516 = vand.u32 %v369, 255
        %v517 = vand.u32 %v370, 255
        %v518 = vand.u32 %v371, 255
        %v519 = vand.u32 %v372, 255
        %v520 = vand.u32 %v373, 255
        %v521 = vand.u32 %v374, 255
        %v522 = vand.u32 %v375, 255
        %v523 = vand.u32 %v376, 255
        %v524 = vand.u32 %v377, 255
        %v525 = vand.u32 %v378, 255
        %v526 = vand.u32 %v379, 255
        %v527 = vand.u32 %v380, 255
        %v528 = vand.u32 %v381, 255
        %v529 = vand.u32 %v382, 255
        %v530 = vand.u32 %v383, 255
        %v531 = vand.u32 %v384, 255
        %v532 = vand.u32 %v385, 255
        %v533 = vand.u32 %v386, 255
        %v534 = vand.u32 %v387, 255
        %v535 = vand.u32 %v388, 255
        %v536 = vand.u32 %v389, 255
        %v537 = vand.u32 %v390, 255
        %v538 = vand.u32 %v391, 255
        %v539 = vand.u32 %v392, 255
        %v540 = vand.u32 %v393, 255
        %v541 = vand.u32 %v394, 255
        %v542 = vand.u32 %v395, 255
        %v543 = vand.u32 %v396, 255
        %v544 = vand.u32 %v397, 255
        %v545 = vand.u32 %v398, 255
        %v546 = vand.u32 %v399, 255
        %v547 = vand.u32 %v400, 255
        %v548 = vand.u32 %v401, 255
        %v549 = vand.u32 %v402, 255
        %v550 = vand.u32 %v403, 255
        %v551 = vand.u32 %v404, 255
        %v552 = vand.u32 %v405, 255
        %v553 = vand.u32 %v406, 255
        %v554 = vand.u32 %v407, 255
        %v555 = vand.u32 %v408, 255
        %v556 = vand.u32 %v409, 255
        %v557 = vand.u32 %v410, 255
        %v558 = vand.u32 %v411, 255
        %v559 = vand.u32 %v412, 255
        %v560 = vand.u32 %v413, 255
        %v561 = vand.u32 %v414, 255
        %v562 = vand.u32 %v415, 255
        %v563 = vand.u32 %v416, 255
        %v564 = vand.u32 %v417, 255
        %v565 = vand.u32 %v418, 255
        %v566 = vand.u32 %v419, 255
        %v567 = vand.u32 %v420, 255
        %v568 = vand.u32 %v421, 255
        %v569 = vand.u32 %v422, 255
        %v570 = vand.u32 %v423, 255
        %v571 = vcvt.s32.f32 %v424
        %v572 = vcvt.s32.f32 %v425
        %v573 = vcvt.s32.f32 %v426
        %v574 = vcvt.s32.f32 %v427
        %v575 = vcvt.s32.f32 %v428
        %v576 = vcvt.s32.f32 %v429
        %v577 = vcvt.s32.f32 %v430
        %v578 = vcvt.s32.f32 %v431
        %v579 = vcvt.s32.f32 %v432
        %v580 = vcvt.s32.f32 %v433
        %v581 = vcvt.s32.f32 %v434
        %v582 = vcvt.s32.f32 %v435
        %v583 = vcvt.s32.f32 %v436
        %v584 = vcvt.s32.f32 %v437
        %v585 = vcvt.s32.f32 %v438
        %v586 = vcvt.s32.f32 %v439
        %v587 = vcvt.s32.f32 %v440
        %v588 = vcvt.s32.f32 %v441
        %v589 = vcvt.s32.f32 %v442
        %v590 = vcvt.s32.f32 %v443
        %v591 = vcvt.s32.f32 %v444
        %v592 = vcvt.s32.f32 %v445
        %v593 = vcvt.s32.f32 %v446
        %v594 = vcvt.s32.f32 %v447
        %v595 = vcvt.s32.f32 %v448
        %v596 = vcvt.s32.f32 %v449
        %v597 = vcvt.s32.f32 %v450
        %v598 = vcvt.s32.f32 %v451
        %v599 = vcvt.s32.f32 %v452
        %v600 = vcvt.s32.f32 %v453
        %v601 = vcvt.s32.f32 %v454
        %v602 = vcvt.s32.f32 %v455
        %v603 = vcvt.s32.f32 %v456
        %v604 = vcvt.s32.f32 %v457
        %v605 = vcvt.s32.f32 %v458
        %v606 = vcvt.s32.f32 %v459
        %v607 = vcvt.s32.f32 %v460
        %v608 = vcvt.s32.f32 %v461
        %v609 = vcvt.s32.f32 %v462
        %v610 = vcvt.s32.f32 %v463
        %v611 = vcvt.s32.f32 %v464
        %v612 = vcvt.s32.f32 %v465
        %v613 = vcvt.s32.f32 %v466
        %v614 = vcvt.s32.f32 %v467
        %v615 = vcvt.s32.f32 %v468
        %v616 = vcvt.s32.f32 %v469
        %v617 = vcvt.s32.f32 %v470
        %v618 = vcvt.s32.f32 %v471
        %v619 = vcvt.s32.f32 %v472
        %v620 = vcvt.s32.f32 %v473
        %v621 = vcvt.s32.f32 %v474
        %v622 = vcvt.s32.f32 %v475
        %v623 = vcvt.s32.f32 %v476
        %v624 = vcvt.s32.f32 %v477
        %v625 = vcvt.s32.f32 %v478
        %v626 = vcvt.s32.f32 %v479
        %v627 = vcvt.s32.f32 %v480
        %v628 = vcvt.s32.f32 %v481
        %v629 = vcvt.s32.f32 %v482
        %v630 = vcvt.s32.f32 %v483
        %v631 = vcvt.s32.f32 %v484
        %v632 = vcvt.s32.f32 %v485
        %v633 = vcvt.s32.f32 %v486
        %v634 = vcvt.s32.f32 %v487
        %v635 = vcvt.s32.f32 %v488
        %v636 = vcvt.s32.f32 %v489
        %v637 = vcvt.s32.f32 %v490
        %v638 = vcvt.s32.f32 %v491
        %v639 = vcvt.s32.f32 %v492
        %v640 = vcvt.s32.f32 %v493
        %v641 = vcvt.s32.f32 %v494
        %v642 = vcvt.s32.f32 %v495
        %v643 = vcvt.s32.f32 %v496
        %v644 = vcvt.s32.f32 %v497
        %v645 = vcvt.s32.f32 %v498
        %v646 = vcvt.s32.f32 %v499
        %v647 = vcvt.s32.f32 %v500
        %v648 = vcvt.s32.f32 %v501
        %v649 = vcvt.s32.f32 %v502
        %v650 = vcvt.s32.f32 %v503
        %v651 = vcvt.s32.f32 %v504
        %v652 = vcvt.s32.f32 %v505
        %v653 = vcvt.s32.f32 %v506
        %v654 = vcvt.s32.f32 %v507
        %v655 = vcvt.s32.f32 %v508
        %v656 = vcvt.s32.f32 %v509
        %v657 = vcvt.s32.f32 %v510
        %v658 = vcvt.s32.f32 %v511
        %v659 = vcvt.s32.f32 %v512
        %v660 = vcvt.s32.f32 %v513
        %v661 = vcvt.s32.f32 %v514
        %v662 = vcvt.s32.f32 %v515
        %v663 = vcvt.s32.f32 %v516
        %v664 = vcvt.s32.f32 %v517
        %v665 = vcvt.s32.f32 %v518
        %v666 = vcvt.s32.f32 %v519
        %v667 = vcvt.s32.f32 %v520
        %v668 = vcvt.s32.f32 %v521
        %v669 = vcvt.s32.f32 %v522
        %v670 = vcvt.s32.f32 %v523
        %v671 = vcvt.s32.f32 %v524
        %v672 = vcvt.s32.f32 %v525
        %v673 = vcvt.s32.f32 %v526
        %v674 = vcvt.s32.f32 %v527
        %v675 = vcvt.s32.f32 %v528
        %v676 = vcvt.s32.f32 %v529
        %v677 = vcvt.s32.f32 %v530
        %v678 = vcvt.s32.f32 %v531
        %v679 = vcvt.s32.f32 %v532
        %v680 = vcvt.s32.f32 %v533
        %v681 = vcvt.s32.f32 %v534
        %v682 = vcvt.s32.f32 %v535
        %v683 = vcvt.s32.f32 %v536
        %v684 = vcvt.s32.f32 %v537
        %v685 = vcvt.s32.f32 %v538
        %v686 = vcvt.s32.f32 %v539
        %v687 = vcvt.s32.f32 %v540
        %v688 = vcvt.s32.f32 %v541
        %v689 = vcvt.s32.f32 %v542
        %v690 = vcvt.s32.f32 %v543
        %v691 = vcvt.s32.f32 %v544
        %v692 = vcvt.s32.f32 %v545
        %v693 = vcvt.s32.f32 %v546
        %v694 = vcvt.s32.f32 %v547
        %v695 = vcvt.s32.f32 %v548
        %v696 = vcvt.s32.f32 %v549
        %v697 = vcvt.s32.f32 %v550
        %v698 = vcvt.s32.f32 %v551
        %v699 = vcvt.s32.f32 %v552
        %v700 = vcvt.s32.f32 %v553
        %v701 = vcvt.s32.f32 %v554
        %v702 = vcvt.s32.f32 %v555
        %v703 = vcvt.s32.f32 %v556
        %v704 = vcvt.s32.f32 %v557
        %v705 = vcvt.s32.f32 %v558
        %v706 = vcvt.s32.f32 %v559
        %v707 = vcvt.s32.f32 %v560
        %v708 = vcvt.s32.f32 %v561
        %v709 = vcvt.s32.f32 %v562
        %v710 = vcvt.s32.f32 %v563
        %v711 = vcvt.s32.f32 %v564
        %v712 = vcvt.s32.f32 %v565
        %v713 = vcvt.s32.f32 %v566
        %v714 = vcvt.s32.f32 %v567
        %v715 = vcvt.s32.f32 %v568
        %v716 = vcvt.s32.f32 %v569
        %v717 = vcvt.s32.f32 %v570
        %865 = vst [vmem:[#allocation1] ss:$2 sm:$0xff] %v571
        %s866 = scalar_lea.vmem [#allocation1], 16
        %867 = vst [vmem:[%s866] ss:$2 sm:$0xff] %v572
        %s868 = scalar_lea.vmem [#allocation1], 32
        %869 = vst [vmem:[%s868] ss:$2 sm:$0xff] %v573
        %s870 = scalar_lea.vmem [#allocation1], 48
        %871 = vst [vmem:[%s870] ss:$2 sm:$0xff] %v574
        %v872 = vld.sshfl [vmem:[#allocation1] sm:$0xff pattern:$0x75316420]
        %v873 = vld.sshfl [vmem:[#allocation1 + $0x8] sm:$0xff pattern:$0x75316420]
        %v874 = vld.sshfl [vmem:[#allocation1 + $0x10] sm:$0xff pattern:$0x75316420]
        %v875 = vld.sshfl [vmem:[#allocation1 + $0x18] sm:$0xff pattern:$0x75316420]
        %v876 = vld.sshfl [vmem:[#allocation1 + $0x20] sm:$0xff pattern:$0x75316420]
        %v877 = vld.sshfl [vmem:[#allocation1 + $0x28] sm:$0xff pattern:$0x75316420]
        %v878 = vld.sshfl [vmem:[#allocation1 + $0x30] sm:$0xff pattern:$0x75316420]
        %v879 = vld.sshfl [vmem:[#allocation1 + $0x38] sm:$0xff pattern:$0x75316420]
        %880 = vst [vmem:[#allocation1] ss:$2 sm:$0xff] %v575
        %881 = vst [vmem:[%s866] ss:$2 sm:$0xff] %v576
        %882 = vst [vmem:[%s868] ss:$2 sm:$0xff] %v577
        %883 = vst [vmem:[%s870] ss:$2 sm:$0xff] %v578
        %v884 = vld.sshfl [vmem:[#allocation1] sm:$0xff pattern:$0x75316420]
        %v885 = vld.sshfl [vmem:[#allocation1 + $0x8] sm:$0xff pattern:$0x75316420]
        %v886 = vld.sshfl [vmem:[#allocation1 + $0x10] sm:$0xff pattern:$0x75316420]
        %v887 = vld.sshfl [vmem:[#allocation1 + $0x18] sm:$0xff pattern:$0x75316420]
        %v888 = vld.sshfl [vmem:[#allocation1 + $0x20] sm:$0xff pattern:$0x75316420]
        %v889 = vld.sshfl [vmem:[#allocation1 + $0x28] sm:$0xff pattern:$0x75316420]
        %v890 = vld.sshfl [vmem:[#allocation1 + $0x30] sm:$0xff pattern:$0x75316420]
        %v891 = vld.sshfl [vmem:[#allocation1 + $0x38] sm:$0xff pattern:$0x75316420]
        %892 = vst [vmem:[#allocation1] ss:$2 sm:$0xff] %v579
        %893 = vst [vmem:[%s866] ss:$2 sm:$0xff] %v580
        %894 = vst [vmem:[%s868] ss:$2 sm:$0xff] %v581
        %895 = vst [vmem:[%s870] ss:$2 sm:$0xff] %v582
        %v896 = vld.sshfl [vmem:[#allocation1] sm:$0xff pattern:$0x75316420]
        %v897 = vld.sshfl [vmem:[#allocation1 + $0x8] sm:$0xff pattern:$0x75316420]
        %v898 = vld.sshfl [vmem:[#allocation1 + $0x10] sm:$0xff pattern:$0x75316420]
        %v899 = vld.sshfl [vmem:[#allocation1 + $0x18] sm:$0xff pattern:$0x75316420]
        %v900 = vld.sshfl [vmem:[#allocation1 + $0x20] sm:$0xff pattern:$0x75316420]
        %v901 = vld.sshfl [vmem:[#allocation1 + $0x28] sm:$0xff pattern:$0x75316420]
        %v902 = vld.sshfl [vmem:[#allocation1 + $0x30] sm:$0xff pattern:$0x75316420]
        %v903 = vld.sshfl [vmem:[#allocation1 + $0x38] sm:$0xff pattern:$0x75316420]
        %904 = vst [vmem:[#allocation1] ss:$2 sm:$0xff] %v583
        %905 = vst [vmem:[%s866] ss:$2 sm:$0xff] %v584
        %906 = vst [vmem:[%s868] ss:$2 sm:$0xff] %v585
        %907 = vst [vmem:[%s870] ss:$2 sm:$0xff] %v586
        %v908 = vld.sshfl [vmem:[#allocation1] sm:$0xff pattern:$0x75316420]
        %v909 = vld.sshfl [vmem:[#allocation1 + $0x8] sm:$0xff pattern:$0x75316420]
        %v910 = vld.sshfl [vmem:[#allocation1 + $0x10] sm:$0xff pattern:$0x75316420]
        %v911 = vld.sshfl [vmem:[#allocation1 + $0x18] sm:$0xff pattern:$0x75316420]
        %v912 = vld.sshfl [vmem:[#allocation1 + $0x20] sm:$0xff pattern:$0x75316420]
        %v913 = vld.sshfl [vmem:[#allocation1 + $0x28] sm:$0xff pattern:$0x75316420]
        %v914 = vld.sshfl [vmem:[#allocation1 + $0x30] sm:$0xff pattern:$0x75316420]
        %v915 = vld.sshfl [vmem:[#allocation1 + $0x38] sm:$0xff pattern:$0x75316420]
        %916 = vst [vmem:[#allocation1] ss:$2 sm:$0xff] %v587
        %917 = vst [vmem:[%s866] ss:$2 sm:$0xff] %v588
        %918 = vst [vmem:[%s868] ss:$2 sm:$0xff] %v589
        %919 = vst [vmem:[%s870] ss:$2 sm:$0xff] %v590
        %v920 = vld.sshfl [vmem:[#allocation1] sm:$0xff pattern:$0x75316420]
        %v921 = vld.sshfl [vmem:[#allocation1 + $0x8] sm:$0xff pattern:$0x75316420]
        %v922 = vld.sshfl [vmem:[#allocation1 + $0x10] sm:$0xff pattern:$0x75316420]
        %v923 = vld.sshfl [vmem:[#allocation1 + $0x18] sm:$0xff pattern:$0x75316420]
        %v924 = vld.sshfl [vmem:[#allocation1 + $0x20] sm:$0xff pattern:$0x75316420]
        %v925 = vld.sshfl [vmem:[#allocation1 + $0x28] sm:$0xff pattern:$0x75316420]
        %v926 = vld.sshfl [vmem:[#allocation1 + $0x30] sm:$0xff pattern:$0x75316420]
        %v927 = vld.sshfl [vmem:[#allocation1 + $0x38] sm:$0xff pattern:$0x75316420]
        %928 = vst [vmem:[#allocation1] ss:$2 sm:$0xff] %v591
        %929 = vst [vmem:[%s866] ss:$2 sm:$0xff] %v592
        %930 = vst [vmem:[%s868] ss:$2 sm:$0xff] %v593
        %931 = vst [vmem:[%s870] ss:$2 sm:$0xff] %v594
        %v932 = vld.sshfl [vmem:[#allocation1] sm:$0xff pattern:$0x75316420]
        %v933 = vld.sshfl [vmem:[#allocation1 + $0x8] sm:$0xff pattern:$0x75316420]
        %v934 = vld.sshfl [vmem:[#allocation1 + $0x10] sm:$0xff pattern:$0x75316420]
        %v935 = vld.sshfl [vmem:[#allocation1 + $0x18] sm:$0xff pattern:$0x75316420]
        %v936 = vld.sshfl [vmem:[#allocation1 + $0x20] sm:$0xff pattern:$0x75316420]
        %v937 = vld.sshfl [vmem:[#allocation1 + $0x28] sm:$0xff pattern:$0x75316420]
        %v938 = vld.sshfl [vmem:[#allocation1 + $0x30] sm:$0xff pattern:$0x75316420]
        %v939 = vld.sshfl [vmem:[#allocation1 + $0x38] sm:$0xff pattern:$0x75316420]
        %940 = vst [vmem:[#allocation1] ss:$2 sm:$0xff] %v595
        %941 = vst [vmem:[%s866] ss:$2 sm:$0xff] %v596
        %942 = vst [vmem:[%s868] ss:$2 sm:$0xff] %v597
        %943 = vst [vmem:[%s870] ss:$2 sm:$0xff] %v598
        %v944 = vld.sshfl [vmem:[#allocation1] sm:$0xff pattern:$0x75316420]
        %v945 = vld.sshfl [vmem:[#allocation1 + $0x8] sm:$0xff pattern:$0x75316420]
        %v946 = vld.sshfl [vmem:[#allocation1 + $0x10] sm:$0xff pattern:$0x75316420]
        %v947 = vld.sshfl [vmem:[#allocation1 + $0x18] sm:$0xff pattern:$0x75316420]
        %v948 = vld.sshfl [vmem:[#allocation1 + $0x20] sm:$0xff pattern:$0x75316420]
        %v949 = vld.sshfl [vmem:[#allocation1 + $0x28] sm:$0xff pattern:$0x75316420]
        %v950 = vld.sshfl [vmem:[#allocation1 + $0x30] sm:$0xff pattern:$0x75316420]
        %v951 = vld.sshfl [vmem:[#allocation1 + $0x38] sm:$0xff pattern:$0x75316420]
        %952 = vst [vmem:[#allocation1] ss:$2 sm:$0xff] %v599
        %953 = vst [vmem:[%s866] ss:$2 sm:$0xff] %v600
        %954 = vst [vmem:[%s868] ss:$2 sm:$0xff] %v601
        %955 = vst [vmem:[%s870] ss:$2 sm:$0xff] %v602
        %v956 = vld.sshfl [vmem:[#allocation1] sm:$0xff pattern:$0x75316420]
        %v957 = vld.sshfl [vmem:[#allocation1 + $0x8] sm:$0xff pattern:$0x75316420]
        %v958 = vld.sshfl [vmem:[#allocation1 + $0x10] sm:$0xff pattern:$0x75316420]
        %v959 = vld.sshfl [vmem:[#allocation1 + $0x18] sm:$0xff pattern:$0x75316420]
        %v960 = vld.sshfl [vmem:[#allocation1 + $0x20] sm:$0xff pattern:$0x75316420]
        %v961 = vld.sshfl [vmem:[#allocation1 + $0x28] sm:$0xff pattern:$0x75316420]
        %v962 = vld.sshfl [vmem:[#allocation1 + $0x30] sm:$0xff pattern:$0x75316420]
        %v963 = vld.sshfl [vmem:[#allocation1 + $0x38] sm:$0xff pattern:$0x75316420]
        %964 = vst [vmem:[#allocation1] ss:$2 sm:$0xff] %v603
        %965 = vst [vmem:[%s866] ss:$2 sm:$0xff] %v604
        %966 = vst [vmem:[%s868] ss:$2 sm:$0xff] %v605
        %967 = vst [vmem:[%s870] ss:$2 sm:$0xff] %v606
        %v968 = vld.sshfl [vmem:[#allocation1] sm:$0xff pattern:$0x75316420]
        %v969 = vld.sshfl [vmem:[#allocation1 + $0x8] sm:$0xff pattern:$0x75316420]
        %v970 = vld.sshfl [vmem:[#allocation1 + $0x10] sm:$0xff pattern:$0x75316420]
        %v971 = vld.sshfl [vmem:[#allocation1 + $0x18] sm:$0xff pattern:$0x75316420]
        %v972 = vld.sshfl [vmem:[#allocation1 + $0x20] sm:$0xff pattern:$0x75316420]
        %v973 = vld.sshfl [vmem:[#allocation1 + $0x28] sm:$0xff pattern:$0x75316420]
        %v974 = vld.sshfl [vmem:[#allocation1 + $0x30] sm:$0xff pattern:$0x75316420]
        %v975 = vld.sshfl [vmem:[#allocation1 + $0x38] sm:$0xff pattern:$0x75316420]
        %976 = vst [vmem:[#allocation1] ss:$2 sm:$0xff] %v607
        %977 = vst [vmem:[%s866] ss:$2 sm:$0xff] %v608
        %978 = vst [vmem:[%s868] ss:$2 sm:$0xff] %v609
        %979 = vst [vmem:[%s870] ss:$2 sm:$0xff] %v610
        %v980 = vld.sshfl [vmem:[#allocation1] sm:$0xff pattern:$0x75316420]
        %v981 = vld.sshfl [vmem:[#allocation1 + $0x8] sm:$0xff pattern:$0x75316420]
        %v982 = vld.sshfl [vmem:[#allocation1 + $0x10] sm:$0xff pattern:$0x75316420]
        %v983 = vld.sshfl [vmem:[#allocation1 + $0x18] sm:$0xff pattern:$0x75316420]
        %v984 = vld.sshfl [vmem:[#allocation1 + $0x20] sm:$0xff pattern:$0x75316420]
        %v985 = vld.sshfl [vmem:[#allocation1 + $0x28] sm:$0xff pattern:$0x75316420]
        %v986 = vld.sshfl [vmem:[#allocation1 + $0x30] sm:$0xff pattern:$0x75316420]
        %v987 = vld.sshfl [vmem:[#allocation1 + $0x38] sm:$0xff pattern:$0x75316420]
        %988 = vst [vmem:[#allocation1] ss:$2 sm:$0xff] %v611
        %989 = vst [vmem:[%s866] ss:$2 sm:$0xff] %v612
        %990 = vst [vmem:[%s868] ss:$2 sm:$0xff] %v613
        %991 = vst [vmem:[%s870] ss:$2 sm:$0xff] %v614
        %v992 = vld.sshfl [vmem:[#allocation1] sm:$0xff pattern:$0x75316420]
        %v993 = vld.sshfl [vmem:[#allocation1 + $0x8] sm:$0xff pattern:$0x75316420]
        %v994 = vld.sshfl [vmem:[#allocation1 + $0x10] sm:$0xff pattern:$0x75316420]
        %v995 = vld.sshfl [vmem:[#allocation1 + $0x18] sm:$0xff pattern:$0x75316420]
        %v996 = vld.sshfl [vmem:[#allocation1 + $0x20] sm:$0xff pattern:$0x75316420]
        %v997 = vld.sshfl [vmem:[#allocation1 + $0x28] sm:$0xff pattern:$0x75316420]
        %v998 = vld.sshfl [vmem:[#allocation1 + $0x30] sm:$0xff pattern:$0x75316420]
        %v999 = vld.sshfl [vmem:[#allocation1 + $0x38] sm:$0xff pattern:$0x75316420]
        %1000 = vst [vmem:[#allocation1] ss:$2 sm:$0xff] %v615
        %1001 = vst [vmem:[%s866] ss:$2 sm:$0xff] %v616
        %1002 = vst [vmem:[%s868] ss:$2 sm:$0xff] %v617
        %1003 = vst [vmem:[%s870] ss:$2 sm:$0xff] %v618
        %v1004 = vld.sshfl [vmem:[#allocation1] sm:$0xff pattern:$0x75316420]
        %v1005 = vld.sshfl [vmem:[#allocation1 + $0x8] sm:$0xff pattern:$0x75316420]
        %v1006 = vld.sshfl [vmem:[#allocation1 + $0x10] sm:$0xff pattern:$0x75316420]
        %v1007 = vld.sshfl [vmem:[#allocation1 + $0x18] sm:$0xff pattern:$0x75316420]
        %v1008 = vld.sshfl [vmem:[#allocation1 + $0x20] sm:$0xff pattern:$0x75316420]
        %v1009 = vld.sshfl [vmem:[#allocation1 + $0x28] sm:$0xff pattern:$0x75316420]
        %v1010 = vld.sshfl [vmem:[#allocation1 + $0x30] sm:$0xff pattern:$0x75316420]
        %v1011 = vld.sshfl [vmem:[#allocation1 + $0x38] sm:$0xff pattern:$0x75316420]
        %1012 = vst [vmem:[#allocation1] ss:$2 sm:$0xff] %v619
        %1013 = vst [vmem:[%s866] ss:$2 sm:$0xff] %v620
        %1014 = vst [vmem:[%s868] ss:$2 sm:$0xff] %v621
        %1015 = vst [vmem:[%s870] ss:$2 sm:$0xff] %v622
        %v1016 = vld.sshfl [vmem:[#allocation1] sm:$0xff pattern:$0x75316420]
        %v1017 = vld.sshfl [vmem:[#allocation1 + $0x8] sm:$0xff pattern:$0x75316420]
        %v1018 = vld.sshfl [vmem:[#allocation1 + $0x10] sm:$0xff pattern:$0x75316420]
        %v1019 = vld.sshfl [vmem:[#allocation1 + $0x18] sm:$0xff pattern:$0x75316420]
        %v1020 = vld.sshfl [vmem:[#allocation1 + $0x20] sm:$0xff pattern:$0x75316420]
        %v1021 = vld.sshfl [vmem:[#allocation1 + $0x28] sm:$0xff pattern:$0x75316420]
        %v1022 = vld.sshfl [vmem:[#allocation1 + $0x30] sm:$0xff pattern:$0x75316420]
        %v1023 = vld.sshfl [vmem:[#allocation1 + $0x38] sm:$0xff pattern:$0x75316420]
        %1024 = vst [vmem:[#allocation1] ss:$2 sm:$0xff] %v623
        %1025 = vst [vmem:[%s866] ss:$2 sm:$0xff] %v624
        %1026 = vst [vmem:[%s868] ss:$2 sm:$0xff] %v625
        %1027 = vst [vmem:[%s870] ss:$2 sm:$0xff] %v626
        %v1028 = vld.sshfl [vmem:[#allocation1] sm:$0xff pattern:$0x75316420]
        %v1029 = vld.sshfl [vmem:[#allocation1 + $0x8] sm:$0xff pattern:$0x75316420]
        %v1030 = vld.sshfl [vmem:[#allocation1 + $0x10] sm:$0xff pattern:$0x75316420]
        %v1031 = vld.sshfl [vmem:[#allocation1 + $0x18] sm:$0xff pattern:$0x75316420]
        %v1032 = vld.sshfl [vmem:[#allocation1 + $0x20] sm:$0xff pattern:$0x75316420]
        %v1033 = vld.sshfl [vmem:[#allocation1 + $0x28] sm:$0xff pattern:$0x75316420]
        %v1034 = vld.sshfl [vmem:[#allocation1 + $0x30] sm:$0xff pattern:$0x75316420]
        %v1035 = vld.sshfl [vmem:[#allocation1 + $0x38] sm:$0xff pattern:$0x75316420]
        %1036 = vst [vmem:[#allocation1] ss:$2 sm:$0xff] %v627
        %1037 = vst [vmem:[%s866] ss:$2 sm:$0xff] %v628
        %1038 = vst [vmem:[%s868] ss:$2 sm:$0xff] %v629
        %1039 = vst [vmem:[%s870] ss:$2 sm:$0xff] %v630
        %v1040 = vld.sshfl [vmem:[#allocation1] sm:$0xff pattern:$0x75316420]
        %v1041 = vld.sshfl [vmem:[#allocation1 + $0x8] sm:$0xff pattern:$0x75316420]
        %v1042 = vld.sshfl [vmem:[#allocation1 + $0x10] sm:$0xff pattern:$0x75316420]
        %v1043 = vld.sshfl [vmem:[#allocation1 + $0x18] sm:$0xff pattern:$0x75316420]
        %v1044 = vld.sshfl [vmem:[#allocation1 + $0x20] sm:$0xff pattern:$0x75316420]
        %v1045 = vld.sshfl [vmem:[#allocation1 + $0x28] sm:$0xff pattern:$0x75316420]
        %v1046 = vld.sshfl [vmem:[#allocation1 + $0x30] sm:$0xff pattern:$0x75316420]
        %v1047 = vld.sshfl [vmem:[#allocation1 + $0x38] sm:$0xff pattern:$0x75316420]
        %1048 = vst [vmem:[#allocation1] ss:$2 sm:$0xff] %v631
        %1049 = vst [vmem:[%s866] ss:$2 sm:$0xff] %v632
        %1050 = vst [vmem:[%s868] ss:$2 sm:$0xff] %v633
        %1051 = vst [vmem:[%s870] ss:$2 sm:$0xff] %v634
        %v1052 = vld.sshfl [vmem:[#allocation1] sm:$0xff pattern:$0x75316420]
        %v1053 = vld.sshfl [vmem:[#allocation1 + $0x8] sm:$0xff pattern:$0x75316420]
        %v1054 = vld.sshfl [vmem:[#allocation1 + $0x10] sm:$0xff pattern:$0x75316420]
        %v1055 = vld.sshfl [vmem:[#allocation1 + $0x18] sm:$0xff pattern:$0x75316420]
        %v1056 = vld.sshfl [vmem:[#allocation1 + $0x20] sm:$0xff pattern:$0x75316420]
        %v1057 = vld.sshfl [vmem:[#allocation1 + $0x28] sm:$0xff pattern:$0x75316420]
        %v1058 = vld.sshfl [vmem:[#allocation1 + $0x30] sm:$0xff pattern:$0x75316420]
        %v1059 = vld.sshfl [vmem:[#allocation1 + $0x38] sm:$0xff pattern:$0x75316420]
        %1060 = vst [vmem:[#allocation1] ss:$2 sm:$0xff] %v635
        %1061 = vst [vmem:[%s866] ss:$2 sm:$0xff] %v636
        %1062 = vst [vmem:[%s868] ss:$2 sm:$0xff] %v637
        %1063 = vst [vmem:[%s870] ss:$2 sm:$0xff] %v638
        %v1064 = vld.sshfl [vmem:[#allocation1] sm:$0xff pattern:$0x75316420]
        %v1065 = vld.sshfl [vmem:[#allocation1 + $0x8] sm:$0xff pattern:$0x75316420]
        %v1066 = vld.sshfl [vmem:[#allocation1 + $0x10] sm:$0xff pattern:$0x75316420]
        %v1067 = vld.sshfl [vmem:[#allocation1 + $0x18] sm:$0xff pattern:$0x75316420]
        %v1068 = vld.sshfl [vmem:[#allocation1 + $0x20] sm:$0xff pattern:$0x75316420]
        %v1069 = vld.sshfl [vmem:[#allocation1 + $0x28] sm:$0xff pattern:$0x75316420]
        %v1070 = vld.sshfl [vmem:[#allocation1 + $0x30] sm:$0xff pattern:$0x75316420]
        %v1071 = vld.sshfl [vmem:[#allocation1 + $0x38] sm:$0xff pattern:$0x75316420]
        %1072 = vst [vmem:[#allocation1] ss:$2 sm:$0xff] %v639
        %1073 = vst [vmem:[%s866] ss:$2 sm:$0xff] %v640
        %1074 = vst [vmem:[%s868] ss:$2 sm:$0xff] %v641
        %1075 = vst [vmem:[%s870] ss:$2 sm:$0xff] %v642
        %v1076 = vld.sshfl [vmem:[#allocation1] sm:$0xff pattern:$0x75316420]
        %v1077 = vld.sshfl [vmem:[#allocation1 + $0x8] sm:$0xff pattern:$0x75316420]
        %v1078 = vld.sshfl [vmem:[#allocation1 + $0x10] sm:$0xff pattern:$0x75316420]
        %v1079 = vld.sshfl [vmem:[#allocation1 + $0x18] sm:$0xff pattern:$0x75316420]
        %v1080 = vld.sshfl [vmem:[#allocation1 + $0x20] sm:$0xff pattern:$0x75316420]
        %v1081 = vld.sshfl [vmem:[#allocation1 + $0x28] sm:$0xff pattern:$0x75316420]
        %v1082 = vld.sshfl [vmem:[#allocation1 + $0x30] sm:$0xff pattern:$0x75316420]
        %v1083 = vld.sshfl [vmem:[#allocation1 + $0x38] sm:$0xff pattern:$0x75316420]
        %1084 = vst [vmem:[#allocation1] ss:$2 sm:$0xff] %v643
        %1085 = vst [vmem:[%s866] ss:$2 sm:$0xff] %v644
        %1086 = vst [vmem:[%s868] ss:$2 sm:$0xff] %v645
        %1087 = vst [vmem:[%s870] ss:$2 sm:$0xff] %v646
        %v1088 = vld.sshfl [vmem:[#allocation1] sm:$0xff pattern:$0x75316420]
        %v1089 = vld.sshfl [vmem:[#allocation1 + $0x8] sm:$0xff pattern:$0x75316420]
        %v1090 = vld.sshfl [vmem:[#allocation1 + $0x10] sm:$0xff pattern:$0x75316420]
        %v1091 = vld.sshfl [vmem:[#allocation1 + $0x18] sm:$0xff pattern:$0x75316420]
        %v1092 = vld.sshfl [vmem:[#allocation1 + $0x20] sm:$0xff pattern:$0x75316420]
        %v1093 = vld.sshfl [vmem:[#allocation1 + $0x28] sm:$0xff pattern:$0x75316420]
        %v1094 = vld.sshfl [vmem:[#allocation1 + $0x30] sm:$0xff pattern:$0x75316420]
        %v1095 = vld.sshfl [vmem:[#allocation1 + $0x38] sm:$0xff pattern:$0x75316420]
        %1096 = vst [vmem:[#allocation1] ss:$2 sm:$0xff] %v647
        %1097 = vst [vmem:[%s866] ss:$2 sm:$0xff] %v648
        %1098 = vst [vmem:[%s868] ss:$2 sm:$0xff] %v649
        %1099 = vst [vmem:[%s870] ss:$2 sm:$0xff] %v650
        %v1100 = vld.sshfl [vmem:[#allocation1] sm:$0xff pattern:$0x75316420]
        %v1101 = vld.sshfl [vmem:[#allocation1 + $0x8] sm:$0xff pattern:$0x75316420]
        %v1102 = vld.sshfl [vmem:[#allocation1 + $0x10] sm:$0xff pattern:$0x75316420]
        %v1103 = vld.sshfl [vmem:[#allocation1 + $0x18] sm:$0xff pattern:$0x75316420]
        %v1104 = vld.sshfl [vmem:[#allocation1 + $0x20] sm:$0xff pattern:$0x75316420]
        %v1105 = vld.sshfl [vmem:[#allocation1 + $0x28] sm:$0xff pattern:$0x75316420]
        %v1106 = vld.sshfl [vmem:[#allocation1 + $0x30] sm:$0xff pattern:$0x75316420]
        %v1107 = vld.sshfl [vmem:[#allocation1 + $0x38] sm:$0xff pattern:$0x75316420]
        %1108 = vst [vmem:[#allocation1] ss:$2 sm:$0xff] %v651
        %1109 = vst [vmem:[%s866] ss:$2 sm:$0xff] %v652
        %1110 = vst [vmem:[%s868] ss:$2 sm:$0xff] %v653
        %1111 = vst [vmem:[%s870] ss:$2 sm:$0xff] %v654
        %v1112 = vld.sshfl [vmem:[#allocation1] sm:$0xff pattern:$0x75316420]
        %v1113 = vld.sshfl [vmem:[#allocation1 + $0x8] sm:$0xff pattern:$0x75316420]
        %v1114 = vld.sshfl [vmem:[#allocation1 + $0x10] sm:$0xff pattern:$0x75316420]
        %v1115 = vld.sshfl [vmem:[#allocation1 + $0x18] sm:$0xff pattern:$0x75316420]
        %v1116 = vld.sshfl [vmem:[#allocation1 + $0x20] sm:$0xff pattern:$0x75316420]
        %v1117 = vld.sshfl [vmem:[#allocation1 + $0x28] sm:$0xff pattern:$0x75316420]
        %v1118 = vld.sshfl [vmem:[#allocation1 + $0x30] sm:$0xff pattern:$0x75316420]
        %v1119 = vld.sshfl [vmem:[#allocation1 + $0x38] sm:$0xff pattern:$0x75316420]
        %1120 = vst [vmem:[#allocation1] ss:$2 sm:$0xff] %v655
        %1121 = vst [vmem:[%s866] ss:$2 sm:$0xff] %v656
        %1122 = vst [vmem:[%s868] ss:$2 sm:$0xff] %v657
        %1123 = vst [vmem:[%s870] ss:$2 sm:$0xff] %v658
        %v1124 = vld.sshfl [vmem:[#allocation1] sm:$0xff pattern:$0x75316420]
        %v1125 = vld.sshfl [vmem:[#allocation1 + $0x8] sm:$0xff pattern:$0x75316420]
        %v1126 = vld.sshfl [vmem:[#allocation1 + $0x10] sm:$0xff pattern:$0x75316420]
        %v1127 = vld.sshfl [vmem:[#allocation1 + $0x18] sm:$0xff pattern:$0x75316420]
        %v1128 = vld.sshfl [vmem:[#allocation1 + $0x20] sm:$0xff pattern:$0x75316420]
        %v1129 = vld.sshfl [vmem:[#allocation1 + $0x28] sm:$0xff pattern:$0x75316420]
        %v1130 = vld.sshfl [vmem:[#allocation1 + $0x30] sm:$0xff pattern:$0x75316420]
        %v1131 = vld.sshfl [vmem:[#allocation1 + $0x38] sm:$0xff pattern:$0x75316420]
        %1132 = vst [vmem:[#allocation1] ss:$2 sm:$0xff] %v659
        %1133 = vst [vmem:[%s866] ss:$2 sm:$0xff] %v660
        %1134 = vst [vmem:[%s868] ss:$2 sm:$0xff] %v661
        %1135 = vst [vmem:[%s870] ss:$2 sm:$0xff] %v662
        %v1136 = vld.sshfl [vmem:[#allocation1] sm:$0xff pattern:$0x75316420]
        %v1137 = vld.sshfl [vmem:[#allocation1 + $0x8] sm:$0xff pattern:$0x75316420]
        %v1138 = vld.sshfl [vmem:[#allocation1 + $0x10] sm:$0xff pattern:$0x75316420]
        %v1139 = vld.sshfl [vmem:[#allocation1 + $0x18] sm:$0xff pattern:$0x75316420]
        %v1140 = vld.sshfl [vmem:[#allocation1 + $0x20] sm:$0xff pattern:$0x75316420]
        %v1141 = vld.sshfl [vmem:[#allocation1 + $0x28] sm:$0xff pattern:$0x75316420]
        %v1142 = vld.sshfl [vmem:[#allocation1 + $0x30] sm:$0xff pattern:$0x75316420]
        %v1143 = vld.sshfl [vmem:[#allocation1 + $0x38] sm:$0xff pattern:$0x75316420]
        %1144 = vst [vmem:[#allocation1] ss:$2 sm:$0xff] %v663
        %1145 = vst [vmem:[%s866] ss:$2 sm:$0xff] %v664
        %1146 = vst [vmem:[%s868] ss:$2 sm:$0xff] %v665
        %1147 = vst [vmem:[%s870] ss:$2 sm:$0xff] %v666
        %v1148 = vld.sshfl [vmem:[#allocation1] sm:$0xff pattern:$0x75316420]
        %v1149 = vld.sshfl [vmem:[#allocation1 + $0x8] sm:$0xff pattern:$0x75316420]
        %v1150 = vld.sshfl [vmem:[#allocation1 + $0x10] sm:$0xff pattern:$0x75316420]
        %v1151 = vld.sshfl [vmem:[#allocation1 + $0x18] sm:$0xff pattern:$0x75316420]
        %v1152 = vld.sshfl [vmem:[#allocation1 + $0x20] sm:$0xff pattern:$0x75316420]
        %v1153 = vld.sshfl [vmem:[#allocation1 + $0x28] sm:$0xff pattern:$0x75316420]
        %v1154 = vld.sshfl [vmem:[#allocation1 + $0x30] sm:$0xff pattern:$0x75316420]
        %v1155 = vld.sshfl [vmem:[#allocation1 + $0x38] sm:$0xff pattern:$0x75316420]
        %1156 = vst [vmem:[#allocation1] ss:$2 sm:$0xff] %v667
        %1157 = vst [vmem:[%s866] ss:$2 sm:$0xff] %v668
        %1158 = vst [vmem:[%s868] ss:$2 sm:$0xff] %v669
        %1159 = vst [vmem:[%s870] ss:$2 sm:$0xff] %v670
        %v1160 = vld.sshfl [vmem:[#allocation1] sm:$0xff pattern:$0x75316420]
        %v1161 = vld.sshfl [vmem:[#allocation1 + $0x8] sm:$0xff pattern:$0x75316420]
        %v1162 = vld.sshfl [vmem:[#allocation1 + $0x10] sm:$0xff pattern:$0x75316420]
        %v1163 = vld.sshfl [vmem:[#allocation1 + $0x18] sm:$0xff pattern:$0x75316420]
        %v1164 = vld.sshfl [vmem:[#allocation1 + $0x20] sm:$0xff pattern:$0x75316420]
        %v1165 = vld.sshfl [vmem:[#allocation1 + $0x28] sm:$0xff pattern:$0x75316420]
        %v1166 = vld.sshfl [vmem:[#allocation1 + $0x30] sm:$0xff pattern:$0x75316420]
        %v1167 = vld.sshfl [vmem:[#allocation1 + $0x38] sm:$0xff pattern:$0x75316420]
        %1168 = vst [vmem:[#allocation1] ss:$2 sm:$0xff] %v671
        %1169 = vst [vmem:[%s866] ss:$2 sm:$0xff] %v672
        %1170 = vst [vmem:[%s868] ss:$2 sm:$0xff] %v673
        %1171 = vst [vmem:[%s870] ss:$2 sm:$0xff] %v674
        %v1172 = vld.sshfl [vmem:[#allocation1] sm:$0xff pattern:$0x75316420]
        %v1173 = vld.sshfl [vmem:[#allocation1 + $0x8] sm:$0xff pattern:$0x75316420]
        %v1174 = vld.sshfl [vmem:[#allocation1 + $0x10] sm:$0xff pattern:$0x75316420]
        %v1175 = vld.sshfl [vmem:[#allocation1 + $0x18] sm:$0xff pattern:$0x75316420]
        %v1176 = vld.sshfl [vmem:[#allocation1 + $0x20] sm:$0xff pattern:$0x75316420]
        %v1177 = vld.sshfl [vmem:[#allocation1 + $0x28] sm:$0xff pattern:$0x75316420]
        %v1178 = vld.sshfl [vmem:[#allocation1 + $0x30] sm:$0xff pattern:$0x75316420]
        %v1179 = vld.sshfl [vmem:[#allocation1 + $0x38] sm:$0xff pattern:$0x75316420]
        %1180 = vst [vmem:[#allocation1] ss:$2 sm:$0xff] %v675
        %1181 = vst [vmem:[%s866] ss:$2 sm:$0xff] %v676
        %1182 = vst [vmem:[%s868] ss:$2 sm:$0xff] %v677
        %1183 = vst [vmem:[%s870] ss:$2 sm:$0xff] %v678
        %v1184 = vld.sshfl [vmem:[#allocation1] sm:$0xff pattern:$0x75316420]
        %v1185 = vld.sshfl [vmem:[#allocation1 + $0x8] sm:$0xff pattern:$0x75316420]
        %v1186 = vld.sshfl [vmem:[#allocation1 + $0x10] sm:$0xff pattern:$0x75316420]
        %v1187 = vld.sshfl [vmem:[#allocation1 + $0x18] sm:$0xff pattern:$0x75316420]
        %v1188 = vld.sshfl [vmem:[#allocation1 + $0x20] sm:$0xff pattern:$0x75316420]
        %v1189 = vld.sshfl [vmem:[#allocation1 + $0x28] sm:$0xff pattern:$0x75316420]
        %v1190 = vld.sshfl [vmem:[#allocation1 + $0x30] sm:$0xff pattern:$0x75316420]
        %v1191 = vld.sshfl [vmem:[#allocation1 + $0x38] sm:$0xff pattern:$0x75316420]
        %1192 = vst [vmem:[#allocation1] ss:$2 sm:$0xff] %v679
        %1193 = vst [vmem:[%s866] ss:$2 sm:$0xff] %v680
        %1194 = vst [vmem:[%s868] ss:$2 sm:$0xff] %v681
        %1195 = vst [vmem:[%s870] ss:$2 sm:$0xff] %v682
        %v1196 = vld.sshfl [vmem:[#allocation1] sm:$0xff pattern:$0x75316420]
        %v1197 = vld.sshfl [vmem:[#allocation1 + $0x8] sm:$0xff pattern:$0x75316420]
        %v1198 = vld.sshfl [vmem:[#allocation1 + $0x10] sm:$0xff pattern:$0x75316420]
        %v1199 = vld.sshfl [vmem:[#allocation1 + $0x18] sm:$0xff pattern:$0x75316420]
        %v1200 = vld.sshfl [vmem:[#allocation1 + $0x20] sm:$0xff pattern:$0x75316420]
        %v1201 = vld.sshfl [vmem:[#allocation1 + $0x28] sm:$0xff pattern:$0x75316420]
        %v1202 = vld.sshfl [vmem:[#allocation1 + $0x30] sm:$0xff pattern:$0x75316420]
        %v1203 = vld.sshfl [vmem:[#allocation1 + $0x38] sm:$0xff pattern:$0x75316420]
        %1204 = vst [vmem:[#allocation1] ss:$2 sm:$0xff] %v683
        %1205 = vst [vmem:[%s866] ss:$2 sm:$0xff] %v684
        %1206 = vst [vmem:[%s868] ss:$2 sm:$0xff] %v685
        %1207 = vst [vmem:[%s870] ss:$2 sm:$0xff] %v686
        %v1208 = vld.sshfl [vmem:[#allocation1] sm:$0xff pattern:$0x75316420]
        %v1209 = vld.sshfl [vmem:[#allocation1 + $0x8] sm:$0xff pattern:$0x75316420]
        %v1210 = vld.sshfl [vmem:[#allocation1 + $0x10] sm:$0xff pattern:$0x75316420]
        %v1211 = vld.sshfl [vmem:[#allocation1 + $0x18] sm:$0xff pattern:$0x75316420]
        %v1212 = vld.sshfl [vmem:[#allocation1 + $0x20] sm:$0xff pattern:$0x75316420]
        %v1213 = vld.sshfl [vmem:[#allocation1 + $0x28] sm:$0xff pattern:$0x75316420]
        %v1214 = vld.sshfl [vmem:[#allocation1 + $0x30] sm:$0xff pattern:$0x75316420]
        %v1215 = vld.sshfl [vmem:[#allocation1 + $0x38] sm:$0xff pattern:$0x75316420]
        %1216 = vst [vmem:[#allocation1] ss:$2 sm:$0xff] %v687
        %1217 = vst [vmem:[%s866] ss:$2 sm:$0xff] %v688
        %1218 = vst [vmem:[%s868] ss:$2 sm:$0xff] %v689
        %1219 = vst [vmem:[%s870] ss:$2 sm:$0xff] %v690
        %v1220 = vld.sshfl [vmem:[#allocation1] sm:$0xff pattern:$0x75316420]
        %v1221 = vld.sshfl [vmem:[#allocation1 + $0x8] sm:$0xff pattern:$0x75316420]
        %v1222 = vld.sshfl [vmem:[#allocation1 + $0x10] sm:$0xff pattern:$0x75316420]
        %v1223 = vld.sshfl [vmem:[#allocation1 + $0x18] sm:$0xff pattern:$0x75316420]
        %v1224 = vld.sshfl [vmem:[#allocation1 + $0x20] sm:$0xff pattern:$0x75316420]
        %v1225 = vld.sshfl [vmem:[#allocation1 + $0x28] sm:$0xff pattern:$0x75316420]
        %v1226 = vld.sshfl [vmem:[#allocation1 + $0x30] sm:$0xff pattern:$0x75316420]
        %v1227 = vld.sshfl [vmem:[#allocation1 + $0x38] sm:$0xff pattern:$0x75316420]
        %1228 = vst [vmem:[#allocation1] ss:$2 sm:$0xff] %v691
        %1229 = vst [vmem:[%s866] ss:$2 sm:$0xff] %v692
        %1230 = vst [vmem:[%s868] ss:$2 sm:$0xff] %v693
        %1231 = vst [vmem:[%s870] ss:$2 sm:$0xff] %v694
        %v1232 = vld.sshfl [vmem:[#allocation1] sm:$0xff pattern:$0x75316420]
        %v1233 = vld.sshfl [vmem:[#allocation1 + $0x8] sm:$0xff pattern:$0x75316420]
        %v1234 = vld.sshfl [vmem:[#allocation1 + $0x10] sm:$0xff pattern:$0x75316420]
        %v1235 = vld.sshfl [vmem:[#allocation1 + $0x18] sm:$0xff pattern:$0x75316420]
        %v1236 = vld.sshfl [vmem:[#allocation1 + $0x20] sm:$0xff pattern:$0x75316420]
        %v1237 = vld.sshfl [vmem:[#allocation1 + $0x28] sm:$0xff pattern:$0x75316420]
        %v1238 = vld.sshfl [vmem:[#allocation1 + $0x30] sm:$0xff pattern:$0x75316420]
        %v1239 = vld.sshfl [vmem:[#allocation1 + $0x38] sm:$0xff pattern:$0x75316420]
        %1240 = vst [vmem:[#allocation1] ss:$2 sm:$0xff] %v695
        %1241 = vst [vmem:[%s866] ss:$2 sm:$0xff] %v696
        %1242 = vst [vmem:[%s868] ss:$2 sm:$0xff] %v697
        %1243 = vst [vmem:[%s870] ss:$2 sm:$0xff] %v698
        %v1244 = vld.sshfl [vmem:[#allocation1] sm:$0xff pattern:$0x75316420]
        %v1245 = vld.sshfl [vmem:[#allocation1 + $0x8] sm:$0xff pattern:$0x75316420]
        %v1246 = vld.sshfl [vmem:[#allocation1 + $0x10] sm:$0xff pattern:$0x75316420]
        %v1247 = vld.sshfl [vmem:[#allocation1 + $0x18] sm:$0xff pattern:$0x75316420]
        %v1248 = vld.sshfl [vmem:[#allocation1 + $0x20] sm:$0xff pattern:$0x75316420]
        %v1249 = vld.sshfl [vmem:[#allocation1 + $0x28] sm:$0xff pattern:$0x75316420]
        %v1250 = vld.sshfl [vmem:[#allocation1 + $0x30] sm:$0xff pattern:$0x75316420]
        %v1251 = vld.sshfl [vmem:[#allocation1 + $0x38] sm:$0xff pattern:$0x75316420]
        %1252 = vst [vmem:[#allocation1] ss:$2 sm:$0xff] %v699
        %1253 = vst [vmem:[%s866] ss:$2 sm:$0xff] %v700
        %1254 = vst [vmem:[%s868] ss:$2 sm:$0xff] %v701
        %1255 = vst [vmem:[%s870] ss:$2 sm:$0xff] %v702
        %v1256 = vld.sshfl [vmem:[#allocation1] sm:$0xff pattern:$0x75316420]
        %v1257 = vld.sshfl [vmem:[#allocation1 + $0x8] sm:$0xff pattern:$0x75316420]
        %v1258 = vld.sshfl [vmem:[#allocation1 + $0x10] sm:$0xff pattern:$0x75316420]
        %v1259 = vld.sshfl [vmem:[#allocation1 + $0x18] sm:$0xff pattern:$0x75316420]
        %v1260 = vld.sshfl [vmem:[#allocation1 + $0x20] sm:$0xff pattern:$0x75316420]
        %v1261 = vld.sshfl [vmem:[#allocation1 + $0x28] sm:$0xff pattern:$0x75316420]
        %v1262 = vld.sshfl [vmem:[#allocation1 + $0x30] sm:$0xff pattern:$0x75316420]
        %v1263 = vld.sshfl [vmem:[#allocation1 + $0x38] sm:$0xff pattern:$0x75316420]
        %1264 = vst [vmem:[#allocation1] ss:$2 sm:$0xff] %v703
        %1265 = vst [vmem:[%s866] ss:$2 sm:$0xff] %v704
        %1266 = vst [vmem:[%s868] ss:$2 sm:$0xff] %v705
        %1267 = vst [vmem:[%s870] ss:$2 sm:$0xff] %v706
        %v1268 = vld.sshfl [vmem:[#allocation1] sm:$0xff pattern:$0x75316420]
        %v1269 = vld.sshfl [vmem:[#allocation1 + $0x8] sm:$0xff pattern:$0x75316420]
        %v1270 = vld.sshfl [vmem:[#allocation1 + $0x10] sm:$0xff pattern:$0x75316420]
        %v1271 = vld.sshfl [vmem:[#allocation1 + $0x18] sm:$0xff pattern:$0x75316420]
        %v1272 = vld.sshfl [vmem:[#allocation1 + $0x20] sm:$0xff pattern:$0x75316420]
        %v1273 = vld.sshfl [vmem:[#allocation1 + $0x28] sm:$0xff pattern:$0x75316420]
        %v1274 = vld.sshfl [vmem:[#allocation1 + $0x30] sm:$0xff pattern:$0x75316420]
        %v1275 = vld.sshfl [vmem:[#allocation1 + $0x38] sm:$0xff pattern:$0x75316420]
        %1276 = vst [vmem:[#allocation1] ss:$2 sm:$0xff] %v707
        %1277 = vst [vmem:[%s866] ss:$2 sm:$0xff] %v708
        %1278 = vst [vmem:[%s868] ss:$2 sm:$0xff] %v709
        %1279 = vst [vmem:[%s870] ss:$2 sm:$0xff] %v710
        %v1280 = vld.sshfl [vmem:[#allocation1] sm:$0xff pattern:$0x75316420]
        %v1281 = vld.sshfl [vmem:[#allocation1 + $0x8] sm:$0xff pattern:$0x75316420]
        %v1282 = vld.sshfl [vmem:[#allocation1 + $0x10] sm:$0xff pattern:$0x75316420]
        %v1283 = vld.sshfl [vmem:[#allocation1 + $0x18] sm:$0xff pattern:$0x75316420]
        %v1284 = vld.sshfl [vmem:[#allocation1 + $0x20] sm:$0xff pattern:$0x75316420]
        %v1285 = vld.sshfl [vmem:[#allocation1 + $0x28] sm:$0xff pattern:$0x75316420]
        %v1286 = vld.sshfl [vmem:[#allocation1 + $0x30] sm:$0xff pattern:$0x75316420]
        %v1287 = vld.sshfl [vmem:[#allocation1 + $0x38] sm:$0xff pattern:$0x75316420]
        %1288 = vst [vmem:[#allocation1] ss:$2 sm:$0xff] %v711
        %1289 = vst [vmem:[%s866] ss:$2 sm:$0xff] %v712
        %1290 = vst [vmem:[%s868] ss:$2 sm:$0xff] %v713
        %1291 = vst [vmem:[%s870] ss:$2 sm:$0xff] %v714
        %v1292 = vld.sshfl [vmem:[#allocation1] sm:$0xff pattern:$0x75316420]
        %v1293 = vld.sshfl [vmem:[#allocation1 + $0x8] sm:$0xff pattern:$0x75316420]
        %v1294 = vld.sshfl [vmem:[#allocation1 + $0x10] sm:$0xff pattern:$0x75316420]
        %v1295 = vld.sshfl [vmem:[#allocation1 + $0x18] sm:$0xff pattern:$0x75316420]
        %v1296 = vld.sshfl [vmem:[#allocation1 + $0x20] sm:$0xff pattern:$0x75316420]
        %v1297 = vld.sshfl [vmem:[#allocation1 + $0x28] sm:$0xff pattern:$0x75316420]
        %v1298 = vld.sshfl [vmem:[#allocation1 + $0x30] sm:$0xff pattern:$0x75316420]
        %v1299 = vld.sshfl [vmem:[#allocation1 + $0x38] sm:$0xff pattern:$0x75316420]
        %1300 = vst [vmem:[#allocation1] ss:$2 sm:$0xff] %v715
        %1301 = vst [vmem:[%s866] ss:$2 sm:$0xff] %v716
        %1302 = vst [vmem:[%s868] ss:$2 sm:$0xff] %v717
        %v1303 = vld.sshfl [vmem:[#allocation1] sm:$0xff pattern:$0x75316420]
        %v1304 = vld.sshfl [vmem:[#allocation1 + $0x8] sm:$0xff pattern:$0x75316420]
        %v1305 = vld.sshfl [vmem:[#allocation1 + $0x10] sm:$0xff pattern:$0x75316420]
        %v1306 = vld.sshfl [vmem:[#allocation1 + $0x18] sm:$0xff pattern:$0x75316420]
        %v1307 = vld.sshfl [vmem:[#allocation1 + $0x20] sm:$0xff pattern:$0x75316420]
        %v1308 = vld.sshfl [vmem:[#allocation1 + $0x28] sm:$0xff pattern:$0x75316420]
        %v1603 = vpack.c.bf16 %v872, %v872
        %v1604 = vpack.c.bf16 %v873, %v873
        %v1605 = vpack.c.bf16 %v874, %v874
        %v1606 = vpack.c.bf16 %v875, %v875
        %v1607 = vpack.c.bf16 %v876, %v876
        %v1608 = vpack.c.bf16 %v877, %v877
        %v1609 = vpack.c.bf16 %v878, %v878
        %v1610 = vpack.c.bf16 %v879, %v879
        %v1611 = vpack.c.bf16 %v884, %v884
        %v1612 = vpack.c.bf16 %v885, %v885
        %v1613 = vpack.c.bf16 %v886, %v886
        %v1614 = vpack.c.bf16 %v887, %v887
        %v1615 = vpack.c.bf16 %v888, %v888
        %v1616 = vpack.c.bf16 %v889, %v889
        %v1617 = vpack.c.bf16 %v890, %v890
        %v1618 = vpack.c.bf16 %v891, %v891
        %v1619 = vpack.c.bf16 %v896, %v896
        %v1620 = vpack.c.bf16 %v897, %v897
        %v1621 = vpack.c.bf16 %v898, %v898
        %v1622 = vpack.c.bf16 %v899, %v899
        %v1623 = vpack.c.bf16 %v900, %v900
        %v1624 = vpack.c.bf16 %v901, %v901
        %v1625 = vpack.c.bf16 %v902, %v902
        %v1626 = vpack.c.bf16 %v903, %v903
        %v1627 = vpack.c.bf16 %v908, %v908
        %v1628 = vpack.c.bf16 %v909, %v909
        %v1629 = vpack.c.bf16 %v910, %v910
        %v1630 = vpack.c.bf16 %v911, %v911
        %v1631 = vpack.c.bf16 %v912, %v912
        %v1632 = vpack.c.bf16 %v913, %v913
        %v1633 = vpack.c.bf16 %v914, %v914
        %v1634 = vpack.c.bf16 %v915, %v915
        %v1635 = vpack.c.bf16 %v920, %v920
        %v1636 = vpack.c.bf16 %v921, %v921
        %v1637 = vpack.c.bf16 %v922, %v922
        %v1638 = vpack.c.bf16 %v923, %v923
        %v1639 = vpack.c.bf16 %v924, %v924
        %v1640 = vpack.c.bf16 %v925, %v925
        %v1641 = vpack.c.bf16 %v926, %v926
        %v1642 = vpack.c.bf16 %v927, %v927
        %v1643 = vpack.c.bf16 %v932, %v932
        %v1644 = vpack.c.bf16 %v933, %v933
        %v1645 = vpack.c.bf16 %v934, %v934
        %v1646 = vpack.c.bf16 %v935, %v935
        %v1647 = vpack.c.bf16 %v936, %v936
        %v1648 = vpack.c.bf16 %v937, %v937
        %v1649 = vpack.c.bf16 %v938, %v938
        %v1650 = vpack.c.bf16 %v939, %v939
        %v1651 = vpack.c.bf16 %v944, %v944
        %v1652 = vpack.c.bf16 %v945, %v945
        %v1653 = vpack.c.bf16 %v946, %v946
        %v1654 = vpack.c.bf16 %v947, %v947
        %v1655 = vpack.c.bf16 %v948, %v948
        %v1656 = vpack.c.bf16 %v949, %v949
        %v1657 = vpack.c.bf16 %v950, %v950
        %v1658 = vpack.c.bf16 %v951, %v951
        %v1659 = vpack.c.bf16 %v956, %v956
        %v1660 = vpack.c.bf16 %v957, %v957
        %v1661 = vpack.c.bf16 %v958, %v958
        %v1662 = vpack.c.bf16 %v959, %v959
        %v1663 = vpack.c.bf16 %v960, %v960
        %v1664 = vpack.c.bf16 %v961, %v961
        %v1665 = vpack.c.bf16 %v962, %v962
        %v1666 = vpack.c.bf16 %v963, %v963
        %v1667 = vpack.c.bf16 %v968, %v968
        %v1668 = vpack.c.bf16 %v969, %v969
        %v1669 = vpack.c.bf16 %v970, %v970
        %v1670 = vpack.c.bf16 %v971, %v971
        %v1671 = vpack.c.bf16 %v972, %v972
        %v1672 = vpack.c.bf16 %v973, %v973
        %v1673 = vpack.c.bf16 %v974, %v974
        %v1674 = vpack.c.bf16 %v975, %v975
        %v1675 = vpack.c.bf16 %v980, %v980
        %v1676 = vpack.c.bf16 %v981, %v981
        %v1677 = vpack.c.bf16 %v982, %v982
        %v1678 = vpack.c.bf16 %v983, %v983
        %v1679 = vpack.c.bf16 %v984, %v984
        %v1680 = vpack.c.bf16 %v985, %v985
        %v1681 = vpack.c.bf16 %v986, %v986
        %v1682 = vpack.c.bf16 %v987, %v987
        %v1683 = vpack.c.bf16 %v992, %v992
        %v1684 = vpack.c.bf16 %v993, %v993
        %v1685 = vpack.c.bf16 %v994, %v994
        %v1686 = vpack.c.bf16 %v995, %v995
        %v1687 = vpack.c.bf16 %v996, %v996
        %v1688 = vpack.c.bf16 %v997, %v997
        %v1689 = vpack.c.bf16 %v998, %v998
        %v1690 = vpack.c.bf16 %v999, %v999
        %v1691 = vpack.c.bf16 %v1004, %v1004
        %v1692 = vpack.c.bf16 %v1005, %v1005
        %v1693 = vpack.c.bf16 %v1006, %v1006
        %v1694 = vpack.c.bf16 %v1007, %v1007
        %v1695 = vpack.c.bf16 %v1008, %v1008
        %v1696 = vpack.c.bf16 %v1009, %v1009
        %v1697 = vpack.c.bf16 %v1010, %v1010
        %v1698 = vpack.c.bf16 %v1011, %v1011
        %v1699 = vpack.c.bf16 %v1016, %v1016
        %v1700 = vpack.c.bf16 %v1017, %v1017
        %v1701 = vpack.c.bf16 %v1018, %v1018
        %v1702 = vpack.c.bf16 %v1019, %v1019
        %v1703 = vpack.c.bf16 %v1020, %v1020
        %v1704 = vpack.c.bf16 %v1021, %v1021
        %v1705 = vpack.c.bf16 %v1022, %v1022
        %v1706 = vpack.c.bf16 %v1023, %v1023
        %v1707 = vpack.c.bf16 %v1028, %v1028
        %v1708 = vpack.c.bf16 %v1029, %v1029
        %v1709 = vpack.c.bf16 %v1030, %v1030
        %v1710 = vpack.c.bf16 %v1031, %v1031
        %v1711 = vpack.c.bf16 %v1032, %v1032
        %v1712 = vpack.c.bf16 %v1033, %v1033
        %v1713 = vpack.c.bf16 %v1034, %v1034
        %v1714 = vpack.c.bf16 %v1035, %v1035
        %v1715 = vpack.c.bf16 %v1040, %v1040
        %v1716 = vpack.c.bf16 %v1041, %v1041
        %v1717 = vpack.c.bf16 %v1042, %v1042
        %v1718 = vpack.c.bf16 %v1043, %v1043
        %v1719 = vpack.c.bf16 %v1044, %v1044
        %v1720 = vpack.c.bf16 %v1045, %v1045
        %v1721 = vpack.c.bf16 %v1046, %v1046
        %v1722 = vpack.c.bf16 %v1047, %v1047
        %v1723 = vpack.c.bf16 %v1052, %v1052
        %v1724 = vpack.c.bf16 %v1053, %v1053
        %v1725 = vpack.c.bf16 %v1054, %v1054
        %v1726 = vpack.c.bf16 %v1055, %v1055
        %v1727 = vpack.c.bf16 %v1056, %v1056
        %v1728 = vpack.c.bf16 %v1057, %v1057
        %v1729 = vpack.c.bf16 %v1058, %v1058
        %v1730 = vpack.c.bf16 %v1059, %v1059
        %v1731 = vpack.c.bf16 %v1064, %v1064
        %v1732 = vpack.c.bf16 %v1065, %v1065
        %v1733 = vpack.c.bf16 %v1066, %v1066
        %v1734 = vpack.c.bf16 %v1067, %v1067
        %v1735 = vpack.c.bf16 %v1068, %v1068
        %v1736 = vpack.c.bf16 %v1069, %v1069
        %v1737 = vpack.c.bf16 %v1070, %v1070
        %v1738 = vpack.c.bf16 %v1071, %v1071
        %v1739 = vpack.c.bf16 %v1076, %v1076
        %v1740 = vpack.c.bf16 %v1077, %v1077
        %v1741 = vpack.c.bf16 %v1078, %v1078
        %v1742 = vpack.c.bf16 %v1079, %v1079
        %v1743 = vpack.c.bf16 %v1080, %v1080
        %v1744 = vpack.c.bf16 %v1081, %v1081
        %v1745 = vpack.c.bf16 %v1082, %v1082
        %v1746 = vpack.c.bf16 %v1083, %v1083
        %v1747 = vpack.c.bf16 %v1088, %v1088
        %v1748 = vpack.c.bf16 %v1089, %v1089
        %v1749 = vpack.c.bf16 %v1090, %v1090
        %v1750 = vpack.c.bf16 %v1091, %v1091
        %v1751 = vpack.c.bf16 %v1092, %v1092
        %v1752 = vpack.c.bf16 %v1093, %v1093
        %v1753 = vpack.c.bf16 %v1094, %v1094
        %v1754 = vpack.c.bf16 %v1095, %v1095
        %v1755 = vpack.c.bf16 %v1100, %v1100
        %v1756 = vpack.c.bf16 %v1101, %v1101
        %v1757 = vpack.c.bf16 %v1102, %v1102
        %v1758 = vpack.c.bf16 %v1103, %v1103
        %v1759 = vpack.c.bf16 %v1104, %v1104
        %v1760 = vpack.c.bf16 %v1105, %v1105
        %v1761 = vpack.c.bf16 %v1106, %v1106
        %v1762 = vpack.c.bf16 %v1107, %v1107
        %v1763 = vpack.c.bf16 %v1112, %v1112
        %v1764 = vpack.c.bf16 %v1113, %v1113
        %v1765 = vpack.c.bf16 %v1114, %v1114
        %v1766 = vpack.c.bf16 %v1115, %v1115
        %v1767 = vpack.c.bf16 %v1116, %v1116
        %v1768 = vpack.c.bf16 %v1117, %v1117
        %v1769 = vpack.c.bf16 %v1118, %v1118
        %v1770 = vpack.c.bf16 %v1119, %v1119
        %v1771 = vpack.c.bf16 %v1124, %v1124
        %v1772 = vpack.c.bf16 %v1125, %v1125
        %v1773 = vpack.c.bf16 %v1126, %v1126
        %v1774 = vpack.c.bf16 %v1127, %v1127
        %v1775 = vpack.c.bf16 %v1128, %v1128
        %v1776 = vpack.c.bf16 %v1129, %v1129
        %v1777 = vpack.c.bf16 %v1130, %v1130
        %v1778 = vpack.c.bf16 %v1131, %v1131
        %v1779 = vpack.c.bf16 %v1136, %v1136
        %v1780 = vpack.c.bf16 %v1137, %v1137
        %v1781 = vpack.c.bf16 %v1138, %v1138
        %v1782 = vpack.c.bf16 %v1139, %v1139
        %v1783 = vpack.c.bf16 %v1140, %v1140
        %v1784 = vpack.c.bf16 %v1141, %v1141
        %v1785 = vpack.c.bf16 %v1142, %v1142
        %v1786 = vpack.c.bf16 %v1143, %v1143
        %v1787 = vpack.c.bf16 %v1148, %v1148
        %v1788 = vpack.c.bf16 %v1149, %v1149
        %v1789 = vpack.c.bf16 %v1150, %v1150
        %v1790 = vpack.c.bf16 %v1151, %v1151
        %v1791 = vpack.c.bf16 %v1152, %v1152
        %v1792 = vpack.c.bf16 %v1153, %v1153
        %v1793 = vpack.c.bf16 %v1154, %v1154
        %v1794 = vpack.c.bf16 %v1155, %v1155
        %v1795 = vpack.c.bf16 %v1160, %v1160
        %v1796 = vpack.c.bf16 %v1161, %v1161
        %v1797 = vpack.c.bf16 %v1162, %v1162
        %v1798 = vpack.c.bf16 %v1163, %v1163
        %v1799 = vpack.c.bf16 %v1164, %v1164
        %v1800 = vpack.c.bf16 %v1165, %v1165
        %v1801 = vpack.c.bf16 %v1166, %v1166
        %v1802 = vpack.c.bf16 %v1167, %v1167
        %v1803 = vpack.c.bf16 %v1172, %v1172
        %v1804 = vpack.c.bf16 %v1173, %v1173
        %v1805 = vpack.c.bf16 %v1174, %v1174
        %v1806 = vpack.c.bf16 %v1175, %v1175
        %v1807 = vpack.c.bf16 %v1176, %v1176
        %v1808 = vpack.c.bf16 %v1177, %v1177
        %v1809 = vpack.c.bf16 %v1178, %v1178
        %v1810 = vpack.c.bf16 %v1179, %v1179
        %v1811 = vpack.c.bf16 %v1184, %v1184
        %v1812 = vpack.c.bf16 %v1185, %v1185
        %v1813 = vpack.c.bf16 %v1186, %v1186
        %v1814 = vpack.c.bf16 %v1187, %v1187
        %v1815 = vpack.c.bf16 %v1188, %v1188
        %v1816 = vpack.c.bf16 %v1189, %v1189
        %v1817 = vpack.c.bf16 %v1190, %v1190
        %v1818 = vpack.c.bf16 %v1191, %v1191
        %v1819 = vpack.c.bf16 %v1196, %v1196
        %v1820 = vpack.c.bf16 %v1197, %v1197
        %v1821 = vpack.c.bf16 %v1198, %v1198
        %v1822 = vpack.c.bf16 %v1199, %v1199
        %v1823 = vpack.c.bf16 %v1200, %v1200
        %v1824 = vpack.c.bf16 %v1201, %v1201
        %v1825 = vpack.c.bf16 %v1202, %v1202
        %v1826 = vpack.c.bf16 %v1203, %v1203
        %v1827 = vpack.c.bf16 %v1208, %v1208
        %v1828 = vpack.c.bf16 %v1209, %v1209
        %v1829 = vpack.c.bf16 %v1210, %v1210
        %v1830 = vpack.c.bf16 %v1211, %v1211
        %v1831 = vpack.c.bf16 %v1212, %v1212
        %v1832 = vpack.c.bf16 %v1213, %v1213
        %v1833 = vpack.c.bf16 %v1214, %v1214
        %v1834 = vpack.c.bf16 %v1215, %v1215
        %v1835 = vpack.c.bf16 %v1220, %v1220
        %v1836 = vpack.c.bf16 %v1221, %v1221
        %v1837 = vpack.c.bf16 %v1222, %v1222
        %v1838 = vpack.c.bf16 %v1223, %v1223
        %v1839 = vpack.c.bf16 %v1224, %v1224
        %v1840 = vpack.c.bf16 %v1225, %v1225
        %v1841 = vpack.c.bf16 %v1226, %v1226
        %v1842 = vpack.c.bf16 %v1227, %v1227
        %v1843 = vpack.c.bf16 %v1232, %v1232
        %v1844 = vpack.c.bf16 %v1233, %v1233
        %v1845 = vpack.c.bf16 %v1234, %v1234
        %v1846 = vpack.c.bf16 %v1235, %v1235
        %v1847 = vpack.c.bf16 %v1236, %v1236
        %v1848 = vpack.c.bf16 %v1237, %v1237
        %v1849 = vpack.c.bf16 %v1238, %v1238
        %v1850 = vpack.c.bf16 %v1239, %v1239
        %v1851 = vpack.c.bf16 %v1244, %v1244
        %v1852 = vpack.c.bf16 %v1245, %v1245
        %v1853 = vpack.c.bf16 %v1246, %v1246
        %v1854 = vpack.c.bf16 %v1247, %v1247
        %v1855 = vpack.c.bf16 %v1248, %v1248
        %v1856 = vpack.c.bf16 %v1249, %v1249
        %v1857 = vpack.c.bf16 %v1250, %v1250
        %v1858 = vpack.c.bf16 %v1251, %v1251
        %v1859 = vpack.c.bf16 %v1256, %v1256
        %v1860 = vpack.c.bf16 %v1257, %v1257
        %v1861 = vpack.c.bf16 %v1258, %v1258
        %v1862 = vpack.c.bf16 %v1259, %v1259
        %v1863 = vpack.c.bf16 %v1260, %v1260
        %v1864 = vpack.c.bf16 %v1261, %v1261
        %v1865 = vpack.c.bf16 %v1262, %v1262
        %v1866 = vpack.c.bf16 %v1263, %v1263
        %v1867 = vpack.c.bf16 %v1268, %v1268
        %v1868 = vpack.c.bf16 %v1269, %v1269
        %v1869 = vpack.c.bf16 %v1270, %v1270
        %v1870 = vpack.c.bf16 %v1271, %v1271
        %v1871 = vpack.c.bf16 %v1272, %v1272
        %v1872 = vpack.c.bf16 %v1273, %v1273
        %v1873 = vpack.c.bf16 %v1274, %v1274
        %v1874 = vpack.c.bf16 %v1275, %v1275
        %v1875 = vpack.c.bf16 %v1280, %v1280
        %v1876 = vpack.c.bf16 %v1281, %v1281
        %v1877 = vpack.c.bf16 %v1282, %v1282
        %v1878 = vpack.c.bf16 %v1283, %v1283
        %v1879 = vpack.c.bf16 %v1284, %v1284
        %v1880 = vpack.c.bf16 %v1285, %v1285
        %v1881 = vpack.c.bf16 %v1286, %v1286
        %v1882 = vpack.c.bf16 %v1287, %v1287
        %v1883 = vpack.c.bf16 %v1292, %v1292
        %v1884 = vpack.c.bf16 %v1293, %v1293
        %v1885 = vpack.c.bf16 %v1294, %v1294
        %v1886 = vpack.c.bf16 %v1295, %v1295
        %v1887 = vpack.c.bf16 %v1296, %v1296
        %v1888 = vpack.c.bf16 %v1297, %v1297
        %v1889 = vpack.c.bf16 %v1298, %v1298
        %v1890 = vpack.c.bf16 %v1299, %v1299
        %v1891 = vpack.c.bf16 %v1303, %v1303
        %v1892 = vpack.c.bf16 %v1304, %v1304
        %v1893 = vpack.c.bf16 %v1305, %v1305
        %v1894 = vpack.c.bf16 %v1306, %v1306
        %v1895 = vpack.c.bf16 %v1307, %v1307
        %v1896 = vpack.c.bf16 %v1308, %v1308
        %v1897 = vld [vmem:[%s226] sm:$0x3]
        %v1898 = vld [vmem:[%s200] sm:$0xff]
        %v1899 = vld [vmem:[%s200 + $0x8] sm:$0xff]
        %v1900 = vld [vmem:[%s200 + $0x10] sm:$0xff]
        %v1901 = vld [vmem:[%s200 + $0x18] sm:$0xff]
        %v1902 = vld [vmem:[%s200 + $0x20] sm:$0xff]
        %v1903 = vld [vmem:[%s200 + $0x28] sm:$0xff]
        %v1904 = vld [vmem:[%s200 + $0x30] sm:$0xff]
        %v1905 = vld [vmem:[%s200 + $0x38] sm:$0xff]
        %v1906 = vld [vmem:[%s200 + $0x40] sm:$0xff]
        %v1907 = vld [vmem:[%s200 + $0x48] sm:$0xff]
        %v1908 = vld [vmem:[%s200 + $0x50] sm:$0xff]
        %v1909 = vld [vmem:[%s200 + $0x58] sm:$0xff]
        %v1910 = vld [vmem:[%s200 + $0x60] sm:$0xff]
        %v1911 = vld [vmem:[%s200 + $0x68] sm:$0xff]
        %v1912 = vld [vmem:[%s200 + $0x70] sm:$0xff]
        %v1913 = vld [vmem:[%s200 + $0x78] sm:$0xff]
        %v1914 = vld [vmem:[%s200 + $0x80] sm:$0xff]
        %v1915 = vld [vmem:[%s200 + $0x88] sm:$0xff]
        %v1916 = vld [vmem:[%s200 + $0x90] sm:$0xff]
        %v1917 = vld [vmem:[%s200 + $0x98] sm:$0xff]
        %v1918 = vld [vmem:[%s200 + $0xa0] sm:$0xff]
        %v1919 = vld [vmem:[%s200 + $0xa8] sm:$0xff]
        %v1920 = vld [vmem:[%s200 + $0xb0] sm:$0xff]
        %v1921 = vld [vmem:[%s200 + $0xb8] sm:$0xff]
        %v1922 = vld [vmem:[%s200 + $0xc0] sm:$0xff]
        %v1923 = vld [vmem:[%s200 + $0xc8] sm:$0xff]
        %v1924 = vld [vmem:[%s200 + $0xd0] sm:$0xff]
        %v1925 = vld [vmem:[%s200 + $0xd8] sm:$0xff]
        %v1926 = vld [vmem:[%s200 + $0xe0] sm:$0xff]
        %v1927 = vld [vmem:[%s200 + $0xe8] sm:$0xff]
        %v1928 = vld [vmem:[%s200 + $0xf0] sm:$0xff]
        %v1929 = vld [vmem:[%s200 + $0xf8] sm:$0xff]
        %v1930 = vld [vmem:[%s200 + $0x100] sm:$0xff]
        %v1931 = vld [vmem:[%s200 + $0x108] sm:$0xff]
        %v1932 = vld [vmem:[%s200 + $0x110] sm:$0xff]
        %v1933 = vld [vmem:[%s200 + $0x118] sm:$0xff]
        %v1934 = vld [vmem:[%s200 + $0x120] sm:$0xff]
        %v1935 = vld [vmem:[%s200 + $0x128] sm:$0xff]
        %v1936 = vld [vmem:[%s200 + $0x130] sm:$0xff]
        %v1937 = vld [vmem:[%s200 + $0x138] sm:$0xff]
        %v1938 = vld [vmem:[%s200 + $0x140] sm:$0xff]
        %v1939 = vld [vmem:[%s200 + $0x148] sm:$0xff]
        %v1940 = vld [vmem:[%s200 + $0x150] sm:$0xff]
        %v1941 = vld [vmem:[%s200 + $0x158] sm:$0xff]
        %v1942 = vld [vmem:[%s200 + $0x160] sm:$0xff]
        %v1943 = vld [vmem:[%s200 + $0x168] sm:$0xff]
        %v1944 = vld [vmem:[%s200 + $0x170] sm:$0xff]
        %v1945 = vld [vmem:[%s200 + $0x178] sm:$0xff]
        %v1946 = vld [vmem:[%s200 + $0x180] sm:$0xff]
        %v1947 = vld [vmem:[%s200 + $0x188] sm:$0xff]
        %v1948 = vld [vmem:[%s200 + $0x190] sm:$0xff]
        %v1949 = vld [vmem:[%s200 + $0x198] sm:$0xff]
        %v1950 = vld [vmem:[%s200 + $0x1a0] sm:$0xff]
        %v1951 = vld [vmem:[%s200 + $0x1a8] sm:$0xff]
        %v1952 = vld [vmem:[%s200 + $0x1b0] sm:$0xff]
        %v1953 = vld [vmem:[%s200 + $0x1b8] sm:$0xff]
        %v1954 = vld [vmem:[%s200 + $0x1c0] sm:$0xff]
        %v1955 = vld [vmem:[%s200 + $0x1c8] sm:$0xff]
        %v1956 = vld [vmem:[%s200 + $0x1d0] sm:$0xff]
        %v1957 = vld [vmem:[%s200 + $0x1d8] sm:$0xff]
        %v1958 = vld [vmem:[%s200 + $0x1e0] sm:$0xff]
        %v1959 = vld [vmem:[%s200 + $0x1e8] sm:$0xff]
        %v1960 = vld [vmem:[%s200 + $0x1f0] sm:$0xff]
        %v1961 = vld [vmem:[%s200 + $0x1f8] sm:$0xff]
        %v1962 = vld [vmem:[%s200 + $0x200] sm:$0xff]
        %v1963 = vld [vmem:[%s200 + $0x208] sm:$0xff]
        %v1964 = vld [vmem:[%s200 + $0x210] sm:$0xff]
        %v1965 = vld [vmem:[%s200 + $0x218] sm:$0xff]
        %v1966 = vld [vmem:[%s200 + $0x220] sm:$0xff]
        %v1967 = vld [vmem:[%s200 + $0x228] sm:$0xff]
        %v1968 = vld [vmem:[%s200 + $0x230] sm:$0xff]
        %v1969 = vld [vmem:[%s200 + $0x238] sm:$0xff]
        %v1970 = vld [vmem:[%s200 + $0x240] sm:$0xff]
        %v1971 = vld [vmem:[%s200 + $0x248] sm:$0xff]
        %v1972 = vld [vmem:[%s200 + $0x250] sm:$0xff]
        %v1973 = vld [vmem:[%s200 + $0x258] sm:$0xff]
        %v1974 = vld [vmem:[%s200 + $0x260] sm:$0xff]
        %v1975 = vld [vmem:[%s200 + $0x268] sm:$0xff]
        %v1976 = vld [vmem:[%s200 + $0x270] sm:$0xff]
        %v1977 = vld [vmem:[%s200 + $0x278] sm:$0xff]
        %v1978 = vld [vmem:[%s200 + $0x280] sm:$0xff]
        %v1979 = vld [vmem:[%s200 + $0x288] sm:$0xff]
        %v1980 = vld [vmem:[%s200 + $0x290] sm:$0xff]
        %v1981 = vld [vmem:[%s200 + $0x298] sm:$0xff]
        %v1982 = vld [vmem:[%s200 + $0x2a0] sm:$0xff]
        %v1983 = vld [vmem:[%s200 + $0x2a8] sm:$0xff]
        %v1984 = vld [vmem:[%s200 + $0x2b0] sm:$0xff]
        %v1985 = vld [vmem:[%s200 + $0x2b8] sm:$0xff]
        %v1986 = vld [vmem:[%s200 + $0x2c0] sm:$0xff]
        %v1987 = vld [vmem:[%s200 + $0x2c8] sm:$0xff]
        %v1988 = vld [vmem:[%s200 + $0x2d0] sm:$0xff]
        %v1989 = vld [vmem:[%s200 + $0x2d8] sm:$0xff]
        %v1990 = vld [vmem:[%s200 + $0x2e0] sm:$0xff]
        %v1991 = vld [vmem:[%s200 + $0x2e8] sm:$0xff]
        %v1992 = vld [vmem:[%s200 + $0x2f0] sm:$0xff]
        %v1993 = vld [vmem:[%s200 + $0x2f8] sm:$0xff]
        %v1994 = vld [vmem:[%s200 + $0x300] sm:$0xff]
        %v1995 = vld [vmem:[%s200 + $0x308] sm:$0xff]
        %v1996 = vld [vmem:[%s200 + $0x310] sm:$0xff]
        %v1997 = vld [vmem:[%s200 + $0x318] sm:$0xff]
        %v1998 = vld [vmem:[%s200 + $0x320] sm:$0xff]
        %v1999 = vld [vmem:[%s200 + $0x328] sm:$0xff]
        %v2000 = vld [vmem:[%s200 + $0x330] sm:$0xff]
        %v2001 = vld [vmem:[%s200 + $0x338] sm:$0xff]
        %v2002 = vld [vmem:[%s200 + $0x340] sm:$0xff]
        %v2003 = vld [vmem:[%s200 + $0x348] sm:$0xff]
        %v2004 = vld [vmem:[%s200 + $0x350] sm:$0xff]
        %v2005 = vld [vmem:[%s200 + $0x358] sm:$0xff]
        %v2006 = vld [vmem:[%s200 + $0x360] sm:$0xff]
        %v2007 = vld [vmem:[%s200 + $0x368] sm:$0xff]
        %v2008 = vld [vmem:[%s200 + $0x370] sm:$0xff]
        %v2009 = vld [vmem:[%s200 + $0x378] sm:$0xff]
        %v2010 = vld [vmem:[%s200 + $0x380] sm:$0xff]
        %v2011 = vld [vmem:[%s200 + $0x388] sm:$0xff]
        %v2012 = vld [vmem:[%s200 + $0x390] sm:$0xff]
        %v2013 = vld [vmem:[%s200 + $0x398] sm:$0xff]
        %v2014 = vld [vmem:[%s200 + $0x3a0] sm:$0xff]
        %v2015 = vld [vmem:[%s200 + $0x3a8] sm:$0xff]
        %v2016 = vld [vmem:[%s200 + $0x3b0] sm:$0xff]
        %v2017 = vld [vmem:[%s200 + $0x3b8] sm:$0xff]
        %v2018 = vld [vmem:[%s200 + $0x3c0] sm:$0xff]
        %v2019 = vld [vmem:[%s200 + $0x3c8] sm:$0xff]
        %v2020 = vld [vmem:[%s200 + $0x3d0] sm:$0xff]
        %v2021 = vld [vmem:[%s200 + $0x3d8] sm:$0xff]
        %v2022 = vld [vmem:[%s200 + $0x3e0] sm:$0xff]
        %v2023 = vld [vmem:[%s200 + $0x3e8] sm:$0xff]
        %v2024 = vld [vmem:[%s200 + $0x3f0] sm:$0xff]
        %v2025 = vld [vmem:[%s200 + $0x3f8] sm:$0xff]
        %v2026 = vld [vmem:[%s200 + $0x400] sm:$0xff]
        %v2027 = vld [vmem:[%s200 + $0x408] sm:$0xff]
        %v2028 = vld [vmem:[%s200 + $0x410] sm:$0xff]
        %v2029 = vld [vmem:[%s200 + $0x418] sm:$0xff]
        %v2030 = vld [vmem:[%s200 + $0x420] sm:$0xff]
        %v2031 = vld [vmem:[%s200 + $0x428] sm:$0xff]
        %v2032 = vld [vmem:[%s200 + $0x430] sm:$0xff]
        %v2033 = vld [vmem:[%s200 + $0x438] sm:$0xff]
        %v2034 = vld [vmem:[%s200 + $0x440] sm:$0xff]
        %v2035 = vld [vmem:[%s200 + $0x448] sm:$0xff]
        %v2036 = vld [vmem:[%s200 + $0x450] sm:$0xff]
        %v2037 = vld [vmem:[%s200 + $0x458] sm:$0xff]
        %v2038 = vld [vmem:[%s200 + $0x460] sm:$0xff]
        %v2039 = vld [vmem:[%s200 + $0x468] sm:$0xff]
        %v2040 = vld [vmem:[%s200 + $0x470] sm:$0xff]
        %v2041 = vld [vmem:[%s200 + $0x478] sm:$0xff]
        %v2042 = vld [vmem:[%s200 + $0x480] sm:$0xff]
        %v2043 = vld [vmem:[%s200 + $0x488] sm:$0xff]
        %v2044 = vld [vmem:[%s200 + $0x490] sm:$0xff]
        %v2045 = vld [vmem:[%s200 + $0x498] sm:$0x11]
        %v2046 = vld [vmem:[%s200 + $0x4a0] sm:$0x11]
        %v2047 = vld [vmem:[%s200 + $0x4a8] sm:$0x11]
        %v2048 = vld [vmem:[%s200 + $0x4b0] sm:$0x11]
        %v2049 = vld [vmem:[%s200 + $0x4b8] sm:$0x11]
        %v2050 = vld [vmem:[%s200 + $0x4c0] sm:$0x11]
        %v2051 = vld [vmem:[%s200 + $0x4c8] sm:$0x11]
        %v2052 = vld [vmem:[%s200 + $0x4d0] sm:$0x11]
        %v2053 = vld [vmem:[%s200 + $0x4d8] sm:$0x11]
        %v2054 = vld [vmem:[%s200 + $0x4e0] sm:$0x11]
        %v2055 = vld [vmem:[%s200 + $0x4e8] sm:$0x11]
        %v2056 = vld [vmem:[%s200 + $0x4f0] sm:$0x11]
        %v2057 = vld [vmem:[%s200 + $0x4f8] sm:$0x11]
        %v2058 = vld [vmem:[%s200 + $0x500] sm:$0x11]
        %v2059 = vld [vmem:[%s200 + $0x508] sm:$0x11]
        %v2060 = vld [vmem:[%s200 + $0x510] sm:$0x11]
        %v2061 = vld [vmem:[%s200 + $0x518] sm:$0x11]
        %v2062 = vld [vmem:[%s200 + $0x520] sm:$0x11]
        %v2063 = vld [vmem:[%s200 + $0x528] sm:$0x11]
        %v2064 = vld [vmem:[%s200 + $0x530] sm:$0x11]
        %v2065 = vld [vmem:[%s200 + $0x538] sm:$0x11]
        %v2066 = vld [vmem:[%s200 + $0x540] sm:$0x11]
        %v2067 = vld [vmem:[%s200 + $0x548] sm:$0x11]
        %v2068 = vld [vmem:[%s200 + $0x550] sm:$0x11]
        %v2069 = vld [vmem:[%s200 + $0x558] sm:$0x11]
        %v2070 = vld [vmem:[%s200 + $0x560] sm:$0x11]
        %v2071 = vld [vmem:[%s200 + $0x568] sm:$0x11]
        %v2072 = vld [vmem:[%s200 + $0x570] sm:$0x11]
        %v2073 = vld [vmem:[%s200 + $0x578] sm:$0x11]
        %v2074 = vld [vmem:[%s200 + $0x580] sm:$0x11]
        %v2075 = vld [vmem:[%s200 + $0x588] sm:$0x11]
        %v2076 = vld [vmem:[%s200 + $0x590] sm:$0x11]
        %v2077 = vld [vmem:[%s200 + $0x598] sm:$0x11]
        %v2078 = vld [vmem:[%s200 + $0x5a0] sm:$0x11]
        %v2079 = vld [vmem:[%s200 + $0x5a8] sm:$0x11]
        %v2080 = vld [vmem:[%s200 + $0x5b0] sm:$0x11]
        %v2081 = vld [vmem:[%s200 + $0x5b8] sm:$0x11]
        %v2082 = vld [vmem:[%s200 + $0x5c0] sm:$0x11]
        %v2083 = vld [vmem:[%s200 + $0x5c8] sm:$0x11]
        %v2084 = vld [vmem:[%s200 + $0x5d0] sm:$0x11]
        %v2085 = vld [vmem:[%s200 + $0x5d8] sm:$0x11]
        %v2086 = vld [vmem:[%s200 + $0x5e0] sm:$0x11]
        %v2087 = vld [vmem:[%s200 + $0x5e8] sm:$0x11]
        %v2088 = vld [vmem:[%s200 + $0x5f0] sm:$0x11]
        %v2089 = vld [vmem:[%s200 + $0x5f8] sm:$0x11]
        %v2090 = vld [vmem:[%s200 + $0x600] sm:$0x11]
        %v2091 = vld [vmem:[%s200 + $0x608] sm:$0x11]
        %v2092 = vld [vmem:[%s200 + $0x610] sm:$0x11]
        %v2093 = vld [vmem:[%s200 + $0x618] sm:$0x11]
        %v2094 = vld [vmem:[%s200 + $0x620] sm:$0x11]
        %v2095 = vld [vmem:[%s200 + $0x628] sm:$0x11]
        %v2096 = vld [vmem:[%s200 + $0x630] sm:$0x11]
        %v2097 = vld [vmem:[%s200 + $0x638] sm:$0x11]
        %v2098 = vld [vmem:[%s200 + $0x640] sm:$0x11]
        %v2099 = vld [vmem:[%s200 + $0x648] sm:$0x11]
        %v2100 = vld [vmem:[%s200 + $0x650] sm:$0x11]
        %v2101 = vld [vmem:[%s200 + $0x658] sm:$0x11]
        %v2102 = vld [vmem:[%s200 + $0x660] sm:$0x11]
        %v2103 = vld [vmem:[%s200 + $0x668] sm:$0x11]
        %v2104 = vld [vmem:[%s200 + $0x670] sm:$0x11]
        %v2105 = vld [vmem:[%s200 + $0x678] sm:$0x11]
        %v2106 = vld [vmem:[%s200 + $0x680] sm:$0x11]
        %v2107 = vld [vmem:[%s200 + $0x688] sm:$0x11]
        %v2108 = vld [vmem:[%s200 + $0x690] sm:$0x11]
        %v2109 = vld [vmem:[%s200 + $0x698] sm:$0x11]
        %v2110 = vld [vmem:[%s200 + $0x6a0] sm:$0x11]
        %v2111 = vld [vmem:[%s200 + $0x6a8] sm:$0x11]
        %v2112 = vld [vmem:[%s200 + $0x6b0] sm:$0x11]
        %v2113 = vld [vmem:[%s200 + $0x6b8] sm:$0x11]
        %v2114 = vld [vmem:[%s200 + $0x6c0] sm:$0x11]
        %v2115 = vld [vmem:[%s200 + $0x6c8] sm:$0x11]
        %v2116 = vld [vmem:[%s200 + $0x6d0] sm:$0x11]
        %v2117 = vld [vmem:[%s200 + $0x6d8] sm:$0x11]
        %v2118 = vld [vmem:[%s200 + $0x6e0] sm:$0x11]
        %v2119 = vld [vmem:[%s200 + $0x6e8] sm:$0x11]
        %v2120 = vld [vmem:[%s200 + $0x6f0] sm:$0x11]
        %v2121 = vld [vmem:[%s200 + $0x6f8] sm:$0x11]
        %v2122 = vld [vmem:[%s200 + $0x700] sm:$0x11]
        %v2123 = vld [vmem:[%s200 + $0x708] sm:$0x11]
        %v2124 = vld [vmem:[%s200 + $0x710] sm:$0x11]
        %v2125 = vld [vmem:[%s200 + $0x718] sm:$0x11]
        %v2126 = vld [vmem:[%s200 + $0x720] sm:$0x11]
        %v2127 = vld [vmem:[%s200 + $0x728] sm:$0x11]
        %v2128 = vld [vmem:[%s200 + $0x730] sm:$0x11]
        %v2129 = vld [vmem:[%s200 + $0x738] sm:$0x11]
        %v2130 = vld [vmem:[%s200 + $0x740] sm:$0x11]
        %v2131 = vld [vmem:[%s200 + $0x748] sm:$0x11]
        %v2132 = vld [vmem:[%s200 + $0x750] sm:$0x11]
        %v2133 = vld [vmem:[%s200 + $0x758] sm:$0x11]
        %v2134 = vld [vmem:[%s200 + $0x760] sm:$0x11]
        %v2135 = vld [vmem:[%s200 + $0x768] sm:$0x11]
        %v2136 = vld [vmem:[%s200 + $0x770] sm:$0x11]
        %v2137 = vld [vmem:[%s200 + $0x778] sm:$0x11]
        %v2138 = vld [vmem:[%s200 + $0x780] sm:$0x11]
        %v2139 = vld [vmem:[%s200 + $0x788] sm:$0x11]
        %v2140 = vld [vmem:[%s200 + $0x790] sm:$0x11]
        %v2141 = vld [vmem:[%s200 + $0x798] sm:$0x11]
        %v2142 = vld [vmem:[%s200 + $0x7a0] sm:$0x11]
        %v2143 = vld [vmem:[%s200 + $0x7a8] sm:$0x11]
        %v2144 = vld [vmem:[%s200 + $0x7b0] sm:$0x11]
        %v2145 = vld [vmem:[%s200 + $0x7b8] sm:$0x11]
        %v2146 = vld [vmem:[%s200 + $0x7c0] sm:$0x11]
        %v2147 = vld [vmem:[%s200 + $0x7c8] sm:$0x11]
        %v2148 = vld [vmem:[%s200 + $0x7d0] sm:$0x11]
        %v2149 = vld [vmem:[%s200 + $0x7d8] sm:$0x11]
        %v2150 = vld [vmem:[%s200 + $0x7e0] sm:$0x11]
        %v2151 = vld [vmem:[%s200 + $0x7e8] sm:$0x11]
        %v2152 = vld [vmem:[%s200 + $0x7f0] sm:$0x11]
        %v2153 = vld [vmem:[%s200 + $0x7f8] sm:$0x11]
        %v2154 = vld [vmem:[%s200 + $0x800] sm:$0x11]
        %v2155 = vld [vmem:[%s200 + $0x808] sm:$0x11]
        %v2156 = vld [vmem:[%s200 + $0x810] sm:$0x11]
        %v2157 = vld [vmem:[%s200 + $0x818] sm:$0x11]
        %v2158 = vld [vmem:[%s200 + $0x820] sm:$0x11]
        %v2159 = vld [vmem:[%s200 + $0x828] sm:$0x11]
        %v2160 = vld [vmem:[%s200 + $0x830] sm:$0x11]
        %v2161 = vld [vmem:[%s200 + $0x838] sm:$0x11]
        %v2162 = vld [vmem:[%s200 + $0x840] sm:$0x11]
        %v2163 = vld [vmem:[%s200 + $0x848] sm:$0x11]
        %v2164 = vld [vmem:[%s200 + $0x850] sm:$0x11]
        %v2165 = vld [vmem:[%s200 + $0x858] sm:$0x11]
        %v2166 = vld [vmem:[%s200 + $0x860] sm:$0x11]
        %v2167 = vld [vmem:[%s200 + $0x868] sm:$0x11]
        %v2168 = vld [vmem:[%s200 + $0x870] sm:$0x11]
        %v2169 = vld [vmem:[%s200 + $0x878] sm:$0x11]
        %v2170 = vld [vmem:[%s200 + $0x880] sm:$0x11]
        %v2171 = vld [vmem:[%s200 + $0x888] sm:$0x11]
        %v2172 = vld [vmem:[%s200 + $0x890] sm:$0x11]
        %v2173 = vld [vmem:[%s200 + $0x898] sm:$0x11]
        %v2174 = vld [vmem:[%s200 + $0x8a0] sm:$0x11]
        %v2175 = vld [vmem:[%s200 + $0x8a8] sm:$0x11]
        %v2176 = vld [vmem:[%s200 + $0x8b0] sm:$0x11]
        %v2177 = vld [vmem:[%s200 + $0x8b8] sm:$0x11]
        %v2178 = vld [vmem:[%s200 + $0x8c0] sm:$0x11]
        %v2179 = vld [vmem:[%s200 + $0x8c8] sm:$0x11]
        %v2180 = vld [vmem:[%s200 + $0x8d0] sm:$0x11]
        %v2181 = vld [vmem:[%s200 + $0x8d8] sm:$0x11]
        %v2182 = vld [vmem:[%s200 + $0x8e0] sm:$0x11]
        %v2183 = vld [vmem:[%s200 + $0x8e8] sm:$0x11]
        %v2184 = vld [vmem:[%s200 + $0x8f0] sm:$0x11]
        %v2185 = vld [vmem:[%s200 + $0x8f8] sm:$0x11]
        %v2186 = vld [vmem:[%s200 + $0x900] sm:$0x11]
        %v2187 = vld [vmem:[%s200 + $0x908] sm:$0x11]
        %v2188 = vld [vmem:[%s200 + $0x910] sm:$0x11]
        %v2189 = vld [vmem:[%s200 + $0x918] sm:$0x11]
        %v2190 = vld [vmem:[%s200 + $0x920] sm:$0x11]
        %v2191 = vld [vmem:[%s200 + $0x928] sm:$0x11]
        %v2486 = vunpack.c.l.b16 %v1898
        %v2487 = vunpack.c.h.b16 %v1898
        %v2488 = vunpack.c.l.b16 %v1899
        %v2489 = vunpack.c.h.b16 %v1899
        %v2490 = vunpack.c.l.b16 %v1900
        %v2491 = vunpack.c.h.b16 %v1900
        %v2492 = vunpack.c.l.b16 %v1901
        %v2493 = vunpack.c.h.b16 %v1901
        %v2494 = vunpack.c.l.b16 %v1902
        %v2495 = vunpack.c.h.b16 %v1902
        %v2496 = vunpack.c.l.b16 %v1903
        %v2497 = vunpack.c.h.b16 %v1903
        %v2498 = vunpack.c.l.b16 %v1904
        %v2499 = vunpack.c.h.b16 %v1904
        %v2500 = vunpack.c.l.b16 %v1905
        %v2501 = vunpack.c.h.b16 %v1905
        %v2502 = vunpack.c.l.b16 %v1906
        %v2503 = vunpack.c.h.b16 %v1906
        %v2504 = vunpack.c.l.b16 %v1907
        %v2505 = vunpack.c.h.b16 %v1907
        %v2506 = vunpack.c.l.b16 %v1908
        %v2507 = vunpack.c.h.b16 %v1908
        %v2508 = vunpack.c.l.b16 %v1909
        %v2509 = vunpack.c.h.b16 %v1909
        %v2510 = vunpack.c.l.b16 %v1910
        %v2511 = vunpack.c.h.b16 %v1910
        %v2512 = vunpack.c.l.b16 %v1911
        %v2513 = vunpack.c.h.b16 %v1911
        %v2514 = vunpack.c.l.b16 %v1912
        %v2515 = vunpack.c.h.b16 %v1912
        %v2516 = vunpack.c.l.b16 %v1913
        %v2517 = vunpack.c.h.b16 %v1913
        %v2518 = vunpack.c.l.b16 %v1914
        %v2519 = vunpack.c.h.b16 %v1914
        %v2520 = vunpack.c.l.b16 %v1915
        %v2521 = vunpack.c.h.b16 %v1915
        %v2522 = vunpack.c.l.b16 %v1916
        %v2523 = vunpack.c.h.b16 %v1916
        %v2524 = vunpack.c.l.b16 %v1917
        %v2525 = vunpack.c.h.b16 %v1917
        %v2526 = vunpack.c.l.b16 %v1918
        %v2527 = vunpack.c.h.b16 %v1918
        %v2528 = vunpack.c.l.b16 %v1919
        %v2529 = vunpack.c.h.b16 %v1919
        %v2530 = vunpack.c.l.b16 %v1920
        %v2531 = vunpack.c.h.b16 %v1920
        %v2532 = vunpack.c.l.b16 %v1921
        %v2533 = vunpack.c.h.b16 %v1921
        %v2534 = vunpack.c.l.b16 %v1922
        %v2535 = vunpack.c.h.b16 %v1922
        %v2536 = vunpack.c.l.b16 %v1923
        %v2537 = vunpack.c.h.b16 %v1923
        %v2538 = vunpack.c.l.b16 %v1924
        %v2539 = vunpack.c.h.b16 %v1924
        %v2540 = vunpack.c.l.b16 %v1925
        %v2541 = vunpack.c.h.b16 %v1925
        %v2542 = vunpack.c.l.b16 %v1926
        %v2543 = vunpack.c.h.b16 %v1926
        %v2544 = vunpack.c.l.b16 %v1927
        %v2545 = vunpack.c.h.b16 %v1927
        %v2546 = vunpack.c.l.b16 %v1928
        %v2547 = vunpack.c.h.b16 %v1928
        %v2548 = vunpack.c.l.b16 %v1929
        %v2549 = vunpack.c.h.b16 %v1929
        %v2550 = vunpack.c.l.b16 %v1930
        %v2551 = vunpack.c.h.b16 %v1930
        %v2552 = vunpack.c.l.b16 %v1931
        %v2553 = vunpack.c.h.b16 %v1931
        %v2554 = vunpack.c.l.b16 %v1932
        %v2555 = vunpack.c.h.b16 %v1932
        %v2556 = vunpack.c.l.b16 %v1933
        %v2557 = vunpack.c.h.b16 %v1933
        %v2558 = vunpack.c.l.b16 %v1934
        %v2559 = vunpack.c.h.b16 %v1934
        %v2560 = vunpack.c.l.b16 %v1935
        %v2561 = vunpack.c.h.b16 %v1935
        %v2562 = vunpack.c.l.b16 %v1936
        %v2563 = vunpack.c.h.b16 %v1936
        %v2564 = vunpack.c.l.b16 %v1937
        %v2565 = vunpack.c.h.b16 %v1937
        %v2566 = vunpack.c.l.b16 %v1938
        %v2567 = vunpack.c.h.b16 %v1938
        %v2568 = vunpack.c.l.b16 %v1939
        %v2569 = vunpack.c.h.b16 %v1939
        %v2570 = vunpack.c.l.b16 %v1940
        %v2571 = vunpack.c.h.b16 %v1940
        %v2572 = vunpack.c.l.b16 %v1941
        %v2573 = vunpack.c.h.b16 %v1941
        %v2574 = vunpack.c.l.b16 %v1942
        %v2575 = vunpack.c.h.b16 %v1942
        %v2576 = vunpack.c.l.b16 %v1943
        %v2577 = vunpack.c.h.b16 %v1943
        %v2578 = vunpack.c.l.b16 %v1944
        %v2579 = vunpack.c.h.b16 %v1944
        %v2580 = vunpack.c.l.b16 %v1945
        %v2581 = vunpack.c.h.b16 %v1945
        %v2582 = vunpack.c.l.b16 %v1946
        %v2583 = vunpack.c.h.b16 %v1946
        %v2584 = vunpack.c.l.b16 %v1947
        %v2585 = vunpack.c.h.b16 %v1947
        %v2586 = vunpack.c.l.b16 %v1948
        %v2587 = vunpack.c.h.b16 %v1948
        %v2588 = vunpack.c.l.b16 %v1949
        %v2589 = vunpack.c.h.b16 %v1949
        %v2590 = vunpack.c.l.b16 %v1950
        %v2591 = vunpack.c.h.b16 %v1950
        %v2592 = vunpack.c.l.b16 %v1951
        %v2593 = vunpack.c.h.b16 %v1951
        %v2594 = vunpack.c.l.b16 %v1952
        %v2595 = vunpack.c.h.b16 %v1952
        %v2596 = vunpack.c.l.b16 %v1953
        %v2597 = vunpack.c.h.b16 %v1953
        %v2598 = vunpack.c.l.b16 %v1954
        %v2599 = vunpack.c.h.b16 %v1954
        %v2600 = vunpack.c.l.b16 %v1955
        %v2601 = vunpack.c.h.b16 %v1955
        %v2602 = vunpack.c.l.b16 %v1956
        %v2603 = vunpack.c.h.b16 %v1956
        %v2604 = vunpack.c.l.b16 %v1957
        %v2605 = vunpack.c.h.b16 %v1957
        %v2606 = vunpack.c.l.b16 %v1958
        %v2607 = vunpack.c.h.b16 %v1958
        %v2608 = vunpack.c.l.b16 %v1959
        %v2609 = vunpack.c.h.b16 %v1959
        %v2610 = vunpack.c.l.b16 %v1960
        %v2611 = vunpack.c.h.b16 %v1960
        %v2612 = vunpack.c.l.b16 %v1961
        %v2613 = vunpack.c.h.b16 %v1961
        %v2614 = vunpack.c.l.b16 %v1962
        %v2615 = vunpack.c.h.b16 %v1962
        %v2616 = vunpack.c.l.b16 %v1963
        %v2617 = vunpack.c.h.b16 %v1963
        %v2618 = vunpack.c.l.b16 %v1964
        %v2619 = vunpack.c.h.b16 %v1964
        %v2620 = vunpack.c.l.b16 %v1965
        %v2621 = vunpack.c.h.b16 %v1965
        %v2622 = vunpack.c.l.b16 %v1966
        %v2623 = vunpack.c.h.b16 %v1966
        %v2624 = vunpack.c.l.b16 %v1967
        %v2625 = vunpack.c.h.b16 %v1967
        %v2626 = vunpack.c.l.b16 %v1968
        %v2627 = vunpack.c.h.b16 %v1968
        %v2628 = vunpack.c.l.b16 %v1969
        %v2629 = vunpack.c.h.b16 %v1969
        %v2630 = vunpack.c.l.b16 %v1970
        %v2631 = vunpack.c.h.b16 %v1970
        %v2632 = vunpack.c.l.b16 %v1971
        %v2633 = vunpack.c.h.b16 %v1971
        %v2634 = vunpack.c.l.b16 %v1972
        %v2635 = vunpack.c.h.b16 %v1972
        %v2636 = vunpack.c.l.b16 %v1973
        %v2637 = vunpack.c.h.b16 %v1973
        %v2638 = vunpack.c.l.b16 %v1974
        %v2639 = vunpack.c.h.b16 %v1974
        %v2640 = vunpack.c.l.b16 %v1975
        %v2641 = vunpack.c.h.b16 %v1975
        %v2642 = vunpack.c.l.b16 %v1976
        %v2643 = vunpack.c.h.b16 %v1976
        %v2644 = vunpack.c.l.b16 %v1977
        %v2645 = vunpack.c.h.b16 %v1977
        %v2646 = vunpack.c.l.b16 %v1978
        %v2647 = vunpack.c.h.b16 %v1978
        %v2648 = vunpack.c.l.b16 %v1979
        %v2649 = vunpack.c.h.b16 %v1979
        %v2650 = vunpack.c.l.b16 %v1980
        %v2651 = vunpack.c.h.b16 %v1980
        %v2652 = vunpack.c.l.b16 %v1981
        %v2653 = vunpack.c.h.b16 %v1981
        %v2654 = vunpack.c.l.b16 %v1982
        %v2655 = vunpack.c.h.b16 %v1982
        %v2656 = vunpack.c.l.b16 %v1983
        %v2657 = vunpack.c.h.b16 %v1983
        %v2658 = vunpack.c.l.b16 %v1984
        %v2659 = vunpack.c.h.b16 %v1984
        %v2660 = vunpack.c.l.b16 %v1985
        %v2661 = vunpack.c.h.b16 %v1985
        %v2662 = vunpack.c.l.b16 %v1986
        %v2663 = vunpack.c.h.b16 %v1986
        %v2664 = vunpack.c.l.b16 %v1987
        %v2665 = vunpack.c.h.b16 %v1987
        %v2666 = vunpack.c.l.b16 %v1988
        %v2667 = vunpack.c.h.b16 %v1988
        %v2668 = vunpack.c.l.b16 %v1989
        %v2669 = vunpack.c.h.b16 %v1989
        %v2670 = vunpack.c.l.b16 %v1990
        %v2671 = vunpack.c.h.b16 %v1990
        %v2672 = vunpack.c.l.b16 %v1991
        %v2673 = vunpack.c.h.b16 %v1991
        %v2674 = vunpack.c.l.b16 %v1992
        %v2675 = vunpack.c.h.b16 %v1992
        %v2676 = vunpack.c.l.b16 %v1993
        %v2677 = vunpack.c.h.b16 %v1993
        %v2678 = vunpack.c.l.b16 %v1994
        %v2679 = vunpack.c.h.b16 %v1994
        %v2680 = vunpack.c.l.b16 %v1995
        %v2681 = vunpack.c.h.b16 %v1995
        %v2682 = vunpack.c.l.b16 %v1996
        %v2683 = vunpack.c.h.b16 %v1996
        %v2684 = vunpack.c.l.b16 %v1997
        %v2685 = vunpack.c.h.b16 %v1997
        %v2686 = vunpack.c.l.b16 %v1998
        %v2687 = vunpack.c.h.b16 %v1998
        %v2688 = vunpack.c.l.b16 %v1999
        %v2689 = vunpack.c.h.b16 %v1999
        %v2690 = vunpack.c.l.b16 %v2000
        %v2691 = vunpack.c.h.b16 %v2000
        %v2692 = vunpack.c.l.b16 %v2001
        %v2693 = vunpack.c.h.b16 %v2001
        %v2694 = vunpack.c.l.b16 %v2002
        %v2695 = vunpack.c.h.b16 %v2002
        %v2696 = vunpack.c.l.b16 %v2003
        %v2697 = vunpack.c.h.b16 %v2003
        %v2698 = vunpack.c.l.b16 %v2004
        %v2699 = vunpack.c.h.b16 %v2004
        %v2700 = vunpack.c.l.b16 %v2005
        %v2701 = vunpack.c.h.b16 %v2005
        %v2702 = vunpack.c.l.b16 %v2006
        %v2703 = vunpack.c.h.b16 %v2006
        %v2704 = vunpack.c.l.b16 %v2007
        %v2705 = vunpack.c.h.b16 %v2007
        %v2706 = vunpack.c.l.b16 %v2008
        %v2707 = vunpack.c.h.b16 %v2008
        %v2708 = vunpack.c.l.b16 %v2009
        %v2709 = vunpack.c.h.b16 %v2009
        %v2710 = vunpack.c.l.b16 %v2010
        %v2711 = vunpack.c.h.b16 %v2010
        %v2712 = vunpack.c.l.b16 %v2011
        %v2713 = vunpack.c.h.b16 %v2011
        %v2714 = vunpack.c.l.b16 %v2012
        %v2715 = vunpack.c.h.b16 %v2012
        %v2716 = vunpack.c.l.b16 %v2013
        %v2717 = vunpack.c.h.b16 %v2013
        %v2718 = vunpack.c.l.b16 %v2014
        %v2719 = vunpack.c.h.b16 %v2014
        %v2720 = vunpack.c.l.b16 %v2015
        %v2721 = vunpack.c.h.b16 %v2015
        %v2722 = vunpack.c.l.b16 %v2016
        %v2723 = vunpack.c.h.b16 %v2016
        %v2724 = vunpack.c.l.b16 %v2017
        %v2725 = vunpack.c.h.b16 %v2017
        %v2726 = vunpack.c.l.b16 %v2018
        %v2727 = vunpack.c.h.b16 %v2018
        %v2728 = vunpack.c.l.b16 %v2019
        %v2729 = vunpack.c.h.b16 %v2019
        %v2730 = vunpack.c.l.b16 %v2020
        %v2731 = vunpack.c.h.b16 %v2020
        %v2732 = vunpack.c.l.b16 %v2021
        %v2733 = vunpack.c.h.b16 %v2021
        %v2734 = vunpack.c.l.b16 %v2022
        %v2735 = vunpack.c.h.b16 %v2022
        %v2736 = vunpack.c.l.b16 %v2023
        %v2737 = vunpack.c.h.b16 %v2023
        %v2738 = vunpack.c.l.b16 %v2024
        %v2739 = vunpack.c.h.b16 %v2024
        %v2740 = vunpack.c.l.b16 %v2025
        %v2741 = vunpack.c.h.b16 %v2025
        %v2742 = vunpack.c.l.b16 %v2026
        %v2743 = vunpack.c.h.b16 %v2026
        %v2744 = vunpack.c.l.b16 %v2027
        %v2745 = vunpack.c.h.b16 %v2027
        %v2746 = vunpack.c.l.b16 %v2028
        %v2747 = vunpack.c.h.b16 %v2028
        %v2748 = vunpack.c.l.b16 %v2029
        %v2749 = vunpack.c.h.b16 %v2029
        %v2750 = vunpack.c.l.b16 %v2030
        %v2751 = vunpack.c.h.b16 %v2030
        %v2752 = vunpack.c.l.b16 %v2031
        %v2753 = vunpack.c.h.b16 %v2031
        %v2754 = vunpack.c.l.b16 %v2032
        %v2755 = vunpack.c.h.b16 %v2032
        %v2756 = vunpack.c.l.b16 %v2033
        %v2757 = vunpack.c.h.b16 %v2033
        %v2758 = vunpack.c.l.b16 %v2034
        %v2759 = vunpack.c.h.b16 %v2034
        %v2760 = vunpack.c.l.b16 %v2035
        %v2761 = vunpack.c.h.b16 %v2035
        %v2762 = vunpack.c.l.b16 %v2036
        %v2763 = vunpack.c.h.b16 %v2036
        %v2764 = vunpack.c.l.b16 %v2037
        %v2765 = vunpack.c.h.b16 %v2037
        %v2766 = vunpack.c.l.b16 %v2038
        %v2767 = vunpack.c.h.b16 %v2038
        %v2768 = vunpack.c.l.b16 %v2039
        %v2769 = vunpack.c.h.b16 %v2039
        %v2770 = vunpack.c.l.b16 %v2040
        %v2771 = vunpack.c.h.b16 %v2040
        %v2772 = vunpack.c.l.b16 %v2041
        %v2773 = vunpack.c.h.b16 %v2041
        %v2774 = vunpack.c.l.b16 %v2042
        %v2775 = vunpack.c.h.b16 %v2042
        %v2776 = vunpack.c.l.b16 %v2043
        %v2777 = vunpack.c.h.b16 %v2043
        %v2778 = vunpack.c.l.b16 %v2044
        %v2779 = vunpack.c.h.b16 %v2044
        %v2780 = vunpack.c.l.b16 %v2045
        %v2781 = vunpack.c.h.b16 %v2045
        %v2782 = vunpack.c.l.b16 %v2046
        %v2783 = vunpack.c.h.b16 %v2046
        %v2784 = vunpack.c.l.b16 %v2047
        %v2785 = vunpack.c.h.b16 %v2047
        %v2786 = vunpack.c.l.b16 %v2048
        %v2787 = vunpack.c.h.b16 %v2048
        %v2788 = vunpack.c.l.b16 %v2049
        %v2789 = vunpack.c.h.b16 %v2049
        %v2790 = vunpack.c.l.b16 %v2050
        %v2791 = vunpack.c.h.b16 %v2050
        %v2792 = vunpack.c.l.b16 %v2051
        %v2793 = vunpack.c.h.b16 %v2051
        %v2794 = vunpack.c.l.b16 %v2052
        %v2795 = vunpack.c.h.b16 %v2052
        %v2796 = vunpack.c.l.b16 %v2053
        %v2797 = vunpack.c.h.b16 %v2053
        %v2798 = vunpack.c.l.b16 %v2054
        %v2799 = vunpack.c.h.b16 %v2054
        %v2800 = vunpack.c.l.b16 %v2055
        %v2801 = vunpack.c.h.b16 %v2055
        %v2802 = vunpack.c.l.b16 %v2056
        %v2803 = vunpack.c.h.b16 %v2056
        %v2804 = vunpack.c.l.b16 %v2057
        %v2805 = vunpack.c.h.b16 %v2057
        %v2806 = vunpack.c.l.b16 %v2058
        %v2807 = vunpack.c.h.b16 %v2058
        %v2808 = vunpack.c.l.b16 %v2059
        %v2809 = vunpack.c.h.b16 %v2059
        %v2810 = vunpack.c.l.b16 %v2060
        %v2811 = vunpack.c.h.b16 %v2060
        %v2812 = vunpack.c.l.b16 %v2061
        %v2813 = vunpack.c.h.b16 %v2061
        %v2814 = vunpack.c.l.b16 %v2062
        %v2815 = vunpack.c.h.b16 %v2062
        %v2816 = vunpack.c.l.b16 %v2063
        %v2817 = vunpack.c.h.b16 %v2063
        %v2818 = vunpack.c.l.b16 %v2064
        %v2819 = vunpack.c.h.b16 %v2064
        %v2820 = vunpack.c.l.b16 %v2065
        %v2821 = vunpack.c.h.b16 %v2065
        %v2822 = vunpack.c.l.b16 %v2066
        %v2823 = vunpack.c.h.b16 %v2066
        %v2824 = vunpack.c.l.b16 %v2067
        %v2825 = vunpack.c.h.b16 %v2067
        %v2826 = vunpack.c.l.b16 %v2068
        %v2827 = vunpack.c.h.b16 %v2068
        %v2828 = vunpack.c.l.b16 %v2069
        %v2829 = vunpack.c.h.b16 %v2069
        %v2830 = vunpack.c.l.b16 %v2070
        %v2831 = vunpack.c.h.b16 %v2070
        %v2832 = vunpack.c.l.b16 %v2071
        %v2833 = vunpack.c.h.b16 %v2071
        %v2834 = vunpack.c.l.b16 %v2072
        %v2835 = vunpack.c.h.b16 %v2072
        %v2836 = vunpack.c.l.b16 %v2073
        %v2837 = vunpack.c.h.b16 %v2073
        %v2838 = vunpack.c.l.b16 %v2074
        %v2839 = vunpack.c.h.b16 %v2074
        %v2840 = vunpack.c.l.b16 %v2075
        %v2841 = vunpack.c.h.b16 %v2075
        %v2842 = vunpack.c.l.b16 %v2076
        %v2843 = vunpack.c.h.b16 %v2076
        %v2844 = vunpack.c.l.b16 %v2077
        %v2845 = vunpack.c.h.b16 %v2077
        %v2846 = vunpack.c.l.b16 %v2078
        %v2847 = vunpack.c.h.b16 %v2078
        %v2848 = vunpack.c.l.b16 %v2079
        %v2849 = vunpack.c.h.b16 %v2079
        %v2850 = vunpack.c.l.b16 %v2080
        %v2851 = vunpack.c.h.b16 %v2080
        %v2852 = vunpack.c.l.b16 %v2081
        %v2853 = vunpack.c.h.b16 %v2081
        %v2854 = vunpack.c.l.b16 %v2082
        %v2855 = vunpack.c.h.b16 %v2082
        %v2856 = vunpack.c.l.b16 %v2083
        %v2857 = vunpack.c.h.b16 %v2083
        %v2858 = vunpack.c.l.b16 %v2084
        %v2859 = vunpack.c.h.b16 %v2084
        %v2860 = vunpack.c.l.b16 %v2085
        %v2861 = vunpack.c.h.b16 %v2085
        %v2862 = vunpack.c.l.b16 %v2086
        %v2863 = vunpack.c.h.b16 %v2086
        %v2864 = vunpack.c.l.b16 %v2087
        %v2865 = vunpack.c.h.b16 %v2087
        %v2866 = vunpack.c.l.b16 %v2088
        %v2867 = vunpack.c.h.b16 %v2088
        %v2868 = vunpack.c.l.b16 %v2089
        %v2869 = vunpack.c.h.b16 %v2089
        %v2870 = vunpack.c.l.b16 %v2090
        %v2871 = vunpack.c.h.b16 %v2090
        %v2872 = vunpack.c.l.b16 %v2091
        %v2873 = vunpack.c.h.b16 %v2091
        %v2874 = vunpack.c.l.b16 %v2092
        %v2875 = vunpack.c.h.b16 %v2092
        %v2876 = vunpack.c.l.b16 %v2093
        %v2877 = vunpack.c.h.b16 %v2093
        %v2878 = vunpack.c.l.b16 %v2094
        %v2879 = vunpack.c.h.b16 %v2094
        %v2880 = vunpack.c.l.b16 %v2095
        %v2881 = vunpack.c.h.b16 %v2095
        %v2882 = vunpack.c.l.b16 %v2096
        %v2883 = vunpack.c.h.b16 %v2096
        %v2884 = vunpack.c.l.b16 %v2097
        %v2885 = vunpack.c.h.b16 %v2097
        %v2886 = vunpack.c.l.b16 %v2098
        %v2887 = vunpack.c.h.b16 %v2098
        %v2888 = vunpack.c.l.b16 %v2099
        %v2889 = vunpack.c.h.b16 %v2099
        %v2890 = vunpack.c.l.b16 %v2100
        %v2891 = vunpack.c.h.b16 %v2100
        %v2892 = vunpack.c.l.b16 %v2101
        %v2893 = vunpack.c.h.b16 %v2101
        %v2894 = vunpack.c.l.b16 %v2102
        %v2895 = vunpack.c.h.b16 %v2102
        %v2896 = vunpack.c.l.b16 %v2103
        %v2897 = vunpack.c.h.b16 %v2103
        %v2898 = vunpack.c.l.b16 %v2104
        %v2899 = vunpack.c.h.b16 %v2104
        %v2900 = vunpack.c.l.b16 %v2105
        %v2901 = vunpack.c.h.b16 %v2105
        %v2902 = vunpack.c.l.b16 %v2106
        %v2903 = vunpack.c.h.b16 %v2106
        %v2904 = vunpack.c.l.b16 %v2107
        %v2905 = vunpack.c.h.b16 %v2107
        %v2906 = vunpack.c.l.b16 %v2108
        %v2907 = vunpack.c.h.b16 %v2108
        %v2908 = vunpack.c.l.b16 %v2109
        %v2909 = vunpack.c.h.b16 %v2109
        %v2910 = vunpack.c.l.b16 %v2110
        %v2911 = vunpack.c.h.b16 %v2110
        %v2912 = vunpack.c.l.b16 %v2111
        %v2913 = vunpack.c.h.b16 %v2111
        %v2914 = vunpack.c.l.b16 %v2112
        %v2915 = vunpack.c.h.b16 %v2112
        %v2916 = vunpack.c.l.b16 %v2113
        %v2917 = vunpack.c.h.b16 %v2113
        %v2918 = vunpack.c.l.b16 %v2114
        %v2919 = vunpack.c.h.b16 %v2114
        %v2920 = vunpack.c.l.b16 %v2115
        %v2921 = vunpack.c.h.b16 %v2115
        %v2922 = vunpack.c.l.b16 %v2116
        %v2923 = vunpack.c.h.b16 %v2116
        %v2924 = vunpack.c.l.b16 %v2117
        %v2925 = vunpack.c.h.b16 %v2117
        %v2926 = vunpack.c.l.b16 %v2118
        %v2927 = vunpack.c.h.b16 %v2118
        %v2928 = vunpack.c.l.b16 %v2119
        %v2929 = vunpack.c.h.b16 %v2119
        %v2930 = vunpack.c.l.b16 %v2120
        %v2931 = vunpack.c.h.b16 %v2120
        %v2932 = vunpack.c.l.b16 %v2121
        %v2933 = vunpack.c.h.b16 %v2121
        %v2934 = vunpack.c.l.b16 %v2122
        %v2935 = vunpack.c.h.b16 %v2122
        %v2936 = vunpack.c.l.b16 %v2123
        %v2937 = vunpack.c.h.b16 %v2123
        %v2938 = vunpack.c.l.b16 %v2124
        %v2939 = vunpack.c.h.b16 %v2124
        %v2940 = vunpack.c.l.b16 %v2125
        %v2941 = vunpack.c.h.b16 %v2125
        %v2942 = vunpack.c.l.b16 %v2126
        %v2943 = vunpack.c.h.b16 %v2126
        %v2944 = vunpack.c.l.b16 %v2127
        %v2945 = vunpack.c.h.b16 %v2127
        %v2946 = vunpack.c.l.b16 %v2128
        %v2947 = vunpack.c.h.b16 %v2128
        %v2948 = vunpack.c.l.b16 %v2129
        %v2949 = vunpack.c.h.b16 %v2129
        %v2950 = vunpack.c.l.b16 %v2130
        %v2951 = vunpack.c.h.b16 %v2130
        %v2952 = vunpack.c.l.b16 %v2131
        %v2953 = vunpack.c.h.b16 %v2131
        %v2954 = vunpack.c.l.b16 %v2132
        %v2955 = vunpack.c.h.b16 %v2132
        %v2956 = vunpack.c.l.b16 %v2133
        %v2957 = vunpack.c.h.b16 %v2133
        %v2958 = vunpack.c.l.b16 %v2134
        %v2959 = vunpack.c.h.b16 %v2134
        %v2960 = vunpack.c.l.b16 %v2135
        %v2961 = vunpack.c.h.b16 %v2135
        %v2962 = vunpack.c.l.b16 %v2136
        %v2963 = vunpack.c.h.b16 %v2136
        %v2964 = vunpack.c.l.b16 %v2137
        %v2965 = vunpack.c.h.b16 %v2137
        %v2966 = vunpack.c.l.b16 %v2138
        %v2967 = vunpack.c.h.b16 %v2138
        %v2968 = vunpack.c.l.b16 %v2139
        %v2969 = vunpack.c.h.b16 %v2139
        %v2970 = vunpack.c.l.b16 %v2140
        %v2971 = vunpack.c.h.b16 %v2140
        %v2972 = vunpack.c.l.b16 %v2141
        %v2973 = vunpack.c.h.b16 %v2141
        %v2974 = vunpack.c.l.b16 %v2142
        %v2975 = vunpack.c.h.b16 %v2142
        %v2976 = vunpack.c.l.b16 %v2143
        %v2977 = vunpack.c.h.b16 %v2143
        %v2978 = vunpack.c.l.b16 %v2144
        %v2979 = vunpack.c.h.b16 %v2144
        %v2980 = vunpack.c.l.b16 %v2145
        %v2981 = vunpack.c.h.b16 %v2145
        %v2982 = vunpack.c.l.b16 %v2146
        %v2983 = vunpack.c.h.b16 %v2146
        %v2984 = vunpack.c.l.b16 %v2147
        %v2985 = vunpack.c.h.b16 %v2147
        %v2986 = vunpack.c.l.b16 %v2148
        %v2987 = vunpack.c.h.b16 %v2148
        %v2988 = vunpack.c.l.b16 %v2149
        %v2989 = vunpack.c.h.b16 %v2149
        %v2990 = vunpack.c.l.b16 %v2150
        %v2991 = vunpack.c.h.b16 %v2150
        %v2992 = vunpack.c.l.b16 %v2151
        %v2993 = vunpack.c.h.b16 %v2151
        %v2994 = vunpack.c.l.b16 %v2152
        %v2995 = vunpack.c.h.b16 %v2152
        %v2996 = vunpack.c.l.b16 %v2153
        %v2997 = vunpack.c.h.b16 %v2153
        %v2998 = vunpack.c.l.b16 %v2154
        %v2999 = vunpack.c.h.b16 %v2154
        %v3000 = vunpack.c.l.b16 %v2155
        %v3001 = vunpack.c.h.b16 %v2155
        %v3002 = vunpack.c.l.b16 %v2156
        %v3003 = vunpack.c.h.b16 %v2156
        %v3004 = vunpack.c.l.b16 %v2157
        %v3005 = vunpack.c.h.b16 %v2157
        %v3006 = vunpack.c.l.b16 %v2158
        %v3007 = vunpack.c.h.b16 %v2158
        %v3008 = vunpack.c.l.b16 %v2159
        %v3009 = vunpack.c.h.b16 %v2159
        %v3010 = vunpack.c.l.b16 %v2160
        %v3011 = vunpack.c.h.b16 %v2160
        %v3012 = vunpack.c.l.b16 %v2161
        %v3013 = vunpack.c.h.b16 %v2161
        %v3014 = vunpack.c.l.b16 %v2162
        %v3015 = vunpack.c.h.b16 %v2162
        %v3016 = vunpack.c.l.b16 %v2163
        %v3017 = vunpack.c.h.b16 %v2163
        %v3018 = vunpack.c.l.b16 %v2164
        %v3019 = vunpack.c.h.b16 %v2164
        %v3020 = vunpack.c.l.b16 %v2165
        %v3021 = vunpack.c.h.b16 %v2165
        %v3022 = vunpack.c.l.b16 %v2166
        %v3023 = vunpack.c.h.b16 %v2166
        %v3024 = vunpack.c.l.b16 %v2167
        %v3025 = vunpack.c.h.b16 %v2167
        %v3026 = vunpack.c.l.b16 %v2168
        %v3027 = vunpack.c.h.b16 %v2168
        %v3028 = vunpack.c.l.b16 %v2169
        %v3029 = vunpack.c.h.b16 %v2169
        %v3030 = vunpack.c.l.b16 %v2170
        %v3031 = vunpack.c.h.b16 %v2170
        %v3032 = vunpack.c.l.b16 %v2171
        %v3033 = vunpack.c.h.b16 %v2171
        %v3034 = vunpack.c.l.b16 %v2172
        %v3035 = vunpack.c.h.b16 %v2172
        %v3036 = vunpack.c.l.b16 %v2173
        %v3037 = vunpack.c.h.b16 %v2173
        %v3038 = vunpack.c.l.b16 %v2174
        %v3039 = vunpack.c.h.b16 %v2174
        %v3040 = vunpack.c.l.b16 %v2175
        %v3041 = vunpack.c.h.b16 %v2175
        %v3042 = vunpack.c.l.b16 %v2176
        %v3043 = vunpack.c.h.b16 %v2176
        %v3044 = vunpack.c.l.b16 %v2177
        %v3045 = vunpack.c.h.b16 %v2177
        %v3046 = vunpack.c.l.b16 %v2178
        %v3047 = vunpack.c.h.b16 %v2178
        %v3048 = vunpack.c.l.b16 %v2179
        %v3049 = vunpack.c.h.b16 %v2179
        %v3050 = vunpack.c.l.b16 %v2180
        %v3051 = vunpack.c.h.b16 %v2180
        %v3052 = vunpack.c.l.b16 %v2181
        %v3053 = vunpack.c.h.b16 %v2181
        %v3054 = vunpack.c.l.b16 %v2182
        %v3055 = vunpack.c.h.b16 %v2182
        %v3056 = vunpack.c.l.b16 %v2183
        %v3057 = vunpack.c.h.b16 %v2183
        %v3058 = vunpack.c.l.b16 %v2184
        %v3059 = vunpack.c.h.b16 %v2184
        %v3060 = vunpack.c.l.b16 %v2185
        %v3061 = vunpack.c.h.b16 %v2185
        %v3062 = vunpack.c.l.b16 %v2186
        %v3063 = vunpack.c.h.b16 %v2186
        %v3064 = vunpack.c.l.b16 %v2187
        %v3065 = vunpack.c.h.b16 %v2187
        %v3066 = vunpack.c.l.b16 %v2188
        %v3067 = vunpack.c.h.b16 %v2188
        %v3068 = vunpack.c.l.b16 %v2189
        %v3069 = vunpack.c.h.b16 %v2189
        %v3070 = vunpack.c.l.b16 %v2190
        %v3071 = vunpack.c.h.b16 %v2190
        %v3072 = vunpack.c.l.b16 %v2191
        %v3073 = vunpack.c.h.b16 %v2191
        %v3074 = vpack.c.b16 %v2780, %v2486
        %v3075 = vpack.c.b16 %v2781, %v2487
        %v3076 = vpack.c.b16 %v2782, %v2488
        %v3077 = vpack.c.b16 %v2783, %v2489
        %v3078 = vpack.c.b16 %v2784, %v2490
        %v3079 = vpack.c.b16 %v2785, %v2491
        %v3080 = vpack.c.b16 %v2786, %v2492
        %v3081 = vpack.c.b16 %v2787, %v2493
        %v3082 = vpack.c.b16 %v2788, %v2494
        %v3083 = vpack.c.b16 %v2789, %v2495
        %v3084 = vpack.c.b16 %v2790, %v2496
        %v3085 = vpack.c.b16 %v2791, %v2497
        %v3086 = vpack.c.b16 %v2792, %v2498
        %v3087 = vpack.c.b16 %v2793, %v2499
        %v3088 = vpack.c.b16 %v2794, %v2500
        %v3089 = vpack.c.b16 %v2795, %v2501
        %v3090 = vpack.c.b16 %v2796, %v2502
        %v3091 = vpack.c.b16 %v2797, %v2503
        %v3092 = vpack.c.b16 %v2798, %v2504
        %v3093 = vpack.c.b16 %v2799, %v2505
        %v3094 = vpack.c.b16 %v2800, %v2506
        %v3095 = vpack.c.b16 %v2801, %v2507
        %v3096 = vpack.c.b16 %v2802, %v2508
        %v3097 = vpack.c.b16 %v2803, %v2509
        %v3098 = vpack.c.b16 %v2804, %v2510
        %v3099 = vpack.c.b16 %v2805, %v2511
        %v3100 = vpack.c.b16 %v2806, %v2512
        %v3101 = vpack.c.b16 %v2807, %v2513
        %v3102 = vpack.c.b16 %v2808, %v2514
        %v3103 = vpack.c.b16 %v2809, %v2515
        %v3104 = vpack.c.b16 %v2810, %v2516
        %v3105 = vpack.c.b16 %v2811, %v2517
        %v3106 = vpack.c.b16 %v2812, %v2518
        %v3107 = vpack.c.b16 %v2813, %v2519
        %v3108 = vpack.c.b16 %v2814, %v2520
        %v3109 = vpack.c.b16 %v2815, %v2521
        %v3110 = vpack.c.b16 %v2816, %v2522
        %v3111 = vpack.c.b16 %v2817, %v2523
        %v3112 = vpack.c.b16 %v2818, %v2524
        %v3113 = vpack.c.b16 %v2819, %v2525
        %v3114 = vpack.c.b16 %v2820, %v2526
        %v3115 = vpack.c.b16 %v2821, %v2527
        %v3116 = vpack.c.b16 %v2822, %v2528
        %v3117 = vpack.c.b16 %v2823, %v2529
        %v3118 = vpack.c.b16 %v2824, %v2530
        %v3119 = vpack.c.b16 %v2825, %v2531
        %v3120 = vpack.c.b16 %v2826, %v2532
        %v3121 = vpack.c.b16 %v2827, %v2533
        %v3122 = vpack.c.b16 %v2828, %v2534
        %v3123 = vpack.c.b16 %v2829, %v2535
        %v3124 = vpack.c.b16 %v2830, %v2536
        %v3125 = vpack.c.b16 %v2831, %v2537
        %v3126 = vpack.c.b16 %v2832, %v2538
        %v3127 = vpack.c.b16 %v2833, %v2539
        %v3128 = vpack.c.b16 %v2834, %v2540
        %v3129 = vpack.c.b16 %v2835, %v2541
        %v3130 = vpack.c.b16 %v2836, %v2542
        %v3131 = vpack.c.b16 %v2837, %v2543
        %v3132 = vpack.c.b16 %v2838, %v2544
        %v3133 = vpack.c.b16 %v2839, %v2545
        %v3134 = vpack.c.b16 %v2840, %v2546
        %v3135 = vpack.c.b16 %v2841, %v2547
        %v3136 = vpack.c.b16 %v2842, %v2548
        %v3137 = vpack.c.b16 %v2843, %v2549
        %v3138 = vpack.c.b16 %v2844, %v2550
        %v3139 = vpack.c.b16 %v2845, %v2551
        %v3140 = vpack.c.b16 %v2846, %v2552
        %v3141 = vpack.c.b16 %v2847, %v2553
        %v3142 = vpack.c.b16 %v2848, %v2554
        %v3143 = vpack.c.b16 %v2849, %v2555
        %v3144 = vpack.c.b16 %v2850, %v2556
        %v3145 = vpack.c.b16 %v2851, %v2557
        %v3146 = vpack.c.b16 %v2852, %v2558
        %v3147 = vpack.c.b16 %v2853, %v2559
        %v3148 = vpack.c.b16 %v2854, %v2560
        %v3149 = vpack.c.b16 %v2855, %v2561
        %v3150 = vpack.c.b16 %v2856, %v2562
        %v3151 = vpack.c.b16 %v2857, %v2563
        %v3152 = vpack.c.b16 %v2858, %v2564
        %v3153 = vpack.c.b16 %v2859, %v2565
        %v3154 = vpack.c.b16 %v2860, %v2566
        %v3155 = vpack.c.b16 %v2861, %v2567
        %v3156 = vpack.c.b16 %v2862, %v2568
        %v3157 = vpack.c.b16 %v2863, %v2569
        %v3158 = vpack.c.b16 %v2864, %v2570
        %v3159 = vpack.c.b16 %v2865, %v2571
        %v3160 = vpack.c.b16 %v2866, %v2572
        %v3161 = vpack.c.b16 %v2867, %v2573
        %v3162 = vpack.c.b16 %v2868, %v2574
        %v3163 = vpack.c.b16 %v2869, %v2575
        %v3164 = vpack.c.b16 %v2870, %v2576
        %v3165 = vpack.c.b16 %v2871, %v2577
        %v3166 = vpack.c.b16 %v2872, %v2578
        %v3167 = vpack.c.b16 %v2873, %v2579
        %v3168 = vpack.c.b16 %v2874, %v2580
        %v3169 = vpack.c.b16 %v2875, %v2581
        %v3170 = vpack.c.b16 %v2876, %v2582
        %v3171 = vpack.c.b16 %v2877, %v2583
        %v3172 = vpack.c.b16 %v2878, %v2584
        %v3173 = vpack.c.b16 %v2879, %v2585
        %v3174 = vpack.c.b16 %v2880, %v2586
        %v3175 = vpack.c.b16 %v2881, %v2587
        %v3176 = vpack.c.b16 %v2882, %v2588
        %v3177 = vpack.c.b16 %v2883, %v2589
        %v3178 = vpack.c.b16 %v2884, %v2590
        %v3179 = vpack.c.b16 %v2885, %v2591
        %v3180 = vpack.c.b16 %v2886, %v2592
        %v3181 = vpack.c.b16 %v2887, %v2593
        %v3182 = vpack.c.b16 %v2888, %v2594
        %v3183 = vpack.c.b16 %v2889, %v2595
        %v3184 = vpack.c.b16 %v2890, %v2596
        %v3185 = vpack.c.b16 %v2891, %v2597
        %v3186 = vpack.c.b16 %v2892, %v2598
        %v3187 = vpack.c.b16 %v2893, %v2599
        %v3188 = vpack.c.b16 %v2894, %v2600
        %v3189 = vpack.c.b16 %v2895, %v2601
        %v3190 = vpack.c.b16 %v2896, %v2602
        %v3191 = vpack.c.b16 %v2897, %v2603
        %v3192 = vpack.c.b16 %v2898, %v2604
        %v3193 = vpack.c.b16 %v2899, %v2605
        %v3194 = vpack.c.b16 %v2900, %v2606
        %v3195 = vpack.c.b16 %v2901, %v2607
        %v3196 = vpack.c.b16 %v2902, %v2608
        %v3197 = vpack.c.b16 %v2903, %v2609
        %v3198 = vpack.c.b16 %v2904, %v2610
        %v3199 = vpack.c.b16 %v2905, %v2611
        %v3200 = vpack.c.b16 %v2906, %v2612
        %v3201 = vpack.c.b16 %v2907, %v2613
        %v3202 = vpack.c.b16 %v2908, %v2614
        %v3203 = vpack.c.b16 %v2909, %v2615
        %v3204 = vpack.c.b16 %v2910, %v2616
        %v3205 = vpack.c.b16 %v2911, %v2617
        %v3206 = vpack.c.b16 %v2912, %v2618
        %v3207 = vpack.c.b16 %v2913, %v2619
        %v3208 = vpack.c.b16 %v2914, %v2620
        %v3209 = vpack.c.b16 %v2915, %v2621
        %v3210 = vpack.c.b16 %v2916, %v2622
        %v3211 = vpack.c.b16 %v2917, %v2623
        %v3212 = vpack.c.b16 %v2918, %v2624
        %v3213 = vpack.c.b16 %v2919, %v2625
        %v3214 = vpack.c.b16 %v2920, %v2626
        %v3215 = vpack.c.b16 %v2921, %v2627
        %v3216 = vpack.c.b16 %v2922, %v2628
        %v3217 = vpack.c.b16 %v2923, %v2629
        %v3218 = vpack.c.b16 %v2924, %v2630
        %v3219 = vpack.c.b16 %v2925, %v2631
        %v3220 = vpack.c.b16 %v2926, %v2632
        %v3221 = vpack.c.b16 %v2927, %v2633
        %v3222 = vpack.c.b16 %v2928, %v2634
        %v3223 = vpack.c.b16 %v2929, %v2635
        %v3224 = vpack.c.b16 %v2930, %v2636
        %v3225 = vpack.c.b16 %v2931, %v2637
        %v3226 = vpack.c.b16 %v2932, %v2638
        %v3227 = vpack.c.b16 %v2933, %v2639
        %v3228 = vpack.c.b16 %v2934, %v2640
        %v3229 = vpack.c.b16 %v2935, %v2641
        %v3230 = vpack.c.b16 %v2936, %v2642
        %v3231 = vpack.c.b16 %v2937, %v2643
        %v3232 = vpack.c.b16 %v2938, %v2644
        %v3233 = vpack.c.b16 %v2939, %v2645
        %v3234 = vpack.c.b16 %v2940, %v2646
        %v3235 = vpack.c.b16 %v2941, %v2647
        %v3236 = vpack.c.b16 %v2942, %v2648
        %v3237 = vpack.c.b16 %v2943, %v2649
        %v3238 = vpack.c.b16 %v2944, %v2650
        %v3239 = vpack.c.b16 %v2945, %v2651
        %v3240 = vpack.c.b16 %v2946, %v2652
        %v3241 = vpack.c.b16 %v2947, %v2653
        %v3242 = vpack.c.b16 %v2948, %v2654
        %v3243 = vpack.c.b16 %v2949, %v2655
        %v3244 = vpack.c.b16 %v2950, %v2656
        %v3245 = vpack.c.b16 %v2951, %v2657
        %v3246 = vpack.c.b16 %v2952, %v2658
        %v3247 = vpack.c.b16 %v2953, %v2659
        %v3248 = vpack.c.b16 %v2954, %v2660
        %v3249 = vpack.c.b16 %v2955, %v2661
        %v3250 = vpack.c.b16 %v2956, %v2662
        %v3251 = vpack.c.b16 %v2957, %v2663
        %v3252 = vpack.c.b16 %v2958, %v2664
        %v3253 = vpack.c.b16 %v2959, %v2665
        %v3254 = vpack.c.b16 %v2960, %v2666
        %v3255 = vpack.c.b16 %v2961, %v2667
        %v3256 = vpack.c.b16 %v2962, %v2668
        %v3257 = vpack.c.b16 %v2963, %v2669
        %v3258 = vpack.c.b16 %v2964, %v2670
        %v3259 = vpack.c.b16 %v2965, %v2671
        %v3260 = vpack.c.b16 %v2966, %v2672
        %v3261 = vpack.c.b16 %v2967, %v2673
        %v3262 = vpack.c.b16 %v2968, %v2674
        %v3263 = vpack.c.b16 %v2969, %v2675
        %v3264 = vpack.c.b16 %v2970, %v2676
        %v3265 = vpack.c.b16 %v2971, %v2677
        %v3266 = vpack.c.b16 %v2972, %v2678
        %v3267 = vpack.c.b16 %v2973, %v2679
        %v3268 = vpack.c.b16 %v2974, %v2680
        %v3269 = vpack.c.b16 %v2975, %v2681
        %v3270 = vpack.c.b16 %v2976, %v2682
        %v3271 = vpack.c.b16 %v2977, %v2683
        %v3272 = vpack.c.b16 %v2978, %v2684
        %v3273 = vpack.c.b16 %v2979, %v2685
        %v3274 = vpack.c.b16 %v2980, %v2686
        %v3275 = vpack.c.b16 %v2981, %v2687
        %v3276 = vpack.c.b16 %v2982, %v2688
        %v3277 = vpack.c.b16 %v2983, %v2689
        %v3278 = vpack.c.b16 %v2984, %v2690
        %v3279 = vpack.c.b16 %v2985, %v2691
        %v3280 = vpack.c.b16 %v2986, %v2692
        %v3281 = vpack.c.b16 %v2987, %v2693
        %v3282 = vpack.c.b16 %v2988, %v2694
        %v3283 = vpack.c.b16 %v2989, %v2695
        %v3284 = vpack.c.b16 %v2990, %v2696
        %v3285 = vpack.c.b16 %v2991, %v2697
        %v3286 = vpack.c.b16 %v2992, %v2698
        %v3287 = vpack.c.b16 %v2993, %v2699
        %v3288 = vpack.c.b16 %v2994, %v2700
        %v3289 = vpack.c.b16 %v2995, %v2701
        %v3290 = vpack.c.b16 %v2996, %v2702
        %v3291 = vpack.c.b16 %v2997, %v2703
        %v3292 = vpack.c.b16 %v2998, %v2704
        %v3293 = vpack.c.b16 %v2999, %v2705
        %v3294 = vpack.c.b16 %v3000, %v2706
        %v3295 = vpack.c.b16 %v3001, %v2707
        %v3296 = vpack.c.b16 %v3002, %v2708
        %v3297 = vpack.c.b16 %v3003, %v2709
        %v3298 = vpack.c.b16 %v3004, %v2710
        %v3299 = vpack.c.b16 %v3005, %v2711
        %v3300 = vpack.c.b16 %v3006, %v2712
        %v3301 = vpack.c.b16 %v3007, %v2713
        %v3302 = vpack.c.b16 %v3008, %v2714
        %v3303 = vpack.c.b16 %v3009, %v2715
        %v3304 = vpack.c.b16 %v3010, %v2716
        %v3305 = vpack.c.b16 %v3011, %v2717
        %v3306 = vpack.c.b16 %v3012, %v2718
        %v3307 = vpack.c.b16 %v3013, %v2719
        %v3308 = vpack.c.b16 %v3014, %v2720
        %v3309 = vpack.c.b16 %v3015, %v2721
        %v3310 = vpack.c.b16 %v3016, %v2722
        %v3311 = vpack.c.b16 %v3017, %v2723
        %v3312 = vpack.c.b16 %v3018, %v2724
        %v3313 = vpack.c.b16 %v3019, %v2725
        %v3314 = vpack.c.b16 %v3020, %v2726
        %v3315 = vpack.c.b16 %v3021, %v2727
        %v3316 = vpack.c.b16 %v3022, %v2728
        %v3317 = vpack.c.b16 %v3023, %v2729
        %v3318 = vpack.c.b16 %v3024, %v2730
        %v3319 = vpack.c.b16 %v3025, %v2731
        %v3320 = vpack.c.b16 %v3026, %v2732
        %v3321 = vpack.c.b16 %v3027, %v2733
        %v3322 = vpack.c.b16 %v3028, %v2734
        %v3323 = vpack.c.b16 %v3029, %v2735
        %v3324 = vpack.c.b16 %v3030, %v2736
        %v3325 = vpack.c.b16 %v3031, %v2737
        %v3326 = vpack.c.b16 %v3032, %v2738
        %v3327 = vpack.c.b16 %v3033, %v2739
        %v3328 = vpack.c.b16 %v3034, %v2740
        %v3329 = vpack.c.b16 %v3035, %v2741
        %v3330 = vpack.c.b16 %v3036, %v2742
        %v3331 = vpack.c.b16 %v3037, %v2743
        %v3332 = vpack.c.b16 %v3038, %v2744
        %v3333 = vpack.c.b16 %v3039, %v2745
        %v3334 = vpack.c.b16 %v3040, %v2746
        %v3335 = vpack.c.b16 %v3041, %v2747
        %v3336 = vpack.c.b16 %v3042, %v2748
        %v3337 = vpack.c.b16 %v3043, %v2749
        %v3338 = vpack.c.b16 %v3044, %v2750
        %v3339 = vpack.c.b16 %v3045, %v2751
        %v3340 = vpack.c.b16 %v3046, %v2752
        %v3341 = vpack.c.b16 %v3047, %v2753
        %v3342 = vpack.c.b16 %v3048, %v2754
        %v3343 = vpack.c.b16 %v3049, %v2755
        %v3344 = vpack.c.b16 %v3050, %v2756
        %v3345 = vpack.c.b16 %v3051, %v2757
        %v3346 = vpack.c.b16 %v3052, %v2758
        %v3347 = vpack.c.b16 %v3053, %v2759
        %v3348 = vpack.c.b16 %v3054, %v2760
        %v3349 = vpack.c.b16 %v3055, %v2761
        %v3350 = vpack.c.b16 %v3056, %v2762
        %v3351 = vpack.c.b16 %v3057, %v2763
        %v3352 = vpack.c.b16 %v3058, %v2764
        %v3353 = vpack.c.b16 %v3059, %v2765
        %v3354 = vpack.c.b16 %v3060, %v2766
        %v3355 = vpack.c.b16 %v3061, %v2767
        %v3356 = vpack.c.b16 %v3062, %v2768
        %v3357 = vpack.c.b16 %v3063, %v2769
        %v3358 = vpack.c.b16 %v3064, %v2770
        %v3359 = vpack.c.b16 %v3065, %v2771
        %v3360 = vpack.c.b16 %v3066, %v2772
        %v3361 = vpack.c.b16 %v3067, %v2773
        %v3362 = vpack.c.b16 %v3068, %v2774
        %v3363 = vpack.c.b16 %v3069, %v2775
        %v3364 = vpack.c.b16 %v3070, %v2776
        %v3365 = vpack.c.b16 %v3071, %v2777
        %v3366 = vpack.c.b16 %v3072, %v2778
        %v3367 = vpack.c.b16 %v3073, %v2779
        %3662 = vmatpush.bf16.xpose.msra.mxu0 0
        %3663 = vmatpush.bf16.xpose.msra.mxu0 0
        %3664 = vmatpush.bf16.xpose.msra.mxu0 0
        %3665 = vmatpush.bf16.xpose.msra.mxu0 0
        %3666 = vmatpush.bf16.xpose.msra.mxu0 0
        %3667 = vmatpush.bf16.xpose.msra.mxu0 0
        %3668 = vmatpush.bf16.xpose.msra.mxu0 0
        %3669 = vmatpush.bf16.xpose.msra.mxu0 %v3074
        %3670 = vmatmul.bf16.gmra.mxu0 %v1603
        %v3671 = vpop.f32.mrf.mxu0
        %v3672 = vadd.f32 0.0, %v3671
        %v3673 = vpop.f32.mrf.mxu0
        %3674 = vdwg.mxu0
        %3675 = vmatpush.bf16.xpose.msra.mxu0 0
        %3676 = vmatpush.bf16.xpose.msra.mxu0 0
        %3677 = vmatpush.bf16.xpose.msra.mxu0 0
        %3678 = vmatpush.bf16.xpose.msra.mxu0 0
        %3679 = vmatpush.bf16.xpose.msra.mxu0 0
        %3680 = vmatpush.bf16.xpose.msra.mxu0 0
        %3681 = vmatpush.bf16.xpose.msra.mxu0 0
        %3682 = vmatpush.bf16.xpose.msra.mxu0 %v3075
        %3683 = vmatmul.bf16.gmra.mxu0 %v1604
        %v3684 = vpop.f32.mrf.mxu0
        %v3685 = vadd.f32 %v3672, %v3684
        %v3686 = vpop.f32.mrf.mxu0
        %3687 = vdwg.mxu0
        %3688 = vmatpush.bf16.xpose.msra.mxu0 0
        %3689 = vmatpush.bf16.xpose.msra.mxu0 0
        %3690 = vmatpush.bf16.xpose.msra.mxu0 0
        %3691 = vmatpush.bf16.xpose.msra.mxu0 0
        %3692 = vmatpush.bf16.xpose.msra.mxu0 0
        %3693 = vmatpush.bf16.xpose.msra.mxu0 0
        %3694 = vmatpush.bf16.xpose.msra.mxu0 0
        %3695 = vmatpush.bf16.xpose.msra.mxu0 %v3076
        %3696 = vmatmul.bf16.gmra.mxu0 %v1605
        %v3697 = vpop.f32.mrf.mxu0
        %v3698 = vadd.f32 %v3685, %v3697
        %v3699 = vpop.f32.mrf.mxu0
        %3700 = vdwg.mxu0
        %3701 = vmatpush.bf16.xpose.msra.mxu0 0
        %3702 = vmatpush.bf16.xpose.msra.mxu0 0
        %3703 = vmatpush.bf16.xpose.msra.mxu0 0
        %3704 = vmatpush.bf16.xpose.msra.mxu0 0
        %3705 = vmatpush.bf16.xpose.msra.mxu0 0
        %3706 = vmatpush.bf16.xpose.msra.mxu0 0
        %3707 = vmatpush.bf16.xpose.msra.mxu0 0
        %3708 = vmatpush.bf16.xpose.msra.mxu0 %v3077
        %3709 = vmatmul.bf16.gmra.mxu0 %v1606
        %v3710 = vpop.f32.mrf.mxu0
        %v3711 = vadd.f32 %v3698, %v3710
        %v3712 = vpop.f32.mrf.mxu0
        %3713 = vdwg.mxu0
        %3714 = vmatpush.bf16.xpose.msra.mxu0 0
        %3715 = vmatpush.bf16.xpose.msra.mxu0 0
        %3716 = vmatpush.bf16.xpose.msra.mxu0 0
        %3717 = vmatpush.bf16.xpose.msra.mxu0 0
        %3718 = vmatpush.bf16.xpose.msra.mxu0 0
        %3719 = vmatpush.bf16.xpose.msra.mxu0 0
        %3720 = vmatpush.bf16.xpose.msra.mxu0 0
        %3721 = vmatpush.bf16.xpose.msra.mxu0 %v3078
        %3722 = vmatmul.bf16.gmra.mxu0 %v1607
        %v3723 = vpop.f32.mrf.mxu0
        %v3724 = vadd.f32 %v3711, %v3723
        %v3725 = vpop.f32.mrf.mxu0
        %3726 = vdwg.mxu0
        %3727 = vmatpush.bf16.xpose.msra.mxu0 0
        %3728 = vmatpush.bf16.xpose.msra.mxu0 0
        %3729 = vmatpush.bf16.xpose.msra.mxu0 0
        %3730 = vmatpush.bf16.xpose.msra.mxu0 0
        %3731 = vmatpush.bf16.xpose.msra.mxu0 0
        %3732 = vmatpush.bf16.xpose.msra.mxu0 0
        %3733 = vmatpush.bf16.xpose.msra.mxu0 0
        %3734 = vmatpush.bf16.xpose.msra.mxu0 %v3079
        %3735 = vmatmul.bf16.gmra.mxu0 %v1608
        %v3736 = vpop.f32.mrf.mxu0
        %v3737 = vadd.f32 %v3724, %v3736
        %v3738 = vpop.f32.mrf.mxu0
        %3739 = vdwg.mxu0
        %3740 = vmatpush.bf16.xpose.msra.mxu0 0
        %3741 = vmatpush.bf16.xpose.msra.mxu0 0
        %3742 = vmatpush.bf16.xpose.msra.mxu0 0
        %3743 = vmatpush.bf16.xpose.msra.mxu0 0
        %3744 = vmatpush.bf16.xpose.msra.mxu0 0
        %3745 = vmatpush.bf16.xpose.msra.mxu0 0
        %3746 = vmatpush.bf16.xpose.msra.mxu0 0
        %3747 = vmatpush.bf16.xpose.msra.mxu0 %v3080
        %3748 = vmatmul.bf16.gmra.mxu0 %v1609
        %v3749 = vpop.f32.mrf.mxu0
        %v3750 = vadd.f32 %v3737, %v3749
        %v3751 = vpop.f32.mrf.mxu0
        %3752 = vdwg.mxu0
        %3753 = vmatpush.bf16.xpose.msra.mxu0 0
        %3754 = vmatpush.bf16.xpose.msra.mxu0 0
        %3755 = vmatpush.bf16.xpose.msra.mxu0 0
        %3756 = vmatpush.bf16.xpose.msra.mxu0 0
        %3757 = vmatpush.bf16.xpose.msra.mxu0 0
        %3758 = vmatpush.bf16.xpose.msra.mxu0 0
        %3759 = vmatpush.bf16.xpose.msra.mxu0 0
        %3760 = vmatpush.bf16.xpose.msra.mxu0 %v3081
        %3761 = vmatmul.bf16.gmra.mxu0 %v1610
        %v3762 = vpop.f32.mrf.mxu0
        %v3763 = vadd.f32 %v3750, %v3762
        %v3764 = vpop.f32.mrf.mxu0
        %3765 = vdwg.mxu0
        %3766 = vmatpush.bf16.xpose.msra.mxu0 0
        %3767 = vmatpush.bf16.xpose.msra.mxu0 0
        %3768 = vmatpush.bf16.xpose.msra.mxu0 0
        %3769 = vmatpush.bf16.xpose.msra.mxu0 0
        %3770 = vmatpush.bf16.xpose.msra.mxu0 0
        %3771 = vmatpush.bf16.xpose.msra.mxu0 0
        %3772 = vmatpush.bf16.xpose.msra.mxu0 0
        %3773 = vmatpush.bf16.xpose.msra.mxu0 %v3082
        %3774 = vmatmul.bf16.gmra.mxu0 %v1611
        %v3775 = vpop.f32.mrf.mxu0
        %v3776 = vadd.f32 %v3763, %v3775
        %v3777 = vpop.f32.mrf.mxu0
        %3778 = vdwg.mxu0
        %3779 = vmatpush.bf16.xpose.msra.mxu0 0
        %3780 = vmatpush.bf16.xpose.msra.mxu0 0
        %3781 = vmatpush.bf16.xpose.msra.mxu0 0
        %3782 = vmatpush.bf16.xpose.msra.mxu0 0
        %3783 = vmatpush.bf16.xpose.msra.mxu0 0
        %3784 = vmatpush.bf16.xpose.msra.mxu0 0
        %3785 = vmatpush.bf16.xpose.msra.mxu0 0
        %3786 = vmatpush.bf16.xpose.msra.mxu0 %v3083
        %3787 = vmatmul.bf16.gmra.mxu0 %v1612
        %v3788 = vpop.f32.mrf.mxu0
        %v3789 = vadd.f32 %v3776, %v3788
        %v3790 = vpop.f32.mrf.mxu0
        %3791 = vdwg.mxu0
        %3792 = vmatpush.bf16.xpose.msra.mxu0 0
        %3793 = vmatpush.bf16.xpose.msra.mxu0 0
        %3794 = vmatpush.bf16.xpose.msra.mxu0 0
        %3795 = vmatpush.bf16.xpose.msra.mxu0 0
        %3796 = vmatpush.bf16.xpose.msra.mxu0 0
        %3797 = vmatpush.bf16.xpose.msra.mxu0 0
        %3798 = vmatpush.bf16.xpose.msra.mxu0 0
        %3799 = vmatpush.bf16.xpose.msra.mxu0 %v3084
        %3800 = vmatmul.bf16.gmra.mxu0 %v1613
        %v3801 = vpop.f32.mrf.mxu0
        %v3802 = vadd.f32 %v3789, %v3801
        %v3803 = vpop.f32.mrf.mxu0
        %3804 = vdwg.mxu0
        %3805 = vmatpush.bf16.xpose.msra.mxu0 0
        %3806 = vmatpush.bf16.xpose.msra.mxu0 0
        %3807 = vmatpush.bf16.xpose.msra.mxu0 0
        %3808 = vmatpush.bf16.xpose.msra.mxu0 0
        %3809 = vmatpush.bf16.xpose.msra.mxu0 0
        %3810 = vmatpush.bf16.xpose.msra.mxu0 0
        %3811 = vmatpush.bf16.xpose.msra.mxu0 0
        %3812 = vmatpush.bf16.xpose.msra.mxu0 %v3085
        %3813 = vmatmul.bf16.gmra.mxu0 %v1614
        %v3814 = vpop.f32.mrf.mxu0
        %v3815 = vadd.f32 %v3802, %v3814
        %v3816 = vpop.f32.mrf.mxu0
        %3817 = vdwg.mxu0
        %3818 = vmatpush.bf16.xpose.msra.mxu0 0
        %3819 = vmatpush.bf16.xpose.msra.mxu0 0
        %3820 = vmatpush.bf16.xpose.msra.mxu0 0
        %3821 = vmatpush.bf16.xpose.msra.mxu0 0
        %3822 = vmatpush.bf16.xpose.msra.mxu0 0
        %3823 = vmatpush.bf16.xpose.msra.mxu0 0
        %3824 = vmatpush.bf16.xpose.msra.mxu0 0
        %3825 = vmatpush.bf16.xpose.msra.mxu0 %v3086
        %3826 = vmatmul.bf16.gmra.mxu0 %v1615
        %v3827 = vpop.f32.mrf.mxu0
        %v3828 = vadd.f32 %v3815, %v3827
        %v3829 = vpop.f32.mrf.mxu0
        %3830 = vdwg.mxu0
        %3831 = vmatpush.bf16.xpose.msra.mxu0 0
        %3832 = vmatpush.bf16.xpose.msra.mxu0 0
        %3833 = vmatpush.bf16.xpose.msra.mxu0 0
        %3834 = vmatpush.bf16.xpose.msra.mxu0 0
        %3835 = vmatpush.bf16.xpose.msra.mxu0 0
        %3836 = vmatpush.bf16.xpose.msra.mxu0 0
        %3837 = vmatpush.bf16.xpose.msra.mxu0 0
        %3838 = vmatpush.bf16.xpose.msra.mxu0 %v3087
        %3839 = vmatmul.bf16.gmra.mxu0 %v1616
        %v3840 = vpop.f32.mrf.mxu0
        %v3841 = vadd.f32 %v3828, %v3840
        %v3842 = vpop.f32.mrf.mxu0
        %3843 = vdwg.mxu0
        %3844 = vmatpush.bf16.xpose.msra.mxu0 0
        %3845 = vmatpush.bf16.xpose.msra.mxu0 0
        %3846 = vmatpush.bf16.xpose.msra.mxu0 0
        %3847 = vmatpush.bf16.xpose.msra.mxu0 0
        %3848 = vmatpush.bf16.xpose.msra.mxu0 0
        %3849 = vmatpush.bf16.xpose.msra.mxu0 0
        %3850 = vmatpush.bf16.xpose.msra.mxu0 0
        %3851 = vmatpush.bf16.xpose.msra.mxu0 %v3088
        %3852 = vmatmul.bf16.gmra.mxu0 %v1617
        %v3853 = vpop.f32.mrf.mxu0
        %v3854 = vadd.f32 %v3841, %v3853
        %v3855 = vpop.f32.mrf.mxu0
        %3856 = vdwg.mxu0
        %3857 = vmatpush.bf16.xpose.msra.mxu0 0
        %3858 = vmatpush.bf16.xpose.msra.mxu0 0
        %3859 = vmatpush.bf16.xpose.msra.mxu0 0
        %3860 = vmatpush.bf16.xpose.msra.mxu0 0
        %3861 = vmatpush.bf16.xpose.msra.mxu0 0
        %3862 = vmatpush.bf16.xpose.msra.mxu0 0
        %3863 = vmatpush.bf16.xpose.msra.mxu0 0
        %3864 = vmatpush.bf16.xpose.msra.mxu0 %v3089
        %3865 = vmatmul.bf16.gmra.mxu0 %v1618
        %v3866 = vpop.f32.mrf.mxu0
        %v3867 = vadd.f32 %v3854, %v3866
        %v3868 = vpop.f32.mrf.mxu0
        %3869 = vdwg.mxu0
        %3870 = vmatpush.bf16.xpose.msra.mxu0 0
        %3871 = vmatpush.bf16.xpose.msra.mxu0 0
        %3872 = vmatpush.bf16.xpose.msra.mxu0 0
        %3873 = vmatpush.bf16.xpose.msra.mxu0 0
        %3874 = vmatpush.bf16.xpose.msra.mxu0 0
        %3875 = vmatpush.bf16.xpose.msra.mxu0 0
        %3876 = vmatpush.bf16.xpose.msra.mxu0 0
        %3877 = vmatpush.bf16.xpose.msra.mxu0 %v3090
        %3878 = vmatmul.bf16.gmra.mxu0 %v1619
        %v3879 = vpop.f32.mrf.mxu0
        %v3880 = vadd.f32 %v3867, %v3879
        %v3881 = vpop.f32.mrf.mxu0
        %3882 = vdwg.mxu0
        %3883 = vmatpush.bf16.xpose.msra.mxu0 0
        %3884 = vmatpush.bf16.xpose.msra.mxu0 0
        %3885 = vmatpush.bf16.xpose.msra.mxu0 0
        %3886 = vmatpush.bf16.xpose.msra.mxu0 0
        %3887 = vmatpush.bf16.xpose.msra.mxu0 0
        %3888 = vmatpush.bf16.xpose.msra.mxu0 0
        %3889 = vmatpush.bf16.xpose.msra.mxu0 0
        %3890 = vmatpush.bf16.xpose.msra.mxu0 %v3091
        %3891 = vmatmul.bf16.gmra.mxu0 %v1620
        %v3892 = vpop.f32.mrf.mxu0
        %v3893 = vadd.f32 %v3880, %v3892
        %v3894 = vpop.f32.mrf.mxu0
        %3895 = vdwg.mxu0
        %3896 = vmatpush.bf16.xpose.msra.mxu0 0
        %3897 = vmatpush.bf16.xpose.msra.mxu0 0
        %3898 = vmatpush.bf16.xpose.msra.mxu0 0
        %3899 = vmatpush.bf16.xpose.msra.mxu0 0
        %3900 = vmatpush.bf16.xpose.msra.mxu0 0
        %3901 = vmatpush.bf16.xpose.msra.mxu0 0
        %3902 = vmatpush.bf16.xpose.msra.mxu0 0
        %3903 = vmatpush.bf16.xpose.msra.mxu0 %v3092
        %3904 = vmatmul.bf16.gmra.mxu0 %v1621
        %v3905 = vpop.f32.mrf.mxu0
        %v3906 = vadd.f32 %v3893, %v3905
        %v3907 = vpop.f32.mrf.mxu0
        %3908 = vdwg.mxu0
        %3909 = vmatpush.bf16.xpose.msra.mxu0 0
        %3910 = vmatpush.bf16.xpose.msra.mxu0 0
        %3911 = vmatpush.bf16.xpose.msra.mxu0 0
        %3912 = vmatpush.bf16.xpose.msra.mxu0 0
        %3913 = vmatpush.bf16.xpose.msra.mxu0 0
        %3914 = vmatpush.bf16.xpose.msra.mxu0 0
        %3915 = vmatpush.bf16.xpose.msra.mxu0 0
        %3916 = vmatpush.bf16.xpose.msra.mxu0 %v3093
        %3917 = vmatmul.bf16.gmra.mxu0 %v1622
        %v3918 = vpop.f32.mrf.mxu0
        %v3919 = vadd.f32 %v3906, %v3918
        %v3920 = vpop.f32.mrf.mxu0
        %3921 = vdwg.mxu0
        %3922 = vmatpush.bf16.xpose.msra.mxu0 0
        %3923 = vmatpush.bf16.xpose.msra.mxu0 0
        %3924 = vmatpush.bf16.xpose.msra.mxu0 0
        %3925 = vmatpush.bf16.xpose.msra.mxu0 0
        %3926 = vmatpush.bf16.xpose.msra.mxu0 0
        %3927 = vmatpush.bf16.xpose.msra.mxu0 0
        %3928 = vmatpush.bf16.xpose.msra.mxu0 0
        %3929 = vmatpush.bf16.xpose.msra.mxu0 %v3094
        %3930 = vmatmul.bf16.gmra.mxu0 %v1623
        %v3931 = vpop.f32.mrf.mxu0
        %v3932 = vadd.f32 %v3919, %v3931
        %v3933 = vpop.f32.mrf.mxu0
        %3934 = vdwg.mxu0
        %3935 = vmatpush.bf16.xpose.msra.mxu0 0
        %3936 = vmatpush.bf16.xpose.msra.mxu0 0
        %3937 = vmatpush.bf16.xpose.msra.mxu0 0
        %3938 = vmatpush.bf16.xpose.msra.mxu0 0
        %3939 = vmatpush.bf16.xpose.msra.mxu0 0
        %3940 = vmatpush.bf16.xpose.msra.mxu0 0
        %3941 = vmatpush.bf16.xpose.msra.mxu0 0
        %3942 = vmatpush.bf16.xpose.msra.mxu0 %v3095
        %3943 = vmatmul.bf16.gmra.mxu0 %v1624
        %v3944 = vpop.f32.mrf.mxu0
        %v3945 = vadd.f32 %v3932, %v3944
        %v3946 = vpop.f32.mrf.mxu0
        %3947 = vdwg.mxu0
        %3948 = vmatpush.bf16.xpose.msra.mxu0 0
        %3949 = vmatpush.bf16.xpose.msra.mxu0 0
        %3950 = vmatpush.bf16.xpose.msra.mxu0 0
        %3951 = vmatpush.bf16.xpose.msra.mxu0 0
        %3952 = vmatpush.bf16.xpose.msra.mxu0 0
        %3953 = vmatpush.bf16.xpose.msra.mxu0 0
        %3954 = vmatpush.bf16.xpose.msra.mxu0 0
        %3955 = vmatpush.bf16.xpose.msra.mxu0 %v3096
        %3956 = vmatmul.bf16.gmra.mxu0 %v1625
        %v3957 = vpop.f32.mrf.mxu0
        %v3958 = vadd.f32 %v3945, %v3957
        %v3959 = vpop.f32.mrf.mxu0
        %3960 = vdwg.mxu0
        %3961 = vmatpush.bf16.xpose.msra.mxu0 0
        %3962 = vmatpush.bf16.xpose.msra.mxu0 0
        %3963 = vmatpush.bf16.xpose.msra.mxu0 0
        %3964 = vmatpush.bf16.xpose.msra.mxu0 0
        %3965 = vmatpush.bf16.xpose.msra.mxu0 0
        %3966 = vmatpush.bf16.xpose.msra.mxu0 0
        %3967 = vmatpush.bf16.xpose.msra.mxu0 0
        %3968 = vmatpush.bf16.xpose.msra.mxu0 %v3097
        %3969 = vmatmul.bf16.gmra.mxu0 %v1626
        %v3970 = vpop.f32.mrf.mxu0
        %v3971 = vadd.f32 %v3958, %v3970
        %v3972 = vpop.f32.mrf.mxu0
        %3973 = vdwg.mxu0
        %3974 = vmatpush.bf16.xpose.msra.mxu0 0
        %3975 = vmatpush.bf16.xpose.msra.mxu0 0
        %3976 = vmatpush.bf16.xpose.msra.mxu0 0
        %3977 = vmatpush.bf16.xpose.msra.mxu0 0
        %3978 = vmatpush.bf16.xpose.msra.mxu0 0
        %3979 = vmatpush.bf16.xpose.msra.mxu0 0
        %3980 = vmatpush.bf16.xpose.msra.mxu0 0
        %3981 = vmatpush.bf16.xpose.msra.mxu0 %v3098
        %3982 = vmatmul.bf16.gmra.mxu0 %v1627
        %v3983 = vpop.f32.mrf.mxu0
        %v3984 = vadd.f32 %v3971, %v3983
        %v3985 = vpop.f32.mrf.mxu0
        %3986 = vdwg.mxu0
        %3987 = vmatpush.bf16.xpose.msra.mxu0 0
        %3988 = vmatpush.bf16.xpose.msra.mxu0 0
        %3989 = vmatpush.bf16.xpose.msra.mxu0 0
        %3990 = vmatpush.bf16.xpose.msra.mxu0 0
        %3991 = vmatpush.bf16.xpose.msra.mxu0 0
        %3992 = vmatpush.bf16.xpose.msra.mxu0 0
        %3993 = vmatpush.bf16.xpose.msra.mxu0 0
        %3994 = vmatpush.bf16.xpose.msra.mxu0 %v3099
        %3995 = vmatmul.bf16.gmra.mxu0 %v1628
        %v3996 = vpop.f32.mrf.mxu0
        %v3997 = vadd.f32 %v3984, %v3996
        %v3998 = vpop.f32.mrf.mxu0
        %3999 = vdwg.mxu0
        %4000 = vmatpush.bf16.xpose.msra.mxu0 0
        %4001 = vmatpush.bf16.xpose.msra.mxu0 0
        %4002 = vmatpush.bf16.xpose.msra.mxu0 0
        %4003 = vmatpush.bf16.xpose.msra.mxu0 0
        %4004 = vmatpush.bf16.xpose.msra.mxu0 0
        %4005 = vmatpush.bf16.xpose.msra.mxu0 0
        %4006 = vmatpush.bf16.xpose.msra.mxu0 0
        %4007 = vmatpush.bf16.xpose.msra.mxu0 %v3100
        %4008 = vmatmul.bf16.gmra.mxu0 %v1629
        %v4009 = vpop.f32.mrf.mxu0
        %v4010 = vadd.f32 %v3997, %v4009
        %v4011 = vpop.f32.mrf.mxu0
        %4012 = vdwg.mxu0
        %4013 = vmatpush.bf16.xpose.msra.mxu0 0
        %4014 = vmatpush.bf16.xpose.msra.mxu0 0
        %4015 = vmatpush.bf16.xpose.msra.mxu0 0
        %4016 = vmatpush.bf16.xpose.msra.mxu0 0
        %4017 = vmatpush.bf16.xpose.msra.mxu0 0
        %4018 = vmatpush.bf16.xpose.msra.mxu0 0
        %4019 = vmatpush.bf16.xpose.msra.mxu0 0
        %4020 = vmatpush.bf16.xpose.msra.mxu0 %v3101
        %4021 = vmatmul.bf16.gmra.mxu0 %v1630
        %v4022 = vpop.f32.mrf.mxu0
        %v4023 = vadd.f32 %v4010, %v4022
        %v4024 = vpop.f32.mrf.mxu0
        %4025 = vdwg.mxu0
        %4026 = vmatpush.bf16.xpose.msra.mxu0 0
        %4027 = vmatpush.bf16.xpose.msra.mxu0 0
        %4028 = vmatpush.bf16.xpose.msra.mxu0 0
        %4029 = vmatpush.bf16.xpose.msra.mxu0 0
        %4030 = vmatpush.bf16.xpose.msra.mxu0 0
        %4031 = vmatpush.bf16.xpose.msra.mxu0 0
        %4032 = vmatpush.bf16.xpose.msra.mxu0 0
        %4033 = vmatpush.bf16.xpose.msra.mxu0 %v3102
        %4034 = vmatmul.bf16.gmra.mxu0 %v1631
        %v4035 = vpop.f32.mrf.mxu0
        %v4036 = vadd.f32 %v4023, %v4035
        %v4037 = vpop.f32.mrf.mxu0
        %4038 = vdwg.mxu0
        %4039 = vmatpush.bf16.xpose.msra.mxu0 0
        %4040 = vmatpush.bf16.xpose.msra.mxu0 0
        %4041 = vmatpush.bf16.xpose.msra.mxu0 0
        %4042 = vmatpush.bf16.xpose.msra.mxu0 0
        %4043 = vmatpush.bf16.xpose.msra.mxu0 0
        %4044 = vmatpush.bf16.xpose.msra.mxu0 0
        %4045 = vmatpush.bf16.xpose.msra.mxu0 0
        %4046 = vmatpush.bf16.xpose.msra.mxu0 %v3103
        %4047 = vmatmul.bf16.gmra.mxu0 %v1632
        %v4048 = vpop.f32.mrf.mxu0
        %v4049 = vadd.f32 %v4036, %v4048
        %v4050 = vpop.f32.mrf.mxu0
        %4051 = vdwg.mxu0
        %4052 = vmatpush.bf16.xpose.msra.mxu0 0
        %4053 = vmatpush.bf16.xpose.msra.mxu0 0
        %4054 = vmatpush.bf16.xpose.msra.mxu0 0
        %4055 = vmatpush.bf16.xpose.msra.mxu0 0
        %4056 = vmatpush.bf16.xpose.msra.mxu0 0
        %4057 = vmatpush.bf16.xpose.msra.mxu0 0
        %4058 = vmatpush.bf16.xpose.msra.mxu0 0
        %4059 = vmatpush.bf16.xpose.msra.mxu0 %v3104
        %4060 = vmatmul.bf16.gmra.mxu0 %v1633
        %v4061 = vpop.f32.mrf.mxu0
        %v4062 = vadd.f32 %v4049, %v4061
        %v4063 = vpop.f32.mrf.mxu0
        %4064 = vdwg.mxu0
        %4065 = vmatpush.bf16.xpose.msra.mxu0 0
        %4066 = vmatpush.bf16.xpose.msra.mxu0 0
        %4067 = vmatpush.bf16.xpose.msra.mxu0 0
        %4068 = vmatpush.bf16.xpose.msra.mxu0 0
        %4069 = vmatpush.bf16.xpose.msra.mxu0 0
        %4070 = vmatpush.bf16.xpose.msra.mxu0 0
        %4071 = vmatpush.bf16.xpose.msra.mxu0 0
        %4072 = vmatpush.bf16.xpose.msra.mxu0 %v3105
        %4073 = vmatmul.bf16.gmra.mxu0 %v1634
        %v4074 = vpop.f32.mrf.mxu0
        %v4075 = vadd.f32 %v4062, %v4074
        %v4076 = vpop.f32.mrf.mxu0
        %4077 = vdwg.mxu0
        %4078 = vmatpush.bf16.xpose.msra.mxu0 0
        %4079 = vmatpush.bf16.xpose.msra.mxu0 0
        %4080 = vmatpush.bf16.xpose.msra.mxu0 0
        %4081 = vmatpush.bf16.xpose.msra.mxu0 0
        %4082 = vmatpush.bf16.xpose.msra.mxu0 0
        %4083 = vmatpush.bf16.xpose.msra.mxu0 0
        %4084 = vmatpush.bf16.xpose.msra.mxu0 0
        %4085 = vmatpush.bf16.xpose.msra.mxu0 %v3106
        %4086 = vmatmul.bf16.gmra.mxu0 %v1635
        %v4087 = vpop.f32.mrf.mxu0
        %v4088 = vadd.f32 %v4075, %v4087
        %v4089 = vpop.f32.mrf.mxu0
        %4090 = vdwg.mxu0
        %4091 = vmatpush.bf16.xpose.msra.mxu0 0
        %4092 = vmatpush.bf16.xpose.msra.mxu0 0
        %4093 = vmatpush.bf16.xpose.msra.mxu0 0
        %4094 = vmatpush.bf16.xpose.msra.mxu0 0
        %4095 = vmatpush.bf16.xpose.msra.mxu0 0
        %4096 = vmatpush.bf16.xpose.msra.mxu0 0
        %4097 = vmatpush.bf16.xpose.msra.mxu0 0
        %4098 = vmatpush.bf16.xpose.msra.mxu0 %v3107
        %4099 = vmatmul.bf16.gmra.mxu0 %v1636
        %v4100 = vpop.f32.mrf.mxu0
        %v4101 = vadd.f32 %v4088, %v4100
        %v4102 = vpop.f32.mrf.mxu0
        %4103 = vdwg.mxu0
        %4104 = vmatpush.bf16.xpose.msra.mxu0 0
        %4105 = vmatpush.bf16.xpose.msra.mxu0 0
        %4106 = vmatpush.bf16.xpose.msra.mxu0 0
        %4107 = vmatpush.bf16.xpose.msra.mxu0 0
        %4108 = vmatpush.bf16.xpose.msra.mxu0 0
        %4109 = vmatpush.bf16.xpose.msra.mxu0 0
        %4110 = vmatpush.bf16.xpose.msra.mxu0 0
        %4111 = vmatpush.bf16.xpose.msra.mxu0 %v3108
        %4112 = vmatmul.bf16.gmra.mxu0 %v1637
        %v4113 = vpop.f32.mrf.mxu0
        %v4114 = vadd.f32 %v4101, %v4113
        %v4115 = vpop.f32.mrf.mxu0
        %4116 = vdwg.mxu0
        %4117 = vmatpush.bf16.xpose.msra.mxu0 0
        %4118 = vmatpush.bf16.xpose.msra.mxu0 0
        %4119 = vmatpush.bf16.xpose.msra.mxu0 0
        %4120 = vmatpush.bf16.xpose.msra.mxu0 0
        %4121 = vmatpush.bf16.xpose.msra.mxu0 0
        %4122 = vmatpush.bf16.xpose.msra.mxu0 0
        %4123 = vmatpush.bf16.xpose.msra.mxu0 0
        %4124 = vmatpush.bf16.xpose.msra.mxu0 %v3109
        %4125 = vmatmul.bf16.gmra.mxu0 %v1638
        %v4126 = vpop.f32.mrf.mxu0
        %v4127 = vadd.f32 %v4114, %v4126
        %v4128 = vpop.f32.mrf.mxu0
        %4129 = vdwg.mxu0
        %4130 = vmatpush.bf16.xpose.msra.mxu0 0
        %4131 = vmatpush.bf16.xpose.msra.mxu0 0
        %4132 = vmatpush.bf16.xpose.msra.mxu0 0
        %4133 = vmatpush.bf16.xpose.msra.mxu0 0
        %4134 = vmatpush.bf16.xpose.msra.mxu0 0
        %4135 = vmatpush.bf16.xpose.msra.mxu0 0
        %4136 = vmatpush.bf16.xpose.msra.mxu0 0
        %4137 = vmatpush.bf16.xpose.msra.mxu0 %v3110
        %4138 = vmatmul.bf16.gmra.mxu0 %v1639
        %v4139 = vpop.f32.mrf.mxu0
        %v4140 = vadd.f32 %v4127, %v4139
        %v4141 = vpop.f32.mrf.mxu0
        %4142 = vdwg.mxu0
        %4143 = vmatpush.bf16.xpose.msra.mxu0 0
        %4144 = vmatpush.bf16.xpose.msra.mxu0 0
        %4145 = vmatpush.bf16.xpose.msra.mxu0 0
        %4146 = vmatpush.bf16.xpose.msra.mxu0 0
        %4147 = vmatpush.bf16.xpose.msra.mxu0 0
        %4148 = vmatpush.bf16.xpose.msra.mxu0 0
        %4149 = vmatpush.bf16.xpose.msra.mxu0 0
        %4150 = vmatpush.bf16.xpose.msra.mxu0 %v3111
        %4151 = vmatmul.bf16.gmra.mxu0 %v1640
        %v4152 = vpop.f32.mrf.mxu0
        %v4153 = vadd.f32 %v4140, %v4152
        %v4154 = vpop.f32.mrf.mxu0
        %4155 = vdwg.mxu0
        %4156 = vmatpush.bf16.xpose.msra.mxu0 0
        %4157 = vmatpush.bf16.xpose.msra.mxu0 0
        %4158 = vmatpush.bf16.xpose.msra.mxu0 0
        %4159 = vmatpush.bf16.xpose.msra.mxu0 0
        %4160 = vmatpush.bf16.xpose.msra.mxu0 0
        %4161 = vmatpush.bf16.xpose.msra.mxu0 0
        %4162 = vmatpush.bf16.xpose.msra.mxu0 0
        %4163 = vmatpush.bf16.xpose.msra.mxu0 %v3112
        %4164 = vmatmul.bf16.gmra.mxu0 %v1641
        %v4165 = vpop.f32.mrf.mxu0
        %v4166 = vadd.f32 %v4153, %v4165
        %v4167 = vpop.f32.mrf.mxu0
        %4168 = vdwg.mxu0
        %4169 = vmatpush.bf16.xpose.msra.mxu0 0
        %4170 = vmatpush.bf16.xpose.msra.mxu0 0
        %4171 = vmatpush.bf16.xpose.msra.mxu0 0
        %4172 = vmatpush.bf16.xpose.msra.mxu0 0
        %4173 = vmatpush.bf16.xpose.msra.mxu0 0
        %4174 = vmatpush.bf16.xpose.msra.mxu0 0
        %4175 = vmatpush.bf16.xpose.msra.mxu0 0
        %4176 = vmatpush.bf16.xpose.msra.mxu0 %v3113
        %4177 = vmatmul.bf16.gmra.mxu0 %v1642
        %v4178 = vpop.f32.mrf.mxu0
        %v4179 = vadd.f32 %v4166, %v4178
        %v4180 = vpop.f32.mrf.mxu0
        %4181 = vdwg.mxu0
        %4182 = vmatpush.bf16.xpose.msra.mxu0 0
        %4183 = vmatpush.bf16.xpose.msra.mxu0 0
        %4184 = vmatpush.bf16.xpose.msra.mxu0 0
        %4185 = vmatpush.bf16.xpose.msra.mxu0 0
        %4186 = vmatpush.bf16.xpose.msra.mxu0 0
        %4187 = vmatpush.bf16.xpose.msra.mxu0 0
        %4188 = vmatpush.bf16.xpose.msra.mxu0 0
        %4189 = vmatpush.bf16.xpose.msra.mxu0 %v3114
        %4190 = vmatmul.bf16.gmra.mxu0 %v1643
        %v4191 = vpop.f32.mrf.mxu0
        %v4192 = vadd.f32 %v4179, %v4191
        %v4193 = vpop.f32.mrf.mxu0
        %4194 = vdwg.mxu0
        %4195 = vmatpush.bf16.xpose.msra.mxu0 0
        %4196 = vmatpush.bf16.xpose.msra.mxu0 0
        %4197 = vmatpush.bf16.xpose.msra.mxu0 0
        %4198 = vmatpush.bf16.xpose.msra.mxu0 0
        %4199 = vmatpush.bf16.xpose.msra.mxu0 0
        %4200 = vmatpush.bf16.xpose.msra.mxu0 0
        %4201 = vmatpush.bf16.xpose.msra.mxu0 0
        %4202 = vmatpush.bf16.xpose.msra.mxu0 %v3115
        %4203 = vmatmul.bf16.gmra.mxu0 %v1644
        %v4204 = vpop.f32.mrf.mxu0
        %v4205 = vadd.f32 %v4192, %v4204
        %v4206 = vpop.f32.mrf.mxu0
        %4207 = vdwg.mxu0
        %4208 = vmatpush.bf16.xpose.msra.mxu0 0
        %4209 = vmatpush.bf16.xpose.msra.mxu0 0
        %4210 = vmatpush.bf16.xpose.msra.mxu0 0
        %4211 = vmatpush.bf16.xpose.msra.mxu0 0
        %4212 = vmatpush.bf16.xpose.msra.mxu0 0
        %4213 = vmatpush.bf16.xpose.msra.mxu0 0
        %4214 = vmatpush.bf16.xpose.msra.mxu0 0
        %4215 = vmatpush.bf16.xpose.msra.mxu0 %v3116
        %4216 = vmatmul.bf16.gmra.mxu0 %v1645
        %v4217 = vpop.f32.mrf.mxu0
        %v4218 = vadd.f32 %v4205, %v4217
        %v4219 = vpop.f32.mrf.mxu0
        %4220 = vdwg.mxu0
        %4221 = vmatpush.bf16.xpose.msra.mxu0 0
        %4222 = vmatpush.bf16.xpose.msra.mxu0 0
        %4223 = vmatpush.bf16.xpose.msra.mxu0 0
        %4224 = vmatpush.bf16.xpose.msra.mxu0 0
        %4225 = vmatpush.bf16.xpose.msra.mxu0 0
        %4226 = vmatpush.bf16.xpose.msra.mxu0 0
        %4227 = vmatpush.bf16.xpose.msra.mxu0 0
        %4228 = vmatpush.bf16.xpose.msra.mxu0 %v3117
        %4229 = vmatmul.bf16.gmra.mxu0 %v1646
        %v4230 = vpop.f32.mrf.mxu0
        %v4231 = vadd.f32 %v4218, %v4230
        %v4232 = vpop.f32.mrf.mxu0
        %4233 = vdwg.mxu0
        %4234 = vmatpush.bf16.xpose.msra.mxu0 0
        %4235 = vmatpush.bf16.xpose.msra.mxu0 0
        %4236 = vmatpush.bf16.xpose.msra.mxu0 0
        %4237 = vmatpush.bf16.xpose.msra.mxu0 0
        %4238 = vmatpush.bf16.xpose.msra.mxu0 0
        %4239 = vmatpush.bf16.xpose.msra.mxu0 0
        %4240 = vmatpush.bf16.xpose.msra.mxu0 0
        %4241 = vmatpush.bf16.xpose.msra.mxu0 %v3118
        %4242 = vmatmul.bf16.gmra.mxu0 %v1647
        %v4243 = vpop.f32.mrf.mxu0
        %v4244 = vadd.f32 %v4231, %v4243
        %v4245 = vpop.f32.mrf.mxu0
        %4246 = vdwg.mxu0
        %4247 = vmatpush.bf16.xpose.msra.mxu0 0
        %4248 = vmatpush.bf16.xpose.msra.mxu0 0
        %4249 = vmatpush.bf16.xpose.msra.mxu0 0
        %4250 = vmatpush.bf16.xpose.msra.mxu0 0
        %4251 = vmatpush.bf16.xpose.msra.mxu0 0
        %4252 = vmatpush.bf16.xpose.msra.mxu0 0
        %4253 = vmatpush.bf16.xpose.msra.mxu0 0
        %4254 = vmatpush.bf16.xpose.msra.mxu0 %v3119
        %4255 = vmatmul.bf16.gmra.mxu0 %v1648
        %v4256 = vpop.f32.mrf.mxu0
        %v4257 = vadd.f32 %v4244, %v4256
        %v4258 = vpop.f32.mrf.mxu0
        %4259 = vdwg.mxu0
        %4260 = vmatpush.bf16.xpose.msra.mxu0 0
        %4261 = vmatpush.bf16.xpose.msra.mxu0 0
        %4262 = vmatpush.bf16.xpose.msra.mxu0 0
        %4263 = vmatpush.bf16.xpose.msra.mxu0 0
        %4264 = vmatpush.bf16.xpose.msra.mxu0 0
        %4265 = vmatpush.bf16.xpose.msra.mxu0 0
        %4266 = vmatpush.bf16.xpose.msra.mxu0 0
        %4267 = vmatpush.bf16.xpose.msra.mxu0 %v3120
        %4268 = vmatmul.bf16.gmra.mxu0 %v1649
        %v4269 = vpop.f32.mrf.mxu0
        %v4270 = vadd.f32 %v4257, %v4269
        %v4271 = vpop.f32.mrf.mxu0
        %4272 = vdwg.mxu0
        %4273 = vmatpush.bf16.xpose.msra.mxu0 0
        %4274 = vmatpush.bf16.xpose.msra.mxu0 0
        %4275 = vmatpush.bf16.xpose.msra.mxu0 0
        %4276 = vmatpush.bf16.xpose.msra.mxu0 0
        %4277 = vmatpush.bf16.xpose.msra.mxu0 0
        %4278 = vmatpush.bf16.xpose.msra.mxu0 0
        %4279 = vmatpush.bf16.xpose.msra.mxu0 0
        %4280 = vmatpush.bf16.xpose.msra.mxu0 %v3121
        %4281 = vmatmul.bf16.gmra.mxu0 %v1650
        %v4282 = vpop.f32.mrf.mxu0
        %v4283 = vadd.f32 %v4270, %v4282
        %v4284 = vpop.f32.mrf.mxu0
        %4285 = vdwg.mxu0
        %4286 = vmatpush.bf16.xpose.msra.mxu0 0
        %4287 = vmatpush.bf16.xpose.msra.mxu0 0
        %4288 = vmatpush.bf16.xpose.msra.mxu0 0
        %4289 = vmatpush.bf16.xpose.msra.mxu0 0
        %4290 = vmatpush.bf16.xpose.msra.mxu0 0
        %4291 = vmatpush.bf16.xpose.msra.mxu0 0
        %4292 = vmatpush.bf16.xpose.msra.mxu0 0
        %4293 = vmatpush.bf16.xpose.msra.mxu0 %v3122
        %4294 = vmatmul.bf16.gmra.mxu0 %v1651
        %v4295 = vpop.f32.mrf.mxu0
        %v4296 = vadd.f32 %v4283, %v4295
        %v4297 = vpop.f32.mrf.mxu0
        %4298 = vdwg.mxu0
        %4299 = vmatpush.bf16.xpose.msra.mxu0 0
        %4300 = vmatpush.bf16.xpose.msra.mxu0 0
        %4301 = vmatpush.bf16.xpose.msra.mxu0 0
        %4302 = vmatpush.bf16.xpose.msra.mxu0 0
        %4303 = vmatpush.bf16.xpose.msra.mxu0 0
        %4304 = vmatpush.bf16.xpose.msra.mxu0 0
        %4305 = vmatpush.bf16.xpose.msra.mxu0 0
        %4306 = vmatpush.bf16.xpose.msra.mxu0 %v3123
        %4307 = vmatmul.bf16.gmra.mxu0 %v1652
        %v4308 = vpop.f32.mrf.mxu0
        %v4309 = vadd.f32 %v4296, %v4308
        %v4310 = vpop.f32.mrf.mxu0
        %4311 = vdwg.mxu0
        %4312 = vmatpush.bf16.xpose.msra.mxu0 0
        %4313 = vmatpush.bf16.xpose.msra.mxu0 0
        %4314 = vmatpush.bf16.xpose.msra.mxu0 0
        %4315 = vmatpush.bf16.xpose.msra.mxu0 0
        %4316 = vmatpush.bf16.xpose.msra.mxu0 0
        %4317 = vmatpush.bf16.xpose.msra.mxu0 0
        %4318 = vmatpush.bf16.xpose.msra.mxu0 0
        %4319 = vmatpush.bf16.xpose.msra.mxu0 %v3124
        %4320 = vmatmul.bf16.gmra.mxu0 %v1653
        %v4321 = vpop.f32.mrf.mxu0
        %v4322 = vadd.f32 %v4309, %v4321
        %v4323 = vpop.f32.mrf.mxu0
        %4324 = vdwg.mxu0
        %4325 = vmatpush.bf16.xpose.msra.mxu0 0
        %4326 = vmatpush.bf16.xpose.msra.mxu0 0
        %4327 = vmatpush.bf16.xpose.msra.mxu0 0
        %4328 = vmatpush.bf16.xpose.msra.mxu0 0
        %4329 = vmatpush.bf16.xpose.msra.mxu0 0
        %4330 = vmatpush.bf16.xpose.msra.mxu0 0
        %4331 = vmatpush.bf16.xpose.msra.mxu0 0
        %4332 = vmatpush.bf16.xpose.msra.mxu0 %v3125
        %4333 = vmatmul.bf16.gmra.mxu0 %v1654
        %v4334 = vpop.f32.mrf.mxu0
        %v4335 = vadd.f32 %v4322, %v4334
        %v4336 = vpop.f32.mrf.mxu0
        %4337 = vdwg.mxu0
        %4338 = vmatpush.bf16.xpose.msra.mxu0 0
        %4339 = vmatpush.bf16.xpose.msra.mxu0 0
        %4340 = vmatpush.bf16.xpose.msra.mxu0 0
        %4341 = vmatpush.bf16.xpose.msra.mxu0 0
        %4342 = vmatpush.bf16.xpose.msra.mxu0 0
        %4343 = vmatpush.bf16.xpose.msra.mxu0 0
        %4344 = vmatpush.bf16.xpose.msra.mxu0 0
        %4345 = vmatpush.bf16.xpose.msra.mxu0 %v3126
        %4346 = vmatmul.bf16.gmra.mxu0 %v1655
        %v4347 = vpop.f32.mrf.mxu0
        %v4348 = vadd.f32 %v4335, %v4347
        %v4349 = vpop.f32.mrf.mxu0
        %4350 = vdwg.mxu0
        %4351 = vmatpush.bf16.xpose.msra.mxu0 0
        %4352 = vmatpush.bf16.xpose.msra.mxu0 0
        %4353 = vmatpush.bf16.xpose.msra.mxu0 0
        %4354 = vmatpush.bf16.xpose.msra.mxu0 0
        %4355 = vmatpush.bf16.xpose.msra.mxu0 0
        %4356 = vmatpush.bf16.xpose.msra.mxu0 0
        %4357 = vmatpush.bf16.xpose.msra.mxu0 0
        %4358 = vmatpush.bf16.xpose.msra.mxu0 %v3127
        %4359 = vmatmul.bf16.gmra.mxu0 %v1656
        %v4360 = vpop.f32.mrf.mxu0
        %v4361 = vadd.f32 %v4348, %v4360
        %v4362 = vpop.f32.mrf.mxu0
        %4363 = vdwg.mxu0
        %4364 = vmatpush.bf16.xpose.msra.mxu0 0
        %4365 = vmatpush.bf16.xpose.msra.mxu0 0
        %4366 = vmatpush.bf16.xpose.msra.mxu0 0
        %4367 = vmatpush.bf16.xpose.msra.mxu0 0
        %4368 = vmatpush.bf16.xpose.msra.mxu0 0
        %4369 = vmatpush.bf16.xpose.msra.mxu0 0
        %4370 = vmatpush.bf16.xpose.msra.mxu0 0
        %4371 = vmatpush.bf16.xpose.msra.mxu0 %v3128
        %4372 = vmatmul.bf16.gmra.mxu0 %v1657
        %v4373 = vpop.f32.mrf.mxu0
        %v4374 = vadd.f32 %v4361, %v4373
        %v4375 = vpop.f32.mrf.mxu0
        %4376 = vdwg.mxu0
        %4377 = vmatpush.bf16.xpose.msra.mxu0 0
        %4378 = vmatpush.bf16.xpose.msra.mxu0 0
        %4379 = vmatpush.bf16.xpose.msra.mxu0 0
        %4380 = vmatpush.bf16.xpose.msra.mxu0 0
        %4381 = vmatpush.bf16.xpose.msra.mxu0 0
        %4382 = vmatpush.bf16.xpose.msra.mxu0 0
        %4383 = vmatpush.bf16.xpose.msra.mxu0 0
        %4384 = vmatpush.bf16.xpose.msra.mxu0 %v3129
        %4385 = vmatmul.bf16.gmra.mxu0 %v1658
        %v4386 = vpop.f32.mrf.mxu0
        %v4387 = vadd.f32 %v4374, %v4386
        %v4388 = vpop.f32.mrf.mxu0
        %4389 = vdwg.mxu0
        %4390 = vmatpush.bf16.xpose.msra.mxu0 0
        %4391 = vmatpush.bf16.xpose.msra.mxu0 0
        %4392 = vmatpush.bf16.xpose.msra.mxu0 0
        %4393 = vmatpush.bf16.xpose.msra.mxu0 0
        %4394 = vmatpush.bf16.xpose.msra.mxu0 0
        %4395 = vmatpush.bf16.xpose.msra.mxu0 0
        %4396 = vmatpush.bf16.xpose.msra.mxu0 0
        %4397 = vmatpush.bf16.xpose.msra.mxu0 %v3130
        %4398 = vmatmul.bf16.gmra.mxu0 %v1659
        %v4399 = vpop.f32.mrf.mxu0
        %v4400 = vadd.f32 %v4387, %v4399
        %v4401 = vpop.f32.mrf.mxu0
        %4402 = vdwg.mxu0
        %4403 = vmatpush.bf16.xpose.msra.mxu0 0
        %4404 = vmatpush.bf16.xpose.msra.mxu0 0
        %4405 = vmatpush.bf16.xpose.msra.mxu0 0
        %4406 = vmatpush.bf16.xpose.msra.mxu0 0
        %4407 = vmatpush.bf16.xpose.msra.mxu0 0
        %4408 = vmatpush.bf16.xpose.msra.mxu0 0
        %4409 = vmatpush.bf16.xpose.msra.mxu0 0
        %4410 = vmatpush.bf16.xpose.msra.mxu0 %v3131
        %4411 = vmatmul.bf16.gmra.mxu0 %v1660
        %v4412 = vpop.f32.mrf.mxu0
        %v4413 = vadd.f32 %v4400, %v4412
        %v4414 = vpop.f32.mrf.mxu0
        %4415 = vdwg.mxu0
        %4416 = vmatpush.bf16.xpose.msra.mxu0 0
        %4417 = vmatpush.bf16.xpose.msra.mxu0 0
        %4418 = vmatpush.bf16.xpose.msra.mxu0 0
        %4419 = vmatpush.bf16.xpose.msra.mxu0 0
        %4420 = vmatpush.bf16.xpose.msra.mxu0 0
        %4421 = vmatpush.bf16.xpose.msra.mxu0 0
        %4422 = vmatpush.bf16.xpose.msra.mxu0 0
        %4423 = vmatpush.bf16.xpose.msra.mxu0 %v3132
        %4424 = vmatmul.bf16.gmra.mxu0 %v1661
        %v4425 = vpop.f32.mrf.mxu0
        %v4426 = vadd.f32 %v4413, %v4425
        %v4427 = vpop.f32.mrf.mxu0
        %4428 = vdwg.mxu0
        %4429 = vmatpush.bf16.xpose.msra.mxu0 0
        %4430 = vmatpush.bf16.xpose.msra.mxu0 0
        %4431 = vmatpush.bf16.xpose.msra.mxu0 0
        %4432 = vmatpush.bf16.xpose.msra.mxu0 0
        %4433 = vmatpush.bf16.xpose.msra.mxu0 0
        %4434 = vmatpush.bf16.xpose.msra.mxu0 0
        %4435 = vmatpush.bf16.xpose.msra.mxu0 0
        %4436 = vmatpush.bf16.xpose.msra.mxu0 %v3133
        %4437 = vmatmul.bf16.gmra.mxu0 %v1662
        %v4438 = vpop.f32.mrf.mxu0
        %v4439 = vadd.f32 %v4426, %v4438
        %v4440 = vpop.f32.mrf.mxu0
        %4441 = vdwg.mxu0
        %4442 = vmatpush.bf16.xpose.msra.mxu0 0
        %4443 = vmatpush.bf16.xpose.msra.mxu0 0
        %4444 = vmatpush.bf16.xpose.msra.mxu0 0
        %4445 = vmatpush.bf16.xpose.msra.mxu0 0
        %4446 = vmatpush.bf16.xpose.msra.mxu0 0
        %4447 = vmatpush.bf16.xpose.msra.mxu0 0
        %4448 = vmatpush.bf16.xpose.msra.mxu0 0
        %4449 = vmatpush.bf16.xpose.msra.mxu0 %v3134
        %4450 = vmatmul.bf16.gmra.mxu0 %v1663
        %v4451 = vpop.f32.mrf.mxu0
        %v4452 = vadd.f32 %v4439, %v4451
        %v4453 = vpop.f32.mrf.mxu0
        %4454 = vdwg.mxu0
        %4455 = vmatpush.bf16.xpose.msra.mxu0 0
        %4456 = vmatpush.bf16.xpose.msra.mxu0 0
        %4457 = vmatpush.bf16.xpose.msra.mxu0 0
        %4458 = vmatpush.bf16.xpose.msra.mxu0 0
        %4459 = vmatpush.bf16.xpose.msra.mxu0 0
        %4460 = vmatpush.bf16.xpose.msra.mxu0 0
        %4461 = vmatpush.bf16.xpose.msra.mxu0 0
        %4462 = vmatpush.bf16.xpose.msra.mxu0 %v3135
        %4463 = vmatmul.bf16.gmra.mxu0 %v1664
        %v4464 = vpop.f32.mrf.mxu0
        %v4465 = vadd.f32 %v4452, %v4464
        %v4466 = vpop.f32.mrf.mxu0
        %4467 = vdwg.mxu0
        %4468 = vmatpush.bf16.xpose.msra.mxu0 0
        %4469 = vmatpush.bf16.xpose.msra.mxu0 0
        %4470 = vmatpush.bf16.xpose.msra.mxu0 0
        %4471 = vmatpush.bf16.xpose.msra.mxu0 0
        %4472 = vmatpush.bf16.xpose.msra.mxu0 0
        %4473 = vmatpush.bf16.xpose.msra.mxu0 0
        %4474 = vmatpush.bf16.xpose.msra.mxu0 0
        %4475 = vmatpush.bf16.xpose.msra.mxu0 %v3136
        %4476 = vmatmul.bf16.gmra.mxu0 %v1665
        %v4477 = vpop.f32.mrf.mxu0
        %v4478 = vadd.f32 %v4465, %v4477
        %v4479 = vpop.f32.mrf.mxu0
        %4480 = vdwg.mxu0
        %4481 = vmatpush.bf16.xpose.msra.mxu0 0
        %4482 = vmatpush.bf16.xpose.msra.mxu0 0
        %4483 = vmatpush.bf16.xpose.msra.mxu0 0
        %4484 = vmatpush.bf16.xpose.msra.mxu0 0
        %4485 = vmatpush.bf16.xpose.msra.mxu0 0
        %4486 = vmatpush.bf16.xpose.msra.mxu0 0
        %4487 = vmatpush.bf16.xpose.msra.mxu0 0
        %4488 = vmatpush.bf16.xpose.msra.mxu0 %v3137
        %4489 = vmatmul.bf16.gmra.mxu0 %v1666
        %v4490 = vpop.f32.mrf.mxu0
        %v4491 = vadd.f32 %v4478, %v4490
        %v4492 = vpop.f32.mrf.mxu0
        %4493 = vdwg.mxu0
        %4494 = vmatpush.bf16.xpose.msra.mxu0 0
        %4495 = vmatpush.bf16.xpose.msra.mxu0 0
        %4496 = vmatpush.bf16.xpose.msra.mxu0 0
        %4497 = vmatpush.bf16.xpose.msra.mxu0 0
        %4498 = vmatpush.bf16.xpose.msra.mxu0 0
        %4499 = vmatpush.bf16.xpose.msra.mxu0 0
        %4500 = vmatpush.bf16.xpose.msra.mxu0 0
        %4501 = vmatpush.bf16.xpose.msra.mxu0 %v3138
        %4502 = vmatmul.bf16.gmra.mxu0 %v1667
        %v4503 = vpop.f32.mrf.mxu0
        %v4504 = vadd.f32 %v4491, %v4503
        %v4505 = vpop.f32.mrf.mxu0
        %4506 = vdwg.mxu0
        %4507 = vmatpush.bf16.xpose.msra.mxu0 0
        %4508 = vmatpush.bf16.xpose.msra.mxu0 0
        %4509 = vmatpush.bf16.xpose.msra.mxu0 0
        %4510 = vmatpush.bf16.xpose.msra.mxu0 0
        %4511 = vmatpush.bf16.xpose.msra.mxu0 0
        %4512 = vmatpush.bf16.xpose.msra.mxu0 0
        %4513 = vmatpush.bf16.xpose.msra.mxu0 0
        %4514 = vmatpush.bf16.xpose.msra.mxu0 %v3139
        %4515 = vmatmul.bf16.gmra.mxu0 %v1668
        %v4516 = vpop.f32.mrf.mxu0
        %v4517 = vadd.f32 %v4504, %v4516
        %v4518 = vpop.f32.mrf.mxu0
        %4519 = vdwg.mxu0
        %4520 = vmatpush.bf16.xpose.msra.mxu0 0
        %4521 = vmatpush.bf16.xpose.msra.mxu0 0
        %4522 = vmatpush.bf16.xpose.msra.mxu0 0
        %4523 = vmatpush.bf16.xpose.msra.mxu0 0
        %4524 = vmatpush.bf16.xpose.msra.mxu0 0
        %4525 = vmatpush.bf16.xpose.msra.mxu0 0
        %4526 = vmatpush.bf16.xpose.msra.mxu0 0
        %4527 = vmatpush.bf16.xpose.msra.mxu0 %v3140
        %4528 = vmatmul.bf16.gmra.mxu0 %v1669
        %v4529 = vpop.f32.mrf.mxu0
        %v4530 = vadd.f32 %v4517, %v4529
        %v4531 = vpop.f32.mrf.mxu0
        %4532 = vdwg.mxu0
        %4533 = vmatpush.bf16.xpose.msra.mxu0 0
        %4534 = vmatpush.bf16.xpose.msra.mxu0 0
        %4535 = vmatpush.bf16.xpose.msra.mxu0 0
        %4536 = vmatpush.bf16.xpose.msra.mxu0 0
        %4537 = vmatpush.bf16.xpose.msra.mxu0 0
        %4538 = vmatpush.bf16.xpose.msra.mxu0 0
        %4539 = vmatpush.bf16.xpose.msra.mxu0 0
        %4540 = vmatpush.bf16.xpose.msra.mxu0 %v3141
        %4541 = vmatmul.bf16.gmra.mxu0 %v1670
        %v4542 = vpop.f32.mrf.mxu0
        %v4543 = vadd.f32 %v4530, %v4542
        %v4544 = vpop.f32.mrf.mxu0
        %4545 = vdwg.mxu0
        %4546 = vmatpush.bf16.xpose.msra.mxu0 0
        %4547 = vmatpush.bf16.xpose.msra.mxu0 0
        %4548 = vmatpush.bf16.xpose.msra.mxu0 0
        %4549 = vmatpush.bf16.xpose.msra.mxu0 0
        %4550 = vmatpush.bf16.xpose.msra.mxu0 0
        %4551 = vmatpush.bf16.xpose.msra.mxu0 0
        %4552 = vmatpush.bf16.xpose.msra.mxu0 0
        %4553 = vmatpush.bf16.xpose.msra.mxu0 %v3142
        %4554 = vmatmul.bf16.gmra.mxu0 %v1671
        %v4555 = vpop.f32.mrf.mxu0
        %v4556 = vadd.f32 %v4543, %v4555
        %v4557 = vpop.f32.mrf.mxu0
        %4558 = vdwg.mxu0
        %4559 = vmatpush.bf16.xpose.msra.mxu0 0
        %4560 = vmatpush.bf16.xpose.msra.mxu0 0
        %4561 = vmatpush.bf16.xpose.msra.mxu0 0
        %4562 = vmatpush.bf16.xpose.msra.mxu0 0
        %4563 = vmatpush.bf16.xpose.msra.mxu0 0
        %4564 = vmatpush.bf16.xpose.msra.mxu0 0
        %4565 = vmatpush.bf16.xpose.msra.mxu0 0
        %4566 = vmatpush.bf16.xpose.msra.mxu0 %v3143
        %4567 = vmatmul.bf16.gmra.mxu0 %v1672
        %v4568 = vpop.f32.mrf.mxu0
        %v4569 = vadd.f32 %v4556, %v4568
        %v4570 = vpop.f32.mrf.mxu0
        %4571 = vdwg.mxu0
        %4572 = vmatpush.bf16.xpose.msra.mxu0 0
        %4573 = vmatpush.bf16.xpose.msra.mxu0 0
        %4574 = vmatpush.bf16.xpose.msra.mxu0 0
        %4575 = vmatpush.bf16.xpose.msra.mxu0 0
        %4576 = vmatpush.bf16.xpose.msra.mxu0 0
        %4577 = vmatpush.bf16.xpose.msra.mxu0 0
        %4578 = vmatpush.bf16.xpose.msra.mxu0 0
        %4579 = vmatpush.bf16.xpose.msra.mxu0 %v3144
        %4580 = vmatmul.bf16.gmra.mxu0 %v1673
        %v4581 = vpop.f32.mrf.mxu0
        %v4582 = vadd.f32 %v4569, %v4581
        %v4583 = vpop.f32.mrf.mxu0
        %4584 = vdwg.mxu0
        %4585 = vmatpush.bf16.xpose.msra.mxu0 0
        %4586 = vmatpush.bf16.xpose.msra.mxu0 0
        %4587 = vmatpush.bf16.xpose.msra.mxu0 0
        %4588 = vmatpush.bf16.xpose.msra.mxu0 0
        %4589 = vmatpush.bf16.xpose.msra.mxu0 0
        %4590 = vmatpush.bf16.xpose.msra.mxu0 0
        %4591 = vmatpush.bf16.xpose.msra.mxu0 0
        %4592 = vmatpush.bf16.xpose.msra.mxu0 %v3145
        %4593 = vmatmul.bf16.gmra.mxu0 %v1674
        %v4594 = vpop.f32.mrf.mxu0
        %v4595 = vadd.f32 %v4582, %v4594
        %v4596 = vpop.f32.mrf.mxu0
        %4597 = vdwg.mxu0
        %4598 = vmatpush.bf16.xpose.msra.mxu0 0
        %4599 = vmatpush.bf16.xpose.msra.mxu0 0
        %4600 = vmatpush.bf16.xpose.msra.mxu0 0
        %4601 = vmatpush.bf16.xpose.msra.mxu0 0
        %4602 = vmatpush.bf16.xpose.msra.mxu0 0
        %4603 = vmatpush.bf16.xpose.msra.mxu0 0
        %4604 = vmatpush.bf16.xpose.msra.mxu0 0
        %4605 = vmatpush.bf16.xpose.msra.mxu0 %v3146
        %4606 = vmatmul.bf16.gmra.mxu0 %v1675
        %v4607 = vpop.f32.mrf.mxu0
        %v4608 = vadd.f32 %v4595, %v4607
        %v4609 = vpop.f32.mrf.mxu0
        %4610 = vdwg.mxu0
        %4611 = vmatpush.bf16.xpose.msra.mxu0 0
        %4612 = vmatpush.bf16.xpose.msra.mxu0 0
        %4613 = vmatpush.bf16.xpose.msra.mxu0 0
        %4614 = vmatpush.bf16.xpose.msra.mxu0 0
        %4615 = vmatpush.bf16.xpose.msra.mxu0 0
        %4616 = vmatpush.bf16.xpose.msra.mxu0 0
        %4617 = vmatpush.bf16.xpose.msra.mxu0 0
        %4618 = vmatpush.bf16.xpose.msra.mxu0 %v3147
        %4619 = vmatmul.bf16.gmra.mxu0 %v1676
        %v4620 = vpop.f32.mrf.mxu0
        %v4621 = vadd.f32 %v4608, %v4620
        %v4622 = vpop.f32.mrf.mxu0
        %4623 = vdwg.mxu0
        %4624 = vmatpush.bf16.xpose.msra.mxu0 0
        %4625 = vmatpush.bf16.xpose.msra.mxu0 0
        %4626 = vmatpush.bf16.xpose.msra.mxu0 0
        %4627 = vmatpush.bf16.xpose.msra.mxu0 0
        %4628 = vmatpush.bf16.xpose.msra.mxu0 0
        %4629 = vmatpush.bf16.xpose.msra.mxu0 0
        %4630 = vmatpush.bf16.xpose.msra.mxu0 0
        %4631 = vmatpush.bf16.xpose.msra.mxu0 %v3148
        %4632 = vmatmul.bf16.gmra.mxu0 %v1677
        %v4633 = vpop.f32.mrf.mxu0
        %v4634 = vadd.f32 %v4621, %v4633
        %v4635 = vpop.f32.mrf.mxu0
        %4636 = vdwg.mxu0
        %4637 = vmatpush.bf16.xpose.msra.mxu0 0
        %4638 = vmatpush.bf16.xpose.msra.mxu0 0
        %4639 = vmatpush.bf16.xpose.msra.mxu0 0
        %4640 = vmatpush.bf16.xpose.msra.mxu0 0
        %4641 = vmatpush.bf16.xpose.msra.mxu0 0
        %4642 = vmatpush.bf16.xpose.msra.mxu0 0
        %4643 = vmatpush.bf16.xpose.msra.mxu0 0
        %4644 = vmatpush.bf16.xpose.msra.mxu0 %v3149
        %4645 = vmatmul.bf16.gmra.mxu0 %v1678
        %v4646 = vpop.f32.mrf.mxu0
        %v4647 = vadd.f32 %v4634, %v4646
        %v4648 = vpop.f32.mrf.mxu0
        %4649 = vdwg.mxu0
        %4650 = vmatpush.bf16.xpose.msra.mxu0 0
        %4651 = vmatpush.bf16.xpose.msra.mxu0 0
        %4652 = vmatpush.bf16.xpose.msra.mxu0 0
        %4653 = vmatpush.bf16.xpose.msra.mxu0 0
        %4654 = vmatpush.bf16.xpose.msra.mxu0 0
        %4655 = vmatpush.bf16.xpose.msra.mxu0 0
        %4656 = vmatpush.bf16.xpose.msra.mxu0 0
        %4657 = vmatpush.bf16.xpose.msra.mxu0 %v3150
        %4658 = vmatmul.bf16.gmra.mxu0 %v1679
        %v4659 = vpop.f32.mrf.mxu0
        %v4660 = vadd.f32 %v4647, %v4659
        %v4661 = vpop.f32.mrf.mxu0
        %4662 = vdwg.mxu0
        %4663 = vmatpush.bf16.xpose.msra.mxu0 0
        %4664 = vmatpush.bf16.xpose.msra.mxu0 0
        %4665 = vmatpush.bf16.xpose.msra.mxu0 0
        %4666 = vmatpush.bf16.xpose.msra.mxu0 0
        %4667 = vmatpush.bf16.xpose.msra.mxu0 0
        %4668 = vmatpush.bf16.xpose.msra.mxu0 0
        %4669 = vmatpush.bf16.xpose.msra.mxu0 0
        %4670 = vmatpush.bf16.xpose.msra.mxu0 %v3151
        %4671 = vmatmul.bf16.gmra.mxu0 %v1680
        %v4672 = vpop.f32.mrf.mxu0
        %v4673 = vadd.f32 %v4660, %v4672
        %v4674 = vpop.f32.mrf.mxu0
        %4675 = vdwg.mxu0
        %4676 = vmatpush.bf16.xpose.msra.mxu0 0
        %4677 = vmatpush.bf16.xpose.msra.mxu0 0
        %4678 = vmatpush.bf16.xpose.msra.mxu0 0
        %4679 = vmatpush.bf16.xpose.msra.mxu0 0
        %4680 = vmatpush.bf16.xpose.msra.mxu0 0
        %4681 = vmatpush.bf16.xpose.msra.mxu0 0
        %4682 = vmatpush.bf16.xpose.msra.mxu0 0
        %4683 = vmatpush.bf16.xpose.msra.mxu0 %v3152
        %4684 = vmatmul.bf16.gmra.mxu0 %v1681
        %v4685 = vpop.f32.mrf.mxu0
        %v4686 = vadd.f32 %v4673, %v4685
        %v4687 = vpop.f32.mrf.mxu0
        %4688 = vdwg.mxu0
        %4689 = vmatpush.bf16.xpose.msra.mxu0 0
        %4690 = vmatpush.bf16.xpose.msra.mxu0 0
        %4691 = vmatpush.bf16.xpose.msra.mxu0 0
        %4692 = vmatpush.bf16.xpose.msra.mxu0 0
        %4693 = vmatpush.bf16.xpose.msra.mxu0 0
        %4694 = vmatpush.bf16.xpose.msra.mxu0 0
        %4695 = vmatpush.bf16.xpose.msra.mxu0 0
        %4696 = vmatpush.bf16.xpose.msra.mxu0 %v3153
        %4697 = vmatmul.bf16.gmra.mxu0 %v1682
        %v4698 = vpop.f32.mrf.mxu0
        %v4699 = vadd.f32 %v4686, %v4698
        %v4700 = vpop.f32.mrf.mxu0
        %4701 = vdwg.mxu0
        %4702 = vmatpush.bf16.xpose.msra.mxu0 0
        %4703 = vmatpush.bf16.xpose.msra.mxu0 0
        %4704 = vmatpush.bf16.xpose.msra.mxu0 0
        %4705 = vmatpush.bf16.xpose.msra.mxu0 0
        %4706 = vmatpush.bf16.xpose.msra.mxu0 0
        %4707 = vmatpush.bf16.xpose.msra.mxu0 0
        %4708 = vmatpush.bf16.xpose.msra.mxu0 0
        %4709 = vmatpush.bf16.xpose.msra.mxu0 %v3154
        %4710 = vmatmul.bf16.gmra.mxu0 %v1683
        %v4711 = vpop.f32.mrf.mxu0
        %v4712 = vadd.f32 %v4699, %v4711
        %v4713 = vpop.f32.mrf.mxu0
        %4714 = vdwg.mxu0
        %4715 = vmatpush.bf16.xpose.msra.mxu0 0
        %4716 = vmatpush.bf16.xpose.msra.mxu0 0
        %4717 = vmatpush.bf16.xpose.msra.mxu0 0
        %4718 = vmatpush.bf16.xpose.msra.mxu0 0
        %4719 = vmatpush.bf16.xpose.msra.mxu0 0
        %4720 = vmatpush.bf16.xpose.msra.mxu0 0
        %4721 = vmatpush.bf16.xpose.msra.mxu0 0
        %4722 = vmatpush.bf16.xpose.msra.mxu0 %v3155
        %4723 = vmatmul.bf16.gmra.mxu0 %v1684
        %v4724 = vpop.f32.mrf.mxu0
        %v4725 = vadd.f32 %v4712, %v4724
        %v4726 = vpop.f32.mrf.mxu0
        %4727 = vdwg.mxu0
        %4728 = vmatpush.bf16.xpose.msra.mxu0 0
        %4729 = vmatpush.bf16.xpose.msra.mxu0 0
        %4730 = vmatpush.bf16.xpose.msra.mxu0 0
        %4731 = vmatpush.bf16.xpose.msra.mxu0 0
        %4732 = vmatpush.bf16.xpose.msra.mxu0 0
        %4733 = vmatpush.bf16.xpose.msra.mxu0 0
        %4734 = vmatpush.bf16.xpose.msra.mxu0 0
        %4735 = vmatpush.bf16.xpose.msra.mxu0 %v3156
        %4736 = vmatmul.bf16.gmra.mxu0 %v1685
        %v4737 = vpop.f32.mrf.mxu0
        %v4738 = vadd.f32 %v4725, %v4737
        %v4739 = vpop.f32.mrf.mxu0
        %4740 = vdwg.mxu0
        %4741 = vmatpush.bf16.xpose.msra.mxu0 0
        %4742 = vmatpush.bf16.xpose.msra.mxu0 0
        %4743 = vmatpush.bf16.xpose.msra.mxu0 0
        %4744 = vmatpush.bf16.xpose.msra.mxu0 0
        %4745 = vmatpush.bf16.xpose.msra.mxu0 0
        %4746 = vmatpush.bf16.xpose.msra.mxu0 0
        %4747 = vmatpush.bf16.xpose.msra.mxu0 0
        %4748 = vmatpush.bf16.xpose.msra.mxu0 %v3157
        %4749 = vmatmul.bf16.gmra.mxu0 %v1686
        %v4750 = vpop.f32.mrf.mxu0
        %v4751 = vadd.f32 %v4738, %v4750
        %v4752 = vpop.f32.mrf.mxu0
        %4753 = vdwg.mxu0
        %4754 = vmatpush.bf16.xpose.msra.mxu0 0
        %4755 = vmatpush.bf16.xpose.msra.mxu0 0
        %4756 = vmatpush.bf16.xpose.msra.mxu0 0
        %4757 = vmatpush.bf16.xpose.msra.mxu0 0
        %4758 = vmatpush.bf16.xpose.msra.mxu0 0
        %4759 = vmatpush.bf16.xpose.msra.mxu0 0
        %4760 = vmatpush.bf16.xpose.msra.mxu0 0
        %4761 = vmatpush.bf16.xpose.msra.mxu0 %v3158
        %4762 = vmatmul.bf16.gmra.mxu0 %v1687
        %v4763 = vpop.f32.mrf.mxu0
        %v4764 = vadd.f32 %v4751, %v4763
        %v4765 = vpop.f32.mrf.mxu0
        %4766 = vdwg.mxu0
        %4767 = vmatpush.bf16.xpose.msra.mxu0 0
        %4768 = vmatpush.bf16.xpose.msra.mxu0 0
        %4769 = vmatpush.bf16.xpose.msra.mxu0 0
        %4770 = vmatpush.bf16.xpose.msra.mxu0 0
        %4771 = vmatpush.bf16.xpose.msra.mxu0 0
        %4772 = vmatpush.bf16.xpose.msra.mxu0 0
        %4773 = vmatpush.bf16.xpose.msra.mxu0 0
        %4774 = vmatpush.bf16.xpose.msra.mxu0 %v3159
        %4775 = vmatmul.bf16.gmra.mxu0 %v1688
        %v4776 = vpop.f32.mrf.mxu0
        %v4777 = vadd.f32 %v4764, %v4776
        %v4778 = vpop.f32.mrf.mxu0
        %4779 = vdwg.mxu0
        %4780 = vmatpush.bf16.xpose.msra.mxu0 0
        %4781 = vmatpush.bf16.xpose.msra.mxu0 0
        %4782 = vmatpush.bf16.xpose.msra.mxu0 0
        %4783 = vmatpush.bf16.xpose.msra.mxu0 0
        %4784 = vmatpush.bf16.xpose.msra.mxu0 0
        %4785 = vmatpush.bf16.xpose.msra.mxu0 0
        %4786 = vmatpush.bf16.xpose.msra.mxu0 0
        %4787 = vmatpush.bf16.xpose.msra.mxu0 %v3160
        %4788 = vmatmul.bf16.gmra.mxu0 %v1689
        %v4789 = vpop.f32.mrf.mxu0
        %v4790 = vadd.f32 %v4777, %v4789
        %v4791 = vpop.f32.mrf.mxu0
        %4792 = vdwg.mxu0
        %4793 = vmatpush.bf16.xpose.msra.mxu0 0
        %4794 = vmatpush.bf16.xpose.msra.mxu0 0
        %4795 = vmatpush.bf16.xpose.msra.mxu0 0
        %4796 = vmatpush.bf16.xpose.msra.mxu0 0
        %4797 = vmatpush.bf16.xpose.msra.mxu0 0
        %4798 = vmatpush.bf16.xpose.msra.mxu0 0
        %4799 = vmatpush.bf16.xpose.msra.mxu0 0
        %4800 = vmatpush.bf16.xpose.msra.mxu0 %v3161
        %4801 = vmatmul.bf16.gmra.mxu0 %v1690
        %v4802 = vpop.f32.mrf.mxu0
        %v4803 = vadd.f32 %v4790, %v4802
        %v4804 = vpop.f32.mrf.mxu0
        %4805 = vdwg.mxu0
        %4806 = vmatpush.bf16.xpose.msra.mxu0 0
        %4807 = vmatpush.bf16.xpose.msra.mxu0 0
        %4808 = vmatpush.bf16.xpose.msra.mxu0 0
        %4809 = vmatpush.bf16.xpose.msra.mxu0 0
        %4810 = vmatpush.bf16.xpose.msra.mxu0 0
        %4811 = vmatpush.bf16.xpose.msra.mxu0 0
        %4812 = vmatpush.bf16.xpose.msra.mxu0 0
        %4813 = vmatpush.bf16.xpose.msra.mxu0 %v3162
        %4814 = vmatmul.bf16.gmra.mxu0 %v1691
        %v4815 = vpop.f32.mrf.mxu0
        %v4816 = vadd.f32 %v4803, %v4815
        %v4817 = vpop.f32.mrf.mxu0
        %4818 = vdwg.mxu0
        %4819 = vmatpush.bf16.xpose.msra.mxu0 0
        %4820 = vmatpush.bf16.xpose.msra.mxu0 0
        %4821 = vmatpush.bf16.xpose.msra.mxu0 0
        %4822 = vmatpush.bf16.xpose.msra.mxu0 0
        %4823 = vmatpush.bf16.xpose.msra.mxu0 0
        %4824 = vmatpush.bf16.xpose.msra.mxu0 0
        %4825 = vmatpush.bf16.xpose.msra.mxu0 0
        %4826 = vmatpush.bf16.xpose.msra.mxu0 %v3163
        %4827 = vmatmul.bf16.gmra.mxu0 %v1692
        %v4828 = vpop.f32.mrf.mxu0
        %v4829 = vadd.f32 %v4816, %v4828
        %v4830 = vpop.f32.mrf.mxu0
        %4831 = vdwg.mxu0
        %4832 = vmatpush.bf16.xpose.msra.mxu0 0
        %4833 = vmatpush.bf16.xpose.msra.mxu0 0
        %4834 = vmatpush.bf16.xpose.msra.mxu0 0
        %4835 = vmatpush.bf16.xpose.msra.mxu0 0
        %4836 = vmatpush.bf16.xpose.msra.mxu0 0
        %4837 = vmatpush.bf16.xpose.msra.mxu0 0
        %4838 = vmatpush.bf16.xpose.msra.mxu0 0
        %4839 = vmatpush.bf16.xpose.msra.mxu0 %v3164
        %4840 = vmatmul.bf16.gmra.mxu0 %v1693
        %v4841 = vpop.f32.mrf.mxu0
        %v4842 = vadd.f32 %v4829, %v4841
        %v4843 = vpop.f32.mrf.mxu0
        %4844 = vdwg.mxu0
        %4845 = vmatpush.bf16.xpose.msra.mxu0 0
        %4846 = vmatpush.bf16.xpose.msra.mxu0 0
        %4847 = vmatpush.bf16.xpose.msra.mxu0 0
        %4848 = vmatpush.bf16.xpose.msra.mxu0 0
        %4849 = vmatpush.bf16.xpose.msra.mxu0 0
        %4850 = vmatpush.bf16.xpose.msra.mxu0 0
        %4851 = vmatpush.bf16.xpose.msra.mxu0 0
        %4852 = vmatpush.bf16.xpose.msra.mxu0 %v3165
        %4853 = vmatmul.bf16.gmra.mxu0 %v1694
        %v4854 = vpop.f32.mrf.mxu0
        %v4855 = vadd.f32 %v4842, %v4854
        %v4856 = vpop.f32.mrf.mxu0
        %4857 = vdwg.mxu0
        %4858 = vmatpush.bf16.xpose.msra.mxu0 0
        %4859 = vmatpush.bf16.xpose.msra.mxu0 0
        %4860 = vmatpush.bf16.xpose.msra.mxu0 0
        %4861 = vmatpush.bf16.xpose.msra.mxu0 0
        %4862 = vmatpush.bf16.xpose.msra.mxu0 0
        %4863 = vmatpush.bf16.xpose.msra.mxu0 0
        %4864 = vmatpush.bf16.xpose.msra.mxu0 0
        %4865 = vmatpush.bf16.xpose.msra.mxu0 %v3166
        %4866 = vmatmul.bf16.gmra.mxu0 %v1695
        %v4867 = vpop.f32.mrf.mxu0
        %v4868 = vadd.f32 %v4855, %v4867
        %v4869 = vpop.f32.mrf.mxu0
        %4870 = vdwg.mxu0
        %4871 = vmatpush.bf16.xpose.msra.mxu0 0
        %4872 = vmatpush.bf16.xpose.msra.mxu0 0
        %4873 = vmatpush.bf16.xpose.msra.mxu0 0
        %4874 = vmatpush.bf16.xpose.msra.mxu0 0
        %4875 = vmatpush.bf16.xpose.msra.mxu0 0
        %4876 = vmatpush.bf16.xpose.msra.mxu0 0
        %4877 = vmatpush.bf16.xpose.msra.mxu0 0
        %4878 = vmatpush.bf16.xpose.msra.mxu0 %v3167
        %4879 = vmatmul.bf16.gmra.mxu0 %v1696
        %v4880 = vpop.f32.mrf.mxu0
        %v4881 = vadd.f32 %v4868, %v4880
        %v4882 = vpop.f32.mrf.mxu0
        %4883 = vdwg.mxu0
        %4884 = vmatpush.bf16.xpose.msra.mxu0 0
        %4885 = vmatpush.bf16.xpose.msra.mxu0 0
        %4886 = vmatpush.bf16.xpose.msra.mxu0 0
        %4887 = vmatpush.bf16.xpose.msra.mxu0 0
        %4888 = vmatpush.bf16.xpose.msra.mxu0 0
        %4889 = vmatpush.bf16.xpose.msra.mxu0 0
        %4890 = vmatpush.bf16.xpose.msra.mxu0 0
        %4891 = vmatpush.bf16.xpose.msra.mxu0 %v3168
        %4892 = vmatmul.bf16.gmra.mxu0 %v1697
        %v4893 = vpop.f32.mrf.mxu0
        %v4894 = vadd.f32 %v4881, %v4893
        %v4895 = vpop.f32.mrf.mxu0
        %4896 = vdwg.mxu0
        %4897 = vmatpush.bf16.xpose.msra.mxu0 0
        %4898 = vmatpush.bf16.xpose.msra.mxu0 0
        %4899 = vmatpush.bf16.xpose.msra.mxu0 0
        %4900 = vmatpush.bf16.xpose.msra.mxu0 0
        %4901 = vmatpush.bf16.xpose.msra.mxu0 0
        %4902 = vmatpush.bf16.xpose.msra.mxu0 0
        %4903 = vmatpush.bf16.xpose.msra.mxu0 0
        %4904 = vmatpush.bf16.xpose.msra.mxu0 %v3169
        %4905 = vmatmul.bf16.gmra.mxu0 %v1698
        %v4906 = vpop.f32.mrf.mxu0
        %v4907 = vadd.f32 %v4894, %v4906
        %v4908 = vpop.f32.mrf.mxu0
        %4909 = vdwg.mxu0
        %4910 = vmatpush.bf16.xpose.msra.mxu0 0
        %4911 = vmatpush.bf16.xpose.msra.mxu0 0
        %4912 = vmatpush.bf16.xpose.msra.mxu0 0
        %4913 = vmatpush.bf16.xpose.msra.mxu0 0
        %4914 = vmatpush.bf16.xpose.msra.mxu0 0
        %4915 = vmatpush.bf16.xpose.msra.mxu0 0
        %4916 = vmatpush.bf16.xpose.msra.mxu0 0
        %4917 = vmatpush.bf16.xpose.msra.mxu0 %v3170
        %4918 = vmatmul.bf16.gmra.mxu0 %v1699
        %v4919 = vpop.f32.mrf.mxu0
        %v4920 = vadd.f32 %v4907, %v4919
        %v4921 = vpop.f32.mrf.mxu0
        %4922 = vdwg.mxu0
        %4923 = vmatpush.bf16.xpose.msra.mxu0 0
        %4924 = vmatpush.bf16.xpose.msra.mxu0 0
        %4925 = vmatpush.bf16.xpose.msra.mxu0 0
        %4926 = vmatpush.bf16.xpose.msra.mxu0 0
        %4927 = vmatpush.bf16.xpose.msra.mxu0 0
        %4928 = vmatpush.bf16.xpose.msra.mxu0 0
        %4929 = vmatpush.bf16.xpose.msra.mxu0 0
        %4930 = vmatpush.bf16.xpose.msra.mxu0 %v3171
        %4931 = vmatmul.bf16.gmra.mxu0 %v1700
        %v4932 = vpop.f32.mrf.mxu0
        %v4933 = vadd.f32 %v4920, %v4932
        %v4934 = vpop.f32.mrf.mxu0
        %4935 = vdwg.mxu0
        %4936 = vmatpush.bf16.xpose.msra.mxu0 0
        %4937 = vmatpush.bf16.xpose.msra.mxu0 0
        %4938 = vmatpush.bf16.xpose.msra.mxu0 0
        %4939 = vmatpush.bf16.xpose.msra.mxu0 0
        %4940 = vmatpush.bf16.xpose.msra.mxu0 0
        %4941 = vmatpush.bf16.xpose.msra.mxu0 0
        %4942 = vmatpush.bf16.xpose.msra.mxu0 0
        %4943 = vmatpush.bf16.xpose.msra.mxu0 %v3172
        %4944 = vmatmul.bf16.gmra.mxu0 %v1701
        %v4945 = vpop.f32.mrf.mxu0
        %v4946 = vadd.f32 %v4933, %v4945
        %v4947 = vpop.f32.mrf.mxu0
        %4948 = vdwg.mxu0
        %4949 = vmatpush.bf16.xpose.msra.mxu0 0
        %4950 = vmatpush.bf16.xpose.msra.mxu0 0
        %4951 = vmatpush.bf16.xpose.msra.mxu0 0
        %4952 = vmatpush.bf16.xpose.msra.mxu0 0
        %4953 = vmatpush.bf16.xpose.msra.mxu0 0
        %4954 = vmatpush.bf16.xpose.msra.mxu0 0
        %4955 = vmatpush.bf16.xpose.msra.mxu0 0
        %4956 = vmatpush.bf16.xpose.msra.mxu0 %v3173
        %4957 = vmatmul.bf16.gmra.mxu0 %v1702
        %v4958 = vpop.f32.mrf.mxu0
        %v4959 = vadd.f32 %v4946, %v4958
        %v4960 = vpop.f32.mrf.mxu0
        %4961 = vdwg.mxu0
        %4962 = vmatpush.bf16.xpose.msra.mxu0 0
        %4963 = vmatpush.bf16.xpose.msra.mxu0 0
        %4964 = vmatpush.bf16.xpose.msra.mxu0 0
        %4965 = vmatpush.bf16.xpose.msra.mxu0 0
        %4966 = vmatpush.bf16.xpose.msra.mxu0 0
        %4967 = vmatpush.bf16.xpose.msra.mxu0 0
        %4968 = vmatpush.bf16.xpose.msra.mxu0 0
        %4969 = vmatpush.bf16.xpose.msra.mxu0 %v3174
        %4970 = vmatmul.bf16.gmra.mxu0 %v1703
        %v4971 = vpop.f32.mrf.mxu0
        %v4972 = vadd.f32 %v4959, %v4971
        %v4973 = vpop.f32.mrf.mxu0
        %4974 = vdwg.mxu0
        %4975 = vmatpush.bf16.xpose.msra.mxu0 0
        %4976 = vmatpush.bf16.xpose.msra.mxu0 0
        %4977 = vmatpush.bf16.xpose.msra.mxu0 0
        %4978 = vmatpush.bf16.xpose.msra.mxu0 0
        %4979 = vmatpush.bf16.xpose.msra.mxu0 0
        %4980 = vmatpush.bf16.xpose.msra.mxu0 0
        %4981 = vmatpush.bf16.xpose.msra.mxu0 0
        %4982 = vmatpush.bf16.xpose.msra.mxu0 %v3175
        %4983 = vmatmul.bf16.gmra.mxu0 %v1704
        %v4984 = vpop.f32.mrf.mxu0
        %v4985 = vadd.f32 %v4972, %v4984
        %v4986 = vpop.f32.mrf.mxu0
        %4987 = vdwg.mxu0
        %4988 = vmatpush.bf16.xpose.msra.mxu0 0
        %4989 = vmatpush.bf16.xpose.msra.mxu0 0
        %4990 = vmatpush.bf16.xpose.msra.mxu0 0
        %4991 = vmatpush.bf16.xpose.msra.mxu0 0
        %4992 = vmatpush.bf16.xpose.msra.mxu0 0
        %4993 = vmatpush.bf16.xpose.msra.mxu0 0
        %4994 = vmatpush.bf16.xpose.msra.mxu0 0
        %4995 = vmatpush.bf16.xpose.msra.mxu0 %v3176
        %4996 = vmatmul.bf16.gmra.mxu0 %v1705
        %v4997 = vpop.f32.mrf.mxu0
        %v4998 = vadd.f32 %v4985, %v4997
        %v4999 = vpop.f32.mrf.mxu0
        %5000 = vdwg.mxu0
        %5001 = vmatpush.bf16.xpose.msra.mxu0 0
        %5002 = vmatpush.bf16.xpose.msra.mxu0 0
        %5003 = vmatpush.bf16.xpose.msra.mxu0 0
        %5004 = vmatpush.bf16.xpose.msra.mxu0 0
        %5005 = vmatpush.bf16.xpose.msra.mxu0 0
        %5006 = vmatpush.bf16.xpose.msra.mxu0 0
        %5007 = vmatpush.bf16.xpose.msra.mxu0 0
        %5008 = vmatpush.bf16.xpose.msra.mxu0 %v3177
        %5009 = vmatmul.bf16.gmra.mxu0 %v1706
        %v5010 = vpop.f32.mrf.mxu0
        %v5011 = vadd.f32 %v4998, %v5010
        %v5012 = vpop.f32.mrf.mxu0
        %5013 = vdwg.mxu0
        %5014 = vmatpush.bf16.xpose.msra.mxu0 0
        %5015 = vmatpush.bf16.xpose.msra.mxu0 0
        %5016 = vmatpush.bf16.xpose.msra.mxu0 0
        %5017 = vmatpush.bf16.xpose.msra.mxu0 0
        %5018 = vmatpush.bf16.xpose.msra.mxu0 0
        %5019 = vmatpush.bf16.xpose.msra.mxu0 0
        %5020 = vmatpush.bf16.xpose.msra.mxu0 0
        %5021 = vmatpush.bf16.xpose.msra.mxu0 %v3178
        %5022 = vmatmul.bf16.gmra.mxu0 %v1707
        %v5023 = vpop.f32.mrf.mxu0
        %v5024 = vadd.f32 %v5011, %v5023
        %v5025 = vpop.f32.mrf.mxu0
        %5026 = vdwg.mxu0
        %5027 = vmatpush.bf16.xpose.msra.mxu0 0
        %5028 = vmatpush.bf16.xpose.msra.mxu0 0
        %5029 = vmatpush.bf16.xpose.msra.mxu0 0
        %5030 = vmatpush.bf16.xpose.msra.mxu0 0
        %5031 = vmatpush.bf16.xpose.msra.mxu0 0
        %5032 = vmatpush.bf16.xpose.msra.mxu0 0
        %5033 = vmatpush.bf16.xpose.msra.mxu0 0
        %5034 = vmatpush.bf16.xpose.msra.mxu0 %v3179
        %5035 = vmatmul.bf16.gmra.mxu0 %v1708
        %v5036 = vpop.f32.mrf.mxu0
        %v5037 = vadd.f32 %v5024, %v5036
        %v5038 = vpop.f32.mrf.mxu0
        %5039 = vdwg.mxu0
        %5040 = vmatpush.bf16.xpose.msra.mxu0 0
        %5041 = vmatpush.bf16.xpose.msra.mxu0 0
        %5042 = vmatpush.bf16.xpose.msra.mxu0 0
        %5043 = vmatpush.bf16.xpose.msra.mxu0 0
        %5044 = vmatpush.bf16.xpose.msra.mxu0 0
        %5045 = vmatpush.bf16.xpose.msra.mxu0 0
        %5046 = vmatpush.bf16.xpose.msra.mxu0 0
        %5047 = vmatpush.bf16.xpose.msra.mxu0 %v3180
        %5048 = vmatmul.bf16.gmra.mxu0 %v1709
        %v5049 = vpop.f32.mrf.mxu0
        %v5050 = vadd.f32 %v5037, %v5049
        %v5051 = vpop.f32.mrf.mxu0
        %5052 = vdwg.mxu0
        %5053 = vmatpush.bf16.xpose.msra.mxu0 0
        %5054 = vmatpush.bf16.xpose.msra.mxu0 0
        %5055 = vmatpush.bf16.xpose.msra.mxu0 0
        %5056 = vmatpush.bf16.xpose.msra.mxu0 0
        %5057 = vmatpush.bf16.xpose.msra.mxu0 0
        %5058 = vmatpush.bf16.xpose.msra.mxu0 0
        %5059 = vmatpush.bf16.xpose.msra.mxu0 0
        %5060 = vmatpush.bf16.xpose.msra.mxu0 %v3181
        %5061 = vmatmul.bf16.gmra.mxu0 %v1710
        %v5062 = vpop.f32.mrf.mxu0
        %v5063 = vadd.f32 %v5050, %v5062
        %v5064 = vpop.f32.mrf.mxu0
        %5065 = vdwg.mxu0
        %5066 = vmatpush.bf16.xpose.msra.mxu0 0
        %5067 = vmatpush.bf16.xpose.msra.mxu0 0
        %5068 = vmatpush.bf16.xpose.msra.mxu0 0
        %5069 = vmatpush.bf16.xpose.msra.mxu0 0
        %5070 = vmatpush.bf16.xpose.msra.mxu0 0
        %5071 = vmatpush.bf16.xpose.msra.mxu0 0
        %5072 = vmatpush.bf16.xpose.msra.mxu0 0
        %5073 = vmatpush.bf16.xpose.msra.mxu0 %v3182
        %5074 = vmatmul.bf16.gmra.mxu0 %v1711
        %v5075 = vpop.f32.mrf.mxu0
        %v5076 = vadd.f32 %v5063, %v5075
        %v5077 = vpop.f32.mrf.mxu0
        %5078 = vdwg.mxu0
        %5079 = vmatpush.bf16.xpose.msra.mxu0 0
        %5080 = vmatpush.bf16.xpose.msra.mxu0 0
        %5081 = vmatpush.bf16.xpose.msra.mxu0 0
        %5082 = vmatpush.bf16.xpose.msra.mxu0 0
        %5083 = vmatpush.bf16.xpose.msra.mxu0 0
        %5084 = vmatpush.bf16.xpose.msra.mxu0 0
        %5085 = vmatpush.bf16.xpose.msra.mxu0 0
        %5086 = vmatpush.bf16.xpose.msra.mxu0 %v3183
        %5087 = vmatmul.bf16.gmra.mxu0 %v1712
        %v5088 = vpop.f32.mrf.mxu0
        %v5089 = vadd.f32 %v5076, %v5088
        %v5090 = vpop.f32.mrf.mxu0
        %5091 = vdwg.mxu0
        %5092 = vmatpush.bf16.xpose.msra.mxu0 0
        %5093 = vmatpush.bf16.xpose.msra.mxu0 0
        %5094 = vmatpush.bf16.xpose.msra.mxu0 0
        %5095 = vmatpush.bf16.xpose.msra.mxu0 0
        %5096 = vmatpush.bf16.xpose.msra.mxu0 0
        %5097 = vmatpush.bf16.xpose.msra.mxu0 0
        %5098 = vmatpush.bf16.xpose.msra.mxu0 0
        %5099 = vmatpush.bf16.xpose.msra.mxu0 %v3184
        %5100 = vmatmul.bf16.gmra.mxu0 %v1713
        %v5101 = vpop.f32.mrf.mxu0
        %v5102 = vadd.f32 %v5089, %v5101
        %v5103 = vpop.f32.mrf.mxu0
        %5104 = vdwg.mxu0
        %5105 = vmatpush.bf16.xpose.msra.mxu0 0
        %5106 = vmatpush.bf16.xpose.msra.mxu0 0
        %5107 = vmatpush.bf16.xpose.msra.mxu0 0
        %5108 = vmatpush.bf16.xpose.msra.mxu0 0
        %5109 = vmatpush.bf16.xpose.msra.mxu0 0
        %5110 = vmatpush.bf16.xpose.msra.mxu0 0
        %5111 = vmatpush.bf16.xpose.msra.mxu0 0
        %5112 = vmatpush.bf16.xpose.msra.mxu0 %v3185
        %5113 = vmatmul.bf16.gmra.mxu0 %v1714
        %v5114 = vpop.f32.mrf.mxu0
        %v5115 = vadd.f32 %v5102, %v5114
        %v5116 = vpop.f32.mrf.mxu0
        %5117 = vdwg.mxu0
        %5118 = vmatpush.bf16.xpose.msra.mxu0 0
        %5119 = vmatpush.bf16.xpose.msra.mxu0 0
        %5120 = vmatpush.bf16.xpose.msra.mxu0 0
        %5121 = vmatpush.bf16.xpose.msra.mxu0 0
        %5122 = vmatpush.bf16.xpose.msra.mxu0 0
        %5123 = vmatpush.bf16.xpose.msra.mxu0 0
        %5124 = vmatpush.bf16.xpose.msra.mxu0 0
        %5125 = vmatpush.bf16.xpose.msra.mxu0 %v3186
        %5126 = vmatmul.bf16.gmra.mxu0 %v1715
        %v5127 = vpop.f32.mrf.mxu0
        %v5128 = vadd.f32 %v5115, %v5127
        %v5129 = vpop.f32.mrf.mxu0
        %5130 = vdwg.mxu0
        %5131 = vmatpush.bf16.xpose.msra.mxu0 0
        %5132 = vmatpush.bf16.xpose.msra.mxu0 0
        %5133 = vmatpush.bf16.xpose.msra.mxu0 0
        %5134 = vmatpush.bf16.xpose.msra.mxu0 0
        %5135 = vmatpush.bf16.xpose.msra.mxu0 0
        %5136 = vmatpush.bf16.xpose.msra.mxu0 0
        %5137 = vmatpush.bf16.xpose.msra.mxu0 0
        %5138 = vmatpush.bf16.xpose.msra.mxu0 %v3187
        %5139 = vmatmul.bf16.gmra.mxu0 %v1716
        %v5140 = vpop.f32.mrf.mxu0
        %v5141 = vadd.f32 %v5128, %v5140
        %v5142 = vpop.f32.mrf.mxu0
        %5143 = vdwg.mxu0
        %5144 = vmatpush.bf16.xpose.msra.mxu0 0
        %5145 = vmatpush.bf16.xpose.msra.mxu0 0
        %5146 = vmatpush.bf16.xpose.msra.mxu0 0
        %5147 = vmatpush.bf16.xpose.msra.mxu0 0
        %5148 = vmatpush.bf16.xpose.msra.mxu0 0
        %5149 = vmatpush.bf16.xpose.msra.mxu0 0
        %5150 = vmatpush.bf16.xpose.msra.mxu0 0
        %5151 = vmatpush.bf16.xpose.msra.mxu0 %v3188
        %5152 = vmatmul.bf16.gmra.mxu0 %v1717
        %v5153 = vpop.f32.mrf.mxu0
        %v5154 = vadd.f32 %v5141, %v5153
        %v5155 = vpop.f32.mrf.mxu0
        %5156 = vdwg.mxu0
        %5157 = vmatpush.bf16.xpose.msra.mxu0 0
        %5158 = vmatpush.bf16.xpose.msra.mxu0 0
        %5159 = vmatpush.bf16.xpose.msra.mxu0 0
        %5160 = vmatpush.bf16.xpose.msra.mxu0 0
        %5161 = vmatpush.bf16.xpose.msra.mxu0 0
        %5162 = vmatpush.bf16.xpose.msra.mxu0 0
        %5163 = vmatpush.bf16.xpose.msra.mxu0 0
        %5164 = vmatpush.bf16.xpose.msra.mxu0 %v3189
        %5165 = vmatmul.bf16.gmra.mxu0 %v1718
        %v5166 = vpop.f32.mrf.mxu0
        %v5167 = vadd.f32 %v5154, %v5166
        %v5168 = vpop.f32.mrf.mxu0
        %5169 = vdwg.mxu0
        %5170 = vmatpush.bf16.xpose.msra.mxu0 0
        %5171 = vmatpush.bf16.xpose.msra.mxu0 0
        %5172 = vmatpush.bf16.xpose.msra.mxu0 0
        %5173 = vmatpush.bf16.xpose.msra.mxu0 0
        %5174 = vmatpush.bf16.xpose.msra.mxu0 0
        %5175 = vmatpush.bf16.xpose.msra.mxu0 0
        %5176 = vmatpush.bf16.xpose.msra.mxu0 0
        %5177 = vmatpush.bf16.xpose.msra.mxu0 %v3190
        %5178 = vmatmul.bf16.gmra.mxu0 %v1719
        %v5179 = vpop.f32.mrf.mxu0
        %v5180 = vadd.f32 %v5167, %v5179
        %v5181 = vpop.f32.mrf.mxu0
        %5182 = vdwg.mxu0
        %5183 = vmatpush.bf16.xpose.msra.mxu0 0
        %5184 = vmatpush.bf16.xpose.msra.mxu0 0
        %5185 = vmatpush.bf16.xpose.msra.mxu0 0
        %5186 = vmatpush.bf16.xpose.msra.mxu0 0
        %5187 = vmatpush.bf16.xpose.msra.mxu0 0
        %5188 = vmatpush.bf16.xpose.msra.mxu0 0
        %5189 = vmatpush.bf16.xpose.msra.mxu0 0
        %5190 = vmatpush.bf16.xpose.msra.mxu0 %v3191
        %5191 = vmatmul.bf16.gmra.mxu0 %v1720
        %v5192 = vpop.f32.mrf.mxu0
        %v5193 = vadd.f32 %v5180, %v5192
        %v5194 = vpop.f32.mrf.mxu0
        %5195 = vdwg.mxu0
        %5196 = vmatpush.bf16.xpose.msra.mxu0 0
        %5197 = vmatpush.bf16.xpose.msra.mxu0 0
        %5198 = vmatpush.bf16.xpose.msra.mxu0 0
        %5199 = vmatpush.bf16.xpose.msra.mxu0 0
        %5200 = vmatpush.bf16.xpose.msra.mxu0 0
        %5201 = vmatpush.bf16.xpose.msra.mxu0 0
        %5202 = vmatpush.bf16.xpose.msra.mxu0 0
        %5203 = vmatpush.bf16.xpose.msra.mxu0 %v3192
        %5204 = vmatmul.bf16.gmra.mxu0 %v1721
        %v5205 = vpop.f32.mrf.mxu0
        %v5206 = vadd.f32 %v5193, %v5205
        %v5207 = vpop.f32.mrf.mxu0
        %5208 = vdwg.mxu0
        %5209 = vmatpush.bf16.xpose.msra.mxu0 0
        %5210 = vmatpush.bf16.xpose.msra.mxu0 0
        %5211 = vmatpush.bf16.xpose.msra.mxu0 0
        %5212 = vmatpush.bf16.xpose.msra.mxu0 0
        %5213 = vmatpush.bf16.xpose.msra.mxu0 0
        %5214 = vmatpush.bf16.xpose.msra.mxu0 0
        %5215 = vmatpush.bf16.xpose.msra.mxu0 0
        %5216 = vmatpush.bf16.xpose.msra.mxu0 %v3193
        %5217 = vmatmul.bf16.gmra.mxu0 %v1722
        %v5218 = vpop.f32.mrf.mxu0
        %v5219 = vadd.f32 %v5206, %v5218
        %v5220 = vpop.f32.mrf.mxu0
        %5221 = vdwg.mxu0
        %5222 = vmatpush.bf16.xpose.msra.mxu0 0
        %5223 = vmatpush.bf16.xpose.msra.mxu0 0
        %5224 = vmatpush.bf16.xpose.msra.mxu0 0
        %5225 = vmatpush.bf16.xpose.msra.mxu0 0
        %5226 = vmatpush.bf16.xpose.msra.mxu0 0
        %5227 = vmatpush.bf16.xpose.msra.mxu0 0
        %5228 = vmatpush.bf16.xpose.msra.mxu0 0
        %5229 = vmatpush.bf16.xpose.msra.mxu0 %v3194
        %5230 = vmatmul.bf16.gmra.mxu0 %v1723
        %v5231 = vpop.f32.mrf.mxu0
        %v5232 = vadd.f32 %v5219, %v5231
        %v5233 = vpop.f32.mrf.mxu0
        %5234 = vdwg.mxu0
        %5235 = vmatpush.bf16.xpose.msra.mxu0 0
        %5236 = vmatpush.bf16.xpose.msra.mxu0 0
        %5237 = vmatpush.bf16.xpose.msra.mxu0 0
        %5238 = vmatpush.bf16.xpose.msra.mxu0 0
        %5239 = vmatpush.bf16.xpose.msra.mxu0 0
        %5240 = vmatpush.bf16.xpose.msra.mxu0 0
        %5241 = vmatpush.bf16.xpose.msra.mxu0 0
        %5242 = vmatpush.bf16.xpose.msra.mxu0 %v3195
        %5243 = vmatmul.bf16.gmra.mxu0 %v1724
        %v5244 = vpop.f32.mrf.mxu0
        %v5245 = vadd.f32 %v5232, %v5244
        %v5246 = vpop.f32.mrf.mxu0
        %5247 = vdwg.mxu0
        %5248 = vmatpush.bf16.xpose.msra.mxu0 0
        %5249 = vmatpush.bf16.xpose.msra.mxu0 0
        %5250 = vmatpush.bf16.xpose.msra.mxu0 0
        %5251 = vmatpush.bf16.xpose.msra.mxu0 0
        %5252 = vmatpush.bf16.xpose.msra.mxu0 0
        %5253 = vmatpush.bf16.xpose.msra.mxu0 0
        %5254 = vmatpush.bf16.xpose.msra.mxu0 0
        %5255 = vmatpush.bf16.xpose.msra.mxu0 %v3196
        %5256 = vmatmul.bf16.gmra.mxu0 %v1725
        %v5257 = vpop.f32.mrf.mxu0
        %v5258 = vadd.f32 %v5245, %v5257
        %v5259 = vpop.f32.mrf.mxu0
        %5260 = vdwg.mxu0
        %5261 = vmatpush.bf16.xpose.msra.mxu0 0
        %5262 = vmatpush.bf16.xpose.msra.mxu0 0
        %5263 = vmatpush.bf16.xpose.msra.mxu0 0
        %5264 = vmatpush.bf16.xpose.msra.mxu0 0
        %5265 = vmatpush.bf16.xpose.msra.mxu0 0
        %5266 = vmatpush.bf16.xpose.msra.mxu0 0
        %5267 = vmatpush.bf16.xpose.msra.mxu0 0
        %5268 = vmatpush.bf16.xpose.msra.mxu0 %v3197
        %5269 = vmatmul.bf16.gmra.mxu0 %v1726
        %v5270 = vpop.f32.mrf.mxu0
        %v5271 = vadd.f32 %v5258, %v5270
        %v5272 = vpop.f32.mrf.mxu0
        %5273 = vdwg.mxu0
        %5274 = vmatpush.bf16.xpose.msra.mxu0 0
        %5275 = vmatpush.bf16.xpose.msra.mxu0 0
        %5276 = vmatpush.bf16.xpose.msra.mxu0 0
        %5277 = vmatpush.bf16.xpose.msra.mxu0 0
        %5278 = vmatpush.bf16.xpose.msra.mxu0 0
        %5279 = vmatpush.bf16.xpose.msra.mxu0 0
        %5280 = vmatpush.bf16.xpose.msra.mxu0 0
        %5281 = vmatpush.bf16.xpose.msra.mxu0 %v3198
        %5282 = vmatmul.bf16.gmra.mxu0 %v1727
        %v5283 = vpop.f32.mrf.mxu0
        %v5284 = vadd.f32 %v5271, %v5283
        %v5285 = vpop.f32.mrf.mxu0
        %5286 = vdwg.mxu0
        %5287 = vmatpush.bf16.xpose.msra.mxu0 0
        %5288 = vmatpush.bf16.xpose.msra.mxu0 0
        %5289 = vmatpush.bf16.xpose.msra.mxu0 0
        %5290 = vmatpush.bf16.xpose.msra.mxu0 0
        %5291 = vmatpush.bf16.xpose.msra.mxu0 0
        %5292 = vmatpush.bf16.xpose.msra.mxu0 0
        %5293 = vmatpush.bf16.xpose.msra.mxu0 0
        %5294 = vmatpush.bf16.xpose.msra.mxu0 %v3199
        %5295 = vmatmul.bf16.gmra.mxu0 %v1728
        %v5296 = vpop.f32.mrf.mxu0
        %v5297 = vadd.f32 %v5284, %v5296
        %v5298 = vpop.f32.mrf.mxu0
        %5299 = vdwg.mxu0
        %5300 = vmatpush.bf16.xpose.msra.mxu0 0
        %5301 = vmatpush.bf16.xpose.msra.mxu0 0
        %5302 = vmatpush.bf16.xpose.msra.mxu0 0
        %5303 = vmatpush.bf16.xpose.msra.mxu0 0
        %5304 = vmatpush.bf16.xpose.msra.mxu0 0
        %5305 = vmatpush.bf16.xpose.msra.mxu0 0
        %5306 = vmatpush.bf16.xpose.msra.mxu0 0
        %5307 = vmatpush.bf16.xpose.msra.mxu0 %v3200
        %5308 = vmatmul.bf16.gmra.mxu0 %v1729
        %v5309 = vpop.f32.mrf.mxu0
        %v5310 = vadd.f32 %v5297, %v5309
        %v5311 = vpop.f32.mrf.mxu0
        %5312 = vdwg.mxu0
        %5313 = vmatpush.bf16.xpose.msra.mxu0 0
        %5314 = vmatpush.bf16.xpose.msra.mxu0 0
        %5315 = vmatpush.bf16.xpose.msra.mxu0 0
        %5316 = vmatpush.bf16.xpose.msra.mxu0 0
        %5317 = vmatpush.bf16.xpose.msra.mxu0 0
        %5318 = vmatpush.bf16.xpose.msra.mxu0 0
        %5319 = vmatpush.bf16.xpose.msra.mxu0 0
        %5320 = vmatpush.bf16.xpose.msra.mxu0 %v3201
        %5321 = vmatmul.bf16.gmra.mxu0 %v1730
        %v5322 = vpop.f32.mrf.mxu0
        %v5323 = vadd.f32 %v5310, %v5322
        %v5324 = vpop.f32.mrf.mxu0
        %5325 = vdwg.mxu0
        %5326 = vmatpush.bf16.xpose.msra.mxu0 0
        %5327 = vmatpush.bf16.xpose.msra.mxu0 0
        %5328 = vmatpush.bf16.xpose.msra.mxu0 0
        %5329 = vmatpush.bf16.xpose.msra.mxu0 0
        %5330 = vmatpush.bf16.xpose.msra.mxu0 0
        %5331 = vmatpush.bf16.xpose.msra.mxu0 0
        %5332 = vmatpush.bf16.xpose.msra.mxu0 0
        %5333 = vmatpush.bf16.xpose.msra.mxu0 %v3202
        %5334 = vmatmul.bf16.gmra.mxu0 %v1731
        %v5335 = vpop.f32.mrf.mxu0
        %v5336 = vadd.f32 %v5323, %v5335
        %v5337 = vpop.f32.mrf.mxu0
        %5338 = vdwg.mxu0
        %5339 = vmatpush.bf16.xpose.msra.mxu0 0
        %5340 = vmatpush.bf16.xpose.msra.mxu0 0
        %5341 = vmatpush.bf16.xpose.msra.mxu0 0
        %5342 = vmatpush.bf16.xpose.msra.mxu0 0
        %5343 = vmatpush.bf16.xpose.msra.mxu0 0
        %5344 = vmatpush.bf16.xpose.msra.mxu0 0
        %5345 = vmatpush.bf16.xpose.msra.mxu0 0
        %5346 = vmatpush.bf16.xpose.msra.mxu0 %v3203
        %5347 = vmatmul.bf16.gmra.mxu0 %v1732
        %v5348 = vpop.f32.mrf.mxu0
        %v5349 = vadd.f32 %v5336, %v5348
        %v5350 = vpop.f32.mrf.mxu0
        %5351 = vdwg.mxu0
        %5352 = vmatpush.bf16.xpose.msra.mxu0 0
        %5353 = vmatpush.bf16.xpose.msra.mxu0 0
        %5354 = vmatpush.bf16.xpose.msra.mxu0 0
        %5355 = vmatpush.bf16.xpose.msra.mxu0 0
        %5356 = vmatpush.bf16.xpose.msra.mxu0 0
        %5357 = vmatpush.bf16.xpose.msra.mxu0 0
        %5358 = vmatpush.bf16.xpose.msra.mxu0 0
        %5359 = vmatpush.bf16.xpose.msra.mxu0 %v3204
        %5360 = vmatmul.bf16.gmra.mxu0 %v1733
        %v5361 = vpop.f32.mrf.mxu0
        %v5362 = vadd.f32 %v5349, %v5361
        %v5363 = vpop.f32.mrf.mxu0
        %5364 = vdwg.mxu0
        %5365 = vmatpush.bf16.xpose.msra.mxu0 0
        %5366 = vmatpush.bf16.xpose.msra.mxu0 0
        %5367 = vmatpush.bf16.xpose.msra.mxu0 0
        %5368 = vmatpush.bf16.xpose.msra.mxu0 0
        %5369 = vmatpush.bf16.xpose.msra.mxu0 0
        %5370 = vmatpush.bf16.xpose.msra.mxu0 0
        %5371 = vmatpush.bf16.xpose.msra.mxu0 0
        %5372 = vmatpush.bf16.xpose.msra.mxu0 %v3205
        %5373 = vmatmul.bf16.gmra.mxu0 %v1734
        %v5374 = vpop.f32.mrf.mxu0
        %v5375 = vadd.f32 %v5362, %v5374
        %v5376 = vpop.f32.mrf.mxu0
        %5377 = vdwg.mxu0
        %5378 = vmatpush.bf16.xpose.msra.mxu0 0
        %5379 = vmatpush.bf16.xpose.msra.mxu0 0
        %5380 = vmatpush.bf16.xpose.msra.mxu0 0
        %5381 = vmatpush.bf16.xpose.msra.mxu0 0
        %5382 = vmatpush.bf16.xpose.msra.mxu0 0
        %5383 = vmatpush.bf16.xpose.msra.mxu0 0
        %5384 = vmatpush.bf16.xpose.msra.mxu0 0
        %5385 = vmatpush.bf16.xpose.msra.mxu0 %v3206
        %5386 = vmatmul.bf16.gmra.mxu0 %v1735
        %v5387 = vpop.f32.mrf.mxu0
        %v5388 = vadd.f32 %v5375, %v5387
        %v5389 = vpop.f32.mrf.mxu0
        %5390 = vdwg.mxu0
        %5391 = vmatpush.bf16.xpose.msra.mxu0 0
        %5392 = vmatpush.bf16.xpose.msra.mxu0 0
        %5393 = vmatpush.bf16.xpose.msra.mxu0 0
        %5394 = vmatpush.bf16.xpose.msra.mxu0 0
        %5395 = vmatpush.bf16.xpose.msra.mxu0 0
        %5396 = vmatpush.bf16.xpose.msra.mxu0 0
        %5397 = vmatpush.bf16.xpose.msra.mxu0 0
        %5398 = vmatpush.bf16.xpose.msra.mxu0 %v3207
        %5399 = vmatmul.bf16.gmra.mxu0 %v1736
        %v5400 = vpop.f32.mrf.mxu0
        %v5401 = vadd.f32 %v5388, %v5400
        %v5402 = vpop.f32.mrf.mxu0
        %5403 = vdwg.mxu0
        %5404 = vmatpush.bf16.xpose.msra.mxu0 0
        %5405 = vmatpush.bf16.xpose.msra.mxu0 0
        %5406 = vmatpush.bf16.xpose.msra.mxu0 0
        %5407 = vmatpush.bf16.xpose.msra.mxu0 0
        %5408 = vmatpush.bf16.xpose.msra.mxu0 0
        %5409 = vmatpush.bf16.xpose.msra.mxu0 0
        %5410 = vmatpush.bf16.xpose.msra.mxu0 0
        %5411 = vmatpush.bf16.xpose.msra.mxu0 %v3208
        %5412 = vmatmul.bf16.gmra.mxu0 %v1737
        %v5413 = vpop.f32.mrf.mxu0
        %v5414 = vadd.f32 %v5401, %v5413
        %v5415 = vpop.f32.mrf.mxu0
        %5416 = vdwg.mxu0
        %5417 = vmatpush.bf16.xpose.msra.mxu0 0
        %5418 = vmatpush.bf16.xpose.msra.mxu0 0
        %5419 = vmatpush.bf16.xpose.msra.mxu0 0
        %5420 = vmatpush.bf16.xpose.msra.mxu0 0
        %5421 = vmatpush.bf16.xpose.msra.mxu0 0
        %5422 = vmatpush.bf16.xpose.msra.mxu0 0
        %5423 = vmatpush.bf16.xpose.msra.mxu0 0
        %5424 = vmatpush.bf16.xpose.msra.mxu0 %v3209
        %5425 = vmatmul.bf16.gmra.mxu0 %v1738
        %v5426 = vpop.f32.mrf.mxu0
        %v5427 = vadd.f32 %v5414, %v5426
        %v5428 = vpop.f32.mrf.mxu0
        %5429 = vdwg.mxu0
        %5430 = vmatpush.bf16.xpose.msra.mxu0 0
        %5431 = vmatpush.bf16.xpose.msra.mxu0 0
        %5432 = vmatpush.bf16.xpose.msra.mxu0 0
        %5433 = vmatpush.bf16.xpose.msra.mxu0 0
        %5434 = vmatpush.bf16.xpose.msra.mxu0 0
        %5435 = vmatpush.bf16.xpose.msra.mxu0 0
        %5436 = vmatpush.bf16.xpose.msra.mxu0 0
        %5437 = vmatpush.bf16.xpose.msra.mxu0 %v3210
        %5438 = vmatmul.bf16.gmra.mxu0 %v1739
        %v5439 = vpop.f32.mrf.mxu0
        %v5440 = vadd.f32 %v5427, %v5439
        %v5441 = vpop.f32.mrf.mxu0
        %5442 = vdwg.mxu0
        %5443 = vmatpush.bf16.xpose.msra.mxu0 0
        %5444 = vmatpush.bf16.xpose.msra.mxu0 0
        %5445 = vmatpush.bf16.xpose.msra.mxu0 0
        %5446 = vmatpush.bf16.xpose.msra.mxu0 0
        %5447 = vmatpush.bf16.xpose.msra.mxu0 0
        %5448 = vmatpush.bf16.xpose.msra.mxu0 0
        %5449 = vmatpush.bf16.xpose.msra.mxu0 0
        %5450 = vmatpush.bf16.xpose.msra.mxu0 %v3211
        %5451 = vmatmul.bf16.gmra.mxu0 %v1740
        %v5452 = vpop.f32.mrf.mxu0
        %v5453 = vadd.f32 %v5440, %v5452
        %v5454 = vpop.f32.mrf.mxu0
        %5455 = vdwg.mxu0
        %5456 = vmatpush.bf16.xpose.msra.mxu0 0
        %5457 = vmatpush.bf16.xpose.msra.mxu0 0
        %5458 = vmatpush.bf16.xpose.msra.mxu0 0
        %5459 = vmatpush.bf16.xpose.msra.mxu0 0
        %5460 = vmatpush.bf16.xpose.msra.mxu0 0
        %5461 = vmatpush.bf16.xpose.msra.mxu0 0
        %5462 = vmatpush.bf16.xpose.msra.mxu0 0
        %5463 = vmatpush.bf16.xpose.msra.mxu0 %v3212
        %5464 = vmatmul.bf16.gmra.mxu0 %v1741
        %v5465 = vpop.f32.mrf.mxu0
        %v5466 = vadd.f32 %v5453, %v5465
        %v5467 = vpop.f32.mrf.mxu0
        %5468 = vdwg.mxu0
        %5469 = vmatpush.bf16.xpose.msra.mxu0 0
        %5470 = vmatpush.bf16.xpose.msra.mxu0 0
        %5471 = vmatpush.bf16.xpose.msra.mxu0 0
        %5472 = vmatpush.bf16.xpose.msra.mxu0 0
        %5473 = vmatpush.bf16.xpose.msra.mxu0 0
        %5474 = vmatpush.bf16.xpose.msra.mxu0 0
        %5475 = vmatpush.bf16.xpose.msra.mxu0 0
        %5476 = vmatpush.bf16.xpose.msra.mxu0 %v3213
        %5477 = vmatmul.bf16.gmra.mxu0 %v1742
        %v5478 = vpop.f32.mrf.mxu0
        %v5479 = vadd.f32 %v5466, %v5478
        %v5480 = vpop.f32.mrf.mxu0
        %5481 = vdwg.mxu0
        %5482 = vmatpush.bf16.xpose.msra.mxu0 0
        %5483 = vmatpush.bf16.xpose.msra.mxu0 0
        %5484 = vmatpush.bf16.xpose.msra.mxu0 0
        %5485 = vmatpush.bf16.xpose.msra.mxu0 0
        %5486 = vmatpush.bf16.xpose.msra.mxu0 0
        %5487 = vmatpush.bf16.xpose.msra.mxu0 0
        %5488 = vmatpush.bf16.xpose.msra.mxu0 0
        %5489 = vmatpush.bf16.xpose.msra.mxu0 %v3214
        %5490 = vmatmul.bf16.gmra.mxu0 %v1743
        %v5491 = vpop.f32.mrf.mxu0
        %v5492 = vadd.f32 %v5479, %v5491
        %v5493 = vpop.f32.mrf.mxu0
        %5494 = vdwg.mxu0
        %5495 = vmatpush.bf16.xpose.msra.mxu0 0
        %5496 = vmatpush.bf16.xpose.msra.mxu0 0
        %5497 = vmatpush.bf16.xpose.msra.mxu0 0
        %5498 = vmatpush.bf16.xpose.msra.mxu0 0
        %5499 = vmatpush.bf16.xpose.msra.mxu0 0
        %5500 = vmatpush.bf16.xpose.msra.mxu0 0
        %5501 = vmatpush.bf16.xpose.msra.mxu0 0
        %5502 = vmatpush.bf16.xpose.msra.mxu0 %v3215
        %5503 = vmatmul.bf16.gmra.mxu0 %v1744
        %v5504 = vpop.f32.mrf.mxu0
        %v5505 = vadd.f32 %v5492, %v5504
        %v5506 = vpop.f32.mrf.mxu0
        %5507 = vdwg.mxu0
        %5508 = vmatpush.bf16.xpose.msra.mxu0 0
        %5509 = vmatpush.bf16.xpose.msra.mxu0 0
        %5510 = vmatpush.bf16.xpose.msra.mxu0 0
        %5511 = vmatpush.bf16.xpose.msra.mxu0 0
        %5512 = vmatpush.bf16.xpose.msra.mxu0 0
        %5513 = vmatpush.bf16.xpose.msra.mxu0 0
        %5514 = vmatpush.bf16.xpose.msra.mxu0 0
        %5515 = vmatpush.bf16.xpose.msra.mxu0 %v3216
        %5516 = vmatmul.bf16.gmra.mxu0 %v1745
        %v5517 = vpop.f32.mrf.mxu0
        %v5518 = vadd.f32 %v5505, %v5517
        %v5519 = vpop.f32.mrf.mxu0
        %5520 = vdwg.mxu0
        %5521 = vmatpush.bf16.xpose.msra.mxu0 0
        %5522 = vmatpush.bf16.xpose.msra.mxu0 0
        %5523 = vmatpush.bf16.xpose.msra.mxu0 0
        %5524 = vmatpush.bf16.xpose.msra.mxu0 0
        %5525 = vmatpush.bf16.xpose.msra.mxu0 0
        %5526 = vmatpush.bf16.xpose.msra.mxu0 0
        %5527 = vmatpush.bf16.xpose.msra.mxu0 0
        %5528 = vmatpush.bf16.xpose.msra.mxu0 %v3217
        %5529 = vmatmul.bf16.gmra.mxu0 %v1746
        %v5530 = vpop.f32.mrf.mxu0
        %v5531 = vadd.f32 %v5518, %v5530
        %v5532 = vpop.f32.mrf.mxu0
        %5533 = vdwg.mxu0
        %5534 = vmatpush.bf16.xpose.msra.mxu0 0
        %5535 = vmatpush.bf16.xpose.msra.mxu0 0
        %5536 = vmatpush.bf16.xpose.msra.mxu0 0
        %5537 = vmatpush.bf16.xpose.msra.mxu0 0
        %5538 = vmatpush.bf16.xpose.msra.mxu0 0
        %5539 = vmatpush.bf16.xpose.msra.mxu0 0
        %5540 = vmatpush.bf16.xpose.msra.mxu0 0
        %5541 = vmatpush.bf16.xpose.msra.mxu0 %v3218
        %5542 = vmatmul.bf16.gmra.mxu0 %v1747
        %v5543 = vpop.f32.mrf.mxu0
        %v5544 = vadd.f32 %v5531, %v5543
        %v5545 = vpop.f32.mrf.mxu0
        %5546 = vdwg.mxu0
        %5547 = vmatpush.bf16.xpose.msra.mxu0 0
        %5548 = vmatpush.bf16.xpose.msra.mxu0 0
        %5549 = vmatpush.bf16.xpose.msra.mxu0 0
        %5550 = vmatpush.bf16.xpose.msra.mxu0 0
        %5551 = vmatpush.bf16.xpose.msra.mxu0 0
        %5552 = vmatpush.bf16.xpose.msra.mxu0 0
        %5553 = vmatpush.bf16.xpose.msra.mxu0 0
        %5554 = vmatpush.bf16.xpose.msra.mxu0 %v3219
        %5555 = vmatmul.bf16.gmra.mxu0 %v1748
        %v5556 = vpop.f32.mrf.mxu0
        %v5557 = vadd.f32 %v5544, %v5556
        %v5558 = vpop.f32.mrf.mxu0
        %5559 = vdwg.mxu0
        %5560 = vmatpush.bf16.xpose.msra.mxu0 0
        %5561 = vmatpush.bf16.xpose.msra.mxu0 0
        %5562 = vmatpush.bf16.xpose.msra.mxu0 0
        %5563 = vmatpush.bf16.xpose.msra.mxu0 0
        %5564 = vmatpush.bf16.xpose.msra.mxu0 0
        %5565 = vmatpush.bf16.xpose.msra.mxu0 0
        %5566 = vmatpush.bf16.xpose.msra.mxu0 0
        %5567 = vmatpush.bf16.xpose.msra.mxu0 %v3220
        %5568 = vmatmul.bf16.gmra.mxu0 %v1749
        %v5569 = vpop.f32.mrf.mxu0
        %v5570 = vadd.f32 %v5557, %v5569
        %v5571 = vpop.f32.mrf.mxu0
        %5572 = vdwg.mxu0
        %5573 = vmatpush.bf16.xpose.msra.mxu0 0
        %5574 = vmatpush.bf16.xpose.msra.mxu0 0
        %5575 = vmatpush.bf16.xpose.msra.mxu0 0
        %5576 = vmatpush.bf16.xpose.msra.mxu0 0
        %5577 = vmatpush.bf16.xpose.msra.mxu0 0
        %5578 = vmatpush.bf16.xpose.msra.mxu0 0
        %5579 = vmatpush.bf16.xpose.msra.mxu0 0
        %5580 = vmatpush.bf16.xpose.msra.mxu0 %v3221
        %5581 = vmatmul.bf16.gmra.mxu0 %v1750
        %v5582 = vpop.f32.mrf.mxu0
        %v5583 = vadd.f32 %v5570, %v5582
        %v5584 = vpop.f32.mrf.mxu0
        %5585 = vdwg.mxu0
        %5586 = vmatpush.bf16.xpose.msra.mxu0 0
        %5587 = vmatpush.bf16.xpose.msra.mxu0 0
        %5588 = vmatpush.bf16.xpose.msra.mxu0 0
        %5589 = vmatpush.bf16.xpose.msra.mxu0 0
        %5590 = vmatpush.bf16.xpose.msra.mxu0 0
        %5591 = vmatpush.bf16.xpose.msra.mxu0 0
        %5592 = vmatpush.bf16.xpose.msra.mxu0 0
        %5593 = vmatpush.bf16.xpose.msra.mxu0 %v3222
        %5594 = vmatmul.bf16.gmra.mxu0 %v1751
        %v5595 = vpop.f32.mrf.mxu0
        %v5596 = vadd.f32 %v5583, %v5595
        %v5597 = vpop.f32.mrf.mxu0
        %5598 = vdwg.mxu0
        %5599 = vmatpush.bf16.xpose.msra.mxu0 0
        %5600 = vmatpush.bf16.xpose.msra.mxu0 0
        %5601 = vmatpush.bf16.xpose.msra.mxu0 0
        %5602 = vmatpush.bf16.xpose.msra.mxu0 0
        %5603 = vmatpush.bf16.xpose.msra.mxu0 0
        %5604 = vmatpush.bf16.xpose.msra.mxu0 0
        %5605 = vmatpush.bf16.xpose.msra.mxu0 0
        %5606 = vmatpush.bf16.xpose.msra.mxu0 %v3223
        %5607 = vmatmul.bf16.gmra.mxu0 %v1752
        %v5608 = vpop.f32.mrf.mxu0
        %v5609 = vadd.f32 %v5596, %v5608
        %v5610 = vpop.f32.mrf.mxu0
        %5611 = vdwg.mxu0
        %5612 = vmatpush.bf16.xpose.msra.mxu0 0
        %5613 = vmatpush.bf16.xpose.msra.mxu0 0
        %5614 = vmatpush.bf16.xpose.msra.mxu0 0
        %5615 = vmatpush.bf16.xpose.msra.mxu0 0
        %5616 = vmatpush.bf16.xpose.msra.mxu0 0
        %5617 = vmatpush.bf16.xpose.msra.mxu0 0
        %5618 = vmatpush.bf16.xpose.msra.mxu0 0
        %5619 = vmatpush.bf16.xpose.msra.mxu0 %v3224
        %5620 = vmatmul.bf16.gmra.mxu0 %v1753
        %v5621 = vpop.f32.mrf.mxu0
        %v5622 = vadd.f32 %v5609, %v5621
        %v5623 = vpop.f32.mrf.mxu0
        %5624 = vdwg.mxu0
        %5625 = vmatpush.bf16.xpose.msra.mxu0 0
        %5626 = vmatpush.bf16.xpose.msra.mxu0 0
        %5627 = vmatpush.bf16.xpose.msra.mxu0 0
        %5628 = vmatpush.bf16.xpose.msra.mxu0 0
        %5629 = vmatpush.bf16.xpose.msra.mxu0 0
        %5630 = vmatpush.bf16.xpose.msra.mxu0 0
        %5631 = vmatpush.bf16.xpose.msra.mxu0 0
        %5632 = vmatpush.bf16.xpose.msra.mxu0 %v3225
        %5633 = vmatmul.bf16.gmra.mxu0 %v1754
        %v5634 = vpop.f32.mrf.mxu0
        %v5635 = vadd.f32 %v5622, %v5634
        %v5636 = vpop.f32.mrf.mxu0
        %5637 = vdwg.mxu0
        %5638 = vmatpush.bf16.xpose.msra.mxu0 0
        %5639 = vmatpush.bf16.xpose.msra.mxu0 0
        %5640 = vmatpush.bf16.xpose.msra.mxu0 0
        %5641 = vmatpush.bf16.xpose.msra.mxu0 0
        %5642 = vmatpush.bf16.xpose.msra.mxu0 0
        %5643 = vmatpush.bf16.xpose.msra.mxu0 0
        %5644 = vmatpush.bf16.xpose.msra.mxu0 0
        %5645 = vmatpush.bf16.xpose.msra.mxu0 %v3226
        %5646 = vmatmul.bf16.gmra.mxu0 %v1755
        %v5647 = vpop.f32.mrf.mxu0
        %v5648 = vadd.f32 %v5635, %v5647
        %v5649 = vpop.f32.mrf.mxu0
        %5650 = vdwg.mxu0
        %5651 = vmatpush.bf16.xpose.msra.mxu0 0
        %5652 = vmatpush.bf16.xpose.msra.mxu0 0
        %5653 = vmatpush.bf16.xpose.msra.mxu0 0
        %5654 = vmatpush.bf16.xpose.msra.mxu0 0
        %5655 = vmatpush.bf16.xpose.msra.mxu0 0
        %5656 = vmatpush.bf16.xpose.msra.mxu0 0
        %5657 = vmatpush.bf16.xpose.msra.mxu0 0
        %5658 = vmatpush.bf16.xpose.msra.mxu0 %v3227
        %5659 = vmatmul.bf16.gmra.mxu0 %v1756
        %v5660 = vpop.f32.mrf.mxu0
        %v5661 = vadd.f32 %v5648, %v5660
        %v5662 = vpop.f32.mrf.mxu0
        %5663 = vdwg.mxu0
        %5664 = vmatpush.bf16.xpose.msra.mxu0 0
        %5665 = vmatpush.bf16.xpose.msra.mxu0 0
        %5666 = vmatpush.bf16.xpose.msra.mxu0 0
        %5667 = vmatpush.bf16.xpose.msra.mxu0 0
        %5668 = vmatpush.bf16.xpose.msra.mxu0 0
        %5669 = vmatpush.bf16.xpose.msra.mxu0 0
        %5670 = vmatpush.bf16.xpose.msra.mxu0 0
        %5671 = vmatpush.bf16.xpose.msra.mxu0 %v3228
        %5672 = vmatmul.bf16.gmra.mxu0 %v1757
        %v5673 = vpop.f32.mrf.mxu0
        %v5674 = vadd.f32 %v5661, %v5673
        %v5675 = vpop.f32.mrf.mxu0
        %5676 = vdwg.mxu0
        %5677 = vmatpush.bf16.xpose.msra.mxu0 0
        %5678 = vmatpush.bf16.xpose.msra.mxu0 0
        %5679 = vmatpush.bf16.xpose.msra.mxu0 0
        %5680 = vmatpush.bf16.xpose.msra.mxu0 0
        %5681 = vmatpush.bf16.xpose.msra.mxu0 0
        %5682 = vmatpush.bf16.xpose.msra.mxu0 0
        %5683 = vmatpush.bf16.xpose.msra.mxu0 0
        %5684 = vmatpush.bf16.xpose.msra.mxu0 %v3229
        %5685 = vmatmul.bf16.gmra.mxu0 %v1758
        %v5686 = vpop.f32.mrf.mxu0
        %v5687 = vadd.f32 %v5674, %v5686
        %v5688 = vpop.f32.mrf.mxu0
        %5689 = vdwg.mxu0
        %5690 = vmatpush.bf16.xpose.msra.mxu0 0
        %5691 = vmatpush.bf16.xpose.msra.mxu0 0
        %5692 = vmatpush.bf16.xpose.msra.mxu0 0
        %5693 = vmatpush.bf16.xpose.msra.mxu0 0
        %5694 = vmatpush.bf16.xpose.msra.mxu0 0
        %5695 = vmatpush.bf16.xpose.msra.mxu0 0
        %5696 = vmatpush.bf16.xpose.msra.mxu0 0
        %5697 = vmatpush.bf16.xpose.msra.mxu0 %v3230
        %5698 = vmatmul.bf16.gmra.mxu0 %v1759
        %v5699 = vpop.f32.mrf.mxu0
        %v5700 = vadd.f32 %v5687, %v5699
        %v5701 = vpop.f32.mrf.mxu0
        %5702 = vdwg.mxu0
        %5703 = vmatpush.bf16.xpose.msra.mxu0 0
        %5704 = vmatpush.bf16.xpose.msra.mxu0 0
        %5705 = vmatpush.bf16.xpose.msra.mxu0 0
        %5706 = vmatpush.bf16.xpose.msra.mxu0 0
        %5707 = vmatpush.bf16.xpose.msra.mxu0 0
        %5708 = vmatpush.bf16.xpose.msra.mxu0 0
        %5709 = vmatpush.bf16.xpose.msra.mxu0 0
        %5710 = vmatpush.bf16.xpose.msra.mxu0 %v3231
        %5711 = vmatmul.bf16.gmra.mxu0 %v1760
        %v5712 = vpop.f32.mrf.mxu0
        %v5713 = vadd.f32 %v5700, %v5712
        %v5714 = vpop.f32.mrf.mxu0
        %5715 = vdwg.mxu0
        %5716 = vmatpush.bf16.xpose.msra.mxu0 0
        %5717 = vmatpush.bf16.xpose.msra.mxu0 0
        %5718 = vmatpush.bf16.xpose.msra.mxu0 0
        %5719 = vmatpush.bf16.xpose.msra.mxu0 0
        %5720 = vmatpush.bf16.xpose.msra.mxu0 0
        %5721 = vmatpush.bf16.xpose.msra.mxu0 0
        %5722 = vmatpush.bf16.xpose.msra.mxu0 0
        %5723 = vmatpush.bf16.xpose.msra.mxu0 %v3232
        %5724 = vmatmul.bf16.gmra.mxu0 %v1761
        %v5725 = vpop.f32.mrf.mxu0
        %v5726 = vadd.f32 %v5713, %v5725
        %v5727 = vpop.f32.mrf.mxu0
        %5728 = vdwg.mxu0
        %5729 = vmatpush.bf16.xpose.msra.mxu0 0
        %5730 = vmatpush.bf16.xpose.msra.mxu0 0
        %5731 = vmatpush.bf16.xpose.msra.mxu0 0
        %5732 = vmatpush.bf16.xpose.msra.mxu0 0
        %5733 = vmatpush.bf16.xpose.msra.mxu0 0
        %5734 = vmatpush.bf16.xpose.msra.mxu0 0
        %5735 = vmatpush.bf16.xpose.msra.mxu0 0
        %5736 = vmatpush.bf16.xpose.msra.mxu0 %v3233
        %5737 = vmatmul.bf16.gmra.mxu0 %v1762
        %v5738 = vpop.f32.mrf.mxu0
        %v5739 = vadd.f32 %v5726, %v5738
        %v5740 = vpop.f32.mrf.mxu0
        %5741 = vdwg.mxu0
        %5742 = vmatpush.bf16.xpose.msra.mxu0 0
        %5743 = vmatpush.bf16.xpose.msra.mxu0 0
        %5744 = vmatpush.bf16.xpose.msra.mxu0 0
        %5745 = vmatpush.bf16.xpose.msra.mxu0 0
        %5746 = vmatpush.bf16.xpose.msra.mxu0 0
        %5747 = vmatpush.bf16.xpose.msra.mxu0 0
        %5748 = vmatpush.bf16.xpose.msra.mxu0 0
        %5749 = vmatpush.bf16.xpose.msra.mxu0 %v3234
        %5750 = vmatmul.bf16.gmra.mxu0 %v1763
        %v5751 = vpop.f32.mrf.mxu0
        %v5752 = vadd.f32 %v5739, %v5751
        %v5753 = vpop.f32.mrf.mxu0
        %5754 = vdwg.mxu0
        %5755 = vmatpush.bf16.xpose.msra.mxu0 0
        %5756 = vmatpush.bf16.xpose.msra.mxu0 0
        %5757 = vmatpush.bf16.xpose.msra.mxu0 0
        %5758 = vmatpush.bf16.xpose.msra.mxu0 0
        %5759 = vmatpush.bf16.xpose.msra.mxu0 0
        %5760 = vmatpush.bf16.xpose.msra.mxu0 0
        %5761 = vmatpush.bf16.xpose.msra.mxu0 0
        %5762 = vmatpush.bf16.xpose.msra.mxu0 %v3235
        %5763 = vmatmul.bf16.gmra.mxu0 %v1764
        %v5764 = vpop.f32.mrf.mxu0
        %v5765 = vadd.f32 %v5752, %v5764
        %v5766 = vpop.f32.mrf.mxu0
        %5767 = vdwg.mxu0
        %5768 = vmatpush.bf16.xpose.msra.mxu0 0
        %5769 = vmatpush.bf16.xpose.msra.mxu0 0
        %5770 = vmatpush.bf16.xpose.msra.mxu0 0
        %5771 = vmatpush.bf16.xpose.msra.mxu0 0
        %5772 = vmatpush.bf16.xpose.msra.mxu0 0
        %5773 = vmatpush.bf16.xpose.msra.mxu0 0
        %5774 = vmatpush.bf16.xpose.msra.mxu0 0
        %5775 = vmatpush.bf16.xpose.msra.mxu0 %v3236
        %5776 = vmatmul.bf16.gmra.mxu0 %v1765
        %v5777 = vpop.f32.mrf.mxu0
        %v5778 = vadd.f32 %v5765, %v5777
        %v5779 = vpop.f32.mrf.mxu0
        %5780 = vdwg.mxu0
        %5781 = vmatpush.bf16.xpose.msra.mxu0 0
        %5782 = vmatpush.bf16.xpose.msra.mxu0 0
        %5783 = vmatpush.bf16.xpose.msra.mxu0 0
        %5784 = vmatpush.bf16.xpose.msra.mxu0 0
        %5785 = vmatpush.bf16.xpose.msra.mxu0 0
        %5786 = vmatpush.bf16.xpose.msra.mxu0 0
        %5787 = vmatpush.bf16.xpose.msra.mxu0 0
        %5788 = vmatpush.bf16.xpose.msra.mxu0 %v3237
        %5789 = vmatmul.bf16.gmra.mxu0 %v1766
        %v5790 = vpop.f32.mrf.mxu0
        %v5791 = vadd.f32 %v5778, %v5790
        %v5792 = vpop.f32.mrf.mxu0
        %5793 = vdwg.mxu0
        %5794 = vmatpush.bf16.xpose.msra.mxu0 0
        %5795 = vmatpush.bf16.xpose.msra.mxu0 0
        %5796 = vmatpush.bf16.xpose.msra.mxu0 0
        %5797 = vmatpush.bf16.xpose.msra.mxu0 0
        %5798 = vmatpush.bf16.xpose.msra.mxu0 0
        %5799 = vmatpush.bf16.xpose.msra.mxu0 0
        %5800 = vmatpush.bf16.xpose.msra.mxu0 0
        %5801 = vmatpush.bf16.xpose.msra.mxu0 %v3238
        %5802 = vmatmul.bf16.gmra.mxu0 %v1767
        %v5803 = vpop.f32.mrf.mxu0
        %v5804 = vadd.f32 %v5791, %v5803
        %v5805 = vpop.f32.mrf.mxu0
        %5806 = vdwg.mxu0
        %5807 = vmatpush.bf16.xpose.msra.mxu0 0
        %5808 = vmatpush.bf16.xpose.msra.mxu0 0
        %5809 = vmatpush.bf16.xpose.msra.mxu0 0
        %5810 = vmatpush.bf16.xpose.msra.mxu0 0
        %5811 = vmatpush.bf16.xpose.msra.mxu0 0
        %5812 = vmatpush.bf16.xpose.msra.mxu0 0
        %5813 = vmatpush.bf16.xpose.msra.mxu0 0
        %5814 = vmatpush.bf16.xpose.msra.mxu0 %v3239
        %5815 = vmatmul.bf16.gmra.mxu0 %v1768
        %v5816 = vpop.f32.mrf.mxu0
        %v5817 = vadd.f32 %v5804, %v5816
        %v5818 = vpop.f32.mrf.mxu0
        %5819 = vdwg.mxu0
        %5820 = vmatpush.bf16.xpose.msra.mxu0 0
        %5821 = vmatpush.bf16.xpose.msra.mxu0 0
        %5822 = vmatpush.bf16.xpose.msra.mxu0 0
        %5823 = vmatpush.bf16.xpose.msra.mxu0 0
        %5824 = vmatpush.bf16.xpose.msra.mxu0 0
        %5825 = vmatpush.bf16.xpose.msra.mxu0 0
        %5826 = vmatpush.bf16.xpose.msra.mxu0 0
        %5827 = vmatpush.bf16.xpose.msra.mxu0 %v3240
        %5828 = vmatmul.bf16.gmra.mxu0 %v1769
        %v5829 = vpop.f32.mrf.mxu0
        %v5830 = vadd.f32 %v5817, %v5829
        %v5831 = vpop.f32.mrf.mxu0
        %5832 = vdwg.mxu0
        %5833 = vmatpush.bf16.xpose.msra.mxu0 0
        %5834 = vmatpush.bf16.xpose.msra.mxu0 0
        %5835 = vmatpush.bf16.xpose.msra.mxu0 0
        %5836 = vmatpush.bf16.xpose.msra.mxu0 0
        %5837 = vmatpush.bf16.xpose.msra.mxu0 0
        %5838 = vmatpush.bf16.xpose.msra.mxu0 0
        %5839 = vmatpush.bf16.xpose.msra.mxu0 0
        %5840 = vmatpush.bf16.xpose.msra.mxu0 %v3241
        %5841 = vmatmul.bf16.gmra.mxu0 %v1770
        %v5842 = vpop.f32.mrf.mxu0
        %v5843 = vadd.f32 %v5830, %v5842
        %v5844 = vpop.f32.mrf.mxu0
        %5845 = vdwg.mxu0
        %5846 = vmatpush.bf16.xpose.msra.mxu0 0
        %5847 = vmatpush.bf16.xpose.msra.mxu0 0
        %5848 = vmatpush.bf16.xpose.msra.mxu0 0
        %5849 = vmatpush.bf16.xpose.msra.mxu0 0
        %5850 = vmatpush.bf16.xpose.msra.mxu0 0
        %5851 = vmatpush.bf16.xpose.msra.mxu0 0
        %5852 = vmatpush.bf16.xpose.msra.mxu0 0
        %5853 = vmatpush.bf16.xpose.msra.mxu0 %v3242
        %5854 = vmatmul.bf16.gmra.mxu0 %v1771
        %v5855 = vpop.f32.mrf.mxu0
        %v5856 = vadd.f32 %v5843, %v5855
        %v5857 = vpop.f32.mrf.mxu0
        %5858 = vdwg.mxu0
        %5859 = vmatpush.bf16.xpose.msra.mxu0 0
        %5860 = vmatpush.bf16.xpose.msra.mxu0 0
        %5861 = vmatpush.bf16.xpose.msra.mxu0 0
        %5862 = vmatpush.bf16.xpose.msra.mxu0 0
        %5863 = vmatpush.bf16.xpose.msra.mxu0 0
        %5864 = vmatpush.bf16.xpose.msra.mxu0 0
        %5865 = vmatpush.bf16.xpose.msra.mxu0 0
        %5866 = vmatpush.bf16.xpose.msra.mxu0 %v3243
        %5867 = vmatmul.bf16.gmra.mxu0 %v1772
        %v5868 = vpop.f32.mrf.mxu0
        %v5869 = vadd.f32 %v5856, %v5868
        %v5870 = vpop.f32.mrf.mxu0
        %5871 = vdwg.mxu0
        %5872 = vmatpush.bf16.xpose.msra.mxu0 0
        %5873 = vmatpush.bf16.xpose.msra.mxu0 0
        %5874 = vmatpush.bf16.xpose.msra.mxu0 0
        %5875 = vmatpush.bf16.xpose.msra.mxu0 0
        %5876 = vmatpush.bf16.xpose.msra.mxu0 0
        %5877 = vmatpush.bf16.xpose.msra.mxu0 0
        %5878 = vmatpush.bf16.xpose.msra.mxu0 0
        %5879 = vmatpush.bf16.xpose.msra.mxu0 %v3244
        %5880 = vmatmul.bf16.gmra.mxu0 %v1773
        %v5881 = vpop.f32.mrf.mxu0
        %v5882 = vadd.f32 %v5869, %v5881
        %v5883 = vpop.f32.mrf.mxu0
        %5884 = vdwg.mxu0
        %5885 = vmatpush.bf16.xpose.msra.mxu0 0
        %5886 = vmatpush.bf16.xpose.msra.mxu0 0
        %5887 = vmatpush.bf16.xpose.msra.mxu0 0
        %5888 = vmatpush.bf16.xpose.msra.mxu0 0
        %5889 = vmatpush.bf16.xpose.msra.mxu0 0
        %5890 = vmatpush.bf16.xpose.msra.mxu0 0
        %5891 = vmatpush.bf16.xpose.msra.mxu0 0
        %5892 = vmatpush.bf16.xpose.msra.mxu0 %v3245
        %5893 = vmatmul.bf16.gmra.mxu0 %v1774
        %v5894 = vpop.f32.mrf.mxu0
        %v5895 = vadd.f32 %v5882, %v5894
        %v5896 = vpop.f32.mrf.mxu0
        %5897 = vdwg.mxu0
        %5898 = vmatpush.bf16.xpose.msra.mxu0 0
        %5899 = vmatpush.bf16.xpose.msra.mxu0 0
        %5900 = vmatpush.bf16.xpose.msra.mxu0 0
        %5901 = vmatpush.bf16.xpose.msra.mxu0 0
        %5902 = vmatpush.bf16.xpose.msra.mxu0 0
        %5903 = vmatpush.bf16.xpose.msra.mxu0 0
        %5904 = vmatpush.bf16.xpose.msra.mxu0 0
        %5905 = vmatpush.bf16.xpose.msra.mxu0 %v3246
        %5906 = vmatmul.bf16.gmra.mxu0 %v1775
        %v5907 = vpop.f32.mrf.mxu0
        %v5908 = vadd.f32 %v5895, %v5907
        %v5909 = vpop.f32.mrf.mxu0
        %5910 = vdwg.mxu0
        %5911 = vmatpush.bf16.xpose.msra.mxu0 0
        %5912 = vmatpush.bf16.xpose.msra.mxu0 0
        %5913 = vmatpush.bf16.xpose.msra.mxu0 0
        %5914 = vmatpush.bf16.xpose.msra.mxu0 0
        %5915 = vmatpush.bf16.xpose.msra.mxu0 0
        %5916 = vmatpush.bf16.xpose.msra.mxu0 0
        %5917 = vmatpush.bf16.xpose.msra.mxu0 0
        %5918 = vmatpush.bf16.xpose.msra.mxu0 %v3247
        %5919 = vmatmul.bf16.gmra.mxu0 %v1776
        %v5920 = vpop.f32.mrf.mxu0
        %v5921 = vadd.f32 %v5908, %v5920
        %v5922 = vpop.f32.mrf.mxu0
        %5923 = vdwg.mxu0
        %5924 = vmatpush.bf16.xpose.msra.mxu0 0
        %5925 = vmatpush.bf16.xpose.msra.mxu0 0
        %5926 = vmatpush.bf16.xpose.msra.mxu0 0
        %5927 = vmatpush.bf16.xpose.msra.mxu0 0
        %5928 = vmatpush.bf16.xpose.msra.mxu0 0
        %5929 = vmatpush.bf16.xpose.msra.mxu0 0
        %5930 = vmatpush.bf16.xpose.msra.mxu0 0
        %5931 = vmatpush.bf16.xpose.msra.mxu0 %v3248
        %5932 = vmatmul.bf16.gmra.mxu0 %v1777
        %v5933 = vpop.f32.mrf.mxu0
        %v5934 = vadd.f32 %v5921, %v5933
        %v5935 = vpop.f32.mrf.mxu0
        %5936 = vdwg.mxu0
        %5937 = vmatpush.bf16.xpose.msra.mxu0 0
        %5938 = vmatpush.bf16.xpose.msra.mxu0 0
        %5939 = vmatpush.bf16.xpose.msra.mxu0 0
        %5940 = vmatpush.bf16.xpose.msra.mxu0 0
        %5941 = vmatpush.bf16.xpose.msra.mxu0 0
        %5942 = vmatpush.bf16.xpose.msra.mxu0 0
        %5943 = vmatpush.bf16.xpose.msra.mxu0 0
        %5944 = vmatpush.bf16.xpose.msra.mxu0 %v3249
        %5945 = vmatmul.bf16.gmra.mxu0 %v1778
        %v5946 = vpop.f32.mrf.mxu0
        %v5947 = vadd.f32 %v5934, %v5946
        %v5948 = vpop.f32.mrf.mxu0
        %5949 = vdwg.mxu0
        %5950 = vmatpush.bf16.xpose.msra.mxu0 0
        %5951 = vmatpush.bf16.xpose.msra.mxu0 0
        %5952 = vmatpush.bf16.xpose.msra.mxu0 0
        %5953 = vmatpush.bf16.xpose.msra.mxu0 0
        %5954 = vmatpush.bf16.xpose.msra.mxu0 0
        %5955 = vmatpush.bf16.xpose.msra.mxu0 0
        %5956 = vmatpush.bf16.xpose.msra.mxu0 0
        %5957 = vmatpush.bf16.xpose.msra.mxu0 %v3250
        %5958 = vmatmul.bf16.gmra.mxu0 %v1779
        %v5959 = vpop.f32.mrf.mxu0
        %v5960 = vadd.f32 %v5947, %v5959
        %v5961 = vpop.f32.mrf.mxu0
        %5962 = vdwg.mxu0
        %5963 = vmatpush.bf16.xpose.msra.mxu0 0
        %5964 = vmatpush.bf16.xpose.msra.mxu0 0
        %5965 = vmatpush.bf16.xpose.msra.mxu0 0
        %5966 = vmatpush.bf16.xpose.msra.mxu0 0
        %5967 = vmatpush.bf16.xpose.msra.mxu0 0
        %5968 = vmatpush.bf16.xpose.msra.mxu0 0
        %5969 = vmatpush.bf16.xpose.msra.mxu0 0
        %5970 = vmatpush.bf16.xpose.msra.mxu0 %v3251
        %5971 = vmatmul.bf16.gmra.mxu0 %v1780
        %v5972 = vpop.f32.mrf.mxu0
        %v5973 = vadd.f32 %v5960, %v5972
        %v5974 = vpop.f32.mrf.mxu0
        %5975 = vdwg.mxu0
        %5976 = vmatpush.bf16.xpose.msra.mxu0 0
        %5977 = vmatpush.bf16.xpose.msra.mxu0 0
        %5978 = vmatpush.bf16.xpose.msra.mxu0 0
        %5979 = vmatpush.bf16.xpose.msra.mxu0 0
        %5980 = vmatpush.bf16.xpose.msra.mxu0 0
        %5981 = vmatpush.bf16.xpose.msra.mxu0 0
        %5982 = vmatpush.bf16.xpose.msra.mxu0 0
        %5983 = vmatpush.bf16.xpose.msra.mxu0 %v3252
        %5984 = vmatmul.bf16.gmra.mxu0 %v1781
        %v5985 = vpop.f32.mrf.mxu0
        %v5986 = vadd.f32 %v5973, %v5985
        %v5987 = vpop.f32.mrf.mxu0
        %5988 = vdwg.mxu0
        %5989 = vmatpush.bf16.xpose.msra.mxu0 0
        %5990 = vmatpush.bf16.xpose.msra.mxu0 0
        %5991 = vmatpush.bf16.xpose.msra.mxu0 0
        %5992 = vmatpush.bf16.xpose.msra.mxu0 0
        %5993 = vmatpush.bf16.xpose.msra.mxu0 0
        %5994 = vmatpush.bf16.xpose.msra.mxu0 0
        %5995 = vmatpush.bf16.xpose.msra.mxu0 0
        %5996 = vmatpush.bf16.xpose.msra.mxu0 %v3253
        %5997 = vmatmul.bf16.gmra.mxu0 %v1782
        %v5998 = vpop.f32.mrf.mxu0
        %v5999 = vadd.f32 %v5986, %v5998
        %v6000 = vpop.f32.mrf.mxu0
        %6001 = vdwg.mxu0
        %6002 = vmatpush.bf16.xpose.msra.mxu0 0
        %6003 = vmatpush.bf16.xpose.msra.mxu0 0
        %6004 = vmatpush.bf16.xpose.msra.mxu0 0
        %6005 = vmatpush.bf16.xpose.msra.mxu0 0
        %6006 = vmatpush.bf16.xpose.msra.mxu0 0
        %6007 = vmatpush.bf16.xpose.msra.mxu0 0
        %6008 = vmatpush.bf16.xpose.msra.mxu0 0
        %6009 = vmatpush.bf16.xpose.msra.mxu0 %v3254
        %6010 = vmatmul.bf16.gmra.mxu0 %v1783
        %v6011 = vpop.f32.mrf.mxu0
        %v6012 = vadd.f32 %v5999, %v6011
        %v6013 = vpop.f32.mrf.mxu0
        %6014 = vdwg.mxu0
        %6015 = vmatpush.bf16.xpose.msra.mxu0 0
        %6016 = vmatpush.bf16.xpose.msra.mxu0 0
        %6017 = vmatpush.bf16.xpose.msra.mxu0 0
        %6018 = vmatpush.bf16.xpose.msra.mxu0 0
        %6019 = vmatpush.bf16.xpose.msra.mxu0 0
        %6020 = vmatpush.bf16.xpose.msra.mxu0 0
        %6021 = vmatpush.bf16.xpose.msra.mxu0 0
        %6022 = vmatpush.bf16.xpose.msra.mxu0 %v3255
        %6023 = vmatmul.bf16.gmra.mxu0 %v1784
        %v6024 = vpop.f32.mrf.mxu0
        %v6025 = vadd.f32 %v6012, %v6024
        %v6026 = vpop.f32.mrf.mxu0
        %6027 = vdwg.mxu0
        %6028 = vmatpush.bf16.xpose.msra.mxu0 0
        %6029 = vmatpush.bf16.xpose.msra.mxu0 0
        %6030 = vmatpush.bf16.xpose.msra.mxu0 0
        %6031 = vmatpush.bf16.xpose.msra.mxu0 0
        %6032 = vmatpush.bf16.xpose.msra.mxu0 0
        %6033 = vmatpush.bf16.xpose.msra.mxu0 0
        %6034 = vmatpush.bf16.xpose.msra.mxu0 0
        %6035 = vmatpush.bf16.xpose.msra.mxu0 %v3256
        %6036 = vmatmul.bf16.gmra.mxu0 %v1785
        %v6037 = vpop.f32.mrf.mxu0
        %v6038 = vadd.f32 %v6025, %v6037
        %v6039 = vpop.f32.mrf.mxu0
        %6040 = vdwg.mxu0
        %6041 = vmatpush.bf16.xpose.msra.mxu0 0
        %6042 = vmatpush.bf16.xpose.msra.mxu0 0
        %6043 = vmatpush.bf16.xpose.msra.mxu0 0
        %6044 = vmatpush.bf16.xpose.msra.mxu0 0
        %6045 = vmatpush.bf16.xpose.msra.mxu0 0
        %6046 = vmatpush.bf16.xpose.msra.mxu0 0
        %6047 = vmatpush.bf16.xpose.msra.mxu0 0
        %6048 = vmatpush.bf16.xpose.msra.mxu0 %v3257
        %6049 = vmatmul.bf16.gmra.mxu0 %v1786
        %v6050 = vpop.f32.mrf.mxu0
        %v6051 = vadd.f32 %v6038, %v6050
        %v6052 = vpop.f32.mrf.mxu0
        %6053 = vdwg.mxu0
        %6054 = vmatpush.bf16.xpose.msra.mxu0 0
        %6055 = vmatpush.bf16.xpose.msra.mxu0 0
        %6056 = vmatpush.bf16.xpose.msra.mxu0 0
        %6057 = vmatpush.bf16.xpose.msra.mxu0 0
        %6058 = vmatpush.bf16.xpose.msra.mxu0 0
        %6059 = vmatpush.bf16.xpose.msra.mxu0 0
        %6060 = vmatpush.bf16.xpose.msra.mxu0 0
        %6061 = vmatpush.bf16.xpose.msra.mxu0 %v3258
        %6062 = vmatmul.bf16.gmra.mxu0 %v1787
        %v6063 = vpop.f32.mrf.mxu0
        %v6064 = vadd.f32 %v6051, %v6063
        %v6065 = vpop.f32.mrf.mxu0
        %6066 = vdwg.mxu0
        %6067 = vmatpush.bf16.xpose.msra.mxu0 0
        %6068 = vmatpush.bf16.xpose.msra.mxu0 0
        %6069 = vmatpush.bf16.xpose.msra.mxu0 0
        %6070 = vmatpush.bf16.xpose.msra.mxu0 0
        %6071 = vmatpush.bf16.xpose.msra.mxu0 0
        %6072 = vmatpush.bf16.xpose.msra.mxu0 0
        %6073 = vmatpush.bf16.xpose.msra.mxu0 0
        %6074 = vmatpush.bf16.xpose.msra.mxu0 %v3259
        %6075 = vmatmul.bf16.gmra.mxu0 %v1788
        %v6076 = vpop.f32.mrf.mxu0
        %v6077 = vadd.f32 %v6064, %v6076
        %v6078 = vpop.f32.mrf.mxu0
        %6079 = vdwg.mxu0
        %6080 = vmatpush.bf16.xpose.msra.mxu0 0
        %6081 = vmatpush.bf16.xpose.msra.mxu0 0
        %6082 = vmatpush.bf16.xpose.msra.mxu0 0
        %6083 = vmatpush.bf16.xpose.msra.mxu0 0
        %6084 = vmatpush.bf16.xpose.msra.mxu0 0
        %6085 = vmatpush.bf16.xpose.msra.mxu0 0
        %6086 = vmatpush.bf16.xpose.msra.mxu0 0
        %6087 = vmatpush.bf16.xpose.msra.mxu0 %v3260
        %6088 = vmatmul.bf16.gmra.mxu0 %v1789
        %v6089 = vpop.f32.mrf.mxu0
        %v6090 = vadd.f32 %v6077, %v6089
        %v6091 = vpop.f32.mrf.mxu0
        %6092 = vdwg.mxu0
        %6093 = vmatpush.bf16.xpose.msra.mxu0 0
        %6094 = vmatpush.bf16.xpose.msra.mxu0 0
        %6095 = vmatpush.bf16.xpose.msra.mxu0 0
        %6096 = vmatpush.bf16.xpose.msra.mxu0 0
        %6097 = vmatpush.bf16.xpose.msra.mxu0 0
        %6098 = vmatpush.bf16.xpose.msra.mxu0 0
        %6099 = vmatpush.bf16.xpose.msra.mxu0 0
        %6100 = vmatpush.bf16.xpose.msra.mxu0 %v3261
        %6101 = vmatmul.bf16.gmra.mxu0 %v1790
        %v6102 = vpop.f32.mrf.mxu0
        %v6103 = vadd.f32 %v6090, %v6102
        %v6104 = vpop.f32.mrf.mxu0
        %6105 = vdwg.mxu0
        %6106 = vmatpush.bf16.xpose.msra.mxu0 0
        %6107 = vmatpush.bf16.xpose.msra.mxu0 0
        %6108 = vmatpush.bf16.xpose.msra.mxu0 0
        %6109 = vmatpush.bf16.xpose.msra.mxu0 0
        %6110 = vmatpush.bf16.xpose.msra.mxu0 0
        %6111 = vmatpush.bf16.xpose.msra.mxu0 0
        %6112 = vmatpush.bf16.xpose.msra.mxu0 0
        %6113 = vmatpush.bf16.xpose.msra.mxu0 %v3262
        %6114 = vmatmul.bf16.gmra.mxu0 %v1791
        %v6115 = vpop.f32.mrf.mxu0
        %v6116 = vadd.f32 %v6103, %v6115
        %v6117 = vpop.f32.mrf.mxu0
        %6118 = vdwg.mxu0
        %6119 = vmatpush.bf16.xpose.msra.mxu0 0
        %6120 = vmatpush.bf16.xpose.msra.mxu0 0
        %6121 = vmatpush.bf16.xpose.msra.mxu0 0
        %6122 = vmatpush.bf16.xpose.msra.mxu0 0
        %6123 = vmatpush.bf16.xpose.msra.mxu0 0
        %6124 = vmatpush.bf16.xpose.msra.mxu0 0
        %6125 = vmatpush.bf16.xpose.msra.mxu0 0
        %6126 = vmatpush.bf16.xpose.msra.mxu0 %v3263
        %6127 = vmatmul.bf16.gmra.mxu0 %v1792
        %v6128 = vpop.f32.mrf.mxu0
        %v6129 = vadd.f32 %v6116, %v6128
        %v6130 = vpop.f32.mrf.mxu0
        %6131 = vdwg.mxu0
        %6132 = vmatpush.bf16.xpose.msra.mxu0 0
        %6133 = vmatpush.bf16.xpose.msra.mxu0 0
        %6134 = vmatpush.bf16.xpose.msra.mxu0 0
        %6135 = vmatpush.bf16.xpose.msra.mxu0 0
        %6136 = vmatpush.bf16.xpose.msra.mxu0 0
        %6137 = vmatpush.bf16.xpose.msra.mxu0 0
        %6138 = vmatpush.bf16.xpose.msra.mxu0 0
        %6139 = vmatpush.bf16.xpose.msra.mxu0 %v3264
        %6140 = vmatmul.bf16.gmra.mxu0 %v1793
        %v6141 = vpop.f32.mrf.mxu0
        %v6142 = vadd.f32 %v6129, %v6141
        %v6143 = vpop.f32.mrf.mxu0
        %6144 = vdwg.mxu0
        %6145 = vmatpush.bf16.xpose.msra.mxu0 0
        %6146 = vmatpush.bf16.xpose.msra.mxu0 0
        %6147 = vmatpush.bf16.xpose.msra.mxu0 0
        %6148 = vmatpush.bf16.xpose.msra.mxu0 0
        %6149 = vmatpush.bf16.xpose.msra.mxu0 0
        %6150 = vmatpush.bf16.xpose.msra.mxu0 0
        %6151 = vmatpush.bf16.xpose.msra.mxu0 0
        %6152 = vmatpush.bf16.xpose.msra.mxu0 %v3265
        %6153 = vmatmul.bf16.gmra.mxu0 %v1794
        %v6154 = vpop.f32.mrf.mxu0
        %v6155 = vadd.f32 %v6142, %v6154
        %v6156 = vpop.f32.mrf.mxu0
        %6157 = vdwg.mxu0
        %6158 = vmatpush.bf16.xpose.msra.mxu0 0
        %6159 = vmatpush.bf16.xpose.msra.mxu0 0
        %6160 = vmatpush.bf16.xpose.msra.mxu0 0
        %6161 = vmatpush.bf16.xpose.msra.mxu0 0
        %6162 = vmatpush.bf16.xpose.msra.mxu0 0
        %6163 = vmatpush.bf16.xpose.msra.mxu0 0
        %6164 = vmatpush.bf16.xpose.msra.mxu0 0
        %6165 = vmatpush.bf16.xpose.msra.mxu0 %v3266
        %6166 = vmatmul.bf16.gmra.mxu0 %v1795
        %v6167 = vpop.f32.mrf.mxu0
        %v6168 = vadd.f32 %v6155, %v6167
        %v6169 = vpop.f32.mrf.mxu0
        %6170 = vdwg.mxu0
        %6171 = vmatpush.bf16.xpose.msra.mxu0 0
        %6172 = vmatpush.bf16.xpose.msra.mxu0 0
        %6173 = vmatpush.bf16.xpose.msra.mxu0 0
        %6174 = vmatpush.bf16.xpose.msra.mxu0 0
        %6175 = vmatpush.bf16.xpose.msra.mxu0 0
        %6176 = vmatpush.bf16.xpose.msra.mxu0 0
        %6177 = vmatpush.bf16.xpose.msra.mxu0 0
        %6178 = vmatpush.bf16.xpose.msra.mxu0 %v3267
        %6179 = vmatmul.bf16.gmra.mxu0 %v1796
        %v6180 = vpop.f32.mrf.mxu0
        %v6181 = vadd.f32 %v6168, %v6180
        %v6182 = vpop.f32.mrf.mxu0
        %6183 = vdwg.mxu0
        %6184 = vmatpush.bf16.xpose.msra.mxu0 0
        %6185 = vmatpush.bf16.xpose.msra.mxu0 0
        %6186 = vmatpush.bf16.xpose.msra.mxu0 0
        %6187 = vmatpush.bf16.xpose.msra.mxu0 0
        %6188 = vmatpush.bf16.xpose.msra.mxu0 0
        %6189 = vmatpush.bf16.xpose.msra.mxu0 0
        %6190 = vmatpush.bf16.xpose.msra.mxu0 0
        %6191 = vmatpush.bf16.xpose.msra.mxu0 %v3268
        %6192 = vmatmul.bf16.gmra.mxu0 %v1797
        %v6193 = vpop.f32.mrf.mxu0
        %v6194 = vadd.f32 %v6181, %v6193
        %v6195 = vpop.f32.mrf.mxu0
        %6196 = vdwg.mxu0
        %6197 = vmatpush.bf16.xpose.msra.mxu0 0
        %6198 = vmatpush.bf16.xpose.msra.mxu0 0
        %6199 = vmatpush.bf16.xpose.msra.mxu0 0
        %6200 = vmatpush.bf16.xpose.msra.mxu0 0
        %6201 = vmatpush.bf16.xpose.msra.mxu0 0
        %6202 = vmatpush.bf16.xpose.msra.mxu0 0
        %6203 = vmatpush.bf16.xpose.msra.mxu0 0
        %6204 = vmatpush.bf16.xpose.msra.mxu0 %v3269
        %6205 = vmatmul.bf16.gmra.mxu0 %v1798
        %v6206 = vpop.f32.mrf.mxu0
        %v6207 = vadd.f32 %v6194, %v6206
        %v6208 = vpop.f32.mrf.mxu0
        %6209 = vdwg.mxu0
        %6210 = vmatpush.bf16.xpose.msra.mxu0 0
        %6211 = vmatpush.bf16.xpose.msra.mxu0 0
        %6212 = vmatpush.bf16.xpose.msra.mxu0 0
        %6213 = vmatpush.bf16.xpose.msra.mxu0 0
        %6214 = vmatpush.bf16.xpose.msra.mxu0 0
        %6215 = vmatpush.bf16.xpose.msra.mxu0 0
        %6216 = vmatpush.bf16.xpose.msra.mxu0 0
        %6217 = vmatpush.bf16.xpose.msra.mxu0 %v3270
        %6218 = vmatmul.bf16.gmra.mxu0 %v1799
        %v6219 = vpop.f32.mrf.mxu0
        %v6220 = vadd.f32 %v6207, %v6219
        %v6221 = vpop.f32.mrf.mxu0
        %6222 = vdwg.mxu0
        %6223 = vmatpush.bf16.xpose.msra.mxu0 0
        %6224 = vmatpush.bf16.xpose.msra.mxu0 0
        %6225 = vmatpush.bf16.xpose.msra.mxu0 0
        %6226 = vmatpush.bf16.xpose.msra.mxu0 0
        %6227 = vmatpush.bf16.xpose.msra.mxu0 0
        %6228 = vmatpush.bf16.xpose.msra.mxu0 0
        %6229 = vmatpush.bf16.xpose.msra.mxu0 0
        %6230 = vmatpush.bf16.xpose.msra.mxu0 %v3271
        %6231 = vmatmul.bf16.gmra.mxu0 %v1800
        %v6232 = vpop.f32.mrf.mxu0
        %v6233 = vadd.f32 %v6220, %v6232
        %v6234 = vpop.f32.mrf.mxu0
        %6235 = vdwg.mxu0
        %6236 = vmatpush.bf16.xpose.msra.mxu0 0
        %6237 = vmatpush.bf16.xpose.msra.mxu0 0
        %6238 = vmatpush.bf16.xpose.msra.mxu0 0
        %6239 = vmatpush.bf16.xpose.msra.mxu0 0
        %6240 = vmatpush.bf16.xpose.msra.mxu0 0
        %6241 = vmatpush.bf16.xpose.msra.mxu0 0
        %6242 = vmatpush.bf16.xpose.msra.mxu0 0
        %6243 = vmatpush.bf16.xpose.msra.mxu0 %v3272
        %6244 = vmatmul.bf16.gmra.mxu0 %v1801
        %v6245 = vpop.f32.mrf.mxu0
        %v6246 = vadd.f32 %v6233, %v6245
        %v6247 = vpop.f32.mrf.mxu0
        %6248 = vdwg.mxu0
        %6249 = vmatpush.bf16.xpose.msra.mxu0 0
        %6250 = vmatpush.bf16.xpose.msra.mxu0 0
        %6251 = vmatpush.bf16.xpose.msra.mxu0 0
        %6252 = vmatpush.bf16.xpose.msra.mxu0 0
        %6253 = vmatpush.bf16.xpose.msra.mxu0 0
        %6254 = vmatpush.bf16.xpose.msra.mxu0 0
        %6255 = vmatpush.bf16.xpose.msra.mxu0 0
        %6256 = vmatpush.bf16.xpose.msra.mxu0 %v3273
        %6257 = vmatmul.bf16.gmra.mxu0 %v1802
        %v6258 = vpop.f32.mrf.mxu0
        %v6259 = vadd.f32 %v6246, %v6258
        %v6260 = vpop.f32.mrf.mxu0
        %6261 = vdwg.mxu0
        %6262 = vmatpush.bf16.xpose.msra.mxu0 0
        %6263 = vmatpush.bf16.xpose.msra.mxu0 0
        %6264 = vmatpush.bf16.xpose.msra.mxu0 0
        %6265 = vmatpush.bf16.xpose.msra.mxu0 0
        %6266 = vmatpush.bf16.xpose.msra.mxu0 0
        %6267 = vmatpush.bf16.xpose.msra.mxu0 0
        %6268 = vmatpush.bf16.xpose.msra.mxu0 0
        %6269 = vmatpush.bf16.xpose.msra.mxu0 %v3274
        %6270 = vmatmul.bf16.gmra.mxu0 %v1803
        %v6271 = vpop.f32.mrf.mxu0
        %v6272 = vadd.f32 %v6259, %v6271
        %v6273 = vpop.f32.mrf.mxu0
        %6274 = vdwg.mxu0
        %6275 = vmatpush.bf16.xpose.msra.mxu0 0
        %6276 = vmatpush.bf16.xpose.msra.mxu0 0
        %6277 = vmatpush.bf16.xpose.msra.mxu0 0
        %6278 = vmatpush.bf16.xpose.msra.mxu0 0
        %6279 = vmatpush.bf16.xpose.msra.mxu0 0
        %6280 = vmatpush.bf16.xpose.msra.mxu0 0
        %6281 = vmatpush.bf16.xpose.msra.mxu0 0
        %6282 = vmatpush.bf16.xpose.msra.mxu0 %v3275
        %6283 = vmatmul.bf16.gmra.mxu0 %v1804
        %v6284 = vpop.f32.mrf.mxu0
        %v6285 = vadd.f32 %v6272, %v6284
        %v6286 = vpop.f32.mrf.mxu0
        %6287 = vdwg.mxu0
        %6288 = vmatpush.bf16.xpose.msra.mxu0 0
        %6289 = vmatpush.bf16.xpose.msra.mxu0 0
        %6290 = vmatpush.bf16.xpose.msra.mxu0 0
        %6291 = vmatpush.bf16.xpose.msra.mxu0 0
        %6292 = vmatpush.bf16.xpose.msra.mxu0 0
        %6293 = vmatpush.bf16.xpose.msra.mxu0 0
        %6294 = vmatpush.bf16.xpose.msra.mxu0 0
        %6295 = vmatpush.bf16.xpose.msra.mxu0 %v3276
        %6296 = vmatmul.bf16.gmra.mxu0 %v1805
        %v6297 = vpop.f32.mrf.mxu0
        %v6298 = vadd.f32 %v6285, %v6297
        %v6299 = vpop.f32.mrf.mxu0
        %6300 = vdwg.mxu0
        %6301 = vmatpush.bf16.xpose.msra.mxu0 0
        %6302 = vmatpush.bf16.xpose.msra.mxu0 0
        %6303 = vmatpush.bf16.xpose.msra.mxu0 0
        %6304 = vmatpush.bf16.xpose.msra.mxu0 0
        %6305 = vmatpush.bf16.xpose.msra.mxu0 0
        %6306 = vmatpush.bf16.xpose.msra.mxu0 0
        %6307 = vmatpush.bf16.xpose.msra.mxu0 0
        %6308 = vmatpush.bf16.xpose.msra.mxu0 %v3277
        %6309 = vmatmul.bf16.gmra.mxu0 %v1806
        %v6310 = vpop.f32.mrf.mxu0
        %v6311 = vadd.f32 %v6298, %v6310
        %v6312 = vpop.f32.mrf.mxu0
        %6313 = vdwg.mxu0
        %6314 = vmatpush.bf16.xpose.msra.mxu0 0
        %6315 = vmatpush.bf16.xpose.msra.mxu0 0
        %6316 = vmatpush.bf16.xpose.msra.mxu0 0
        %6317 = vmatpush.bf16.xpose.msra.mxu0 0
        %6318 = vmatpush.bf16.xpose.msra.mxu0 0
        %6319 = vmatpush.bf16.xpose.msra.mxu0 0
        %6320 = vmatpush.bf16.xpose.msra.mxu0 0
        %6321 = vmatpush.bf16.xpose.msra.mxu0 %v3278
        %6322 = vmatmul.bf16.gmra.mxu0 %v1807
        %v6323 = vpop.f32.mrf.mxu0
        %v6324 = vadd.f32 %v6311, %v6323
        %v6325 = vpop.f32.mrf.mxu0
        %6326 = vdwg.mxu0
        %6327 = vmatpush.bf16.xpose.msra.mxu0 0
        %6328 = vmatpush.bf16.xpose.msra.mxu0 0
        %6329 = vmatpush.bf16.xpose.msra.mxu0 0
        %6330 = vmatpush.bf16.xpose.msra.mxu0 0
        %6331 = vmatpush.bf16.xpose.msra.mxu0 0
        %6332 = vmatpush.bf16.xpose.msra.mxu0 0
        %6333 = vmatpush.bf16.xpose.msra.mxu0 0
        %6334 = vmatpush.bf16.xpose.msra.mxu0 %v3279
        %6335 = vmatmul.bf16.gmra.mxu0 %v1808
        %v6336 = vpop.f32.mrf.mxu0
        %v6337 = vadd.f32 %v6324, %v6336
        %v6338 = vpop.f32.mrf.mxu0
        %6339 = vdwg.mxu0
        %6340 = vmatpush.bf16.xpose.msra.mxu0 0
        %6341 = vmatpush.bf16.xpose.msra.mxu0 0
        %6342 = vmatpush.bf16.xpose.msra.mxu0 0
        %6343 = vmatpush.bf16.xpose.msra.mxu0 0
        %6344 = vmatpush.bf16.xpose.msra.mxu0 0
        %6345 = vmatpush.bf16.xpose.msra.mxu0 0
        %6346 = vmatpush.bf16.xpose.msra.mxu0 0
        %6347 = vmatpush.bf16.xpose.msra.mxu0 %v3280
        %6348 = vmatmul.bf16.gmra.mxu0 %v1809
        %v6349 = vpop.f32.mrf.mxu0
        %v6350 = vadd.f32 %v6337, %v6349
        %v6351 = vpop.f32.mrf.mxu0
        %6352 = vdwg.mxu0
        %6353 = vmatpush.bf16.xpose.msra.mxu0 0
        %6354 = vmatpush.bf16.xpose.msra.mxu0 0
        %6355 = vmatpush.bf16.xpose.msra.mxu0 0
        %6356 = vmatpush.bf16.xpose.msra.mxu0 0
        %6357 = vmatpush.bf16.xpose.msra.mxu0 0
        %6358 = vmatpush.bf16.xpose.msra.mxu0 0
        %6359 = vmatpush.bf16.xpose.msra.mxu0 0
        %6360 = vmatpush.bf16.xpose.msra.mxu0 %v3281
        %6361 = vmatmul.bf16.gmra.mxu0 %v1810
        %v6362 = vpop.f32.mrf.mxu0
        %v6363 = vadd.f32 %v6350, %v6362
        %v6364 = vpop.f32.mrf.mxu0
        %6365 = vdwg.mxu0
        %6366 = vmatpush.bf16.xpose.msra.mxu0 0
        %6367 = vmatpush.bf16.xpose.msra.mxu0 0
        %6368 = vmatpush.bf16.xpose.msra.mxu0 0
        %6369 = vmatpush.bf16.xpose.msra.mxu0 0
        %6370 = vmatpush.bf16.xpose.msra.mxu0 0
        %6371 = vmatpush.bf16.xpose.msra.mxu0 0
        %6372 = vmatpush.bf16.xpose.msra.mxu0 0
        %6373 = vmatpush.bf16.xpose.msra.mxu0 %v3282
        %6374 = vmatmul.bf16.gmra.mxu0 %v1811
        %v6375 = vpop.f32.mrf.mxu0
        %v6376 = vadd.f32 %v6363, %v6375
        %v6377 = vpop.f32.mrf.mxu0
        %6378 = vdwg.mxu0
        %6379 = vmatpush.bf16.xpose.msra.mxu0 0
        %6380 = vmatpush.bf16.xpose.msra.mxu0 0
        %6381 = vmatpush.bf16.xpose.msra.mxu0 0
        %6382 = vmatpush.bf16.xpose.msra.mxu0 0
        %6383 = vmatpush.bf16.xpose.msra.mxu0 0
        %6384 = vmatpush.bf16.xpose.msra.mxu0 0
        %6385 = vmatpush.bf16.xpose.msra.mxu0 0
        %6386 = vmatpush.bf16.xpose.msra.mxu0 %v3283
        %6387 = vmatmul.bf16.gmra.mxu0 %v1812
        %v6388 = vpop.f32.mrf.mxu0
        %v6389 = vadd.f32 %v6376, %v6388
        %v6390 = vpop.f32.mrf.mxu0
        %6391 = vdwg.mxu0
        %6392 = vmatpush.bf16.xpose.msra.mxu0 0
        %6393 = vmatpush.bf16.xpose.msra.mxu0 0
        %6394 = vmatpush.bf16.xpose.msra.mxu0 0
        %6395 = vmatpush.bf16.xpose.msra.mxu0 0
        %6396 = vmatpush.bf16.xpose.msra.mxu0 0
        %6397 = vmatpush.bf16.xpose.msra.mxu0 0
        %6398 = vmatpush.bf16.xpose.msra.mxu0 0
        %6399 = vmatpush.bf16.xpose.msra.mxu0 %v3284
        %6400 = vmatmul.bf16.gmra.mxu0 %v1813
        %v6401 = vpop.f32.mrf.mxu0
        %v6402 = vadd.f32 %v6389, %v6401
        %v6403 = vpop.f32.mrf.mxu0
        %6404 = vdwg.mxu0
        %6405 = vmatpush.bf16.xpose.msra.mxu0 0
        %6406 = vmatpush.bf16.xpose.msra.mxu0 0
        %6407 = vmatpush.bf16.xpose.msra.mxu0 0
        %6408 = vmatpush.bf16.xpose.msra.mxu0 0
        %6409 = vmatpush.bf16.xpose.msra.mxu0 0
        %6410 = vmatpush.bf16.xpose.msra.mxu0 0
        %6411 = vmatpush.bf16.xpose.msra.mxu0 0
        %6412 = vmatpush.bf16.xpose.msra.mxu0 %v3285
        %6413 = vmatmul.bf16.gmra.mxu0 %v1814
        %v6414 = vpop.f32.mrf.mxu0
        %v6415 = vadd.f32 %v6402, %v6414
        %v6416 = vpop.f32.mrf.mxu0
        %6417 = vdwg.mxu0
        %6418 = vmatpush.bf16.xpose.msra.mxu0 0
        %6419 = vmatpush.bf16.xpose.msra.mxu0 0
        %6420 = vmatpush.bf16.xpose.msra.mxu0 0
        %6421 = vmatpush.bf16.xpose.msra.mxu0 0
        %6422 = vmatpush.bf16.xpose.msra.mxu0 0
        %6423 = vmatpush.bf16.xpose.msra.mxu0 0
        %6424 = vmatpush.bf16.xpose.msra.mxu0 0
        %6425 = vmatpush.bf16.xpose.msra.mxu0 %v3286
        %6426 = vmatmul.bf16.gmra.mxu0 %v1815
        %v6427 = vpop.f32.mrf.mxu0
        %v6428 = vadd.f32 %v6415, %v6427
        %v6429 = vpop.f32.mrf.mxu0
        %6430 = vdwg.mxu0
        %6431 = vmatpush.bf16.xpose.msra.mxu0 0
        %6432 = vmatpush.bf16.xpose.msra.mxu0 0
        %6433 = vmatpush.bf16.xpose.msra.mxu0 0
        %6434 = vmatpush.bf16.xpose.msra.mxu0 0
        %6435 = vmatpush.bf16.xpose.msra.mxu0 0
        %6436 = vmatpush.bf16.xpose.msra.mxu0 0
        %6437 = vmatpush.bf16.xpose.msra.mxu0 0
        %6438 = vmatpush.bf16.xpose.msra.mxu0 %v3287
        %6439 = vmatmul.bf16.gmra.mxu0 %v1816
        %v6440 = vpop.f32.mrf.mxu0
        %v6441 = vadd.f32 %v6428, %v6440
        %v6442 = vpop.f32.mrf.mxu0
        %6443 = vdwg.mxu0
        %6444 = vmatpush.bf16.xpose.msra.mxu0 0
        %6445 = vmatpush.bf16.xpose.msra.mxu0 0
        %6446 = vmatpush.bf16.xpose.msra.mxu0 0
        %6447 = vmatpush.bf16.xpose.msra.mxu0 0
        %6448 = vmatpush.bf16.xpose.msra.mxu0 0
        %6449 = vmatpush.bf16.xpose.msra.mxu0 0
        %6450 = vmatpush.bf16.xpose.msra.mxu0 0
        %6451 = vmatpush.bf16.xpose.msra.mxu0 %v3288
        %6452 = vmatmul.bf16.gmra.mxu0 %v1817
        %v6453 = vpop.f32.mrf.mxu0
        %v6454 = vadd.f32 %v6441, %v6453
        %v6455 = vpop.f32.mrf.mxu0
        %6456 = vdwg.mxu0
        %6457 = vmatpush.bf16.xpose.msra.mxu0 0
        %6458 = vmatpush.bf16.xpose.msra.mxu0 0
        %6459 = vmatpush.bf16.xpose.msra.mxu0 0
        %6460 = vmatpush.bf16.xpose.msra.mxu0 0
        %6461 = vmatpush.bf16.xpose.msra.mxu0 0
        %6462 = vmatpush.bf16.xpose.msra.mxu0 0
        %6463 = vmatpush.bf16.xpose.msra.mxu0 0
        %6464 = vmatpush.bf16.xpose.msra.mxu0 %v3289
        %6465 = vmatmul.bf16.gmra.mxu0 %v1818
        %v6466 = vpop.f32.mrf.mxu0
        %v6467 = vadd.f32 %v6454, %v6466
        %v6468 = vpop.f32.mrf.mxu0
        %6469 = vdwg.mxu0
        %6470 = vmatpush.bf16.xpose.msra.mxu0 0
        %6471 = vmatpush.bf16.xpose.msra.mxu0 0
        %6472 = vmatpush.bf16.xpose.msra.mxu0 0
        %6473 = vmatpush.bf16.xpose.msra.mxu0 0
        %6474 = vmatpush.bf16.xpose.msra.mxu0 0
        %6475 = vmatpush.bf16.xpose.msra.mxu0 0
        %6476 = vmatpush.bf16.xpose.msra.mxu0 0
        %6477 = vmatpush.bf16.xpose.msra.mxu0 %v3290
        %6478 = vmatmul.bf16.gmra.mxu0 %v1819
        %v6479 = vpop.f32.mrf.mxu0
        %v6480 = vadd.f32 %v6467, %v6479
        %v6481 = vpop.f32.mrf.mxu0
        %6482 = vdwg.mxu0
        %6483 = vmatpush.bf16.xpose.msra.mxu0 0
        %6484 = vmatpush.bf16.xpose.msra.mxu0 0
        %6485 = vmatpush.bf16.xpose.msra.mxu0 0
        %6486 = vmatpush.bf16.xpose.msra.mxu0 0
        %6487 = vmatpush.bf16.xpose.msra.mxu0 0
        %6488 = vmatpush.bf16.xpose.msra.mxu0 0
        %6489 = vmatpush.bf16.xpose.msra.mxu0 0
        %6490 = vmatpush.bf16.xpose.msra.mxu0 %v3291
        %6491 = vmatmul.bf16.gmra.mxu0 %v1820
        %v6492 = vpop.f32.mrf.mxu0
        %v6493 = vadd.f32 %v6480, %v6492
        %v6494 = vpop.f32.mrf.mxu0
        %6495 = vdwg.mxu0
        %6496 = vmatpush.bf16.xpose.msra.mxu0 0
        %6497 = vmatpush.bf16.xpose.msra.mxu0 0
        %6498 = vmatpush.bf16.xpose.msra.mxu0 0
        %6499 = vmatpush.bf16.xpose.msra.mxu0 0
        %6500 = vmatpush.bf16.xpose.msra.mxu0 0
        %6501 = vmatpush.bf16.xpose.msra.mxu0 0
        %6502 = vmatpush.bf16.xpose.msra.mxu0 0
        %6503 = vmatpush.bf16.xpose.msra.mxu0 %v3292
        %6504 = vmatmul.bf16.gmra.mxu0 %v1821
        %v6505 = vpop.f32.mrf.mxu0
        %v6506 = vadd.f32 %v6493, %v6505
        %v6507 = vpop.f32.mrf.mxu0
        %6508 = vdwg.mxu0
        %6509 = vmatpush.bf16.xpose.msra.mxu0 0
        %6510 = vmatpush.bf16.xpose.msra.mxu0 0
        %6511 = vmatpush.bf16.xpose.msra.mxu0 0
        %6512 = vmatpush.bf16.xpose.msra.mxu0 0
        %6513 = vmatpush.bf16.xpose.msra.mxu0 0
        %6514 = vmatpush.bf16.xpose.msra.mxu0 0
        %6515 = vmatpush.bf16.xpose.msra.mxu0 0
        %6516 = vmatpush.bf16.xpose.msra.mxu0 %v3293
        %6517 = vmatmul.bf16.gmra.mxu0 %v1822
        %v6518 = vpop.f32.mrf.mxu0
        %v6519 = vadd.f32 %v6506, %v6518
        %v6520 = vpop.f32.mrf.mxu0
        %6521 = vdwg.mxu0
        %6522 = vmatpush.bf16.xpose.msra.mxu0 0
        %6523 = vmatpush.bf16.xpose.msra.mxu0 0
        %6524 = vmatpush.bf16.xpose.msra.mxu0 0
        %6525 = vmatpush.bf16.xpose.msra.mxu0 0
        %6526 = vmatpush.bf16.xpose.msra.mxu0 0
        %6527 = vmatpush.bf16.xpose.msra.mxu0 0
        %6528 = vmatpush.bf16.xpose.msra.mxu0 0
        %6529 = vmatpush.bf16.xpose.msra.mxu0 %v3294
        %6530 = vmatmul.bf16.gmra.mxu0 %v1823
        %v6531 = vpop.f32.mrf.mxu0
        %v6532 = vadd.f32 %v6519, %v6531
        %v6533 = vpop.f32.mrf.mxu0
        %6534 = vdwg.mxu0
        %6535 = vmatpush.bf16.xpose.msra.mxu0 0
        %6536 = vmatpush.bf16.xpose.msra.mxu0 0
        %6537 = vmatpush.bf16.xpose.msra.mxu0 0
        %6538 = vmatpush.bf16.xpose.msra.mxu0 0
        %6539 = vmatpush.bf16.xpose.msra.mxu0 0
        %6540 = vmatpush.bf16.xpose.msra.mxu0 0
        %6541 = vmatpush.bf16.xpose.msra.mxu0 0
        %6542 = vmatpush.bf16.xpose.msra.mxu0 %v3295
        %6543 = vmatmul.bf16.gmra.mxu0 %v1824
        %v6544 = vpop.f32.mrf.mxu0
        %v6545 = vadd.f32 %v6532, %v6544
        %v6546 = vpop.f32.mrf.mxu0
        %6547 = vdwg.mxu0
        %6548 = vmatpush.bf16.xpose.msra.mxu0 0
        %6549 = vmatpush.bf16.xpose.msra.mxu0 0
        %6550 = vmatpush.bf16.xpose.msra.mxu0 0
        %6551 = vmatpush.bf16.xpose.msra.mxu0 0
        %6552 = vmatpush.bf16.xpose.msra.mxu0 0
        %6553 = vmatpush.bf16.xpose.msra.mxu0 0
        %6554 = vmatpush.bf16.xpose.msra.mxu0 0
        %6555 = vmatpush.bf16.xpose.msra.mxu0 %v3296
        %6556 = vmatmul.bf16.gmra.mxu0 %v1825
        %v6557 = vpop.f32.mrf.mxu0
        %v6558 = vadd.f32 %v6545, %v6557
        %v6559 = vpop.f32.mrf.mxu0
        %6560 = vdwg.mxu0
        %6561 = vmatpush.bf16.xpose.msra.mxu0 0
        %6562 = vmatpush.bf16.xpose.msra.mxu0 0
        %6563 = vmatpush.bf16.xpose.msra.mxu0 0
        %6564 = vmatpush.bf16.xpose.msra.mxu0 0
        %6565 = vmatpush.bf16.xpose.msra.mxu0 0
        %6566 = vmatpush.bf16.xpose.msra.mxu0 0
        %6567 = vmatpush.bf16.xpose.msra.mxu0 0
        %6568 = vmatpush.bf16.xpose.msra.mxu0 %v3297
        %6569 = vmatmul.bf16.gmra.mxu0 %v1826
        %v6570 = vpop.f32.mrf.mxu0
        %v6571 = vadd.f32 %v6558, %v6570
        %v6572 = vpop.f32.mrf.mxu0
        %6573 = vdwg.mxu0
        %6574 = vmatpush.bf16.xpose.msra.mxu0 0
        %6575 = vmatpush.bf16.xpose.msra.mxu0 0
        %6576 = vmatpush.bf16.xpose.msra.mxu0 0
        %6577 = vmatpush.bf16.xpose.msra.mxu0 0
        %6578 = vmatpush.bf16.xpose.msra.mxu0 0
        %6579 = vmatpush.bf16.xpose.msra.mxu0 0
        %6580 = vmatpush.bf16.xpose.msra.mxu0 0
        %6581 = vmatpush.bf16.xpose.msra.mxu0 %v3298
        %6582 = vmatmul.bf16.gmra.mxu0 %v1827
        %v6583 = vpop.f32.mrf.mxu0
        %v6584 = vadd.f32 %v6571, %v6583
        %v6585 = vpop.f32.mrf.mxu0
        %6586 = vdwg.mxu0
        %6587 = vmatpush.bf16.xpose.msra.mxu0 0
        %6588 = vmatpush.bf16.xpose.msra.mxu0 0
        %6589 = vmatpush.bf16.xpose.msra.mxu0 0
        %6590 = vmatpush.bf16.xpose.msra.mxu0 0
        %6591 = vmatpush.bf16.xpose.msra.mxu0 0
        %6592 = vmatpush.bf16.xpose.msra.mxu0 0
        %6593 = vmatpush.bf16.xpose.msra.mxu0 0
        %6594 = vmatpush.bf16.xpose.msra.mxu0 %v3299
        %6595 = vmatmul.bf16.gmra.mxu0 %v1828
        %v6596 = vpop.f32.mrf.mxu0
        %v6597 = vadd.f32 %v6584, %v6596
        %v6598 = vpop.f32.mrf.mxu0
        %6599 = vdwg.mxu0
        %6600 = vmatpush.bf16.xpose.msra.mxu0 0
        %6601 = vmatpush.bf16.xpose.msra.mxu0 0
        %6602 = vmatpush.bf16.xpose.msra.mxu0 0
        %6603 = vmatpush.bf16.xpose.msra.mxu0 0
        %6604 = vmatpush.bf16.xpose.msra.mxu0 0
        %6605 = vmatpush.bf16.xpose.msra.mxu0 0
        %6606 = vmatpush.bf16.xpose.msra.mxu0 0
        %6607 = vmatpush.bf16.xpose.msra.mxu0 %v3300
        %6608 = vmatmul.bf16.gmra.mxu0 %v1829
        %v6609 = vpop.f32.mrf.mxu0
        %v6610 = vadd.f32 %v6597, %v6609
        %v6611 = vpop.f32.mrf.mxu0
        %6612 = vdwg.mxu0
        %6613 = vmatpush.bf16.xpose.msra.mxu0 0
        %6614 = vmatpush.bf16.xpose.msra.mxu0 0
        %6615 = vmatpush.bf16.xpose.msra.mxu0 0
        %6616 = vmatpush.bf16.xpose.msra.mxu0 0
        %6617 = vmatpush.bf16.xpose.msra.mxu0 0
        %6618 = vmatpush.bf16.xpose.msra.mxu0 0
        %6619 = vmatpush.bf16.xpose.msra.mxu0 0
        %6620 = vmatpush.bf16.xpose.msra.mxu0 %v3301
        %6621 = vmatmul.bf16.gmra.mxu0 %v1830
        %v6622 = vpop.f32.mrf.mxu0
        %v6623 = vadd.f32 %v6610, %v6622
        %v6624 = vpop.f32.mrf.mxu0
        %6625 = vdwg.mxu0
        %6626 = vmatpush.bf16.xpose.msra.mxu0 0
        %6627 = vmatpush.bf16.xpose.msra.mxu0 0
        %6628 = vmatpush.bf16.xpose.msra.mxu0 0
        %6629 = vmatpush.bf16.xpose.msra.mxu0 0
        %6630 = vmatpush.bf16.xpose.msra.mxu0 0
        %6631 = vmatpush.bf16.xpose.msra.mxu0 0
        %6632 = vmatpush.bf16.xpose.msra.mxu0 0
        %6633 = vmatpush.bf16.xpose.msra.mxu0 %v3302
        %6634 = vmatmul.bf16.gmra.mxu0 %v1831
        %v6635 = vpop.f32.mrf.mxu0
        %v6636 = vadd.f32 %v6623, %v6635
        %v6637 = vpop.f32.mrf.mxu0
        %6638 = vdwg.mxu0
        %6639 = vmatpush.bf16.xpose.msra.mxu0 0
        %6640 = vmatpush.bf16.xpose.msra.mxu0 0
        %6641 = vmatpush.bf16.xpose.msra.mxu0 0
        %6642 = vmatpush.bf16.xpose.msra.mxu0 0
        %6643 = vmatpush.bf16.xpose.msra.mxu0 0
        %6644 = vmatpush.bf16.xpose.msra.mxu0 0
        %6645 = vmatpush.bf16.xpose.msra.mxu0 0
        %6646 = vmatpush.bf16.xpose.msra.mxu0 %v3303
        %6647 = vmatmul.bf16.gmra.mxu0 %v1832
        %v6648 = vpop.f32.mrf.mxu0
        %v6649 = vadd.f32 %v6636, %v6648
        %v6650 = vpop.f32.mrf.mxu0
        %6651 = vdwg.mxu0
        %6652 = vmatpush.bf16.xpose.msra.mxu0 0
        %6653 = vmatpush.bf16.xpose.msra.mxu0 0
        %6654 = vmatpush.bf16.xpose.msra.mxu0 0
        %6655 = vmatpush.bf16.xpose.msra.mxu0 0
        %6656 = vmatpush.bf16.xpose.msra.mxu0 0
        %6657 = vmatpush.bf16.xpose.msra.mxu0 0
        %6658 = vmatpush.bf16.xpose.msra.mxu0 0
        %6659 = vmatpush.bf16.xpose.msra.mxu0 %v3304
        %6660 = vmatmul.bf16.gmra.mxu0 %v1833
        %v6661 = vpop.f32.mrf.mxu0
        %v6662 = vadd.f32 %v6649, %v6661
        %v6663 = vpop.f32.mrf.mxu0
        %6664 = vdwg.mxu0
        %6665 = vmatpush.bf16.xpose.msra.mxu0 0
        %6666 = vmatpush.bf16.xpose.msra.mxu0 0
        %6667 = vmatpush.bf16.xpose.msra.mxu0 0
        %6668 = vmatpush.bf16.xpose.msra.mxu0 0
        %6669 = vmatpush.bf16.xpose.msra.mxu0 0
        %6670 = vmatpush.bf16.xpose.msra.mxu0 0
        %6671 = vmatpush.bf16.xpose.msra.mxu0 0
        %6672 = vmatpush.bf16.xpose.msra.mxu0 %v3305
        %6673 = vmatmul.bf16.gmra.mxu0 %v1834
        %v6674 = vpop.f32.mrf.mxu0
        %v6675 = vadd.f32 %v6662, %v6674
        %v6676 = vpop.f32.mrf.mxu0
        %6677 = vdwg.mxu0
        %6678 = vmatpush.bf16.xpose.msra.mxu0 0
        %6679 = vmatpush.bf16.xpose.msra.mxu0 0
        %6680 = vmatpush.bf16.xpose.msra.mxu0 0
        %6681 = vmatpush.bf16.xpose.msra.mxu0 0
        %6682 = vmatpush.bf16.xpose.msra.mxu0 0
        %6683 = vmatpush.bf16.xpose.msra.mxu0 0
        %6684 = vmatpush.bf16.xpose.msra.mxu0 0
        %6685 = vmatpush.bf16.xpose.msra.mxu0 %v3306
        %6686 = vmatmul.bf16.gmra.mxu0 %v1835
        %v6687 = vpop.f32.mrf.mxu0
        %v6688 = vadd.f32 %v6675, %v6687
        %v6689 = vpop.f32.mrf.mxu0
        %6690 = vdwg.mxu0
        %6691 = vmatpush.bf16.xpose.msra.mxu0 0
        %6692 = vmatpush.bf16.xpose.msra.mxu0 0
        %6693 = vmatpush.bf16.xpose.msra.mxu0 0
        %6694 = vmatpush.bf16.xpose.msra.mxu0 0
        %6695 = vmatpush.bf16.xpose.msra.mxu0 0
        %6696 = vmatpush.bf16.xpose.msra.mxu0 0
        %6697 = vmatpush.bf16.xpose.msra.mxu0 0
        %6698 = vmatpush.bf16.xpose.msra.mxu0 %v3307
        %6699 = vmatmul.bf16.gmra.mxu0 %v1836
        %v6700 = vpop.f32.mrf.mxu0
        %v6701 = vadd.f32 %v6688, %v6700
        %v6702 = vpop.f32.mrf.mxu0
        %6703 = vdwg.mxu0
        %6704 = vmatpush.bf16.xpose.msra.mxu0 0
        %6705 = vmatpush.bf16.xpose.msra.mxu0 0
        %6706 = vmatpush.bf16.xpose.msra.mxu0 0
        %6707 = vmatpush.bf16.xpose.msra.mxu0 0
        %6708 = vmatpush.bf16.xpose.msra.mxu0 0
        %6709 = vmatpush.bf16.xpose.msra.mxu0 0
        %6710 = vmatpush.bf16.xpose.msra.mxu0 0
        %6711 = vmatpush.bf16.xpose.msra.mxu0 %v3308
        %6712 = vmatmul.bf16.gmra.mxu0 %v1837
        %v6713 = vpop.f32.mrf.mxu0
        %v6714 = vadd.f32 %v6701, %v6713
        %v6715 = vpop.f32.mrf.mxu0
        %6716 = vdwg.mxu0
        %6717 = vmatpush.bf16.xpose.msra.mxu0 0
        %6718 = vmatpush.bf16.xpose.msra.mxu0 0
        %6719 = vmatpush.bf16.xpose.msra.mxu0 0
        %6720 = vmatpush.bf16.xpose.msra.mxu0 0
        %6721 = vmatpush.bf16.xpose.msra.mxu0 0
        %6722 = vmatpush.bf16.xpose.msra.mxu0 0
        %6723 = vmatpush.bf16.xpose.msra.mxu0 0
        %6724 = vmatpush.bf16.xpose.msra.mxu0 %v3309
        %6725 = vmatmul.bf16.gmra.mxu0 %v1838
        %v6726 = vpop.f32.mrf.mxu0
        %v6727 = vadd.f32 %v6714, %v6726
        %v6728 = vpop.f32.mrf.mxu0
        %6729 = vdwg.mxu0
        %6730 = vmatpush.bf16.xpose.msra.mxu0 0
        %6731 = vmatpush.bf16.xpose.msra.mxu0 0
        %6732 = vmatpush.bf16.xpose.msra.mxu0 0
        %6733 = vmatpush.bf16.xpose.msra.mxu0 0
        %6734 = vmatpush.bf16.xpose.msra.mxu0 0
        %6735 = vmatpush.bf16.xpose.msra.mxu0 0
        %6736 = vmatpush.bf16.xpose.msra.mxu0 0
        %6737 = vmatpush.bf16.xpose.msra.mxu0 %v3310
        %6738 = vmatmul.bf16.gmra.mxu0 %v1839
        %v6739 = vpop.f32.mrf.mxu0
        %v6740 = vadd.f32 %v6727, %v6739
        %v6741 = vpop.f32.mrf.mxu0
        %6742 = vdwg.mxu0
        %6743 = vmatpush.bf16.xpose.msra.mxu0 0
        %6744 = vmatpush.bf16.xpose.msra.mxu0 0
        %6745 = vmatpush.bf16.xpose.msra.mxu0 0
        %6746 = vmatpush.bf16.xpose.msra.mxu0 0
        %6747 = vmatpush.bf16.xpose.msra.mxu0 0
        %6748 = vmatpush.bf16.xpose.msra.mxu0 0
        %6749 = vmatpush.bf16.xpose.msra.mxu0 0
        %6750 = vmatpush.bf16.xpose.msra.mxu0 %v3311
        %6751 = vmatmul.bf16.gmra.mxu0 %v1840
        %v6752 = vpop.f32.mrf.mxu0
        %v6753 = vadd.f32 %v6740, %v6752
        %v6754 = vpop.f32.mrf.mxu0
        %6755 = vdwg.mxu0
        %6756 = vmatpush.bf16.xpose.msra.mxu0 0
        %6757 = vmatpush.bf16.xpose.msra.mxu0 0
        %6758 = vmatpush.bf16.xpose.msra.mxu0 0
        %6759 = vmatpush.bf16.xpose.msra.mxu0 0
        %6760 = vmatpush.bf16.xpose.msra.mxu0 0
        %6761 = vmatpush.bf16.xpose.msra.mxu0 0
        %6762 = vmatpush.bf16.xpose.msra.mxu0 0
        %6763 = vmatpush.bf16.xpose.msra.mxu0 %v3312
        %6764 = vmatmul.bf16.gmra.mxu0 %v1841
        %v6765 = vpop.f32.mrf.mxu0
        %v6766 = vadd.f32 %v6753, %v6765
        %v6767 = vpop.f32.mrf.mxu0
        %6768 = vdwg.mxu0
        %6769 = vmatpush.bf16.xpose.msra.mxu0 0
        %6770 = vmatpush.bf16.xpose.msra.mxu0 0
        %6771 = vmatpush.bf16.xpose.msra.mxu0 0
        %6772 = vmatpush.bf16.xpose.msra.mxu0 0
        %6773 = vmatpush.bf16.xpose.msra.mxu0 0
        %6774 = vmatpush.bf16.xpose.msra.mxu0 0
        %6775 = vmatpush.bf16.xpose.msra.mxu0 0
        %6776 = vmatpush.bf16.xpose.msra.mxu0 %v3313
        %6777 = vmatmul.bf16.gmra.mxu0 %v1842
        %v6778 = vpop.f32.mrf.mxu0
        %v6779 = vadd.f32 %v6766, %v6778
        %v6780 = vpop.f32.mrf.mxu0
        %6781 = vdwg.mxu0
        %6782 = vmatpush.bf16.xpose.msra.mxu0 0
        %6783 = vmatpush.bf16.xpose.msra.mxu0 0
        %6784 = vmatpush.bf16.xpose.msra.mxu0 0
        %6785 = vmatpush.bf16.xpose.msra.mxu0 0
        %6786 = vmatpush.bf16.xpose.msra.mxu0 0
        %6787 = vmatpush.bf16.xpose.msra.mxu0 0
        %6788 = vmatpush.bf16.xpose.msra.mxu0 0
        %6789 = vmatpush.bf16.xpose.msra.mxu0 %v3314
        %6790 = vmatmul.bf16.gmra.mxu0 %v1843
        %v6791 = vpop.f32.mrf.mxu0
        %v6792 = vadd.f32 %v6779, %v6791
        %v6793 = vpop.f32.mrf.mxu0
        %6794 = vdwg.mxu0
        %6795 = vmatpush.bf16.xpose.msra.mxu0 0
        %6796 = vmatpush.bf16.xpose.msra.mxu0 0
        %6797 = vmatpush.bf16.xpose.msra.mxu0 0
        %6798 = vmatpush.bf16.xpose.msra.mxu0 0
        %6799 = vmatpush.bf16.xpose.msra.mxu0 0
        %6800 = vmatpush.bf16.xpose.msra.mxu0 0
        %6801 = vmatpush.bf16.xpose.msra.mxu0 0
        %6802 = vmatpush.bf16.xpose.msra.mxu0 %v3315
        %6803 = vmatmul.bf16.gmra.mxu0 %v1844
        %v6804 = vpop.f32.mrf.mxu0
        %v6805 = vadd.f32 %v6792, %v6804
        %v6806 = vpop.f32.mrf.mxu0
        %6807 = vdwg.mxu0
        %6808 = vmatpush.bf16.xpose.msra.mxu0 0
        %6809 = vmatpush.bf16.xpose.msra.mxu0 0
        %6810 = vmatpush.bf16.xpose.msra.mxu0 0
        %6811 = vmatpush.bf16.xpose.msra.mxu0 0
        %6812 = vmatpush.bf16.xpose.msra.mxu0 0
        %6813 = vmatpush.bf16.xpose.msra.mxu0 0
        %6814 = vmatpush.bf16.xpose.msra.mxu0 0
        %6815 = vmatpush.bf16.xpose.msra.mxu0 %v3316
        %6816 = vmatmul.bf16.gmra.mxu0 %v1845
        %v6817 = vpop.f32.mrf.mxu0
        %v6818 = vadd.f32 %v6805, %v6817
        %v6819 = vpop.f32.mrf.mxu0
        %6820 = vdwg.mxu0
        %6821 = vmatpush.bf16.xpose.msra.mxu0 0
        %6822 = vmatpush.bf16.xpose.msra.mxu0 0
        %6823 = vmatpush.bf16.xpose.msra.mxu0 0
        %6824 = vmatpush.bf16.xpose.msra.mxu0 0
        %6825 = vmatpush.bf16.xpose.msra.mxu0 0
        %6826 = vmatpush.bf16.xpose.msra.mxu0 0
        %6827 = vmatpush.bf16.xpose.msra.mxu0 0
        %6828 = vmatpush.bf16.xpose.msra.mxu0 %v3317
        %6829 = vmatmul.bf16.gmra.mxu0 %v1846
        %v6830 = vpop.f32.mrf.mxu0
        %v6831 = vadd.f32 %v6818, %v6830
        %v6832 = vpop.f32.mrf.mxu0
        %6833 = vdwg.mxu0
        %6834 = vmatpush.bf16.xpose.msra.mxu0 0
        %6835 = vmatpush.bf16.xpose.msra.mxu0 0
        %6836 = vmatpush.bf16.xpose.msra.mxu0 0
        %6837 = vmatpush.bf16.xpose.msra.mxu0 0
        %6838 = vmatpush.bf16.xpose.msra.mxu0 0
        %6839 = vmatpush.bf16.xpose.msra.mxu0 0
        %6840 = vmatpush.bf16.xpose.msra.mxu0 0
        %6841 = vmatpush.bf16.xpose.msra.mxu0 %v3318
        %6842 = vmatmul.bf16.gmra.mxu0 %v1847
        %v6843 = vpop.f32.mrf.mxu0
        %v6844 = vadd.f32 %v6831, %v6843
        %v6845 = vpop.f32.mrf.mxu0
        %6846 = vdwg.mxu0
        %6847 = vmatpush.bf16.xpose.msra.mxu0 0
        %6848 = vmatpush.bf16.xpose.msra.mxu0 0
        %6849 = vmatpush.bf16.xpose.msra.mxu0 0
        %6850 = vmatpush.bf16.xpose.msra.mxu0 0
        %6851 = vmatpush.bf16.xpose.msra.mxu0 0
        %6852 = vmatpush.bf16.xpose.msra.mxu0 0
        %6853 = vmatpush.bf16.xpose.msra.mxu0 0
        %6854 = vmatpush.bf16.xpose.msra.mxu0 %v3319
        %6855 = vmatmul.bf16.gmra.mxu0 %v1848
        %v6856 = vpop.f32.mrf.mxu0
        %v6857 = vadd.f32 %v6844, %v6856
        %v6858 = vpop.f32.mrf.mxu0
        %6859 = vdwg.mxu0
        %6860 = vmatpush.bf16.xpose.msra.mxu0 0
        %6861 = vmatpush.bf16.xpose.msra.mxu0 0
        %6862 = vmatpush.bf16.xpose.msra.mxu0 0
        %6863 = vmatpush.bf16.xpose.msra.mxu0 0
        %6864 = vmatpush.bf16.xpose.msra.mxu0 0
        %6865 = vmatpush.bf16.xpose.msra.mxu0 0
        %6866 = vmatpush.bf16.xpose.msra.mxu0 0
        %6867 = vmatpush.bf16.xpose.msra.mxu0 %v3320
        %6868 = vmatmul.bf16.gmra.mxu0 %v1849
        %v6869 = vpop.f32.mrf.mxu0
        %v6870 = vadd.f32 %v6857, %v6869
        %v6871 = vpop.f32.mrf.mxu0
        %6872 = vdwg.mxu0
        %6873 = vmatpush.bf16.xpose.msra.mxu0 0
        %6874 = vmatpush.bf16.xpose.msra.mxu0 0
        %6875 = vmatpush.bf16.xpose.msra.mxu0 0
        %6876 = vmatpush.bf16.xpose.msra.mxu0 0
        %6877 = vmatpush.bf16.xpose.msra.mxu0 0
        %6878 = vmatpush.bf16.xpose.msra.mxu0 0
        %6879 = vmatpush.bf16.xpose.msra.mxu0 0
        %6880 = vmatpush.bf16.xpose.msra.mxu0 %v3321
        %6881 = vmatmul.bf16.gmra.mxu0 %v1850
        %v6882 = vpop.f32.mrf.mxu0
        %v6883 = vadd.f32 %v6870, %v6882
        %v6884 = vpop.f32.mrf.mxu0
        %6885 = vdwg.mxu0
        %6886 = vmatpush.bf16.xpose.msra.mxu0 0
        %6887 = vmatpush.bf16.xpose.msra.mxu0 0
        %6888 = vmatpush.bf16.xpose.msra.mxu0 0
        %6889 = vmatpush.bf16.xpose.msra.mxu0 0
        %6890 = vmatpush.bf16.xpose.msra.mxu0 0
        %6891 = vmatpush.bf16.xpose.msra.mxu0 0
        %6892 = vmatpush.bf16.xpose.msra.mxu0 0
        %6893 = vmatpush.bf16.xpose.msra.mxu0 %v3322
        %6894 = vmatmul.bf16.gmra.mxu0 %v1851
        %v6895 = vpop.f32.mrf.mxu0
        %v6896 = vadd.f32 %v6883, %v6895
        %v6897 = vpop.f32.mrf.mxu0
        %6898 = vdwg.mxu0
        %6899 = vmatpush.bf16.xpose.msra.mxu0 0
        %6900 = vmatpush.bf16.xpose.msra.mxu0 0
        %6901 = vmatpush.bf16.xpose.msra.mxu0 0
        %6902 = vmatpush.bf16.xpose.msra.mxu0 0
        %6903 = vmatpush.bf16.xpose.msra.mxu0 0
        %6904 = vmatpush.bf16.xpose.msra.mxu0 0
        %6905 = vmatpush.bf16.xpose.msra.mxu0 0
        %6906 = vmatpush.bf16.xpose.msra.mxu0 %v3323
        %6907 = vmatmul.bf16.gmra.mxu0 %v1852
        %v6908 = vpop.f32.mrf.mxu0
        %v6909 = vadd.f32 %v6896, %v6908
        %v6910 = vpop.f32.mrf.mxu0
        %6911 = vdwg.mxu0
        %6912 = vmatpush.bf16.xpose.msra.mxu0 0
        %6913 = vmatpush.bf16.xpose.msra.mxu0 0
        %6914 = vmatpush.bf16.xpose.msra.mxu0 0
        %6915 = vmatpush.bf16.xpose.msra.mxu0 0
        %6916 = vmatpush.bf16.xpose.msra.mxu0 0
        %6917 = vmatpush.bf16.xpose.msra.mxu0 0
        %6918 = vmatpush.bf16.xpose.msra.mxu0 0
        %6919 = vmatpush.bf16.xpose.msra.mxu0 %v3324
        %6920 = vmatmul.bf16.gmra.mxu0 %v1853
        %v6921 = vpop.f32.mrf.mxu0
        %v6922 = vadd.f32 %v6909, %v6921
        %v6923 = vpop.f32.mrf.mxu0
        %6924 = vdwg.mxu0
        %6925 = vmatpush.bf16.xpose.msra.mxu0 0
        %6926 = vmatpush.bf16.xpose.msra.mxu0 0
        %6927 = vmatpush.bf16.xpose.msra.mxu0 0
        %6928 = vmatpush.bf16.xpose.msra.mxu0 0
        %6929 = vmatpush.bf16.xpose.msra.mxu0 0
        %6930 = vmatpush.bf16.xpose.msra.mxu0 0
        %6931 = vmatpush.bf16.xpose.msra.mxu0 0
        %6932 = vmatpush.bf16.xpose.msra.mxu0 %v3325
        %6933 = vmatmul.bf16.gmra.mxu0 %v1854
        %v6934 = vpop.f32.mrf.mxu0
        %v6935 = vadd.f32 %v6922, %v6934
        %v6936 = vpop.f32.mrf.mxu0
        %6937 = vdwg.mxu0
        %6938 = vmatpush.bf16.xpose.msra.mxu0 0
        %6939 = vmatpush.bf16.xpose.msra.mxu0 0
        %6940 = vmatpush.bf16.xpose.msra.mxu0 0
        %6941 = vmatpush.bf16.xpose.msra.mxu0 0
        %6942 = vmatpush.bf16.xpose.msra.mxu0 0
        %6943 = vmatpush.bf16.xpose.msra.mxu0 0
        %6944 = vmatpush.bf16.xpose.msra.mxu0 0
        %6945 = vmatpush.bf16.xpose.msra.mxu0 %v3326
        %6946 = vmatmul.bf16.gmra.mxu0 %v1855
        %v6947 = vpop.f32.mrf.mxu0
        %v6948 = vadd.f32 %v6935, %v6947
        %v6949 = vpop.f32.mrf.mxu0
        %6950 = vdwg.mxu0
        %6951 = vmatpush.bf16.xpose.msra.mxu0 0
        %6952 = vmatpush.bf16.xpose.msra.mxu0 0
        %6953 = vmatpush.bf16.xpose.msra.mxu0 0
        %6954 = vmatpush.bf16.xpose.msra.mxu0 0
        %6955 = vmatpush.bf16.xpose.msra.mxu0 0
        %6956 = vmatpush.bf16.xpose.msra.mxu0 0
        %6957 = vmatpush.bf16.xpose.msra.mxu0 0
        %6958 = vmatpush.bf16.xpose.msra.mxu0 %v3327
        %6959 = vmatmul.bf16.gmra.mxu0 %v1856
        %v6960 = vpop.f32.mrf.mxu0
        %v6961 = vadd.f32 %v6948, %v6960
        %v6962 = vpop.f32.mrf.mxu0
        %6963 = vdwg.mxu0
        %6964 = vmatpush.bf16.xpose.msra.mxu0 0
        %6965 = vmatpush.bf16.xpose.msra.mxu0 0
        %6966 = vmatpush.bf16.xpose.msra.mxu0 0
        %6967 = vmatpush.bf16.xpose.msra.mxu0 0
        %6968 = vmatpush.bf16.xpose.msra.mxu0 0
        %6969 = vmatpush.bf16.xpose.msra.mxu0 0
        %6970 = vmatpush.bf16.xpose.msra.mxu0 0
        %6971 = vmatpush.bf16.xpose.msra.mxu0 %v3328
        %6972 = vmatmul.bf16.gmra.mxu0 %v1857
        %v6973 = vpop.f32.mrf.mxu0
        %v6974 = vadd.f32 %v6961, %v6973
        %v6975 = vpop.f32.mrf.mxu0
        %6976 = vdwg.mxu0
        %6977 = vmatpush.bf16.xpose.msra.mxu0 0
        %6978 = vmatpush.bf16.xpose.msra.mxu0 0
        %6979 = vmatpush.bf16.xpose.msra.mxu0 0
        %6980 = vmatpush.bf16.xpose.msra.mxu0 0
        %6981 = vmatpush.bf16.xpose.msra.mxu0 0
        %6982 = vmatpush.bf16.xpose.msra.mxu0 0
        %6983 = vmatpush.bf16.xpose.msra.mxu0 0
        %6984 = vmatpush.bf16.xpose.msra.mxu0 %v3329
        %6985 = vmatmul.bf16.gmra.mxu0 %v1858
        %v6986 = vpop.f32.mrf.mxu0
        %v6987 = vadd.f32 %v6974, %v6986
        %v6988 = vpop.f32.mrf.mxu0
        %6989 = vdwg.mxu0
        %6990 = vmatpush.bf16.xpose.msra.mxu0 0
        %6991 = vmatpush.bf16.xpose.msra.mxu0 0
        %6992 = vmatpush.bf16.xpose.msra.mxu0 0
        %6993 = vmatpush.bf16.xpose.msra.mxu0 0
        %6994 = vmatpush.bf16.xpose.msra.mxu0 0
        %6995 = vmatpush.bf16.xpose.msra.mxu0 0
        %6996 = vmatpush.bf16.xpose.msra.mxu0 0
        %6997 = vmatpush.bf16.xpose.msra.mxu0 %v3330
        %6998 = vmatmul.bf16.gmra.mxu0 %v1859
        %v6999 = vpop.f32.mrf.mxu0
        %v7000 = vadd.f32 %v6987, %v6999
        %v7001 = vpop.f32.mrf.mxu0
        %7002 = vdwg.mxu0
        %7003 = vmatpush.bf16.xpose.msra.mxu0 0
        %7004 = vmatpush.bf16.xpose.msra.mxu0 0
        %7005 = vmatpush.bf16.xpose.msra.mxu0 0
        %7006 = vmatpush.bf16.xpose.msra.mxu0 0
        %7007 = vmatpush.bf16.xpose.msra.mxu0 0
        %7008 = vmatpush.bf16.xpose.msra.mxu0 0
        %7009 = vmatpush.bf16.xpose.msra.mxu0 0
        %7010 = vmatpush.bf16.xpose.msra.mxu0 %v3331
        %7011 = vmatmul.bf16.gmra.mxu0 %v1860
        %v7012 = vpop.f32.mrf.mxu0
        %v7013 = vadd.f32 %v7000, %v7012
        %v7014 = vpop.f32.mrf.mxu0
        %7015 = vdwg.mxu0
        %7016 = vmatpush.bf16.xpose.msra.mxu0 0
        %7017 = vmatpush.bf16.xpose.msra.mxu0 0
        %7018 = vmatpush.bf16.xpose.msra.mxu0 0
        %7019 = vmatpush.bf16.xpose.msra.mxu0 0
        %7020 = vmatpush.bf16.xpose.msra.mxu0 0
        %7021 = vmatpush.bf16.xpose.msra.mxu0 0
        %7022 = vmatpush.bf16.xpose.msra.mxu0 0
        %7023 = vmatpush.bf16.xpose.msra.mxu0 %v3332
        %7024 = vmatmul.bf16.gmra.mxu0 %v1861
        %v7025 = vpop.f32.mrf.mxu0
        %v7026 = vadd.f32 %v7013, %v7025
        %v7027 = vpop.f32.mrf.mxu0
        %7028 = vdwg.mxu0
        %7029 = vmatpush.bf16.xpose.msra.mxu0 0
        %7030 = vmatpush.bf16.xpose.msra.mxu0 0
        %7031 = vmatpush.bf16.xpose.msra.mxu0 0
        %7032 = vmatpush.bf16.xpose.msra.mxu0 0
        %7033 = vmatpush.bf16.xpose.msra.mxu0 0
        %7034 = vmatpush.bf16.xpose.msra.mxu0 0
        %7035 = vmatpush.bf16.xpose.msra.mxu0 0
        %7036 = vmatpush.bf16.xpose.msra.mxu0 %v3333
        %7037 = vmatmul.bf16.gmra.mxu0 %v1862
        %v7038 = vpop.f32.mrf.mxu0
        %v7039 = vadd.f32 %v7026, %v7038
        %v7040 = vpop.f32.mrf.mxu0
        %7041 = vdwg.mxu0
        %7042 = vmatpush.bf16.xpose.msra.mxu0 0
        %7043 = vmatpush.bf16.xpose.msra.mxu0 0
        %7044 = vmatpush.bf16.xpose.msra.mxu0 0
        %7045 = vmatpush.bf16.xpose.msra.mxu0 0
        %7046 = vmatpush.bf16.xpose.msra.mxu0 0
        %7047 = vmatpush.bf16.xpose.msra.mxu0 0
        %7048 = vmatpush.bf16.xpose.msra.mxu0 0
        %7049 = vmatpush.bf16.xpose.msra.mxu0 %v3334
        %7050 = vmatmul.bf16.gmra.mxu0 %v1863
        %v7051 = vpop.f32.mrf.mxu0
        %v7052 = vadd.f32 %v7039, %v7051
        %v7053 = vpop.f32.mrf.mxu0
        %7054 = vdwg.mxu0
        %7055 = vmatpush.bf16.xpose.msra.mxu0 0
        %7056 = vmatpush.bf16.xpose.msra.mxu0 0
        %7057 = vmatpush.bf16.xpose.msra.mxu0 0
        %7058 = vmatpush.bf16.xpose.msra.mxu0 0
        %7059 = vmatpush.bf16.xpose.msra.mxu0 0
        %7060 = vmatpush.bf16.xpose.msra.mxu0 0
        %7061 = vmatpush.bf16.xpose.msra.mxu0 0
        %7062 = vmatpush.bf16.xpose.msra.mxu0 %v3335
        %7063 = vmatmul.bf16.gmra.mxu0 %v1864
        %v7064 = vpop.f32.mrf.mxu0
        %v7065 = vadd.f32 %v7052, %v7064
        %v7066 = vpop.f32.mrf.mxu0
        %7067 = vdwg.mxu0
        %7068 = vmatpush.bf16.xpose.msra.mxu0 0
        %7069 = vmatpush.bf16.xpose.msra.mxu0 0
        %7070 = vmatpush.bf16.xpose.msra.mxu0 0
        %7071 = vmatpush.bf16.xpose.msra.mxu0 0
        %7072 = vmatpush.bf16.xpose.msra.mxu0 0
        %7073 = vmatpush.bf16.xpose.msra.mxu0 0
        %7074 = vmatpush.bf16.xpose.msra.mxu0 0
        %7075 = vmatpush.bf16.xpose.msra.mxu0 %v3336
        %7076 = vmatmul.bf16.gmra.mxu0 %v1865
        %v7077 = vpop.f32.mrf.mxu0
        %v7078 = vadd.f32 %v7065, %v7077
        %v7079 = vpop.f32.mrf.mxu0
        %7080 = vdwg.mxu0
        %7081 = vmatpush.bf16.xpose.msra.mxu0 0
        %7082 = vmatpush.bf16.xpose.msra.mxu0 0
        %7083 = vmatpush.bf16.xpose.msra.mxu0 0
        %7084 = vmatpush.bf16.xpose.msra.mxu0 0
        %7085 = vmatpush.bf16.xpose.msra.mxu0 0
        %7086 = vmatpush.bf16.xpose.msra.mxu0 0
        %7087 = vmatpush.bf16.xpose.msra.mxu0 0
        %7088 = vmatpush.bf16.xpose.msra.mxu0 %v3337
        %7089 = vmatmul.bf16.gmra.mxu0 %v1866
        %v7090 = vpop.f32.mrf.mxu0
        %v7091 = vadd.f32 %v7078, %v7090
        %v7092 = vpop.f32.mrf.mxu0
        %7093 = vdwg.mxu0
        %7094 = vmatpush.bf16.xpose.msra.mxu0 0
        %7095 = vmatpush.bf16.xpose.msra.mxu0 0
        %7096 = vmatpush.bf16.xpose.msra.mxu0 0
        %7097 = vmatpush.bf16.xpose.msra.mxu0 0
        %7098 = vmatpush.bf16.xpose.msra.mxu0 0
        %7099 = vmatpush.bf16.xpose.msra.mxu0 0
        %7100 = vmatpush.bf16.xpose.msra.mxu0 0
        %7101 = vmatpush.bf16.xpose.msra.mxu0 %v3338
        %7102 = vmatmul.bf16.gmra.mxu0 %v1867
        %v7103 = vpop.f32.mrf.mxu0
        %v7104 = vadd.f32 %v7091, %v7103
        %v7105 = vpop.f32.mrf.mxu0
        %7106 = vdwg.mxu0
        %7107 = vmatpush.bf16.xpose.msra.mxu0 0
        %7108 = vmatpush.bf16.xpose.msra.mxu0 0
        %7109 = vmatpush.bf16.xpose.msra.mxu0 0
        %7110 = vmatpush.bf16.xpose.msra.mxu0 0
        %7111 = vmatpush.bf16.xpose.msra.mxu0 0
        %7112 = vmatpush.bf16.xpose.msra.mxu0 0
        %7113 = vmatpush.bf16.xpose.msra.mxu0 0
        %7114 = vmatpush.bf16.xpose.msra.mxu0 %v3339
        %7115 = vmatmul.bf16.gmra.mxu0 %v1868
        %v7116 = vpop.f32.mrf.mxu0
        %v7117 = vadd.f32 %v7104, %v7116
        %v7118 = vpop.f32.mrf.mxu0
        %7119 = vdwg.mxu0
        %7120 = vmatpush.bf16.xpose.msra.mxu0 0
        %7121 = vmatpush.bf16.xpose.msra.mxu0 0
        %7122 = vmatpush.bf16.xpose.msra.mxu0 0
        %7123 = vmatpush.bf16.xpose.msra.mxu0 0
        %7124 = vmatpush.bf16.xpose.msra.mxu0 0
        %7125 = vmatpush.bf16.xpose.msra.mxu0 0
        %7126 = vmatpush.bf16.xpose.msra.mxu0 0
        %7127 = vmatpush.bf16.xpose.msra.mxu0 %v3340
        %7128 = vmatmul.bf16.gmra.mxu0 %v1869
        %v7129 = vpop.f32.mrf.mxu0
        %v7130 = vadd.f32 %v7117, %v7129
        %v7131 = vpop.f32.mrf.mxu0
        %7132 = vdwg.mxu0
        %7133 = vmatpush.bf16.xpose.msra.mxu0 0
        %7134 = vmatpush.bf16.xpose.msra.mxu0 0
        %7135 = vmatpush.bf16.xpose.msra.mxu0 0
        %7136 = vmatpush.bf16.xpose.msra.mxu0 0
        %7137 = vmatpush.bf16.xpose.msra.mxu0 0
        %7138 = vmatpush.bf16.xpose.msra.mxu0 0
        %7139 = vmatpush.bf16.xpose.msra.mxu0 0
        %7140 = vmatpush.bf16.xpose.msra.mxu0 %v3341
        %7141 = vmatmul.bf16.gmra.mxu0 %v1870
        %v7142 = vpop.f32.mrf.mxu0
        %v7143 = vadd.f32 %v7130, %v7142
        %v7144 = vpop.f32.mrf.mxu0
        %7145 = vdwg.mxu0
        %7146 = vmatpush.bf16.xpose.msra.mxu0 0
        %7147 = vmatpush.bf16.xpose.msra.mxu0 0
        %7148 = vmatpush.bf16.xpose.msra.mxu0 0
        %7149 = vmatpush.bf16.xpose.msra.mxu0 0
        %7150 = vmatpush.bf16.xpose.msra.mxu0 0
        %7151 = vmatpush.bf16.xpose.msra.mxu0 0
        %7152 = vmatpush.bf16.xpose.msra.mxu0 0
        %7153 = vmatpush.bf16.xpose.msra.mxu0 %v3342
        %7154 = vmatmul.bf16.gmra.mxu0 %v1871
        %v7155 = vpop.f32.mrf.mxu0
        %v7156 = vadd.f32 %v7143, %v7155
        %v7157 = vpop.f32.mrf.mxu0
        %7158 = vdwg.mxu0
        %7159 = vmatpush.bf16.xpose.msra.mxu0 0
        %7160 = vmatpush.bf16.xpose.msra.mxu0 0
        %7161 = vmatpush.bf16.xpose.msra.mxu0 0
        %7162 = vmatpush.bf16.xpose.msra.mxu0 0
        %7163 = vmatpush.bf16.xpose.msra.mxu0 0
        %7164 = vmatpush.bf16.xpose.msra.mxu0 0
        %7165 = vmatpush.bf16.xpose.msra.mxu0 0
        %7166 = vmatpush.bf16.xpose.msra.mxu0 %v3343
        %7167 = vmatmul.bf16.gmra.mxu0 %v1872
        %v7168 = vpop.f32.mrf.mxu0
        %v7169 = vadd.f32 %v7156, %v7168
        %v7170 = vpop.f32.mrf.mxu0
        %7171 = vdwg.mxu0
        %7172 = vmatpush.bf16.xpose.msra.mxu0 0
        %7173 = vmatpush.bf16.xpose.msra.mxu0 0
        %7174 = vmatpush.bf16.xpose.msra.mxu0 0
        %7175 = vmatpush.bf16.xpose.msra.mxu0 0
        %7176 = vmatpush.bf16.xpose.msra.mxu0 0
        %7177 = vmatpush.bf16.xpose.msra.mxu0 0
        %7178 = vmatpush.bf16.xpose.msra.mxu0 0
        %7179 = vmatpush.bf16.xpose.msra.mxu0 %v3344
        %7180 = vmatmul.bf16.gmra.mxu0 %v1873
        %v7181 = vpop.f32.mrf.mxu0
        %v7182 = vadd.f32 %v7169, %v7181
        %v7183 = vpop.f32.mrf.mxu0
        %7184 = vdwg.mxu0
        %7185 = vmatpush.bf16.xpose.msra.mxu0 0
        %7186 = vmatpush.bf16.xpose.msra.mxu0 0
        %7187 = vmatpush.bf16.xpose.msra.mxu0 0
        %7188 = vmatpush.bf16.xpose.msra.mxu0 0
        %7189 = vmatpush.bf16.xpose.msra.mxu0 0
        %7190 = vmatpush.bf16.xpose.msra.mxu0 0
        %7191 = vmatpush.bf16.xpose.msra.mxu0 0
        %7192 = vmatpush.bf16.xpose.msra.mxu0 %v3345
        %7193 = vmatmul.bf16.gmra.mxu0 %v1874
        %v7194 = vpop.f32.mrf.mxu0
        %v7195 = vadd.f32 %v7182, %v7194
        %v7196 = vpop.f32.mrf.mxu0
        %7197 = vdwg.mxu0
        %7198 = vmatpush.bf16.xpose.msra.mxu0 0
        %7199 = vmatpush.bf16.xpose.msra.mxu0 0
        %7200 = vmatpush.bf16.xpose.msra.mxu0 0
        %7201 = vmatpush.bf16.xpose.msra.mxu0 0
        %7202 = vmatpush.bf16.xpose.msra.mxu0 0
        %7203 = vmatpush.bf16.xpose.msra.mxu0 0
        %7204 = vmatpush.bf16.xpose.msra.mxu0 0
        %7205 = vmatpush.bf16.xpose.msra.mxu0 %v3346
        %7206 = vmatmul.bf16.gmra.mxu0 %v1875
        %v7207 = vpop.f32.mrf.mxu0
        %v7208 = vadd.f32 %v7195, %v7207
        %v7209 = vpop.f32.mrf.mxu0
        %7210 = vdwg.mxu0
        %7211 = vmatpush.bf16.xpose.msra.mxu0 0
        %7212 = vmatpush.bf16.xpose.msra.mxu0 0
        %7213 = vmatpush.bf16.xpose.msra.mxu0 0
        %7214 = vmatpush.bf16.xpose.msra.mxu0 0
        %7215 = vmatpush.bf16.xpose.msra.mxu0 0
        %7216 = vmatpush.bf16.xpose.msra.mxu0 0
        %7217 = vmatpush.bf16.xpose.msra.mxu0 0
        %7218 = vmatpush.bf16.xpose.msra.mxu0 %v3347
        %7219 = vmatmul.bf16.gmra.mxu0 %v1876
        %v7220 = vpop.f32.mrf.mxu0
        %v7221 = vadd.f32 %v7208, %v7220
        %v7222 = vpop.f32.mrf.mxu0
        %7223 = vdwg.mxu0
        %7224 = vmatpush.bf16.xpose.msra.mxu0 0
        %7225 = vmatpush.bf16.xpose.msra.mxu0 0
        %7226 = vmatpush.bf16.xpose.msra.mxu0 0
        %7227 = vmatpush.bf16.xpose.msra.mxu0 0
        %7228 = vmatpush.bf16.xpose.msra.mxu0 0
        %7229 = vmatpush.bf16.xpose.msra.mxu0 0
        %7230 = vmatpush.bf16.xpose.msra.mxu0 0
        %7231 = vmatpush.bf16.xpose.msra.mxu0 %v3348
        %7232 = vmatmul.bf16.gmra.mxu0 %v1877
        %v7233 = vpop.f32.mrf.mxu0
        %v7234 = vadd.f32 %v7221, %v7233
        %v7235 = vpop.f32.mrf.mxu0
        %7236 = vdwg.mxu0
        %7237 = vmatpush.bf16.xpose.msra.mxu0 0
        %7238 = vmatpush.bf16.xpose.msra.mxu0 0
        %7239 = vmatpush.bf16.xpose.msra.mxu0 0
        %7240 = vmatpush.bf16.xpose.msra.mxu0 0
        %7241 = vmatpush.bf16.xpose.msra.mxu0 0
        %7242 = vmatpush.bf16.xpose.msra.mxu0 0
        %7243 = vmatpush.bf16.xpose.msra.mxu0 0
        %7244 = vmatpush.bf16.xpose.msra.mxu0 %v3349
        %7245 = vmatmul.bf16.gmra.mxu0 %v1878
        %v7246 = vpop.f32.mrf.mxu0
        %v7247 = vadd.f32 %v7234, %v7246
        %v7248 = vpop.f32.mrf.mxu0
        %7249 = vdwg.mxu0
        %7250 = vmatpush.bf16.xpose.msra.mxu0 0
        %7251 = vmatpush.bf16.xpose.msra.mxu0 0
        %7252 = vmatpush.bf16.xpose.msra.mxu0 0
        %7253 = vmatpush.bf16.xpose.msra.mxu0 0
        %7254 = vmatpush.bf16.xpose.msra.mxu0 0
        %7255 = vmatpush.bf16.xpose.msra.mxu0 0
        %7256 = vmatpush.bf16.xpose.msra.mxu0 0
        %7257 = vmatpush.bf16.xpose.msra.mxu0 %v3350
        %7258 = vmatmul.bf16.gmra.mxu0 %v1879
        %v7259 = vpop.f32.mrf.mxu0
        %v7260 = vadd.f32 %v7247, %v7259
        %v7261 = vpop.f32.mrf.mxu0
        %7262 = vdwg.mxu0
        %7263 = vmatpush.bf16.xpose.msra.mxu0 0
        %7264 = vmatpush.bf16.xpose.msra.mxu0 0
        %7265 = vmatpush.bf16.xpose.msra.mxu0 0
        %7266 = vmatpush.bf16.xpose.msra.mxu0 0
        %7267 = vmatpush.bf16.xpose.msra.mxu0 0
        %7268 = vmatpush.bf16.xpose.msra.mxu0 0
        %7269 = vmatpush.bf16.xpose.msra.mxu0 0
        %7270 = vmatpush.bf16.xpose.msra.mxu0 %v3351
        %7271 = vmatmul.bf16.gmra.mxu0 %v1880
        %v7272 = vpop.f32.mrf.mxu0
        %v7273 = vadd.f32 %v7260, %v7272
        %v7274 = vpop.f32.mrf.mxu0
        %7275 = vdwg.mxu0
        %7276 = vmatpush.bf16.xpose.msra.mxu0 0
        %7277 = vmatpush.bf16.xpose.msra.mxu0 0
        %7278 = vmatpush.bf16.xpose.msra.mxu0 0
        %7279 = vmatpush.bf16.xpose.msra.mxu0 0
        %7280 = vmatpush.bf16.xpose.msra.mxu0 0
        %7281 = vmatpush.bf16.xpose.msra.mxu0 0
        %7282 = vmatpush.bf16.xpose.msra.mxu0 0
        %7283 = vmatpush.bf16.xpose.msra.mxu0 %v3352
        %7284 = vmatmul.bf16.gmra.mxu0 %v1881
        %v7285 = vpop.f32.mrf.mxu0
        %v7286 = vadd.f32 %v7273, %v7285
        %v7287 = vpop.f32.mrf.mxu0
        %7288 = vdwg.mxu0
        %7289 = vmatpush.bf16.xpose.msra.mxu0 0
        %7290 = vmatpush.bf16.xpose.msra.mxu0 0
        %7291 = vmatpush.bf16.xpose.msra.mxu0 0
        %7292 = vmatpush.bf16.xpose.msra.mxu0 0
        %7293 = vmatpush.bf16.xpose.msra.mxu0 0
        %7294 = vmatpush.bf16.xpose.msra.mxu0 0
        %7295 = vmatpush.bf16.xpose.msra.mxu0 0
        %7296 = vmatpush.bf16.xpose.msra.mxu0 %v3353
        %7297 = vmatmul.bf16.gmra.mxu0 %v1882
        %v7298 = vpop.f32.mrf.mxu0
        %v7299 = vadd.f32 %v7286, %v7298
        %v7300 = vpop.f32.mrf.mxu0
        %7301 = vdwg.mxu0
        %7302 = vmatpush.bf16.xpose.msra.mxu0 0
        %7303 = vmatpush.bf16.xpose.msra.mxu0 0
        %7304 = vmatpush.bf16.xpose.msra.mxu0 0
        %7305 = vmatpush.bf16.xpose.msra.mxu0 0
        %7306 = vmatpush.bf16.xpose.msra.mxu0 0
        %7307 = vmatpush.bf16.xpose.msra.mxu0 0
        %7308 = vmatpush.bf16.xpose.msra.mxu0 0
        %7309 = vmatpush.bf16.xpose.msra.mxu0 %v3354
        %7310 = vmatmul.bf16.gmra.mxu0 %v1883
        %v7311 = vpop.f32.mrf.mxu0
        %v7312 = vadd.f32 %v7299, %v7311
        %v7313 = vpop.f32.mrf.mxu0
        %7314 = vdwg.mxu0
        %7315 = vmatpush.bf16.xpose.msra.mxu0 0
        %7316 = vmatpush.bf16.xpose.msra.mxu0 0
        %7317 = vmatpush.bf16.xpose.msra.mxu0 0
        %7318 = vmatpush.bf16.xpose.msra.mxu0 0
        %7319 = vmatpush.bf16.xpose.msra.mxu0 0
        %7320 = vmatpush.bf16.xpose.msra.mxu0 0
        %7321 = vmatpush.bf16.xpose.msra.mxu0 0
        %7322 = vmatpush.bf16.xpose.msra.mxu0 %v3355
        %7323 = vmatmul.bf16.gmra.mxu0 %v1884
        %v7324 = vpop.f32.mrf.mxu0
        %v7325 = vadd.f32 %v7312, %v7324
        %v7326 = vpop.f32.mrf.mxu0
        %7327 = vdwg.mxu0
        %7328 = vmatpush.bf16.xpose.msra.mxu0 0
        %7329 = vmatpush.bf16.xpose.msra.mxu0 0
        %7330 = vmatpush.bf16.xpose.msra.mxu0 0
        %7331 = vmatpush.bf16.xpose.msra.mxu0 0
        %7332 = vmatpush.bf16.xpose.msra.mxu0 0
        %7333 = vmatpush.bf16.xpose.msra.mxu0 0
        %7334 = vmatpush.bf16.xpose.msra.mxu0 0
        %7335 = vmatpush.bf16.xpose.msra.mxu0 %v3356
        %7336 = vmatmul.bf16.gmra.mxu0 %v1885
        %v7337 = vpop.f32.mrf.mxu0
        %v7338 = vadd.f32 %v7325, %v7337
        %v7339 = vpop.f32.mrf.mxu0
        %7340 = vdwg.mxu0
        %7341 = vmatpush.bf16.xpose.msra.mxu0 0
        %7342 = vmatpush.bf16.xpose.msra.mxu0 0
        %7343 = vmatpush.bf16.xpose.msra.mxu0 0
        %7344 = vmatpush.bf16.xpose.msra.mxu0 0
        %7345 = vmatpush.bf16.xpose.msra.mxu0 0
        %7346 = vmatpush.bf16.xpose.msra.mxu0 0
        %7347 = vmatpush.bf16.xpose.msra.mxu0 0
        %7348 = vmatpush.bf16.xpose.msra.mxu0 %v3357
        %7349 = vmatmul.bf16.gmra.mxu0 %v1886
        %v7350 = vpop.f32.mrf.mxu0
        %v7351 = vadd.f32 %v7338, %v7350
        %v7352 = vpop.f32.mrf.mxu0
        %7353 = vdwg.mxu0
        %7354 = vmatpush.bf16.xpose.msra.mxu0 0
        %7355 = vmatpush.bf16.xpose.msra.mxu0 0
        %7356 = vmatpush.bf16.xpose.msra.mxu0 0
        %7357 = vmatpush.bf16.xpose.msra.mxu0 0
        %7358 = vmatpush.bf16.xpose.msra.mxu0 0
        %7359 = vmatpush.bf16.xpose.msra.mxu0 0
        %7360 = vmatpush.bf16.xpose.msra.mxu0 0
        %7361 = vmatpush.bf16.xpose.msra.mxu0 %v3358
        %7362 = vmatmul.bf16.gmra.mxu0 %v1887
        %v7363 = vpop.f32.mrf.mxu0
        %v7364 = vadd.f32 %v7351, %v7363
        %v7365 = vpop.f32.mrf.mxu0
        %7366 = vdwg.mxu0
        %7367 = vmatpush.bf16.xpose.msra.mxu0 0
        %7368 = vmatpush.bf16.xpose.msra.mxu0 0
        %7369 = vmatpush.bf16.xpose.msra.mxu0 0
        %7370 = vmatpush.bf16.xpose.msra.mxu0 0
        %7371 = vmatpush.bf16.xpose.msra.mxu0 0
        %7372 = vmatpush.bf16.xpose.msra.mxu0 0
        %7373 = vmatpush.bf16.xpose.msra.mxu0 0
        %7374 = vmatpush.bf16.xpose.msra.mxu0 %v3359
        %7375 = vmatmul.bf16.gmra.mxu0 %v1888
        %v7376 = vpop.f32.mrf.mxu0
        %v7377 = vadd.f32 %v7364, %v7376
        %v7378 = vpop.f32.mrf.mxu0
        %7379 = vdwg.mxu0
        %7380 = vmatpush.bf16.xpose.msra.mxu0 0
        %7381 = vmatpush.bf16.xpose.msra.mxu0 0
        %7382 = vmatpush.bf16.xpose.msra.mxu0 0
        %7383 = vmatpush.bf16.xpose.msra.mxu0 0
        %7384 = vmatpush.bf16.xpose.msra.mxu0 0
        %7385 = vmatpush.bf16.xpose.msra.mxu0 0
        %7386 = vmatpush.bf16.xpose.msra.mxu0 0
        %7387 = vmatpush.bf16.xpose.msra.mxu0 %v3360
        %7388 = vmatmul.bf16.gmra.mxu0 %v1889
        %v7389 = vpop.f32.mrf.mxu0
        %v7390 = vadd.f32 %v7377, %v7389
        %v7391 = vpop.f32.mrf.mxu0
        %7392 = vdwg.mxu0
        %7393 = vmatpush.bf16.xpose.msra.mxu0 0
        %7394 = vmatpush.bf16.xpose.msra.mxu0 0
        %7395 = vmatpush.bf16.xpose.msra.mxu0 0
        %7396 = vmatpush.bf16.xpose.msra.mxu0 0
        %7397 = vmatpush.bf16.xpose.msra.mxu0 0
        %7398 = vmatpush.bf16.xpose.msra.mxu0 0
        %7399 = vmatpush.bf16.xpose.msra.mxu0 0
        %7400 = vmatpush.bf16.xpose.msra.mxu0 %v3361
        %7401 = vmatmul.bf16.gmra.mxu0 %v1890
        %v7402 = vpop.f32.mrf.mxu0
        %v7403 = vadd.f32 %v7390, %v7402
        %v7404 = vpop.f32.mrf.mxu0
        %7405 = vdwg.mxu0
        %7406 = vmatpush.bf16.xpose.msra.mxu0 0
        %7407 = vmatpush.bf16.xpose.msra.mxu0 0
        %7408 = vmatpush.bf16.xpose.msra.mxu0 0
        %7409 = vmatpush.bf16.xpose.msra.mxu0 0
        %7410 = vmatpush.bf16.xpose.msra.mxu0 0
        %7411 = vmatpush.bf16.xpose.msra.mxu0 0
        %7412 = vmatpush.bf16.xpose.msra.mxu0 0
        %7413 = vmatpush.bf16.xpose.msra.mxu0 %v3362
        %7414 = vmatmul.bf16.gmra.mxu0 %v1891
        %v7415 = vpop.f32.mrf.mxu0
        %v7416 = vadd.f32 %v7403, %v7415
        %v7417 = vpop.f32.mrf.mxu0
        %7418 = vdwg.mxu0
        %7419 = vmatpush.bf16.xpose.msra.mxu0 0
        %7420 = vmatpush.bf16.xpose.msra.mxu0 0
        %7421 = vmatpush.bf16.xpose.msra.mxu0 0
        %7422 = vmatpush.bf16.xpose.msra.mxu0 0
        %7423 = vmatpush.bf16.xpose.msra.mxu0 0
        %7424 = vmatpush.bf16.xpose.msra.mxu0 0
        %7425 = vmatpush.bf16.xpose.msra.mxu0 0
        %7426 = vmatpush.bf16.xpose.msra.mxu0 %v3363
        %7427 = vmatmul.bf16.gmra.mxu0 %v1892
        %v7428 = vpop.f32.mrf.mxu0
        %v7429 = vadd.f32 %v7416, %v7428
        %v7430 = vpop.f32.mrf.mxu0
        %7431 = vdwg.mxu0
        %7432 = vmatpush.bf16.xpose.msra.mxu0 0
        %7433 = vmatpush.bf16.xpose.msra.mxu0 0
        %7434 = vmatpush.bf16.xpose.msra.mxu0 0
        %7435 = vmatpush.bf16.xpose.msra.mxu0 0
        %7436 = vmatpush.bf16.xpose.msra.mxu0 0
        %7437 = vmatpush.bf16.xpose.msra.mxu0 0
        %7438 = vmatpush.bf16.xpose.msra.mxu0 0
        %7439 = vmatpush.bf16.xpose.msra.mxu0 %v3364
        %7440 = vmatmul.bf16.gmra.mxu0 %v1893
        %v7441 = vpop.f32.mrf.mxu0
        %v7442 = vadd.f32 %v7429, %v7441
        %v7443 = vpop.f32.mrf.mxu0
        %7444 = vdwg.mxu0
        %7445 = vmatpush.bf16.xpose.msra.mxu0 0
        %7446 = vmatpush.bf16.xpose.msra.mxu0 0
        %7447 = vmatpush.bf16.xpose.msra.mxu0 0
        %7448 = vmatpush.bf16.xpose.msra.mxu0 0
        %7449 = vmatpush.bf16.xpose.msra.mxu0 0
        %7450 = vmatpush.bf16.xpose.msra.mxu0 0
        %7451 = vmatpush.bf16.xpose.msra.mxu0 0
        %7452 = vmatpush.bf16.xpose.msra.mxu0 %v3365
        %7453 = vmatmul.bf16.gmra.mxu0 %v1894
        %v7454 = vpop.f32.mrf.mxu0
        %v7455 = vadd.f32 %v7442, %v7454
        %v7456 = vpop.f32.mrf.mxu0
        %7457 = vdwg.mxu0
        %7458 = vmatpush.bf16.xpose.msra.mxu0 0
        %7459 = vmatpush.bf16.xpose.msra.mxu0 0
        %7460 = vmatpush.bf16.xpose.msra.mxu0 0
        %7461 = vmatpush.bf16.xpose.msra.mxu0 0
        %7462 = vmatpush.bf16.xpose.msra.mxu0 0
        %7463 = vmatpush.bf16.xpose.msra.mxu0 0
        %7464 = vmatpush.bf16.xpose.msra.mxu0 0
        %7465 = vmatpush.bf16.xpose.msra.mxu0 %v3366
        %7466 = vmatmul.bf16.gmra.mxu0 %v1895
        %v7467 = vpop.f32.mrf.mxu0
        %v7468 = vadd.f32 %v7455, %v7467
        %v7469 = vpop.f32.mrf.mxu0
        %7470 = vdwg.mxu0
        %7471 = vmatpush.bf16.xpose.msra.mxu0 0
        %7472 = vmatpush.bf16.xpose.msra.mxu0 0
        %7473 = vmatpush.bf16.xpose.msra.mxu0 0
        %7474 = vmatpush.bf16.xpose.msra.mxu0 0
        %7475 = vmatpush.bf16.xpose.msra.mxu0 0
        %7476 = vmatpush.bf16.xpose.msra.mxu0 0
        %7477 = vmatpush.bf16.xpose.msra.mxu0 0
        %7478 = vmatpush.bf16.xpose.msra.mxu0 %v3367
        %7479 = vmatmul.bf16.gmra.mxu0 %v1896
        %v7480 = vpop.f32.mrf.mxu0
        %v7481 = vadd.f32 %v7468, %v7480
        %v7482 = vpop.f32.mrf.mxu0
        %7483 = vdwg.mxu0
        %v7484 = vadd.f32 %v1897, %v7481
        %vm7485 = vcmask 74752
        %7486 = vst.msk [vmem:[%s226] sm:$0x3] %vm7485, %v7484
        %s7487 = sand.u32 %s102, 1
        %s7488 = scalar_lea.sflag [#allocation4], %s7487
        %s7489 = sand.u32 %s102, 1
        %s7490 = smul.addr %s7489, 2
        %s7491 = scalar_lea.vmem [#allocation7], %s7490
        // Predicated region
        $region41: #{tpu_custom_call.1} parent=27 // pred_check
          %p7492 = pneg %p112
        $region42: #{tpu_custom_call.1} parent=27 // pred_check_branch
          %7494 = sbr.rel (%p7492) target = $region44
        $region43: #{tpu_custom_call.1} parent=27 // pred_region
          %7496 = vsyncadd %s7488, 0
          %s7497 = smul.addr %s26, 2
          %s7498 = scalar_lea.hbm %s2, %s7497
          %s7500 = sshll.u32 %s7491, 4
          %s7501 = int_to_ptr.vmem [resolvable:$true] %s7500
          %s7502 = sshll.u32 %s7498, 4
          %s7503 = int_to_ptr.hbm [resolvable:$true] %s7502
          %7505 = dma.vmem_to_hbm [thread:$0]  %s7501, 32, %s7503, %s7488
        $region44: #{tpu_custom_call.1} parent=27 // pred_fallthru
          _
      $region28: #{tpu_custom_call.1} parent=5 // pred_fallthru
        _
      %p7506 = scmp.le.s32.totalorder 2, %s17
      // Predicated region
      $region45: #{tpu_custom_call.1} parent=5 // pred_check
        %p7507 = pneg %p7506
      $region46: #{tpu_custom_call.1} parent=5 // pred_check_branch
        %7509 = sbr.rel (%p7507) target = $region48
      $region47: #{tpu_custom_call.1} parent=5 // pred_region
        %s7510 = ssub.s32 %s17, 2
        // Predicated region
        $region49: #{tpu_custom_call.1} parent=47 // pred_check
          %p7511 = pneg %p118
        $region50: #{tpu_custom_call.1} parent=47 // pred_check_branch
          %7513 = sbr.rel (%p7511) target = $region52
        $region51: #{tpu_custom_call.1} parent=47 // pred_region
          %s7514 = sand.u32 %s103, 1
          %s7515 = scalar_lea.sflag [#allocation4], %s7514
          %s7516 = sand.u32 %s103, 1
          %s7517 = smul.addr %s7516, 2
          %s7518 = scalar_lea.vmem [#allocation7], %s7517
          %7520 = dma.done %s7515, 32
        $region52: #{tpu_custom_call.1} parent=47 // pred_fallthru
          _
      $region48: #{tpu_custom_call.1} parent=5 // pred_fallthru
        _
    $region6: #{tpu_custom_call.1} parent=1 // loop_footer
      %s21 = sadd.s32 1, %s17
    $region7: #{tpu_custom_call.1} parent=1 // loop_footer_branch
      %16 = sbr.rel target = $region3
    $region8: #{tpu_custom_call.1} parent=1 // loop_exit
      _
    %7521 = vsyncpa [#allocation3], 1
    %s7522 = scalar_lea.sflag [#allocation3], 1
    %7523 = vsyncpa %s7522, 1
    %7524 = vsyncpa [#allocation6], 1
    %s7525 = scalar_lea.sflag [#allocation6], 1
    %7526 = vsyncpa %s7525, 1
    %7527 = vsyncpa [#allocation4], 1
    %s7528 = scalar_lea.sflag [#allocation4], 1
    %7529 = vsyncpa %s7528, 1

</llo_original>
